<compile_context>
chip_gen: v7x
topology: tpu7x:2x2x1
jax: 0.10.0
libtpu: 0.0.40
codegen_flags: <defaults>
</compile_context>

<pallas_src>
import jax
import jax.numpy as jnp
from jax.experimental import pallas as pl
from jax.experimental.pallas import tpu as pltpu

L = 128            # feature_num implied by Linear(16 * 32, ...): 128 -> 64 -> 32
C = 16             # conv channels
NUM_CLASSES = 6
OUT_PAD = 128      # lane-dense output slab width (classes live in cols [:6])


def dnn_kernel(x_ref, a1_ref, b1_ref, a2_ref, b2_ref, a3_ref, b3_ref,
               a4_ref, b4_ref, a5_ref, b5_ref, out_ref):
    f32 = jnp.float32
    bf16 = jnp.bfloat16

    def dense(x, w_ref, b_ref):
        # bf16 x bf16 -> f32 accumulation: one MXU pass per tile.
        return jnp.dot(x.astype(bf16), w_ref[...],
                       preferred_element_type=f32) + b_ref[...]

    x = x_ref[...]                                      # (TB, 128) bf16

    # conv1 + bias folded into a Toeplitz matmul: cols [0:1024) are the even
    # output positions, [1024:2048) the odd ones (feat = c*64 + m per half).
    h1 = dense(x, a1_ref, b1_ref)                       # (TB, 2048) f32
    half1 = C * (L // 2)                                # 1024
    # ReLU fused into MaxPool1d(2): max(relu(a), relu(b)) == max(max(a,b), 0).
    p1 = jnp.maximum(jnp.maximum(h1[:, :half1], h1[:, half1:]), 0.0)

    # conv2 + bias, same even/odd trick, ReLU fused into the pool.
    h2 = dense(p1, a2_ref, b2_ref)                      # (TB, 1024)
    half2 = C * (L // 4)                                # 512
    p2 = jnp.maximum(jnp.maximum(h2[:, :half2], h2[:, half2:]), 0.0)
    # p2 column order co*32 + l == PyTorch x.view(B, -1) flatten order.

    # fc1 -> ReLU -> fc2 -> ReLU -> fc3(padded to 128 cols) -> Sigmoid.
    y = jnp.maximum(dense(p2, a3_ref, b3_ref), 0.0)     # (TB, 256)
    y = jnp.maximum(dense(y, a4_ref, b4_ref), 0.0)      # (TB, 128)
    z = dense(y, a5_ref, b5_ref)                        # (TB, 128)
    out_ref[...] = jax.nn.sigmoid(z).astype(out_ref.dtype)


def _round_up(n, m):
    return (n + m - 1) // m * m


def _conv_pool_matrix(w, lin, parity):
    """Matrix taking a (ci*lin + i) feature slab to the Conv1d(k=3, pad=1)
    outputs at positions 2*m + parity, laid out as columns (co*(lin//2) + m).
    Zero padding at the sequence edges is encoded by the absent rows."""
    cout, cin, k = w.shape
    i = jnp.arange(lin)[:, None]
    m = jnp.arange(lin // 2)[None, :]
    sels = jnp.stack([(i == 2 * m + parity + t - 1).astype(jnp.float32)
                      for t in range(k)])                        # (k, lin, lin//2)
    blk = jnp.einsum('oct,tim->ciom', w, sels, precision='highest')
    return blk.reshape(cin * lin, cout * (lin // 2))


def _pack_params(params):
    """One-time plain-JAX parameter plumbing (outside the kernel).
    Matmul operands are stored in bf16 (halves resident VMEM and per-step DMA);
    biases stay f32 and are added to the f32 accumulators."""
    W1, b1, W2, b2, W3, b3, W4, b4, W5, b5 = [jnp.asarray(p, jnp.float32) for p in params]
    bf = jnp.bfloat16
    a1 = jnp.concatenate([_conv_pool_matrix(W1, L, 0),
                          _conv_pool_matrix(W1, L, 1)], axis=1)       # (128, 2048)
    a2 = jnp.concatenate([_conv_pool_matrix(W2, L // 2, 0),
                          _conv_pool_matrix(W2, L // 2, 1)], axis=1)  # (1024, 1024)
    b1e = jnp.tile(jnp.repeat(b1, L // 2), 2).reshape(1, 2 * C * (L // 2))   # (1, 2048)
    b2e = jnp.tile(jnp.repeat(b2, L // 4), 2).reshape(1, 2 * C * (L // 4))   # (1, 1024)
    # Last layer padded to a lane-dense 128-wide slab (avoids masked vst on cols=6).
    a5 = jnp.zeros((128, OUT_PAD), jnp.float32).at[:, :NUM_CLASSES].set(W5.T)
    b5p = jnp.zeros((1, OUT_PAD), jnp.float32).at[:, :NUM_CLASSES].set(b5)
    return (a1.astype(bf), b1e,                 # (128, 2048), (1, 2048)
            a2.astype(bf), b2e,                 # (1024, 1024), (1, 1024)
            W3.T.astype(bf), b3.reshape(1, -1),  # (512, 256),  (1, 256)
            W4.T.astype(bf), b4.reshape(1, -1),  # (256, 128),  (1, 128)
            a5.astype(bf), b5p)                 # (128, 128),  (1, 128)


def _choose_tb(B, block_b):
    """Batch tile: as big as requested, 8/128-aligned, but split into >=2 grid
    steps for large batches so dimension_semantics=("parallel",) can shard the
    work across both TensorCores on v7x."""
    b8 = _round_up(B, 8)
    tb = min(block_b, b8)
    if b8 >= 512 and _round_up(b8, tb) // tb < 2:
        tb = min(tb, _round_up((b8 + 1) // 2, 128))
    return tb


def _build_call(TB, B_pad, packed_shapes, single_buffer_weights):
    def resident(shape):
        kwargs = {}
        if single_buffer_weights:
            # Weights are grid-resident (constant index map, fetched once):
            # single-buffer them instead of the default double-buffering.
            kwargs["pipeline_mode"] = pl.Buffered(1)
        return pl.BlockSpec(shape, lambda b, _n=len(shape): (0,) * _n, **kwargs)

    weight_specs = [resident(s) for s in packed_shapes]
    return pl.pallas_call(
        dnn_kernel,
        out_shape=jax.ShapeDtypeStruct((B_pad, OUT_PAD), jnp.float32),
        grid=(B_pad // TB,),
        in_specs=[pl.BlockSpec((TB, L), lambda b: (b, 0))] + weight_specs,
        out_specs=pl.BlockSpec((TB, OUT_PAD), lambda b: (b, 0)),
        compiler_params=pltpu.CompilerParams(
            dimension_semantics=("parallel",),          # batch blocks are independent
            vmem_limit_bytes=48 * 1024 * 1024,
        ),
    )


def dnn_forward(x, params, *, block_b=512):
    """x: (B, 1, L) float32, NCL just like the PyTorch module."""
    B = x.shape[0]
    assert x.shape == (B, 1, L)

    TB = _choose_tb(B, block_b)
    B_pad = _round_up(B, TB)

    x_k = x[:, 0, :].astype(jnp.bfloat16)               # (B, L): batch->sublanes, seq->lanes
    if B_pad != B:
        x_k = jnp.pad(x_k, ((0, B_pad - B), (0, 0)))

    packed = _pack_params(params)
    shapes = [p.shape for p in packed]

    try:
        out = _build_call(TB, B_pad, shapes, True)(x_k, *packed)
    except Exception:
        # Fallback if pl.Buffered(1) is not supported by this jax build.
        out = _build_call(TB, B_pad, shapes, False)(x_k, *packed)
    return out[:B, :NUM_CLASSES]


def dnn_reference(x, params):
    """Plain-JAX (f32) replica of the PyTorch forward (NCL), for verification."""
    W1, b1, W2, b2, W3, b3, W4, b4, W5, b5 = params
    B = x.shape[0]
    xp = jnp.pad(x, ((0, 0), (0, 0), (1, 1)))
    h = jnp.zeros((B, 16, L), jnp.float32)
    for k in range(3):
        h = h + W1[:, 0, k][None, :, None] * xp[:, 0, k:k + L][:, None, :]
    h = jax.nn.relu(h + b1[None, :, None])
    h = jnp.max(h.reshape(B, 16, L // 2, 2), axis=-1)
    hp = jnp.pad(h, ((0, 0), (0, 0), (1, 1)))
    h2 = jnp.zeros((B, 16, L // 2), jnp.float32)
    for k in range(3):
        h2 = h2 + jnp.einsum('oi,bil->bol', W2[:, :, k], hp[:, :, k:k + L // 2],
                             precision='highest')
    h2 = jax.nn.relu(h2 + b2[None, :, None])
    h2 = jnp.max(h2.reshape(B, 16, L // 4, 2), axis=-1)
    flat = h2.reshape(B, 16 * (L // 4))
    y = jax.nn.relu(jnp.dot(flat, W3.T, precision='highest') + b3)
    y = jax.nn.relu(jnp.dot(y, W4.T, precision='highest') + b4)
    return jax.nn.sigmoid(jnp.dot(y, W5.T, precision='highest') + b5)


def init_params(key):
    ks = jax.random.split(key, 10)
    s = 0.1
    W1 = jax.random.normal(ks[0], (16, 1, 3), jnp.float32) * s
    b1 = jax.random.normal(ks[1], (16,), jnp.float32) * s
    W2 = jax.random.normal(ks[2], (16, 16, 3), jnp.float32) * s
    b2 = jax.random.normal(ks[3], (16,), jnp.float32) * s
    W3 = jax.random.normal(ks[4], (256, 16 * 32), jnp.float32) * s
    b3 = jax.random.normal(ks[5], (256,), jnp.float32) * s
    W4 = jax.random.normal(ks[6], (128, 256), jnp.float32) * s
    b4 = jax.random.normal(ks[7], (128,), jnp.float32) * s
    W5 = jax.random.normal(ks[8], (NUM_CLASSES, 128), jnp.float32) * s
    b5 = jax.random.normal(ks[9], (NUM_CLASSES,), jnp.float32) * s
    return (W1, b1, W2, b2, W3, b3, W4, b4, W5, b5)


if __name__ == "__main__":
    key = jax.random.PRNGKey(0)
    pkey, xkey = jax.random.split(key)
    params = init_params(pkey)

    B = 2
    x = jax.random.normal(xkey, (B, 1, L), jnp.float32)   # PyTorch NCL input

    out = jax.block_until_ready(dnn_forward(x, params))
    ref = jax.block_until_ready(dnn_reference(x, params))

    assert out.shape == (B, NUM_CLASSES)
    # bf16 MXU operands vs f32 reference: post-sigmoid outputs agree to ~1e-3;
    # 2e-2 gives comfortable margin while still catching structural bugs.
    max_err = float(jnp.max(jnp.abs(out - ref)))
    if max_err > 2e-2:
        raise AssertionError(f"kernel/reference mismatch: max abs err {max_err}")
    print("KERNEL_OK")
</pallas_src>

<mosaic_0001>
module attributes {stable_mosaic.version = 11 : i64} {
  func.func @dnn_kernel(%arg0: i32, %arg1: memref<8x128xbf16, #tpu.memory_space<vmem>>, %arg2: memref<128x2048xbf16, #tpu.memory_space<vmem>>, %arg3: memref<1x2048xf32, #tpu.memory_space<vmem>>, %arg4: memref<1024x1024xbf16, #tpu.memory_space<vmem>>, %arg5: memref<1x1024xf32, #tpu.memory_space<vmem>>, %arg6: memref<512x256xbf16, #tpu.memory_space<vmem>>, %arg7: memref<1x256xf32, #tpu.memory_space<vmem>>, %arg8: memref<256x128xbf16, #tpu.memory_space<vmem>>, %arg9: memref<1x128xf32, #tpu.memory_space<vmem>>, %arg10: memref<128x128xbf16, #tpu.memory_space<vmem>>, %arg11: memref<1x128xf32, #tpu.memory_space<vmem>>, %arg12: memref<8x128xf32, #tpu.memory_space<vmem>>) attributes {dimension_semantics = [#tpu.dimension_semantics<parallel>], iteration_bounds = array<i64: 1>, scalar_prefetch = 0 : i64, scratch_operands = 0 : i64, tpu.core_type = #tpu.core_type<tc>, window_params = [{transform_indices = @transform_0, window_bounds = array<i64: 8, 128>}, {pipeline_mode = #tpu.pipeline_mode<synchronous>, transform_indices = @transform_1, window_bounds = array<i64: 128, 2048>}, {pipeline_mode = #tpu.pipeline_mode<synchronous>, transform_indices = @transform_2, window_bounds = array<i64: 1, 2048>}, {pipeline_mode = #tpu.pipeline_mode<synchronous>, transform_indices = @transform_3, window_bounds = array<i64: 1024, 1024>}, {pipeline_mode = #tpu.pipeline_mode<synchronous>, transform_indices = @transform_4, window_bounds = array<i64: 1, 1024>}, {pipeline_mode = #tpu.pipeline_mode<synchronous>, transform_indices = @transform_5, window_bounds = array<i64: 512, 256>}, {pipeline_mode = #tpu.pipeline_mode<synchronous>, transform_indices = @transform_6, window_bounds = array<i64: 1, 256>}, {pipeline_mode = #tpu.pipeline_mode<synchronous>, transform_indices = @transform_7, window_bounds = array<i64: 256, 128>}, {pipeline_mode = #tpu.pipeline_mode<synchronous>, transform_indices = @transform_8, window_bounds = array<i64: 1, 128>}, {pipeline_mode = #tpu.pipeline_mode<synchronous>, transform_indices = @transform_9, window_bounds = array<i64: 128, 128>}, {pipeline_mode = #tpu.pipeline_mode<synchronous>, transform_indices = @transform_10, window_bounds = array<i64: 1, 128>}, {transform_indices = @transform_11, window_bounds = array<i64: 8, 128>}]} {
    %c0 = arith.constant 0 : index
    %c0_0 = arith.constant 0 : index
    %0 = vector.load %arg1[%c0, %c0_0] : memref<8x128xbf16, #tpu.memory_space<vmem>>, vector<8x128xbf16>
    %c0_1 = arith.constant 0 : index
    %c0_2 = arith.constant 0 : index
    %1 = vector.load %arg2[%c0_1, %c0_2] : memref<128x2048xbf16, #tpu.memory_space<vmem>>, vector<128x2048xbf16>
    %cst = arith.constant dense<0.000000e+00> : vector<8x2048xf32>
    %2 = tpu.matmul %0, %1, %cst {dimension_numbers = #tpu.dot_dimension_numbers<[1], [0], [0], [1], [0, 0, 1, 1], [], []>} : vector<8x128xbf16>, vector<128x2048xbf16>, vector<8x2048xf32> -> vector<8x2048xf32>
    %c0_3 = arith.constant 0 : index
    %c0_4 = arith.constant 0 : index
    %3 = vector.load %arg3[%c0_3, %c0_4] : memref<1x2048xf32, #tpu.memory_space<vmem>>, vector<1x2048xf32>
    %4 = vector.broadcast %3 : vector<1x2048xf32> to vector<8x2048xf32>
    %5 = arith.addf %2, %4 : vector<8x2048xf32>
    %6 = vector.extract_strided_slice %5 {offsets = [0, 0], sizes = [8, 1024], strides = [1, 1]} : vector<8x2048xf32> to vector<8x1024xf32>
    %7 = vector.extract_strided_slice %5 {offsets = [0, 1024], sizes = [8, 1024], strides = [1, 1]} : vector<8x2048xf32> to vector<8x1024xf32>
    %8 = arith.maximumf %6, %7 : vector<8x1024xf32>
    %cst_5 = arith.constant 0.000000e+00 : f32
    %9 = vector.broadcast %cst_5 : f32 to vector<8x1024xf32>
    %10 = arith.maximumf %8, %9 : vector<8x1024xf32>
    %11 = arith.truncf %10 : vector<8x1024xf32> to vector<8x1024xbf16>
    %c0_6 = arith.constant 0 : index
    %c0_7 = arith.constant 0 : index
    %12 = vector.load %arg4[%c0_6, %c0_7] : memref<1024x1024xbf16, #tpu.memory_space<vmem>>, vector<1024x1024xbf16>
    %cst_8 = arith.constant dense<0.000000e+00> : vector<8x1024xf32>
    %13 = tpu.matmul %11, %12, %cst_8 {dimension_numbers = #tpu.dot_dimension_numbers<[1], [0], [0], [1], [0, 0, 1, 1], [], []>} : vector<8x1024xbf16>, vector<1024x1024xbf16>, vector<8x1024xf32> -> vector<8x1024xf32>
    %c0_9 = arith.constant 0 : index
    %c0_10 = arith.constant 0 : index
    %14 = vector.load %arg5[%c0_9, %c0_10] : memref<1x1024xf32, #tpu.memory_space<vmem>>, vector<1x1024xf32>
    %15 = vector.broadcast %14 : vector<1x1024xf32> to vector<8x1024xf32>
    %16 = arith.addf %13, %15 : vector<8x1024xf32>
    %17 = vector.extract_strided_slice %16 {offsets = [0, 0], sizes = [8, 512], strides = [1, 1]} : vector<8x1024xf32> to vector<8x512xf32>
    %18 = vector.extract_strided_slice %16 {offsets = [0, 512], sizes = [8, 512], strides = [1, 1]} : vector<8x1024xf32> to vector<8x512xf32>
    %19 = arith.maximumf %17, %18 : vector<8x512xf32>
    %cst_11 = arith.constant 0.000000e+00 : f32
    %20 = vector.broadcast %cst_11 : f32 to vector<8x512xf32>
    %21 = arith.maximumf %19, %20 : vector<8x512xf32>
    %22 = arith.truncf %21 : vector<8x512xf32> to vector<8x512xbf16>
    %c0_12 = arith.constant 0 : index
    %c0_13 = arith.constant 0 : index
    %23 = vector.load %arg6[%c0_12, %c0_13] : memref<512x256xbf16, #tpu.memory_space<vmem>>, vector<512x256xbf16>
    %cst_14 = arith.constant dense<0.000000e+00> : vector<8x256xf32>
    %24 = tpu.matmul %22, %23, %cst_14 {dimension_numbers = #tpu.dot_dimension_numbers<[1], [0], [0], [1], [0, 0, 1, 1], [], []>} : vector<8x512xbf16>, vector<512x256xbf16>, vector<8x256xf32> -> vector<8x256xf32>
    %c0_15 = arith.constant 0 : index
    %c0_16 = arith.constant 0 : index
    %25 = vector.load %arg7[%c0_15, %c0_16] : memref<1x256xf32, #tpu.memory_space<vmem>>, vector<1x256xf32>
    %26 = vector.broadcast %25 : vector<1x256xf32> to vector<8x256xf32>
    %27 = arith.addf %24, %26 : vector<8x256xf32>
    %cst_17 = arith.constant 0.000000e+00 : f32
    %28 = vector.broadcast %cst_17 : f32 to vector<8x256xf32>
    %29 = arith.maximumf %27, %28 : vector<8x256xf32>
    %30 = arith.truncf %29 : vector<8x256xf32> to vector<8x256xbf16>
    %c0_18 = arith.constant 0 : index
    %c0_19 = arith.constant 0 : index
    %31 = vector.load %arg8[%c0_18, %c0_19] : memref<256x128xbf16, #tpu.memory_space<vmem>>, vector<256x128xbf16>
    %cst_20 = arith.constant dense<0.000000e+00> : vector<8x128xf32>
    %32 = tpu.matmul %30, %31, %cst_20 {dimension_numbers = #tpu.dot_dimension_numbers<[1], [0], [0], [1], [0, 0, 1, 1], [], []>} : vector<8x256xbf16>, vector<256x128xbf16>, vector<8x128xf32> -> vector<8x128xf32>
    %c0_21 = arith.constant 0 : index
    %c0_22 = arith.constant 0 : index
    %33 = vector.load %arg9[%c0_21, %c0_22] : memref<1x128xf32, #tpu.memory_space<vmem>>, vector<1x128xf32>
    %34 = vector.broadcast %33 : vector<1x128xf32> to vector<8x128xf32>
    %35 = arith.addf %32, %34 : vector<8x128xf32>
    %cst_23 = arith.constant 0.000000e+00 : f32
    %36 = vector.broadcast %cst_23 : f32 to vector<8x128xf32>
    %37 = arith.maximumf %35, %36 : vector<8x128xf32>
    %38 = arith.truncf %37 : vector<8x128xf32> to vector<8x128xbf16>
    %c0_24 = arith.constant 0 : index
    %c0_25 = arith.constant 0 : index
    %39 = vector.load %arg10[%c0_24, %c0_25] : memref<128x128xbf16, #tpu.memory_space<vmem>>, vector<128x128xbf16>
    %cst_26 = arith.constant dense<0.000000e+00> : vector<8x128xf32>
    %40 = tpu.matmul %38, %39, %cst_26 {dimension_numbers = #tpu.dot_dimension_numbers<[1], [0], [0], [1], [0, 0, 1, 1], [], []>} : vector<8x128xbf16>, vector<128x128xbf16>, vector<8x128xf32> -> vector<8x128xf32>
    %c0_27 = arith.constant 0 : index
    %c0_28 = arith.constant 0 : index
    %41 = vector.load %arg11[%c0_27, %c0_28] : memref<1x128xf32, #tpu.memory_space<vmem>>, vector<1x128xf32>
    %42 = vector.broadcast %41 : vector<1x128xf32> to vector<8x128xf32>
    %43 = arith.addf %40, %42 : vector<8x128xf32>
    %44 = arith.negf %43 : vector<8x128xf32>
    %45 = math.exp %44 : vector<8x128xf32>
    %cst_29 = arith.constant 1.000000e+00 : f32
    %46 = vector.broadcast %cst_29 : f32 to vector<8x128xf32>
    %47 = arith.addf %46, %45 : vector<8x128xf32>
    %48 = arith.divf %46, %47 : vector<8x128xf32>
    %c0_30 = arith.constant 0 : index
    %c0_31 = arith.constant 0 : index
    %49 = vector.load %arg12[%c0_30, %c0_31] : memref<8x128xf32, #tpu.memory_space<vmem>>, vector<8x128xf32>
    tpu.vector_store %arg12[%c0_30, %c0_31], %48 {strides = array<i32>} : memref<8x128xf32, #tpu.memory_space<vmem>>, vector<8x128xf32>,
    return
  }
  func.func @transform_0(%arg0: i32) -> (i32, i32) {
    %c0_i32 = arith.constant 0 : i32
    %c0_i32_0 = arith.constant 0 : i32
    return %arg0, %c0_i32 : i32, i32
  }
  func.func @transform_1(%arg0: i32) -> (i32, i32) {
    %c0_i32 = arith.constant 0 : i32
    %c0_i32_0 = arith.constant 0 : i32
    %c0_i32_1 = arith.constant 0 : i32
    return %c0_i32, %c0_i32_0 : i32, i32
  }
  func.func @transform_2(%arg0: i32) -> (i32, i32) {
    %c0_i32 = arith.constant 0 : i32
    %c0_i32_0 = arith.constant 0 : i32
    %c0_i32_1 = arith.constant 0 : i32
    return %c0_i32, %c0_i32_0 : i32, i32
  }
  func.func @transform_3(%arg0: i32) -> (i32, i32) {
    %c0_i32 = arith.constant 0 : i32
    %c0_i32_0 = arith.constant 0 : i32
    %c0_i32_1 = arith.constant 0 : i32
    return %c0_i32, %c0_i32_0 : i32, i32
  }
  func.func @transform_4(%arg0: i32) -> (i32, i32) {
    %c0_i32 = arith.constant 0 : i32
    %c0_i32_0 = arith.constant 0 : i32
    %c0_i32_1 = arith.constant 0 : i32
    return %c0_i32, %c0_i32_0 : i32, i32
  }
  func.func @transform_5(%arg0: i32) -> (i32, i32) {
    %c0_i32 = arith.constant 0 : i32
    %c0_i32_0 = arith.constant 0 : i32
    %c0_i32_1 = arith.constant 0 : i32
    return %c0_i32, %c0_i32_0 : i32, i32
  }
  func.func @transform_6(%arg0: i32) -> (i32, i32) {
    %c0_i32 = arith.constant 0 : i32
    %c0_i32_0 = arith.constant 0 : i32
    %c0_i32_1 = arith.constant 0 : i32
    return %c0_i32, %c0_i32_0 : i32, i32
  }
  func.func @transform_7(%arg0: i32) -> (i32, i32) {
    %c0_i32 = arith.constant 0 : i32
    %c0_i32_0 = arith.constant 0 : i32
    %c0_i32_1 = arith.constant 0 : i32
    return %c0_i32, %c0_i32_0 : i32, i32
  }
  func.func @transform_8(%arg0: i32) -> (i32, i32) {
    %c0_i32 = arith.constant 0 : i32
    %c0_i32_0 = arith.constant 0 : i32
    %c0_i32_1 = arith.constant 0 : i32
    return %c0_i32, %c0_i32_0 : i32, i32
  }
  func.func @transform_9(%arg0: i32) -> (i32, i32) {
    %c0_i32 = arith.constant 0 : i32
    %c0_i32_0 = arith.constant 0 : i32
    %c0_i32_1 = arith.constant 0 : i32
    return %c0_i32, %c0_i32_0 : i32, i32
  }
  func.func @transform_10(%arg0: i32) -> (i32, i32) {
    %c0_i32 = arith.constant 0 : i32
    %c0_i32_0 = arith.constant 0 : i32
    %c0_i32_1 = arith.constant 0 : i32
    return %c0_i32, %c0_i32_0 : i32, i32
  }
  func.func @transform_11(%arg0: i32) -> (i32, i32) {
    %c0_i32 = arith.constant 0 : i32
    %c0_i32_0 = arith.constant 0 : i32
    return %arg0, %c0_i32 : i32, i32
  }
}

module attributes {stable_mosaic.version = 11 : i64} {
  func.func @dnn_kernel(%arg0: i32, %arg1: memref<8x128xbf16, #tpu.memory_space<vmem>>, %arg2: memref<128x2048xbf16, #tpu.memory_space<vmem>>, %arg3: memref<1x2048xf32, #tpu.memory_space<vmem>>, %arg4: memref<1024x1024xbf16, #tpu.memory_space<vmem>>, %arg5: memref<1x1024xf32, #tpu.memory_space<vmem>>, %arg6: memref<512x256xbf16, #tpu.memory_space<vmem>>, %arg7: memref<1x256xf32, #tpu.memory_space<vmem>>, %arg8: memref<256x128xbf16, #tpu.memory_space<vmem>>, %arg9: memref<1x128xf32, #tpu.memory_space<vmem>>, %arg10: memref<128x128xbf16, #tpu.memory_space<vmem>>, %arg11: memref<1x128xf32, #tpu.memory_space<vmem>>, %arg12: memref<8x128xf32, #tpu.memory_space<vmem>>) attributes {dimension_semantics = [#tpu.dimension_semantics<parallel>], iteration_bounds = array<i64: 1>, scalar_prefetch = 0 : i64, scratch_operands = 0 : i64, tpu.core_type = #tpu.core_type<tc>, window_params = [{transform_indices = @transform_0, window_bounds = array<i64: 8, 128>}, {pipeline_mode = #tpu.pipeline_mode<synchronous>, transform_indices = @transform_1, window_bounds = array<i64: 128, 2048>}, {pipeline_mode = #tpu.pipeline_mode<synchronous>, transform_indices = @transform_2, window_bounds = array<i64: 1, 2048>}, {pipeline_mode = #tpu.pipeline_mode<synchronous>, transform_indices = @transform_3, window_bounds = array<i64: 1024, 1024>}, {pipeline_mode = #tpu.pipeline_mode<synchronous>, transform_indices = @transform_4, window_bounds = array<i64: 1, 1024>}, {pipeline_mode = #tpu.pipeline_mode<synchronous>, transform_indices = @transform_5, window_bounds = array<i64: 512, 256>}, {pipeline_mode = #tpu.pipeline_mode<synchronous>, transform_indices = @transform_6, window_bounds = array<i64: 1, 256>}, {pipeline_mode = #tpu.pipeline_mode<synchronous>, transform_indices = @transform_7, window_bounds = array<i64: 256, 128>}, {pipeline_mode = #tpu.pipeline_mode<synchronous>, transform_indices = @transform_8, window_bounds = array<i64: 1, 128>}, {pipeline_mode = #tpu.pipeline_mode<synchronous>, transform_indices = @transform_9, window_bounds = array<i64: 128, 128>}, {pipeline_mode = #tpu.pipeline_mode<synchronous>, transform_indices = @transform_10, window_bounds = array<i64: 1, 128>}, {transform_indices = @transform_11, window_bounds = array<i64: 8, 128>}]} {
    %c0 = arith.constant 0 : index
    %c0_0 = arith.constant 0 : index
    %0 = vector.load %arg1[%c0, %c0_0] : memref<8x128xbf16, #tpu.memory_space<vmem>>, vector<8x128xbf16>
    %c0_1 = arith.constant 0 : index
    %c0_2 = arith.constant 0 : index
    %1 = vector.load %arg2[%c0_1, %c0_2] : memref<128x2048xbf16, #tpu.memory_space<vmem>>, vector<128x2048xbf16>
    %cst = arith.constant dense<0.000000e+00> : vector<8x2048xf32>
    %2 = tpu.matmul %0, %1, %cst {dimension_numbers = #tpu.dot_dimension_numbers<[1], [0], [0], [1], [0, 0, 1, 1], [], []>} : vector<8x128xbf16>, vector<128x2048xbf16>, vector<8x2048xf32> -> vector<8x2048xf32>
    %c0_3 = arith.constant 0 : index
    %c0_4 = arith.constant 0 : index
    %3 = vector.load %arg3[%c0_3, %c0_4] : memref<1x2048xf32, #tpu.memory_space<vmem>>, vector<1x2048xf32>
    %4 = vector.broadcast %3 : vector<1x2048xf32> to vector<8x2048xf32>
    %5 = arith.addf %2, %4 : vector<8x2048xf32>
    %6 = vector.extract_strided_slice %5 {offsets = [0, 0], sizes = [8, 1024], strides = [1, 1]} : vector<8x2048xf32> to vector<8x1024xf32>
    %7 = vector.extract_strided_slice %5 {offsets = [0, 1024], sizes = [8, 1024], strides = [1, 1]} : vector<8x2048xf32> to vector<8x1024xf32>
    %8 = arith.maximumf %6, %7 : vector<8x1024xf32>
    %cst_5 = arith.constant 0.000000e+00 : f32
    %9 = vector.broadcast %cst_5 : f32 to vector<8x1024xf32>
    %10 = arith.maximumf %8, %9 : vector<8x1024xf32>
    %11 = arith.truncf %10 : vector<8x1024xf32> to vector<8x1024xbf16>
    %c0_6 = arith.constant 0 : index
    %c0_7 = arith.constant 0 : index
    %12 = vector.load %arg4[%c0_6, %c0_7] : memref<1024x1024xbf16, #tpu.memory_space<vmem>>, vector<1024x1024xbf16>
    %cst_8 = arith.constant dense<0.000000e+00> : vector<8x1024xf32>
    %13 = tpu.matmul %11, %12, %cst_8 {dimension_numbers = #tpu.dot_dimension_numbers<[1], [0], [0], [1], [0, 0, 1, 1], [], []>} : vector<8x1024xbf16>, vector<1024x1024xbf16>, vector<8x1024xf32> -> vector<8x1024xf32>
    %c0_9 = arith.constant 0 : index
    %c0_10 = arith.constant 0 : index
    %14 = vector.load %arg5[%c0_9, %c0_10] : memref<1x1024xf32, #tpu.memory_space<vmem>>, vector<1x1024xf32>
    %15 = vector.broadcast %14 : vector<1x1024xf32> to vector<8x1024xf32>
    %16 = arith.addf %13, %15 : vector<8x1024xf32>
    %17 = vector.extract_strided_slice %16 {offsets = [0, 0], sizes = [8, 512], strides = [1, 1]} : vector<8x1024xf32> to vector<8x512xf32>
    %18 = vector.extract_strided_slice %16 {offsets = [0, 512], sizes = [8, 512], strides = [1, 1]} : vector<8x1024xf32> to vector<8x512xf32>
    %19 = arith.maximumf %17, %18 : vector<8x512xf32>
    %cst_11 = arith.constant 0.000000e+00 : f32
    %20 = vector.broadcast %cst_11 : f32 to vector<8x512xf32>
    %21 = arith.maximumf %19, %20 : vector<8x512xf32>
    %22 = arith.truncf %21 : vector<8x512xf32> to vector<8x512xbf16>
    %c0_12 = arith.constant 0 : index
    %c0_13 = arith.constant 0 : index
    %23 = vector.load %arg6[%c0_12, %c0_13] : memref<512x256xbf16, #tpu.memory_space<vmem>>, vector<512x256xbf16>
    %cst_14 = arith.constant dense<0.000000e+00> : vector<8x256xf32>
    %24 = tpu.matmul %22, %23, %cst_14 {dimension_numbers = #tpu.dot_dimension_numbers<[1], [0], [0], [1], [0, 0, 1, 1], [], []>} : vector<8x512xbf16>, vector<512x256xbf16>, vector<8x256xf32> -> vector<8x256xf32>
    %c0_15 = arith.constant 0 : index
    %c0_16 = arith.constant 0 : index
    %25 = vector.load %arg7[%c0_15, %c0_16] : memref<1x256xf32, #tpu.memory_space<vmem>>, vector<1x256xf32>
    %26 = vector.broadcast %25 : vector<1x256xf32> to vector<8x256xf32>
    %27 = arith.addf %24, %26 : vector<8x256xf32>
    %cst_17 = arith.constant 0.000000e+00 : f32
    %28 = vector.broadcast %cst_17 : f32 to vector<8x256xf32>
    %29 = arith.maximumf %27, %28 : vector<8x256xf32>
    %30 = arith.truncf %29 : vector<8x256xf32> to vector<8x256xbf16>
    %c0_18 = arith.constant 0 : index
    %c0_19 = arith.constant 0 : index
    %31 = vector.load %arg8[%c0_18, %c0_19] : memref<256x128xbf16, #tpu.memory_space<vmem>>, vector<256x128xbf16>
    %cst_20 = arith.constant dense<0.000000e+00> : vector<8x128xf32>
    %32 = tpu.matmul %30, %31, %cst_20 {dimension_numbers = #tpu.dot_dimension_numbers<[1], [0], [0], [1], [0, 0, 1, 1], [], []>} : vector<8x256xbf16>, vector<256x128xbf16>, vector<8x128xf32> -> vector<8x128xf32>
    %c0_21 = arith.constant 0 : index
    %c0_22 = arith.constant 0 : index
    %33 = vector.load %arg9[%c0_21, %c0_22] : memref<1x128xf32, #tpu.memory_space<vmem>>, vector<1x128xf32>
    %34 = vector.broadcast %33 : vector<1x128xf32> to vector<8x128xf32>
    %35 = arith.addf %32, %34 : vector<8x128xf32>
    %cst_23 = arith.constant 0.000000e+00 : f32
    %36 = vector.broadcast %cst_23 : f32 to vector<8x128xf32>
    %37 = arith.maximumf %35, %36 : vector<8x128xf32>
    %38 = arith.truncf %37 : vector<8x128xf32> to vector<8x128xbf16>
    %c0_24 = arith.constant 0 : index
    %c0_25 = arith.constant 0 : index
    %39 = vector.load %arg10[%c0_24, %c0_25] : memref<128x128xbf16, #tpu.memory_space<vmem>>, vector<128x128xbf16>
    %cst_26 = arith.constant dense<0.000000e+00> : vector<8x128xf32>
    %40 = tpu.matmul %38, %39, %cst_26 {dimension_numbers = #tpu.dot_dimension_numbers<[1], [0], [0], [1], [0, 0, 1, 1], [], []>} : vector<8x128xbf16>, vector<128x128xbf16>, vector<8x128xf32> -> vector<8x128xf32>
    %c0_27 = arith.constant 0 : index
    %c0_28 = arith.constant 0 : index
    %41 = vector.load %arg11[%c0_27, %c0_28] : memref<1x128xf32, #tpu.memory_space<vmem>>, vector<1x128xf32>
    %42 = vector.broadcast %41 : vector<1x128xf32> to vector<8x128xf32>
    %43 = arith.addf %40, %42 : vector<8x128xf32>
    %44 = arith.negf %43 : vector<8x128xf32>
    %45 = math.exp %44 : vector<8x128xf32>
    %cst_29 = arith.constant 1.000000e+00 : f32
    %46 = vector.broadcast %cst_29 : f32 to vector<8x128xf32>
    %47 = arith.addf %46, %45 : vector<8x128xf32>
    %48 = arith.divf %46, %47 : vector<8x128xf32>
    %c0_30 = arith.constant 0 : index
    %c0_31 = arith.constant 0 : index
    %49 = vector.load %arg12[%c0_30, %c0_31] : memref<8x128xf32, #tpu.memory_space<vmem>>, vector<8x128xf32>
    tpu.vector_store %arg12[%c0_30, %c0_31], %48 {strides = array<i32>} : memref<8x128xf32, #tpu.memory_space<vmem>>, vector<8x128xf32>,
    return
  }
  func.func @transform_0(%arg0: i32) -> (i32, i32) {
    %c0_i32 = arith.constant 0 : i32
    %c0_i32_0 = arith.constant 0 : i32
    return %arg0, %c0_i32 : i32, i32
  }
  func.func @transform_1(%arg0: i32) -> (i32, i32) {
    %c0_i32 = arith.constant 0 : i32
    %c0_i32_0 = arith.constant 0 : i32
    %c0_i32_1 = arith.constant 0 : i32
    return %c0_i32, %c0_i32_0 : i32, i32
  }
  func.func @transform_2(%arg0: i32) -> (i32, i32) {
    %c0_i32 = arith.constant 0 : i32
    %c0_i32_0 = arith.constant 0 : i32
    %c0_i32_1 = arith.constant 0 : i32
    return %c0_i32, %c0_i32_0 : i32, i32
  }
  func.func @transform_3(%arg0: i32) -> (i32, i32) {
    %c0_i32 = arith.constant 0 : i32
    %c0_i32_0 = arith.constant 0 : i32
    %c0_i32_1 = arith.constant 0 : i32
    return %c0_i32, %c0_i32_0 : i32, i32
  }
  func.func @transform_4(%arg0: i32) -> (i32, i32) {
    %c0_i32 = arith.constant 0 : i32
    %c0_i32_0 = arith.constant 0 : i32
    %c0_i32_1 = arith.constant 0 : i32
    return %c0_i32, %c0_i32_0 : i32, i32
  }
  func.func @transform_5(%arg0: i32) -> (i32, i32) {
    %c0_i32 = arith.constant 0 : i32
    %c0_i32_0 = arith.constant 0 : i32
    %c0_i32_1 = arith.constant 0 : i32
    return %c0_i32, %c0_i32_0 : i32, i32
  }
  func.func @transform_6(%arg0: i32) -> (i32, i32) {
    %c0_i32 = arith.constant 0 : i32
    %c0_i32_0 = arith.constant 0 : i32
    %c0_i32_1 = arith.constant 0 : i32
    return %c0_i32, %c0_i32_0 : i32, i32
  }
  func.func @transform_7(%arg0: i32) -> (i32, i32) {
    %c0_i32 = arith.constant 0 : i32
    %c0_i32_0 = arith.constant 0 : i32
    %c0_i32_1 = arith.constant 0 : i32
    return %c0_i32, %c0_i32_0 : i32, i32
  }
  func.func @transform_8(%arg0: i32) -> (i32, i32) {
    %c0_i32 = arith.constant 0 : i32
    %c0_i32_0 = arith.constant 0 : i32
    %c0_i32_1 = arith.constant 0 : i32
    return %c0_i32, %c0_i32_0 : i32, i32
  }
  func.func @transform_9(%arg0: i32) -> (i32, i32) {
    %c0_i32 = arith.constant 0 : i32
    %c0_i32_0 = arith.constant 0 : i32
    %c0_i32_1 = arith.constant 0 : i32
    return %c0_i32, %c0_i32_0 : i32, i32
  }
  func.func @transform_10(%arg0: i32) -> (i32, i32) {
    %c0_i32 = arith.constant 0 : i32
    %c0_i32_0 = arith.constant 0 : i32
    %c0_i32_1 = arith.constant 0 : i32
    return %c0_i32, %c0_i32_0 : i32, i32
  }
  func.func @transform_11(%arg0: i32) -> (i32, i32) {
    %c0_i32 = arith.constant 0 : i32
    %c0_i32_0 = arith.constant 0 : i32
    return %arg0, %c0_i32 : i32, i32
  }
}

</mosaic_0001>

<llo_original>
// kernel: tpu_custom_call.1
$region0: #{tpu_custom_call.1}
  #allocation0 [shape = 'u32[]', space=smem, size = 0x4, offset = 0x4, fixed_abs, tag = 'smem constant byte address 0x4 - core index']
  #allocation1 [shape = 'u32[144,128]{1,0:T(1,128)}', space=vmem, size = 0x12000, scoped, tag = 'internal scratch']
  %s0 = inlined_call_operand.hbm [shape: bf16[8,128], index: 0, kind: input, shape index: {}]
  %s1 = inlined_call_operand.hbm [shape: bf16[128,2048], index: 1, kind: input, shape index: {}]
  %s2 = inlined_call_operand.hbm [shape: f32[1,2048], index: 2, kind: input, shape index: {}]
  %s3 = inlined_call_operand.hbm [shape: bf16[1024,1024], index: 3, kind: input, shape index: {}]
  %s4 = inlined_call_operand.hbm [shape: f32[1,1024], index: 4, kind: input, shape index: {}]
  %s5 = inlined_call_operand.hbm [shape: bf16[512,256], index: 5, kind: input, shape index: {}]
  %s6 = inlined_call_operand.hbm [shape: f32[1,256], index: 6, kind: input, shape index: {}]
  %s7 = inlined_call_operand.hbm [shape: bf16[256,128], index: 7, kind: input, shape index: {}]
  %s8 = inlined_call_operand.hbm [shape: f32[1,128], index: 8, kind: input, shape index: {}]
  %s9 = inlined_call_operand.hbm [shape: bf16[128,128], index: 9, kind: input, shape index: {}]
  %s10 = inlined_call_operand.hbm [shape: f32[1,128], index: 10, kind: input, shape index: {}]
  %s11 = inlined_call_operand.hbm [shape: f32[8,128], index: 11, kind: output, shape index: {}]
  %s12 = sld [smem:[#allocation0]]
  $region98: #{tpu_custom_call.1} parent=0
    _
  %s14 = ssub.s32 1, %s12
  %s15 = scalar_select 0, %s14, %s12
  $region1: #{tpu_custom_call.1} parent=0
    #allocation2 [shape = 'u8[2048]{0}', space=vmem, size = 0x800, scoped, tag = 'input window, operand 0, single buffered']
    #allocation3 [shape = 's32[1]{0}', space=sflag, size = 0x4, scoped, tag = 'scoped memory for tpu_custom_call.1']
    #allocation4 [shape = 's32[1]{0}', space=sflag, size = 0x4, scoped, tag = 'scoped memory for tpu_custom_call.1']
    #allocation5 [shape = 'u8[524288]{0}', space=vmem, size = 0x80000, scoped, tag = 'input window, operand 1, single buffered']
    #allocation6 [shape = 's32[1]{0}', space=sflag, size = 0x4, scoped, tag = 'scoped memory for tpu_custom_call.1']
    #allocation7 [shape = 'u8[8192]{0}', space=vmem, size = 0x2000, scoped, tag = 'input window, operand 2, single buffered']
    #allocation8 [shape = 'u8[2097152]{0}', space=vmem, size = 0x200000, scoped, tag = 'input window, operand 3, single buffered']
    #allocation9 [shape = 's32[1]{0}', space=sflag, size = 0x4, scoped, tag = 'scoped memory for tpu_custom_call.1']
    #allocation10 [shape = 'u8[4096]{0}', space=vmem, size = 0x1000, scoped, tag = 'input window, operand 4, single buffered']
    #allocation11 [shape = 'u8[262144]{0}', space=vmem, size = 0x40000, scoped, tag = 'input window, operand 5, single buffered']
    #allocation12 [shape = 's32[1]{0}', space=sflag, size = 0x4, scoped, tag = 'scoped memory for tpu_custom_call.1']
    #allocation13 [shape = 'u8[1024]{0}', space=vmem, size = 0x400, scoped, tag = 'input window, operand 6, single buffered']
    #allocation14 [shape = 'u8[65536]{0}', space=vmem, size = 0x10000, scoped, tag = 'input window, operand 7, single buffered']
    #allocation15 [shape = 's32[1]{0}', space=sflag, size = 0x4, scoped, tag = 'scoped memory for tpu_custom_call.1']
    #allocation16 [shape = 'u8[512]{0}', space=vmem, size = 0x400, scoped, tag = 'input window, operand 8, single buffered']
    #allocation17 [shape = 'u8[32768]{0}', space=vmem, size = 0x8000, scoped, tag = 'input window, operand 9, single buffered']
    #allocation18 [shape = 's32[1]{0}', space=sflag, size = 0x4, scoped, tag = 'scoped memory for tpu_custom_call.1']
    #allocation19 [shape = 'u8[512]{0}', space=vmem, size = 0x400, scoped, tag = 'input window, operand 10, single buffered']
    #allocation20 [shape = 'u8[4096]{0}', space=vmem, size = 0x1000, scoped, tag = 'output window, operand 0, single buffered']
    %16 = vsyncpa [#allocation3], 0
    %17 = vsyncpa [#allocation6], 0
    %18 = vsyncpa [#allocation9], 0
    %19 = vsyncpa [#allocation12], 0
    %20 = vsyncpa [#allocation15], 0
    %21 = vsyncpa [#allocation18], 0
    %22 = vsyncpa [#allocation4], 0
    // Predicated region
    $region2: #{tpu_custom_call.1} parent=1 // pred_check
      _
    $region3: #{tpu_custom_call.1} parent=1 // pred_check_branch
      %24 = sbr.rel (0) target = $region5
    $region4: #{tpu_custom_call.1} parent=1 // pred_region
      %s26 = ssub.s32 64, 64
      %27 = vsyncadd [#allocation3], %s26
      %s29 = sshll.u32 [#allocation2], 4
      %s30 = int_to_ptr.vmem [resolvable:$true] %s29
      %32 = dma.hbm_to_vmem [thread:$0]  %s0, 64, %s30, [#allocation3]
    $region5: #{tpu_custom_call.1} parent=1 // pred_fallthru
      _
    // Predicated region
    $region6: #{tpu_custom_call.1} parent=1 // pred_check
      _
    $region7: #{tpu_custom_call.1} parent=1 // pred_check_branch
      %34 = sbr.rel (0) target = $region9
    $region8: #{tpu_custom_call.1} parent=1 // pred_region
      %s36 = ssub.s32 16384, 16384
      %37 = vsyncadd [#allocation6], %s36
      %s38 = sshll.u32 [#allocation5], 4
      %s39 = int_to_ptr.vmem [resolvable:$true] %s38
      %44 = dma.hbm_to_vmem [thread:$0]  %s1, 16384, %s39, [#allocation6], 1024, 1024, 64
    $region9: #{tpu_custom_call.1} parent=1 // pred_fallthru
      _
    // Predicated region
    $region10: #{tpu_custom_call.1} parent=1 // pred_check
      _
    $region11: #{tpu_custom_call.1} parent=1 // pred_check_branch
      %46 = sbr.rel (0) target = $region13
    $region12: #{tpu_custom_call.1} parent=1 // pred_region
      %s48 = ssub.s32 256, 256
      %49 = vsyncadd [#allocation6], %s48
      %s51 = sshll.u32 [#allocation7], 4
      %s52 = int_to_ptr.vmem [resolvable:$true] %s51
      %54 = dma.hbm_to_vmem [thread:$0]  %s2, 256, %s52, [#allocation6]
    $region13: #{tpu_custom_call.1} parent=1 // pred_fallthru
      _
    // Predicated region
    $region14: #{tpu_custom_call.1} parent=1 // pred_check
      _
    $region15: #{tpu_custom_call.1} parent=1 // pred_check_branch
      %56 = sbr.rel (0) target = $region17
    $region16: #{tpu_custom_call.1} parent=1 // pred_region
      %s58 = ssub.s32 65536, 65536
      %59 = vsyncadd [#allocation9], %s58
      %s60 = sshll.u32 [#allocation8], 4
      %s61 = int_to_ptr.vmem [resolvable:$true] %s60
      %66 = dma.hbm_to_vmem [thread:$0]  %s3, 65536, %s61, [#allocation9], 512, 512, 32
    $region17: #{tpu_custom_call.1} parent=1 // pred_fallthru
      _
    // Predicated region
    $region18: #{tpu_custom_call.1} parent=1 // pred_check
      _
    $region19: #{tpu_custom_call.1} parent=1 // pred_check_branch
      %68 = sbr.rel (0) target = $region21
    $region20: #{tpu_custom_call.1} parent=1 // pred_region
      %s70 = ssub.s32 128, 128
      %71 = vsyncadd [#allocation9], %s70
      %s73 = sshll.u32 [#allocation10], 4
      %s74 = int_to_ptr.vmem [resolvable:$true] %s73
      %76 = dma.hbm_to_vmem [thread:$0]  %s4, 128, %s74, [#allocation9]
    $region21: #{tpu_custom_call.1} parent=1 // pred_fallthru
      _
    // Predicated region
    $region22: #{tpu_custom_call.1} parent=1 // pred_check
      _
    $region23: #{tpu_custom_call.1} parent=1 // pred_check_branch
      %78 = sbr.rel (0) target = $region25
    $region24: #{tpu_custom_call.1} parent=1 // pred_region
      %s80 = ssub.s32 8192, 8192
      %81 = vsyncadd [#allocation12], %s80
      %s82 = sshll.u32 [#allocation11], 4
      %s83 = int_to_ptr.vmem [resolvable:$true] %s82
      %88 = dma.hbm_to_vmem [thread:$0]  %s5, 8192, %s83, [#allocation12], 128, 128, 8
    $region25: #{tpu_custom_call.1} parent=1 // pred_fallthru
      _
    // Predicated region
    $region26: #{tpu_custom_call.1} parent=1 // pred_check
      _
    $region27: #{tpu_custom_call.1} parent=1 // pred_check_branch
      %90 = sbr.rel (0) target = $region29
    $region28: #{tpu_custom_call.1} parent=1 // pred_region
      %s92 = ssub.s32 32, 32
      %93 = vsyncadd [#allocation12], %s92
      %s95 = sshll.u32 [#allocation13], 4
      %s96 = int_to_ptr.vmem [resolvable:$true] %s95
      %98 = dma.hbm_to_vmem [thread:$0]  %s6, 32, %s96, [#allocation12]
    $region29: #{tpu_custom_call.1} parent=1 // pred_fallthru
      _
    // Predicated region
    $region30: #{tpu_custom_call.1} parent=1 // pred_check
      _
    $region31: #{tpu_custom_call.1} parent=1 // pred_check_branch
      %100 = sbr.rel (0) target = $region33
    $region32: #{tpu_custom_call.1} parent=1 // pred_region
      %s102 = ssub.s32 2048, 2048
      %103 = vsyncadd [#allocation15], %s102
      %s104 = sshll.u32 [#allocation14], 4
      %s105 = int_to_ptr.vmem [resolvable:$true] %s104
      %110 = dma.hbm_to_vmem [thread:$0]  %s7, 2048, %s105, [#allocation15], 64, 64, 4
    $region33: #{tpu_custom_call.1} parent=1 // pred_fallthru
      _
    // Predicated region
    $region34: #{tpu_custom_call.1} parent=1 // pred_check
      _
    $region35: #{tpu_custom_call.1} parent=1 // pred_check_branch
      %112 = sbr.rel (0) target = $region37
    $region36: #{tpu_custom_call.1} parent=1 // pred_region
      %s114 = ssub.s32 16, 16
      %115 = vsyncadd [#allocation15], %s114
      %s117 = sshll.u32 [#allocation16], 4
      %s118 = int_to_ptr.vmem [resolvable:$true] %s117
      %120 = dma.hbm_to_vmem [thread:$0]  %s8, 16, %s118, [#allocation15]
    $region37: #{tpu_custom_call.1} parent=1 // pred_fallthru
      _
    // Predicated region
    $region38: #{tpu_custom_call.1} parent=1 // pred_check
      _
    $region39: #{tpu_custom_call.1} parent=1 // pred_check_branch
      %122 = sbr.rel (0) target = $region41
    $region40: #{tpu_custom_call.1} parent=1 // pred_region
      %s124 = ssub.s32 1024, 1024
      %125 = vsyncadd [#allocation18], %s124
      %s126 = sshll.u32 [#allocation17], 4
      %s127 = int_to_ptr.vmem [resolvable:$true] %s126
      %132 = dma.hbm_to_vmem [thread:$0]  %s9, 1024, %s127, [#allocation18], 64, 64, 4
    $region41: #{tpu_custom_call.1} parent=1 // pred_fallthru
      _
    // Predicated region
    $region42: #{tpu_custom_call.1} parent=1 // pred_check
      _
    $region43: #{tpu_custom_call.1} parent=1 // pred_check_branch
      %134 = sbr.rel (0) target = $region45
    $region44: #{tpu_custom_call.1} parent=1 // pred_region
      %s136 = ssub.s32 16, 16
      %137 = vsyncadd [#allocation18], %s136
      %s139 = sshll.u32 [#allocation19], 4
      %s140 = int_to_ptr.vmem [resolvable:$true] %s139
      %142 = dma.hbm_to_vmem [thread:$0]  %s10, 16, %s140, [#allocation18]
    $region45: #{tpu_custom_call.1} parent=1 // pred_fallthru
      _
    // Predicated region
    $region46: #{tpu_custom_call.1} parent=1 // pred_check
      _
    $region47: #{tpu_custom_call.1} parent=1 // pred_check_branch
      %144 = sbr.rel (0) target = $region49
    $region48: #{tpu_custom_call.1} parent=1 // pred_region
      %145 = dma.done [#allocation3], 64
    $region49: #{tpu_custom_call.1} parent=1 // pred_fallthru
      _
    // Predicated region
    $region50: #{tpu_custom_call.1} parent=1 // pred_check
      _
    $region51: #{tpu_custom_call.1} parent=1 // pred_check_branch
      %147 = sbr.rel (0) target = $region53
    $region52: #{tpu_custom_call.1} parent=1 // pred_region
      %148 = dma.done [#allocation6], 16384
    $region53: #{tpu_custom_call.1} parent=1 // pred_fallthru
      _
    // Predicated region
    $region54: #{tpu_custom_call.1} parent=1 // pred_check
      _
    $region55: #{tpu_custom_call.1} parent=1 // pred_check_branch
      %150 = sbr.rel (0) target = $region57
    $region56: #{tpu_custom_call.1} parent=1 // pred_region
      %151 = dma.done [#allocation6], 256
    $region57: #{tpu_custom_call.1} parent=1 // pred_fallthru
      _
    // Predicated region
    $region58: #{tpu_custom_call.1} parent=1 // pred_check
      _
    $region59: #{tpu_custom_call.1} parent=1 // pred_check_branch
      %153 = sbr.rel (0) target = $region61
    $region60: #{tpu_custom_call.1} parent=1 // pred_region
      %154 = dma.done [#allocation9], 65536
    $region61: #{tpu_custom_call.1} parent=1 // pred_fallthru
      _
    // Predicated region
    $region62: #{tpu_custom_call.1} parent=1 // pred_check
      _
    $region63: #{tpu_custom_call.1} parent=1 // pred_check_branch
      %156 = sbr.rel (0) target = $region65
    $region64: #{tpu_custom_call.1} parent=1 // pred_region
      %157 = dma.done [#allocation9], 128
    $region65: #{tpu_custom_call.1} parent=1 // pred_fallthru
      _
    // Predicated region
    $region66: #{tpu_custom_call.1} parent=1 // pred_check
      _
    $region67: #{tpu_custom_call.1} parent=1 // pred_check_branch
      %159 = sbr.rel (0) target = $region69
    $region68: #{tpu_custom_call.1} parent=1 // pred_region
      %160 = dma.done [#allocation12], 8192
    $region69: #{tpu_custom_call.1} parent=1 // pred_fallthru
      _
    // Predicated region
    $region70: #{tpu_custom_call.1} parent=1 // pred_check
      _
    $region71: #{tpu_custom_call.1} parent=1 // pred_check_branch
      %162 = sbr.rel (0) target = $region73
    $region72: #{tpu_custom_call.1} parent=1 // pred_region
      %163 = dma.done [#allocation12], 32
    $region73: #{tpu_custom_call.1} parent=1 // pred_fallthru
      _
    // Predicated region
    $region74: #{tpu_custom_call.1} parent=1 // pred_check
      _
    $region75: #{tpu_custom_call.1} parent=1 // pred_check_branch
      %165 = sbr.rel (0) target = $region77
    $region76: #{tpu_custom_call.1} parent=1 // pred_region
      %166 = dma.done [#allocation15], 2048
    $region77: #{tpu_custom_call.1} parent=1 // pred_fallthru
      _
    // Predicated region
    $region78: #{tpu_custom_call.1} parent=1 // pred_check
      _
    $region79: #{tpu_custom_call.1} parent=1 // pred_check_branch
      %168 = sbr.rel (0) target = $region81
    $region80: #{tpu_custom_call.1} parent=1 // pred_region
      %169 = dma.done [#allocation15], 16
    $region81: #{tpu_custom_call.1} parent=1 // pred_fallthru
      _
    // Predicated region
    $region82: #{tpu_custom_call.1} parent=1 // pred_check
      _
    $region83: #{tpu_custom_call.1} parent=1 // pred_check_branch
      %171 = sbr.rel (0) target = $region85
    $region84: #{tpu_custom_call.1} parent=1 // pred_region
      %172 = dma.done [#allocation18], 1024
    $region85: #{tpu_custom_call.1} parent=1 // pred_fallthru
      _
    // Predicated region
    $region86: #{tpu_custom_call.1} parent=1 // pred_check
      _
    $region87: #{tpu_custom_call.1} parent=1 // pred_check_branch
      %174 = sbr.rel (0) target = $region89
    $region88: #{tpu_custom_call.1} parent=1 // pred_region
      %175 = dma.done [#allocation18], 16
    $region89: #{tpu_custom_call.1} parent=1 // pred_fallthru
      _
    %v177 = vld [vmem:[#allocation2] sm:$0xf]
    %v178 = vld [vmem:[#allocation5] sm:$0xff]
    %v179 = vld [vmem:[#allocation5 + $0x8] sm:$0xff]
    %v180 = vld [vmem:[#allocation5 + $0x10] sm:$0xff]
    %v181 = vld [vmem:[#allocation5 + $0x18] sm:$0xff]
    %v182 = vld [vmem:[#allocation5 + $0x20] sm:$0xff]
    %v183 = vld [vmem:[#allocation5 + $0x28] sm:$0xff]
    %v184 = vld [vmem:[#allocation5 + $0x30] sm:$0xff]
    %v185 = vld [vmem:[#allocation5 + $0x38] sm:$0xff]
    %v186 = vld [vmem:[#allocation5 + $0x40] sm:$0xff]
    %v187 = vld [vmem:[#allocation5 + $0x48] sm:$0xff]
    %v188 = vld [vmem:[#allocation5 + $0x50] sm:$0xff]
    %v189 = vld [vmem:[#allocation5 + $0x58] sm:$0xff]
    %v190 = vld [vmem:[#allocation5 + $0x60] sm:$0xff]
    %v191 = vld [vmem:[#allocation5 + $0x68] sm:$0xff]
    %v192 = vld [vmem:[#allocation5 + $0x70] sm:$0xff]
    %v193 = vld [vmem:[#allocation5 + $0x78] sm:$0xff]
    %v194 = vld [vmem:[#allocation5 + $0x80] sm:$0xff]
    %v195 = vld [vmem:[#allocation5 + $0x88] sm:$0xff]
    %v196 = vld [vmem:[#allocation5 + $0x90] sm:$0xff]
    %v197 = vld [vmem:[#allocation5 + $0x98] sm:$0xff]
    %v198 = vld [vmem:[#allocation5 + $0xa0] sm:$0xff]
    %v199 = vld [vmem:[#allocation5 + $0xa8] sm:$0xff]
    %v200 = vld [vmem:[#allocation5 + $0xb0] sm:$0xff]
    %v201 = vld [vmem:[#allocation5 + $0xb8] sm:$0xff]
    %v202 = vld [vmem:[#allocation5 + $0xc0] sm:$0xff]
    %v203 = vld [vmem:[#allocation5 + $0xc8] sm:$0xff]
    %v204 = vld [vmem:[#allocation5 + $0xd0] sm:$0xff]
    %v205 = vld [vmem:[#allocation5 + $0xd8] sm:$0xff]
    %v206 = vld [vmem:[#allocation5 + $0xe0] sm:$0xff]
    %v207 = vld [vmem:[#allocation5 + $0xe8] sm:$0xff]
    %v208 = vld [vmem:[#allocation5 + $0xf0] sm:$0xff]
    %v209 = vld [vmem:[#allocation5 + $0xf8] sm:$0xff]
    %v210 = vld [vmem:[#allocation5 + $0x100] sm:$0xff]
    %v211 = vld [vmem:[#allocation5 + $0x108] sm:$0xff]
    %v212 = vld [vmem:[#allocation5 + $0x110] sm:$0xff]
    %v213 = vld [vmem:[#allocation5 + $0x118] sm:$0xff]
    %v214 = vld [vmem:[#allocation5 + $0x120] sm:$0xff]
    %v215 = vld [vmem:[#allocation5 + $0x128] sm:$0xff]
    %v216 = vld [vmem:[#allocation5 + $0x130] sm:$0xff]
    %v217 = vld [vmem:[#allocation5 + $0x138] sm:$0xff]
    %v218 = vld [vmem:[#allocation5 + $0x140] sm:$0xff]
    %v219 = vld [vmem:[#allocation5 + $0x148] sm:$0xff]
    %v220 = vld [vmem:[#allocation5 + $0x150] sm:$0xff]
    %v221 = vld [vmem:[#allocation5 + $0x158] sm:$0xff]
    %v222 = vld [vmem:[#allocation5 + $0x160] sm:$0xff]
    %v223 = vld [vmem:[#allocation5 + $0x168] sm:$0xff]
    %v224 = vld [vmem:[#allocation5 + $0x170] sm:$0xff]
    %v225 = vld [vmem:[#allocation5 + $0x178] sm:$0xff]
    %v226 = vld [vmem:[#allocation5 + $0x180] sm:$0xff]
    %v227 = vld [vmem:[#allocation5 + $0x188] sm:$0xff]
    %v228 = vld [vmem:[#allocation5 + $0x190] sm:$0xff]
    %v229 = vld [vmem:[#allocation5 + $0x198] sm:$0xff]
    %v230 = vld [vmem:[#allocation5 + $0x1a0] sm:$0xff]
    %v231 = vld [vmem:[#allocation5 + $0x1a8] sm:$0xff]
    %v232 = vld [vmem:[#allocation5 + $0x1b0] sm:$0xff]
    %v233 = vld [vmem:[#allocation5 + $0x1b8] sm:$0xff]
    %v234 = vld [vmem:[#allocation5 + $0x1c0] sm:$0xff]
    %v235 = vld [vmem:[#allocation5 + $0x1c8] sm:$0xff]
    %v236 = vld [vmem:[#allocation5 + $0x1d0] sm:$0xff]
    %v237 = vld [vmem:[#allocation5 + $0x1d8] sm:$0xff]
    %v238 = vld [vmem:[#allocation5 + $0x1e0] sm:$0xff]
    %v239 = vld [vmem:[#allocation5 + $0x1e8] sm:$0xff]
    %v240 = vld [vmem:[#allocation5 + $0x1f0] sm:$0xff]
    %v241 = vld [vmem:[#allocation5 + $0x1f8] sm:$0xff]
    %v242 = vld [vmem:[#allocation5 + $0x200] sm:$0xff]
    %v243 = vld [vmem:[#allocation5 + $0x208] sm:$0xff]
    %v244 = vld [vmem:[#allocation5 + $0x210] sm:$0xff]
    %v245 = vld [vmem:[#allocation5 + $0x218] sm:$0xff]
    %v246 = vld [vmem:[#allocation5 + $0x220] sm:$0xff]
    %v247 = vld [vmem:[#allocation5 + $0x228] sm:$0xff]
    %v248 = vld [vmem:[#allocation5 + $0x230] sm:$0xff]
    %v249 = vld [vmem:[#allocation5 + $0x238] sm:$0xff]
    %v250 = vld [vmem:[#allocation5 + $0x240] sm:$0xff]
    %v251 = vld [vmem:[#allocation5 + $0x248] sm:$0xff]
    %v252 = vld [vmem:[#allocation5 + $0x250] sm:$0xff]
    %v253 = vld [vmem:[#allocation5 + $0x258] sm:$0xff]
    %v254 = vld [vmem:[#allocation5 + $0x260] sm:$0xff]
    %v255 = vld [vmem:[#allocation5 + $0x268] sm:$0xff]
    %v256 = vld [vmem:[#allocation5 + $0x270] sm:$0xff]
    %v257 = vld [vmem:[#allocation5 + $0x278] sm:$0xff]
    %v258 = vld [vmem:[#allocation5 + $0x280] sm:$0xff]
    %v259 = vld [vmem:[#allocation5 + $0x288] sm:$0xff]
    %v260 = vld [vmem:[#allocation5 + $0x290] sm:$0xff]
    %v261 = vld [vmem:[#allocation5 + $0x298] sm:$0xff]
    %v262 = vld [vmem:[#allocation5 + $0x2a0] sm:$0xff]
    %v263 = vld [vmem:[#allocation5 + $0x2a8] sm:$0xff]
    %v264 = vld [vmem:[#allocation5 + $0x2b0] sm:$0xff]
    %v265 = vld [vmem:[#allocation5 + $0x2b8] sm:$0xff]
    %v266 = vld [vmem:[#allocation5 + $0x2c0] sm:$0xff]
    %v267 = vld [vmem:[#allocation5 + $0x2c8] sm:$0xff]
    %v268 = vld [vmem:[#allocation5 + $0x2d0] sm:$0xff]
    %v269 = vld [vmem:[#allocation5 + $0x2d8] sm:$0xff]
    %v270 = vld [vmem:[#allocation5 + $0x2e0] sm:$0xff]
    %v271 = vld [vmem:[#allocation5 + $0x2e8] sm:$0xff]
    %v272 = vld [vmem:[#allocation5 + $0x2f0] sm:$0xff]
    %v273 = vld [vmem:[#allocation5 + $0x2f8] sm:$0xff]
    %v274 = vld [vmem:[#allocation5 + $0x300] sm:$0xff]
    %v275 = vld [vmem:[#allocation5 + $0x308] sm:$0xff]
    %v276 = vld [vmem:[#allocation5 + $0x310] sm:$0xff]
    %v277 = vld [vmem:[#allocation5 + $0x318] sm:$0xff]
    %v278 = vld [vmem:[#allocation5 + $0x320] sm:$0xff]
    %v279 = vld [vmem:[#allocation5 + $0x328] sm:$0xff]
    %v280 = vld [vmem:[#allocation5 + $0x330] sm:$0xff]
    %v281 = vld [vmem:[#allocation5 + $0x338] sm:$0xff]
    %v282 = vld [vmem:[#allocation5 + $0x340] sm:$0xff]
    %v283 = vld [vmem:[#allocation5 + $0x348] sm:$0xff]
    %v284 = vld [vmem:[#allocation5 + $0x350] sm:$0xff]
    %v285 = vld [vmem:[#allocation5 + $0x358] sm:$0xff]
    %v286 = vld [vmem:[#allocation5 + $0x360] sm:$0xff]
    %v287 = vld [vmem:[#allocation5 + $0x368] sm:$0xff]
    %v288 = vld [vmem:[#allocation5 + $0x370] sm:$0xff]
    %v289 = vld [vmem:[#allocation5 + $0x378] sm:$0xff]
    %v290 = vld [vmem:[#allocation5 + $0x380] sm:$0xff]
    %v291 = vld [vmem:[#allocation5 + $0x388] sm:$0xff]
    %v292 = vld [vmem:[#allocation5 + $0x390] sm:$0xff]
    %v293 = vld [vmem:[#allocation5 + $0x398] sm:$0xff]
    %v294 = vld [vmem:[#allocation5 + $0x3a0] sm:$0xff]
    %v295 = vld [vmem:[#allocation5 + $0x3a8] sm:$0xff]
    %v296 = vld [vmem:[#allocation5 + $0x3b0] sm:$0xff]
    %v297 = vld [vmem:[#allocation5 + $0x3b8] sm:$0xff]
    %v298 = vld [vmem:[#allocation5 + $0x3c0] sm:$0xff]
    %v299 = vld [vmem:[#allocation5 + $0x3c8] sm:$0xff]
    %v300 = vld [vmem:[#allocation5 + $0x3d0] sm:$0xff]
    %v301 = vld [vmem:[#allocation5 + $0x3d8] sm:$0xff]
    %v302 = vld [vmem:[#allocation5 + $0x3e0] sm:$0xff]
    %v303 = vld [vmem:[#allocation5 + $0x3e8] sm:$0xff]
    %v304 = vld [vmem:[#allocation5 + $0x3f0] sm:$0xff]
    %v305 = vld [vmem:[#allocation5 + $0x3f8] sm:$0xff]
    %v306 = vld [vmem:[#allocation7] sm:$0xff]
    %v307 = vld [vmem:[#allocation7 + $0x8] sm:$0xff]
    %v310 = vlaneseq
    %v311 = vshrl.u32 %v310, 7
    %v312 = vsub.s32 0, %v311
    %v313 = vrot.slane %v306, %v312
    %v314 = vlaneseq
    %v315 = vshrl.u32 %v314, 7
    %v316 = vsub.s32 1, %v315
    %v317 = vrot.slane %v306, %v316
    %v318 = vlaneseq
    %v319 = vshrl.u32 %v318, 7
    %v320 = vsub.s32 2, %v319
    %v321 = vrot.slane %v306, %v320
    %v322 = vlaneseq
    %v323 = vshrl.u32 %v322, 7
    %v324 = vsub.s32 3, %v323
    %v325 = vrot.slane %v306, %v324
    %v326 = vlaneseq
    %v327 = vshrl.u32 %v326, 7
    %v328 = vsub.s32 4, %v327
    %v329 = vrot.slane %v306, %v328
    %v330 = vlaneseq
    %v331 = vshrl.u32 %v330, 7
    %v332 = vsub.s32 5, %v331
    %v333 = vrot.slane %v306, %v332
    %v334 = vlaneseq
    %v335 = vshrl.u32 %v334, 7
    %v336 = vsub.s32 6, %v335
    %v337 = vrot.slane %v306, %v336
    %v338 = vlaneseq
    %v339 = vshrl.u32 %v338, 7
    %v340 = vsub.s32 7, %v339
    %v341 = vrot.slane %v306, %v340
    %v342 = vlaneseq
    %v343 = vshrl.u32 %v342, 7
    %v344 = vsub.s32 0, %v343
    %v345 = vrot.slane %v307, %v344
    %v346 = vlaneseq
    %v347 = vshrl.u32 %v346, 7
    %v348 = vsub.s32 1, %v347
    %v349 = vrot.slane %v307, %v348
    %v350 = vlaneseq
    %v351 = vshrl.u32 %v350, 7
    %v352 = vsub.s32 2, %v351
    %v353 = vrot.slane %v307, %v352
    %v354 = vlaneseq
    %v355 = vshrl.u32 %v354, 7
    %v356 = vsub.s32 3, %v355
    %v357 = vrot.slane %v307, %v356
    %v358 = vlaneseq
    %v359 = vshrl.u32 %v358, 7
    %v360 = vsub.s32 4, %v359
    %v361 = vrot.slane %v307, %v360
    %v362 = vlaneseq
    %v363 = vshrl.u32 %v362, 7
    %v364 = vsub.s32 5, %v363
    %v365 = vrot.slane %v307, %v364
    %v366 = vlaneseq
    %v367 = vshrl.u32 %v366, 7
    %v368 = vsub.s32 6, %v367
    %v369 = vrot.slane %v307, %v368
    %v370 = vlaneseq
    %v371 = vshrl.u32 %v370, 7
    %v372 = vsub.s32 7, %v371
    %v373 = vrot.slane %v307, %v372
    %v518 = vunpack.c.l.b16 %v178
    %v519 = vunpack.c.h.b16 %v178
    %v520 = vunpack.c.l.b16 %v179
    %v521 = vunpack.c.h.b16 %v179
    %v522 = vunpack.c.l.b16 %v180
    %v523 = vunpack.c.h.b16 %v180
    %v524 = vunpack.c.l.b16 %v181
    %v525 = vunpack.c.h.b16 %v181
    %v526 = vunpack.c.l.b16 %v182
    %v527 = vunpack.c.h.b16 %v182
    %v528 = vunpack.c.l.b16 %v183
    %v529 = vunpack.c.h.b16 %v183
    %v530 = vunpack.c.l.b16 %v184
    %v531 = vunpack.c.h.b16 %v184
    %v532 = vunpack.c.l.b16 %v185
    %v533 = vunpack.c.h.b16 %v185
    %v534 = vunpack.c.l.b16 %v186
    %v535 = vunpack.c.h.b16 %v186
    %v536 = vunpack.c.l.b16 %v187
    %v537 = vunpack.c.h.b16 %v187
    %v538 = vunpack.c.l.b16 %v188
    %v539 = vunpack.c.h.b16 %v188
    %v540 = vunpack.c.l.b16 %v189
    %v541 = vunpack.c.h.b16 %v189
    %v542 = vunpack.c.l.b16 %v190
    %v543 = vunpack.c.h.b16 %v190
    %v544 = vunpack.c.l.b16 %v191
    %v545 = vunpack.c.h.b16 %v191
    %v546 = vunpack.c.l.b16 %v192
    %v547 = vunpack.c.h.b16 %v192
    %v548 = vunpack.c.l.b16 %v193
    %v549 = vunpack.c.h.b16 %v193
    %v550 = vunpack.c.l.b16 %v194
    %v551 = vunpack.c.h.b16 %v194
    %v552 = vunpack.c.l.b16 %v195
    %v553 = vunpack.c.h.b16 %v195
    %v554 = vunpack.c.l.b16 %v196
    %v555 = vunpack.c.h.b16 %v196
    %v556 = vunpack.c.l.b16 %v197
    %v557 = vunpack.c.h.b16 %v197
    %v558 = vunpack.c.l.b16 %v198
    %v559 = vunpack.c.h.b16 %v198
    %v560 = vunpack.c.l.b16 %v199
    %v561 = vunpack.c.h.b16 %v199
    %v562 = vunpack.c.l.b16 %v200
    %v563 = vunpack.c.h.b16 %v200
    %v564 = vunpack.c.l.b16 %v201
    %v565 = vunpack.c.h.b16 %v201
    %v566 = vunpack.c.l.b16 %v202
    %v567 = vunpack.c.h.b16 %v202
    %v568 = vunpack.c.l.b16 %v203
    %v569 = vunpack.c.h.b16 %v203
    %v570 = vunpack.c.l.b16 %v204
    %v571 = vunpack.c.h.b16 %v204
    %v572 = vunpack.c.l.b16 %v205
    %v573 = vunpack.c.h.b16 %v205
    %v574 = vunpack.c.l.b16 %v206
    %v575 = vunpack.c.h.b16 %v206
    %v576 = vunpack.c.l.b16 %v207
    %v577 = vunpack.c.h.b16 %v207
    %v578 = vunpack.c.l.b16 %v208
    %v579 = vunpack.c.h.b16 %v208
    %v580 = vunpack.c.l.b16 %v209
    %v581 = vunpack.c.h.b16 %v209
    %v582 = vunpack.c.l.b16 %v210
    %v583 = vunpack.c.h.b16 %v210
    %v584 = vunpack.c.l.b16 %v211
    %v585 = vunpack.c.h.b16 %v211
    %v586 = vunpack.c.l.b16 %v212
    %v587 = vunpack.c.h.b16 %v212
    %v588 = vunpack.c.l.b16 %v213
    %v589 = vunpack.c.h.b16 %v213
    %v590 = vunpack.c.l.b16 %v214
    %v591 = vunpack.c.h.b16 %v214
    %v592 = vunpack.c.l.b16 %v215
    %v593 = vunpack.c.h.b16 %v215
    %v594 = vunpack.c.l.b16 %v216
    %v595 = vunpack.c.h.b16 %v216
    %v596 = vunpack.c.l.b16 %v217
    %v597 = vunpack.c.h.b16 %v217
    %v598 = vunpack.c.l.b16 %v218
    %v599 = vunpack.c.h.b16 %v218
    %v600 = vunpack.c.l.b16 %v219
    %v601 = vunpack.c.h.b16 %v219
    %v602 = vunpack.c.l.b16 %v220
    %v603 = vunpack.c.h.b16 %v220
    %v604 = vunpack.c.l.b16 %v221
    %v605 = vunpack.c.h.b16 %v221
    %v606 = vunpack.c.l.b16 %v222
    %v607 = vunpack.c.h.b16 %v222
    %v608 = vunpack.c.l.b16 %v223
    %v609 = vunpack.c.h.b16 %v223
    %v610 = vunpack.c.l.b16 %v224
    %v611 = vunpack.c.h.b16 %v224
    %v612 = vunpack.c.l.b16 %v225
    %v613 = vunpack.c.h.b16 %v225
    %v614 = vunpack.c.l.b16 %v226
    %v615 = vunpack.c.h.b16 %v226
    %v616 = vunpack.c.l.b16 %v227
    %v617 = vunpack.c.h.b16 %v227
    %v618 = vunpack.c.l.b16 %v228
    %v619 = vunpack.c.h.b16 %v228
    %v620 = vunpack.c.l.b16 %v229
    %v621 = vunpack.c.h.b16 %v229
    %v622 = vunpack.c.l.b16 %v230
    %v623 = vunpack.c.h.b16 %v230
    %v624 = vunpack.c.l.b16 %v231
    %v625 = vunpack.c.h.b16 %v231
    %v626 = vunpack.c.l.b16 %v232
    %v627 = vunpack.c.h.b16 %v232
    %v628 = vunpack.c.l.b16 %v233
    %v629 = vunpack.c.h.b16 %v233
    %v630 = vunpack.c.l.b16 %v234
    %v631 = vunpack.c.h.b16 %v234
    %v632 = vunpack.c.l.b16 %v235
    %v633 = vunpack.c.h.b16 %v235
    %v634 = vunpack.c.l.b16 %v236
    %v635 = vunpack.c.h.b16 %v236
    %v636 = vunpack.c.l.b16 %v237
    %v637 = vunpack.c.h.b16 %v237
    %v638 = vunpack.c.l.b16 %v238
    %v639 = vunpack.c.h.b16 %v238
    %v640 = vunpack.c.l.b16 %v239
    %v641 = vunpack.c.h.b16 %v239
    %v642 = vunpack.c.l.b16 %v240
    %v643 = vunpack.c.h.b16 %v240
    %v644 = vunpack.c.l.b16 %v241
    %v645 = vunpack.c.h.b16 %v241
    %v646 = vunpack.c.l.b16 %v242
    %v647 = vunpack.c.h.b16 %v242
    %v648 = vunpack.c.l.b16 %v243
    %v649 = vunpack.c.h.b16 %v243
    %v650 = vunpack.c.l.b16 %v244
    %v651 = vunpack.c.h.b16 %v244
    %v652 = vunpack.c.l.b16 %v245
    %v653 = vunpack.c.h.b16 %v245
    %v654 = vunpack.c.l.b16 %v246
    %v655 = vunpack.c.h.b16 %v246
    %v656 = vunpack.c.l.b16 %v247
    %v657 = vunpack.c.h.b16 %v247
    %v658 = vunpack.c.l.b16 %v248
    %v659 = vunpack.c.h.b16 %v248
    %v660 = vunpack.c.l.b16 %v249
    %v661 = vunpack.c.h.b16 %v249
    %v662 = vunpack.c.l.b16 %v250
    %v663 = vunpack.c.h.b16 %v250
    %v664 = vunpack.c.l.b16 %v251
    %v665 = vunpack.c.h.b16 %v251
    %v666 = vunpack.c.l.b16 %v252
    %v667 = vunpack.c.h.b16 %v252
    %v668 = vunpack.c.l.b16 %v253
    %v669 = vunpack.c.h.b16 %v253
    %v670 = vunpack.c.l.b16 %v254
    %v671 = vunpack.c.h.b16 %v254
    %v672 = vunpack.c.l.b16 %v255
    %v673 = vunpack.c.h.b16 %v255
    %v674 = vunpack.c.l.b16 %v256
    %v675 = vunpack.c.h.b16 %v256
    %v676 = vunpack.c.l.b16 %v257
    %v677 = vunpack.c.h.b16 %v257
    %v678 = vunpack.c.l.b16 %v258
    %v679 = vunpack.c.h.b16 %v258
    %v680 = vunpack.c.l.b16 %v259
    %v681 = vunpack.c.h.b16 %v259
    %v682 = vunpack.c.l.b16 %v260
    %v683 = vunpack.c.h.b16 %v260
    %v684 = vunpack.c.l.b16 %v261
    %v685 = vunpack.c.h.b16 %v261
    %v686 = vunpack.c.l.b16 %v262
    %v687 = vunpack.c.h.b16 %v262
    %v688 = vunpack.c.l.b16 %v263
    %v689 = vunpack.c.h.b16 %v263
    %v690 = vunpack.c.l.b16 %v264
    %v691 = vunpack.c.h.b16 %v264
    %v692 = vunpack.c.l.b16 %v265
    %v693 = vunpack.c.h.b16 %v265
    %v694 = vunpack.c.l.b16 %v266
    %v695 = vunpack.c.h.b16 %v266
    %v696 = vunpack.c.l.b16 %v267
    %v697 = vunpack.c.h.b16 %v267
    %v698 = vunpack.c.l.b16 %v268
    %v699 = vunpack.c.h.b16 %v268
    %v700 = vunpack.c.l.b16 %v269
    %v701 = vunpack.c.h.b16 %v269
    %v702 = vunpack.c.l.b16 %v270
    %v703 = vunpack.c.h.b16 %v270
    %v704 = vunpack.c.l.b16 %v271
    %v705 = vunpack.c.h.b16 %v271
    %v706 = vunpack.c.l.b16 %v272
    %v707 = vunpack.c.h.b16 %v272
    %v708 = vunpack.c.l.b16 %v273
    %v709 = vunpack.c.h.b16 %v273
    %v710 = vunpack.c.l.b16 %v274
    %v711 = vunpack.c.h.b16 %v274
    %v712 = vunpack.c.l.b16 %v275
    %v713 = vunpack.c.h.b16 %v275
    %v714 = vunpack.c.l.b16 %v276
    %v715 = vunpack.c.h.b16 %v276
    %v716 = vunpack.c.l.b16 %v277
    %v717 = vunpack.c.h.b16 %v277
    %v718 = vunpack.c.l.b16 %v278
    %v719 = vunpack.c.h.b16 %v278
    %v720 = vunpack.c.l.b16 %v279
    %v721 = vunpack.c.h.b16 %v279
    %v722 = vunpack.c.l.b16 %v280
    %v723 = vunpack.c.h.b16 %v280
    %v724 = vunpack.c.l.b16 %v281
    %v725 = vunpack.c.h.b16 %v281
    %v726 = vunpack.c.l.b16 %v282
    %v727 = vunpack.c.h.b16 %v282
    %v728 = vunpack.c.l.b16 %v283
    %v729 = vunpack.c.h.b16 %v283
    %v730 = vunpack.c.l.b16 %v284
    %v731 = vunpack.c.h.b16 %v284
    %v732 = vunpack.c.l.b16 %v285
    %v733 = vunpack.c.h.b16 %v285
    %v734 = vunpack.c.l.b16 %v286
    %v735 = vunpack.c.h.b16 %v286
    %v736 = vunpack.c.l.b16 %v287
    %v737 = vunpack.c.h.b16 %v287
    %v738 = vunpack.c.l.b16 %v288
    %v739 = vunpack.c.h.b16 %v288
    %v740 = vunpack.c.l.b16 %v289
    %v741 = vunpack.c.h.b16 %v289
    %v742 = vunpack.c.l.b16 %v290
    %v743 = vunpack.c.h.b16 %v290
    %v744 = vunpack.c.l.b16 %v291
    %v745 = vunpack.c.h.b16 %v291
    %v746 = vunpack.c.l.b16 %v292
    %v747 = vunpack.c.h.b16 %v292
    %v748 = vunpack.c.l.b16 %v293
    %v749 = vunpack.c.h.b16 %v293
    %v750 = vunpack.c.l.b16 %v294
    %v751 = vunpack.c.h.b16 %v294
    %v752 = vunpack.c.l.b16 %v295
    %v753 = vunpack.c.h.b16 %v295
    %v754 = vunpack.c.l.b16 %v296
    %v755 = vunpack.c.h.b16 %v296
    %v756 = vunpack.c.l.b16 %v297
    %v757 = vunpack.c.h.b16 %v297
    %v758 = vunpack.c.l.b16 %v298
    %v759 = vunpack.c.h.b16 %v298
    %v760 = vunpack.c.l.b16 %v299
    %v761 = vunpack.c.h.b16 %v299
    %v762 = vunpack.c.l.b16 %v300
    %v763 = vunpack.c.h.b16 %v300
    %v764 = vunpack.c.l.b16 %v301
    %v765 = vunpack.c.h.b16 %v301
    %v766 = vunpack.c.l.b16 %v302
    %v767 = vunpack.c.h.b16 %v302
    %v768 = vunpack.c.l.b16 %v303
    %v769 = vunpack.c.h.b16 %v303
    %v770 = vunpack.c.l.b16 %v304
    %v771 = vunpack.c.h.b16 %v304
    %v772 = vunpack.c.l.b16 %v305
    %v773 = vunpack.c.h.b16 %v305
    %v774 = vpack.c.b16 %v534, %v518
    %v775 = vpack.c.b16 %v535, %v519
    %v776 = vpack.c.b16 %v536, %v520
    %v777 = vpack.c.b16 %v537, %v521
    %v778 = vpack.c.b16 %v538, %v522
    %v779 = vpack.c.b16 %v539, %v523
    %v780 = vpack.c.b16 %v540, %v524
    %v781 = vpack.c.b16 %v541, %v525
    %v782 = vpack.c.b16 %v542, %v526
    %v783 = vpack.c.b16 %v543, %v527
    %v784 = vpack.c.b16 %v544, %v528
    %v785 = vpack.c.b16 %v545, %v529
    %v786 = vpack.c.b16 %v546, %v530
    %v787 = vpack.c.b16 %v547, %v531
    %v788 = vpack.c.b16 %v548, %v532
    %v789 = vpack.c.b16 %v549, %v533
    %v790 = vpack.c.b16 %v566, %v550
    %v791 = vpack.c.b16 %v567, %v551
    %v792 = vpack.c.b16 %v568, %v552
    %v793 = vpack.c.b16 %v569, %v553
    %v794 = vpack.c.b16 %v570, %v554
    %v795 = vpack.c.b16 %v571, %v555
    %v796 = vpack.c.b16 %v572, %v556
    %v797 = vpack.c.b16 %v573, %v557
    %v798 = vpack.c.b16 %v574, %v558
    %v799 = vpack.c.b16 %v575, %v559
    %v800 = vpack.c.b16 %v576, %v560
    %v801 = vpack.c.b16 %v577, %v561
    %v802 = vpack.c.b16 %v578, %v562
    %v803 = vpack.c.b16 %v579, %v563
    %v804 = vpack.c.b16 %v580, %v564
    %v805 = vpack.c.b16 %v581, %v565
    %v806 = vpack.c.b16 %v598, %v582
    %v807 = vpack.c.b16 %v599, %v583
    %v808 = vpack.c.b16 %v600, %v584
    %v809 = vpack.c.b16 %v601, %v585
    %v810 = vpack.c.b16 %v602, %v586
    %v811 = vpack.c.b16 %v603, %v587
    %v812 = vpack.c.b16 %v604, %v588
    %v813 = vpack.c.b16 %v605, %v589
    %v814 = vpack.c.b16 %v606, %v590
    %v815 = vpack.c.b16 %v607, %v591
    %v816 = vpack.c.b16 %v608, %v592
    %v817 = vpack.c.b16 %v609, %v593
    %v818 = vpack.c.b16 %v610, %v594
    %v819 = vpack.c.b16 %v611, %v595
    %v820 = vpack.c.b16 %v612, %v596
    %v821 = vpack.c.b16 %v613, %v597
    %v822 = vpack.c.b16 %v630, %v614
    %v823 = vpack.c.b16 %v631, %v615
    %v824 = vpack.c.b16 %v632, %v616
    %v825 = vpack.c.b16 %v633, %v617
    %v826 = vpack.c.b16 %v634, %v618
    %v827 = vpack.c.b16 %v635, %v619
    %v828 = vpack.c.b16 %v636, %v620
    %v829 = vpack.c.b16 %v637, %v621
    %v830 = vpack.c.b16 %v638, %v622
    %v831 = vpack.c.b16 %v639, %v623
    %v832 = vpack.c.b16 %v640, %v624
    %v833 = vpack.c.b16 %v641, %v625
    %v834 = vpack.c.b16 %v642, %v626
    %v835 = vpack.c.b16 %v643, %v627
    %v836 = vpack.c.b16 %v644, %v628
    %v837 = vpack.c.b16 %v645, %v629
    %v838 = vpack.c.b16 %v662, %v646
    %v839 = vpack.c.b16 %v663, %v647
    %v840 = vpack.c.b16 %v664, %v648
    %v841 = vpack.c.b16 %v665, %v649
    %v842 = vpack.c.b16 %v666, %v650
    %v843 = vpack.c.b16 %v667, %v651
    %v844 = vpack.c.b16 %v668, %v652
    %v845 = vpack.c.b16 %v669, %v653
    %v846 = vpack.c.b16 %v670, %v654
    %v847 = vpack.c.b16 %v671, %v655
    %v848 = vpack.c.b16 %v672, %v656
    %v849 = vpack.c.b16 %v673, %v657
    %v850 = vpack.c.b16 %v674, %v658
    %v851 = vpack.c.b16 %v675, %v659
    %v852 = vpack.c.b16 %v676, %v660
    %v853 = vpack.c.b16 %v677, %v661
    %v854 = vpack.c.b16 %v694, %v678
    %v855 = vpack.c.b16 %v695, %v679
    %v856 = vpack.c.b16 %v696, %v680
    %v857 = vpack.c.b16 %v697, %v681
    %v858 = vpack.c.b16 %v698, %v682
    %v859 = vpack.c.b16 %v699, %v683
    %v860 = vpack.c.b16 %v700, %v684
    %v861 = vpack.c.b16 %v701, %v685
    %v862 = vpack.c.b16 %v702, %v686
    %v863 = vpack.c.b16 %v703, %v687
    %v864 = vpack.c.b16 %v704, %v688
    %v865 = vpack.c.b16 %v705, %v689
    %v866 = vpack.c.b16 %v706, %v690
    %v867 = vpack.c.b16 %v707, %v691
    %v868 = vpack.c.b16 %v708, %v692
    %v869 = vpack.c.b16 %v709, %v693
    %v870 = vpack.c.b16 %v726, %v710
    %v871 = vpack.c.b16 %v727, %v711
    %v872 = vpack.c.b16 %v728, %v712
    %v873 = vpack.c.b16 %v729, %v713
    %v874 = vpack.c.b16 %v730, %v714
    %v875 = vpack.c.b16 %v731, %v715
    %v876 = vpack.c.b16 %v732, %v716
    %v877 = vpack.c.b16 %v733, %v717
    %v878 = vpack.c.b16 %v734, %v718
    %v879 = vpack.c.b16 %v735, %v719
    %v880 = vpack.c.b16 %v736, %v720
    %v881 = vpack.c.b16 %v737, %v721
    %v882 = vpack.c.b16 %v738, %v722
    %v883 = vpack.c.b16 %v739, %v723
    %v884 = vpack.c.b16 %v740, %v724
    %v885 = vpack.c.b16 %v741, %v725
    %v886 = vpack.c.b16 %v758, %v742
    %v887 = vpack.c.b16 %v759, %v743
    %v888 = vpack.c.b16 %v760, %v744
    %v889 = vpack.c.b16 %v761, %v745
    %v890 = vpack.c.b16 %v762, %v746
    %v891 = vpack.c.b16 %v763, %v747
    %v892 = vpack.c.b16 %v764, %v748
    %v893 = vpack.c.b16 %v765, %v749
    %v894 = vpack.c.b16 %v766, %v750
    %v895 = vpack.c.b16 %v767, %v751
    %v896 = vpack.c.b16 %v768, %v752
    %v897 = vpack.c.b16 %v769, %v753
    %v898 = vpack.c.b16 %v770, %v754
    %v899 = vpack.c.b16 %v771, %v755
    %v900 = vpack.c.b16 %v772, %v756
    %v901 = vpack.c.b16 %v773, %v757
    %1030 = vmatprep.subr.bf16.mxu0 %v775
    %1031 = vmatpush1.bf16.msra.mxu0 %v774
    %1032 = vmatprep.subr.bf16.mxu0 %v791
    %1033 = vmatpush1.bf16.msra.mxu0 %v790
    %1034 = vmatprep.subr.bf16.mxu0 %v807
    %1035 = vmatpush1.bf16.msra.mxu0 %v806
    %1036 = vmatprep.subr.bf16.mxu0 %v823
    %1037 = vmatpush1.bf16.msra.mxu0 %v822
    %1038 = vmatprep.subr.bf16.mxu0 %v839
    %1039 = vmatpush1.bf16.msra.mxu0 %v838
    %1040 = vmatprep.subr.bf16.mxu0 %v855
    %1041 = vmatpush1.bf16.msra.mxu0 %v854
    %1042 = vmatprep.subr.bf16.mxu0 %v871
    %1043 = vmatpush1.bf16.msra.mxu0 %v870
    %1044 = vmatprep.subr.bf16.mxu0 %v887
    %1045 = vmatpush1.bf16.msra.mxu0 %v886
    %1046 = vmatprep.subr.bf16.mxu0 0
    %1047 = vmatpush1.bf16.msra.mxu0 0
    %1048 = vmatprep.subr.bf16.mxu0 0
    %1049 = vmatpush1.bf16.msra.mxu0 0
    %1050 = vmatprep.subr.bf16.mxu0 0
    %1051 = vmatpush1.bf16.msra.mxu0 0
    %1052 = vmatprep.subr.bf16.mxu0 0
    %1053 = vmatpush1.bf16.msra.mxu0 0
    %1054 = vmatprep.subr.bf16.mxu0 0
    %1055 = vmatpush1.bf16.msra.mxu0 0
    %1056 = vmatprep.subr.bf16.mxu0 0
    %1057 = vmatpush1.bf16.msra.mxu0 0
    %1058 = vmatprep.subr.bf16.mxu0 0
    %1059 = vmatpush1.bf16.msra.mxu0 0
    %1060 = vmatprep.subr.bf16.mxu0 0
    %1061 = vmatpush1.bf16.msra.mxu0 0
    %1062 = vmatprep.mubr.bf16.mxu0 0
    %1063 = vmatmul.mubr.bf16.gmra.mrb[0].mxu0 %v177
    %v1064 = vpop.f32.mrb[0].mxu0
    %v1065 = vadd.f32 %v313, %v1064
    %v1066 = vpop.f32.mrb[0].mxu0
    %v1067 = vadd.f32 %v317, %v1066
    %v1068 = vpop.f32.mrb[0].mxu0
    %v1069 = vpop.f32.mrb[0].mxu0
    %1070 = vdwg.mxu0
    %1071 = vmatprep.subr.bf16.mxu0 %v777
    %1072 = vmatpush1.bf16.msra.mxu0 %v776
    %1073 = vmatprep.subr.bf16.mxu0 %v793
    %1074 = vmatpush1.bf16.msra.mxu0 %v792
    %1075 = vmatprep.subr.bf16.mxu0 %v809
    %1076 = vmatpush1.bf16.msra.mxu0 %v808
    %1077 = vmatprep.subr.bf16.mxu0 %v825
    %1078 = vmatpush1.bf16.msra.mxu0 %v824
    %1079 = vmatprep.subr.bf16.mxu0 %v841
    %1080 = vmatpush1.bf16.msra.mxu0 %v840
    %1081 = vmatprep.subr.bf16.mxu0 %v857
    %1082 = vmatpush1.bf16.msra.mxu0 %v856
    %1083 = vmatprep.subr.bf16.mxu0 %v873
    %1084 = vmatpush1.bf16.msra.mxu0 %v872
    %1085 = vmatprep.subr.bf16.mxu0 %v889
    %1086 = vmatpush1.bf16.msra.mxu0 %v888
    %1087 = vmatprep.subr.bf16.mxu0 0
    %1088 = vmatpush1.bf16.msra.mxu0 0
    %1089 = vmatprep.subr.bf16.mxu0 0
    %1090 = vmatpush1.bf16.msra.mxu0 0
    %1091 = vmatprep.subr.bf16.mxu0 0
    %1092 = vmatpush1.bf16.msra.mxu0 0
    %1093 = vmatprep.subr.bf16.mxu0 0
    %1094 = vmatpush1.bf16.msra.mxu0 0
    %1095 = vmatprep.subr.bf16.mxu0 0
    %1096 = vmatpush1.bf16.msra.mxu0 0
    %1097 = vmatprep.subr.bf16.mxu0 0
    %1098 = vmatpush1.bf16.msra.mxu0 0
    %1099 = vmatprep.subr.bf16.mxu0 0
    %1100 = vmatpush1.bf16.msra.mxu0 0
    %1101 = vmatprep.subr.bf16.mxu0 0
    %1102 = vmatpush1.bf16.msra.mxu0 0
    %1103 = vmatprep.mubr.bf16.mxu0 0
    %1104 = vmatmul.mubr.bf16.gmra.mrb[0].mxu0 %v177
    %v1105 = vpop.f32.mrb[0].mxu0
    %v1106 = vadd.f32 %v321, %v1105
    %v1107 = vpop.f32.mrb[0].mxu0
    %v1108 = vadd.f32 %v325, %v1107
    %v1109 = vpop.f32.mrb[0].mxu0
    %v1110 = vpop.f32.mrb[0].mxu0
    %1111 = vdwg.mxu0
    %1112 = vmatprep.subr.bf16.mxu0 %v779
    %1113 = vmatpush1.bf16.msra.mxu0 %v778
    %1114 = vmatprep.subr.bf16.mxu0 %v795
    %1115 = vmatpush1.bf16.msra.mxu0 %v794
    %1116 = vmatprep.subr.bf16.mxu0 %v811
    %1117 = vmatpush1.bf16.msra.mxu0 %v810
    %1118 = vmatprep.subr.bf16.mxu0 %v827
    %1119 = vmatpush1.bf16.msra.mxu0 %v826
    %1120 = vmatprep.subr.bf16.mxu0 %v843
    %1121 = vmatpush1.bf16.msra.mxu0 %v842
    %1122 = vmatprep.subr.bf16.mxu0 %v859
    %1123 = vmatpush1.bf16.msra.mxu0 %v858
    %1124 = vmatprep.subr.bf16.mxu0 %v875
    %1125 = vmatpush1.bf16.msra.mxu0 %v874
    %1126 = vmatprep.subr.bf16.mxu0 %v891
    %1127 = vmatpush1.bf16.msra.mxu0 %v890
    %1128 = vmatprep.subr.bf16.mxu0 0
    %1129 = vmatpush1.bf16.msra.mxu0 0
    %1130 = vmatprep.subr.bf16.mxu0 0
    %1131 = vmatpush1.bf16.msra.mxu0 0
    %1132 = vmatprep.subr.bf16.mxu0 0
    %1133 = vmatpush1.bf16.msra.mxu0 0
    %1134 = vmatprep.subr.bf16.mxu0 0
    %1135 = vmatpush1.bf16.msra.mxu0 0
    %1136 = vmatprep.subr.bf16.mxu0 0
    %1137 = vmatpush1.bf16.msra.mxu0 0
    %1138 = vmatprep.subr.bf16.mxu0 0
    %1139 = vmatpush1.bf16.msra.mxu0 0
    %1140 = vmatprep.subr.bf16.mxu0 0
    %1141 = vmatpush1.bf16.msra.mxu0 0
    %1142 = vmatprep.subr.bf16.mxu0 0
    %1143 = vmatpush1.bf16.msra.mxu0 0
    %1144 = vmatprep.mubr.bf16.mxu0 0
    %1145 = vmatmul.mubr.bf16.gmra.mrb[0].mxu0 %v177
    %v1146 = vpop.f32.mrb[0].mxu0
    %v1147 = vadd.f32 %v329, %v1146
    %v1148 = vpop.f32.mrb[0].mxu0
    %v1149 = vadd.f32 %v333, %v1148
    %v1150 = vpop.f32.mrb[0].mxu0
    %v1151 = vpop.f32.mrb[0].mxu0
    %1152 = vdwg.mxu0
    %1153 = vmatprep.subr.bf16.mxu0 %v781
    %1154 = vmatpush1.bf16.msra.mxu0 %v780
    %1155 = vmatprep.subr.bf16.mxu0 %v797
    %1156 = vmatpush1.bf16.msra.mxu0 %v796
    %1157 = vmatprep.subr.bf16.mxu0 %v813
    %1158 = vmatpush1.bf16.msra.mxu0 %v812
    %1159 = vmatprep.subr.bf16.mxu0 %v829
    %1160 = vmatpush1.bf16.msra.mxu0 %v828
    %1161 = vmatprep.subr.bf16.mxu0 %v845
    %1162 = vmatpush1.bf16.msra.mxu0 %v844
    %1163 = vmatprep.subr.bf16.mxu0 %v861
    %1164 = vmatpush1.bf16.msra.mxu0 %v860
    %1165 = vmatprep.subr.bf16.mxu0 %v877
    %1166 = vmatpush1.bf16.msra.mxu0 %v876
    %1167 = vmatprep.subr.bf16.mxu0 %v893
    %1168 = vmatpush1.bf16.msra.mxu0 %v892
    %1169 = vmatprep.subr.bf16.mxu0 0
    %1170 = vmatpush1.bf16.msra.mxu0 0
    %1171 = vmatprep.subr.bf16.mxu0 0
    %1172 = vmatpush1.bf16.msra.mxu0 0
    %1173 = vmatprep.subr.bf16.mxu0 0
    %1174 = vmatpush1.bf16.msra.mxu0 0
    %1175 = vmatprep.subr.bf16.mxu0 0
    %1176 = vmatpush1.bf16.msra.mxu0 0
    %1177 = vmatprep.subr.bf16.mxu0 0
    %1178 = vmatpush1.bf16.msra.mxu0 0
    %1179 = vmatprep.subr.bf16.mxu0 0
    %1180 = vmatpush1.bf16.msra.mxu0 0
    %1181 = vmatprep.subr.bf16.mxu0 0
    %1182 = vmatpush1.bf16.msra.mxu0 0
    %1183 = vmatprep.subr.bf16.mxu0 0
    %1184 = vmatpush1.bf16.msra.mxu0 0
    %1185 = vmatprep.mubr.bf16.mxu0 0
    %1186 = vmatmul.mubr.bf16.gmra.mrb[0].mxu0 %v177
    %v1187 = vpop.f32.mrb[0].mxu0
    %v1188 = vadd.f32 %v337, %v1187
    %v1189 = vpop.f32.mrb[0].mxu0
    %v1190 = vadd.f32 %v341, %v1189
    %v1191 = vpop.f32.mrb[0].mxu0
    %v1192 = vpop.f32.mrb[0].mxu0
    %1193 = vdwg.mxu0
    %1194 = vmatprep.subr.bf16.mxu0 %v783
    %1195 = vmatpush1.bf16.msra.mxu0 %v782
    %1196 = vmatprep.subr.bf16.mxu0 %v799
    %1197 = vmatpush1.bf16.msra.mxu0 %v798
    %1198 = vmatprep.subr.bf16.mxu0 %v815
    %1199 = vmatpush1.bf16.msra.mxu0 %v814
    %1200 = vmatprep.subr.bf16.mxu0 %v831
    %1201 = vmatpush1.bf16.msra.mxu0 %v830
    %1202 = vmatprep.subr.bf16.mxu0 %v847
    %1203 = vmatpush1.bf16.msra.mxu0 %v846
    %1204 = vmatprep.subr.bf16.mxu0 %v863
    %1205 = vmatpush1.bf16.msra.mxu0 %v862
    %1206 = vmatprep.subr.bf16.mxu0 %v879
    %1207 = vmatpush1.bf16.msra.mxu0 %v878
    %1208 = vmatprep.subr.bf16.mxu0 %v895
    %1209 = vmatpush1.bf16.msra.mxu0 %v894
    %1210 = vmatprep.subr.bf16.mxu0 0
    %1211 = vmatpush1.bf16.msra.mxu0 0
    %1212 = vmatprep.subr.bf16.mxu0 0
    %1213 = vmatpush1.bf16.msra.mxu0 0
    %1214 = vmatprep.subr.bf16.mxu0 0
    %1215 = vmatpush1.bf16.msra.mxu0 0
    %1216 = vmatprep.subr.bf16.mxu0 0
    %1217 = vmatpush1.bf16.msra.mxu0 0
    %1218 = vmatprep.subr.bf16.mxu0 0
    %1219 = vmatpush1.bf16.msra.mxu0 0
    %1220 = vmatprep.subr.bf16.mxu0 0
    %1221 = vmatpush1.bf16.msra.mxu0 0
    %1222 = vmatprep.subr.bf16.mxu0 0
    %1223 = vmatpush1.bf16.msra.mxu0 0
    %1224 = vmatprep.subr.bf16.mxu0 0
    %1225 = vmatpush1.bf16.msra.mxu0 0
    %1226 = vmatprep.mubr.bf16.mxu0 0
    %1227 = vmatmul.mubr.bf16.gmra.mrb[0].mxu0 %v177
    %v1228 = vpop.f32.mrb[0].mxu0
    %v1229 = vadd.f32 %v345, %v1228
    %v1230 = vpop.f32.mrb[0].mxu0
    %v1231 = vadd.f32 %v349, %v1230
    %v1232 = vpop.f32.mrb[0].mxu0
    %v1233 = vpop.f32.mrb[0].mxu0
    %1234 = vdwg.mxu0
    %1235 = vmatprep.subr.bf16.mxu0 %v785
    %1236 = vmatpush1.bf16.msra.mxu0 %v784
    %1237 = vmatprep.subr.bf16.mxu0 %v801
    %1238 = vmatpush1.bf16.msra.mxu0 %v800
    %1239 = vmatprep.subr.bf16.mxu0 %v817
    %1240 = vmatpush1.bf16.msra.mxu0 %v816
    %1241 = vmatprep.subr.bf16.mxu0 %v833
    %1242 = vmatpush1.bf16.msra.mxu0 %v832
    %1243 = vmatprep.subr.bf16.mxu0 %v849
    %1244 = vmatpush1.bf16.msra.mxu0 %v848
    %1245 = vmatprep.subr.bf16.mxu0 %v865
    %1246 = vmatpush1.bf16.msra.mxu0 %v864
    %1247 = vmatprep.subr.bf16.mxu0 %v881
    %1248 = vmatpush1.bf16.msra.mxu0 %v880
    %1249 = vmatprep.subr.bf16.mxu0 %v897
    %1250 = vmatpush1.bf16.msra.mxu0 %v896
    %1251 = vmatprep.subr.bf16.mxu0 0
    %1252 = vmatpush1.bf16.msra.mxu0 0
    %1253 = vmatprep.subr.bf16.mxu0 0
    %1254 = vmatpush1.bf16.msra.mxu0 0
    %1255 = vmatprep.subr.bf16.mxu0 0
    %1256 = vmatpush1.bf16.msra.mxu0 0
    %1257 = vmatprep.subr.bf16.mxu0 0
    %1258 = vmatpush1.bf16.msra.mxu0 0
    %1259 = vmatprep.subr.bf16.mxu0 0
    %1260 = vmatpush1.bf16.msra.mxu0 0
    %1261 = vmatprep.subr.bf16.mxu0 0
    %1262 = vmatpush1.bf16.msra.mxu0 0
    %1263 = vmatprep.subr.bf16.mxu0 0
    %1264 = vmatpush1.bf16.msra.mxu0 0
    %1265 = vmatprep.subr.bf16.mxu0 0
    %1266 = vmatpush1.bf16.msra.mxu0 0
    %1267 = vmatprep.mubr.bf16.mxu0 0
    %1268 = vmatmul.mubr.bf16.gmra.mrb[0].mxu0 %v177
    %v1269 = vpop.f32.mrb[0].mxu0
    %v1270 = vadd.f32 %v353, %v1269
    %v1271 = vpop.f32.mrb[0].mxu0
    %v1272 = vadd.f32 %v357, %v1271
    %v1273 = vpop.f32.mrb[0].mxu0
    %v1274 = vpop.f32.mrb[0].mxu0
    %1275 = vdwg.mxu0
    %1276 = vmatprep.subr.bf16.mxu0 %v787
    %1277 = vmatpush1.bf16.msra.mxu0 %v786
    %1278 = vmatprep.subr.bf16.mxu0 %v803
    %1279 = vmatpush1.bf16.msra.mxu0 %v802
    %1280 = vmatprep.subr.bf16.mxu0 %v819
    %1281 = vmatpush1.bf16.msra.mxu0 %v818
    %1282 = vmatprep.subr.bf16.mxu0 %v835
    %1283 = vmatpush1.bf16.msra.mxu0 %v834
    %1284 = vmatprep.subr.bf16.mxu0 %v851
    %1285 = vmatpush1.bf16.msra.mxu0 %v850
    %1286 = vmatprep.subr.bf16.mxu0 %v867
    %1287 = vmatpush1.bf16.msra.mxu0 %v866
    %1288 = vmatprep.subr.bf16.mxu0 %v883
    %1289 = vmatpush1.bf16.msra.mxu0 %v882
    %1290 = vmatprep.subr.bf16.mxu0 %v899
    %1291 = vmatpush1.bf16.msra.mxu0 %v898
    %1292 = vmatprep.subr.bf16.mxu0 0
    %1293 = vmatpush1.bf16.msra.mxu0 0
    %1294 = vmatprep.subr.bf16.mxu0 0
    %1295 = vmatpush1.bf16.msra.mxu0 0
    %1296 = vmatprep.subr.bf16.mxu0 0
    %1297 = vmatpush1.bf16.msra.mxu0 0
    %1298 = vmatprep.subr.bf16.mxu0 0
    %1299 = vmatpush1.bf16.msra.mxu0 0
    %1300 = vmatprep.subr.bf16.mxu0 0
    %1301 = vmatpush1.bf16.msra.mxu0 0
    %1302 = vmatprep.subr.bf16.mxu0 0
    %1303 = vmatpush1.bf16.msra.mxu0 0
    %1304 = vmatprep.subr.bf16.mxu0 0
    %1305 = vmatpush1.bf16.msra.mxu0 0
    %1306 = vmatprep.subr.bf16.mxu0 0
    %1307 = vmatpush1.bf16.msra.mxu0 0
    %1308 = vmatprep.mubr.bf16.mxu0 0
    %1309 = vmatmul.mubr.bf16.gmra.mrb[0].mxu0 %v177
    %v1310 = vpop.f32.mrb[0].mxu0
    %v1311 = vadd.f32 %v361, %v1310
    %v1312 = vpop.f32.mrb[0].mxu0
    %v1313 = vadd.f32 %v365, %v1312
    %v1314 = vpop.f32.mrb[0].mxu0
    %v1315 = vpop.f32.mrb[0].mxu0
    %1316 = vdwg.mxu0
    %1317 = vmatprep.subr.bf16.mxu0 %v789
    %1318 = vmatpush1.bf16.msra.mxu0 %v788
    %1319 = vmatprep.subr.bf16.mxu0 %v805
    %1320 = vmatpush1.bf16.msra.mxu0 %v804
    %1321 = vmatprep.subr.bf16.mxu0 %v821
    %1322 = vmatpush1.bf16.msra.mxu0 %v820
    %1323 = vmatprep.subr.bf16.mxu0 %v837
    %1324 = vmatpush1.bf16.msra.mxu0 %v836
    %1325 = vmatprep.subr.bf16.mxu0 %v853
    %1326 = vmatpush1.bf16.msra.mxu0 %v852
    %1327 = vmatprep.subr.bf16.mxu0 %v869
    %1328 = vmatpush1.bf16.msra.mxu0 %v868
    %1329 = vmatprep.subr.bf16.mxu0 %v885
    %1330 = vmatpush1.bf16.msra.mxu0 %v884
    %1331 = vmatprep.subr.bf16.mxu0 %v901
    %1332 = vmatpush1.bf16.msra.mxu0 %v900
    %1333 = vmatprep.subr.bf16.mxu0 0
    %1334 = vmatpush1.bf16.msra.mxu0 0
    %1335 = vmatprep.subr.bf16.mxu0 0
    %1336 = vmatpush1.bf16.msra.mxu0 0
    %1337 = vmatprep.subr.bf16.mxu0 0
    %1338 = vmatpush1.bf16.msra.mxu0 0
    %1339 = vmatprep.subr.bf16.mxu0 0
    %1340 = vmatpush1.bf16.msra.mxu0 0
    %1341 = vmatprep.subr.bf16.mxu0 0
    %1342 = vmatpush1.bf16.msra.mxu0 0
    %1343 = vmatprep.subr.bf16.mxu0 0
    %1344 = vmatpush1.bf16.msra.mxu0 0
    %1345 = vmatprep.subr.bf16.mxu0 0
    %1346 = vmatpush1.bf16.msra.mxu0 0
    %1347 = vmatprep.subr.bf16.mxu0 0
    %1348 = vmatpush1.bf16.msra.mxu0 0
    %1349 = vmatprep.mubr.bf16.mxu0 0
    %1350 = vmatmul.mubr.bf16.gmra.mrb[0].mxu0 %v177
    %v1351 = vpop.f32.mrb[0].mxu0
    %v1352 = vadd.f32 %v369, %v1351
    %v1353 = vpop.f32.mrb[0].mxu0
    %v1354 = vadd.f32 %v373, %v1353
    %v1355 = vpop.f32.mrb[0].mxu0
    %v1356 = vpop.f32.mrb[0].mxu0
    %1357 = vdwg.mxu0
    %v1358 = vmax.f32 %v1065, %v1229
    %v1359 = vmax.f32 %v1067, %v1231
    %v1360 = vmax.f32 %v1106, %v1270
    %v1361 = vmax.f32 %v1108, %v1272
    %v1362 = vmax.f32 %v1147, %v1311
    %v1363 = vmax.f32 %v1149, %v1313
    %v1364 = vmax.f32 %v1188, %v1352
    %v1365 = vmax.f32 %v1190, %v1354
    %v1366 = vmax.f32 %v1358, 0.0
    %v1367 = vmax.f32 %v1359, 0.0
    %v1368 = vmax.f32 %v1360, 0.0
    %v1369 = vmax.f32 %v1361, 0.0
    %v1370 = vmax.f32 %v1362, 0.0
    %v1371 = vmax.f32 %v1363, 0.0
    %v1372 = vmax.f32 %v1364, 0.0
    %v1373 = vmax.f32 %v1365, 0.0
    %v1374 = vpack.c.bf16 %v1366, %v1366
    %v1375 = vpack.c.bf16 %v1367, %v1367
    %v1376 = vpack.c.bf16 %v1368, %v1368
    %v1377 = vpack.c.bf16 %v1369, %v1369
    %v1378 = vpack.c.bf16 %v1370, %v1370
    %v1379 = vpack.c.bf16 %v1371, %v1371
    %v1380 = vpack.c.bf16 %v1372, %v1372
    %v1381 = vpack.c.bf16 %v1373, %v1373
    %v1382 = vld [vmem:[#allocation8] sm:$0xff]
    %v1383 = vld [vmem:[#allocation8 + $0x8] sm:$0xff]
    %v1384 = vld [vmem:[#allocation8 + $0x10] sm:$0xff]
    %v1385 = vld [vmem:[#allocation8 + $0x18] sm:$0xff]
    %v1386 = vld [vmem:[#allocation8 + $0x20] sm:$0xff]
    %v1387 = vld [vmem:[#allocation8 + $0x28] sm:$0xff]
    %v1388 = vld [vmem:[#allocation8 + $0x30] sm:$0xff]
    %v1389 = vld [vmem:[#allocation8 + $0x38] sm:$0xff]
    %v1390 = vld [vmem:[#allocation8 + $0x40] sm:$0xff]
    %v1391 = vld [vmem:[#allocation8 + $0x48] sm:$0xff]
    %v1392 = vld [vmem:[#allocation8 + $0x50] sm:$0xff]
    %v1393 = vld [vmem:[#allocation8 + $0x58] sm:$0xff]
    %v1394 = vld [vmem:[#allocation8 + $0x60] sm:$0xff]
    %v1395 = vld [vmem:[#allocation8 + $0x68] sm:$0xff]
    %v1396 = vld [vmem:[#allocation8 + $0x70] sm:$0xff]
    %v1397 = vld [vmem:[#allocation8 + $0x78] sm:$0xff]
    %v1398 = vld [vmem:[#allocation8 + $0x80] sm:$0xff]
    %v1399 = vld [vmem:[#allocation8 + $0x88] sm:$0xff]
    %v1400 = vld [vmem:[#allocation8 + $0x90] sm:$0xff]
    %v1401 = vld [vmem:[#allocation8 + $0x98] sm:$0xff]
    %v1402 = vld [vmem:[#allocation8 + $0xa0] sm:$0xff]
    %v1403 = vld [vmem:[#allocation8 + $0xa8] sm:$0xff]
    %v1404 = vld [vmem:[#allocation8 + $0xb0] sm:$0xff]
    %v1405 = vld [vmem:[#allocation8 + $0xb8] sm:$0xff]
    %v1406 = vld [vmem:[#allocation8 + $0xc0] sm:$0xff]
    %v1407 = vld [vmem:[#allocation8 + $0xc8] sm:$0xff]
    %v1408 = vld [vmem:[#allocation8 + $0xd0] sm:$0xff]
    %v1409 = vld [vmem:[#allocation8 + $0xd8] sm:$0xff]
    %v1410 = vld [vmem:[#allocation8 + $0xe0] sm:$0xff]
    %v1411 = vld [vmem:[#allocation8 + $0xe8] sm:$0xff]
    %v1412 = vld [vmem:[#allocation8 + $0xf0] sm:$0xff]
    %v1413 = vld [vmem:[#allocation8 + $0xf8] sm:$0xff]
    %v1414 = vld [vmem:[#allocation8 + $0x100] sm:$0xff]
    %v1415 = vld [vmem:[#allocation8 + $0x108] sm:$0xff]
    %v1416 = vld [vmem:[#allocation8 + $0x110] sm:$0xff]
    %v1417 = vld [vmem:[#allocation8 + $0x118] sm:$0xff]
    %v1418 = vld [vmem:[#allocation8 + $0x120] sm:$0xff]
    %v1419 = vld [vmem:[#allocation8 + $0x128] sm:$0xff]
    %v1420 = vld [vmem:[#allocation8 + $0x130] sm:$0xff]
    %v1421 = vld [vmem:[#allocation8 + $0x138] sm:$0xff]
    %v1422 = vld [vmem:[#allocation8 + $0x140] sm:$0xff]
    %v1423 = vld [vmem:[#allocation8 + $0x148] sm:$0xff]
    %v1424 = vld [vmem:[#allocation8 + $0x150] sm:$0xff]
    %v1425 = vld [vmem:[#allocation8 + $0x158] sm:$0xff]
    %v1426 = vld [vmem:[#allocation8 + $0x160] sm:$0xff]
    %v1427 = vld [vmem:[#allocation8 + $0x168] sm:$0xff]
    %v1428 = vld [vmem:[#allocation8 + $0x170] sm:$0xff]
    %v1429 = vld [vmem:[#allocation8 + $0x178] sm:$0xff]
    %v1430 = vld [vmem:[#allocation8 + $0x180] sm:$0xff]
    %v1431 = vld [vmem:[#allocation8 + $0x188] sm:$0xff]
    %v1432 = vld [vmem:[#allocation8 + $0x190] sm:$0xff]
    %v1433 = vld [vmem:[#allocation8 + $0x198] sm:$0xff]
    %v1434 = vld [vmem:[#allocation8 + $0x1a0] sm:$0xff]
    %v1435 = vld [vmem:[#allocation8 + $0x1a8] sm:$0xff]
    %v1436 = vld [vmem:[#allocation8 + $0x1b0] sm:$0xff]
    %v1437 = vld [vmem:[#allocation8 + $0x1b8] sm:$0xff]
    %v1438 = vld [vmem:[#allocation8 + $0x1c0] sm:$0xff]
    %v1439 = vld [vmem:[#allocation8 + $0x1c8] sm:$0xff]
    %v1440 = vld [vmem:[#allocation8 + $0x1d0] sm:$0xff]
    %v1441 = vld [vmem:[#allocation8 + $0x1d8] sm:$0xff]
    %v1442 = vld [vmem:[#allocation8 + $0x1e0] sm:$0xff]
    %v1443 = vld [vmem:[#allocation8 + $0x1e8] sm:$0xff]
    %v1444 = vld [vmem:[#allocation8 + $0x1f0] sm:$0xff]
    %v1445 = vld [vmem:[#allocation8 + $0x1f8] sm:$0xff]
    %v1446 = vld [vmem:[#allocation8 + $0x200] sm:$0xff]
    %v1447 = vld [vmem:[#allocation8 + $0x208] sm:$0xff]
    %v1448 = vld [vmem:[#allocation8 + $0x210] sm:$0xff]
    %v1449 = vld [vmem:[#allocation8 + $0x218] sm:$0xff]
    %v1450 = vld [vmem:[#allocation8 + $0x220] sm:$0xff]
    %v1451 = vld [vmem:[#allocation8 + $0x228] sm:$0xff]
    %v1452 = vld [vmem:[#allocation8 + $0x230] sm:$0xff]
    %v1453 = vld [vmem:[#allocation8 + $0x238] sm:$0xff]
    %v1454 = vld [vmem:[#allocation8 + $0x240] sm:$0xff]
    %v1455 = vld [vmem:[#allocation8 + $0x248] sm:$0xff]
    %v1456 = vld [vmem:[#allocation8 + $0x250] sm:$0xff]
    %v1457 = vld [vmem:[#allocation8 + $0x258] sm:$0xff]
    %v1458 = vld [vmem:[#allocation8 + $0x260] sm:$0xff]
    %v1459 = vld [vmem:[#allocation8 + $0x268] sm:$0xff]
    %v1460 = vld [vmem:[#allocation8 + $0x270] sm:$0xff]
    %v1461 = vld [vmem:[#allocation8 + $0x278] sm:$0xff]
    %v1462 = vld [vmem:[#allocation8 + $0x280] sm:$0xff]
    %v1463 = vld [vmem:[#allocation8 + $0x288] sm:$0xff]
    %v1464 = vld [vmem:[#allocation8 + $0x290] sm:$0xff]
    %v1465 = vld [vmem:[#allocation8 + $0x298] sm:$0xff]
    %v1466 = vld [vmem:[#allocation8 + $0x2a0] sm:$0xff]
    %v1467 = vld [vmem:[#allocation8 + $0x2a8] sm:$0xff]
    %v1468 = vld [vmem:[#allocation8 + $0x2b0] sm:$0xff]
    %v1469 = vld [vmem:[#allocation8 + $0x2b8] sm:$0xff]
    %v1470 = vld [vmem:[#allocation8 + $0x2c0] sm:$0xff]
    %v1471 = vld [vmem:[#allocation8 + $0x2c8] sm:$0xff]
    %v1472 = vld [vmem:[#allocation8 + $0x2d0] sm:$0xff]
    %v1473 = vld [vmem:[#allocation8 + $0x2d8] sm:$0xff]
    %v1474 = vld [vmem:[#allocation8 + $0x2e0] sm:$0xff]
    %v1475 = vld [vmem:[#allocation8 + $0x2e8] sm:$0xff]
    %v1476 = vld [vmem:[#allocation8 + $0x2f0] sm:$0xff]
    %v1477 = vld [vmem:[#allocation8 + $0x2f8] sm:$0xff]
    %v1478 = vld [vmem:[#allocation8 + $0x300] sm:$0xff]
    %v1479 = vld [vmem:[#allocation8 + $0x308] sm:$0xff]
    %v1480 = vld [vmem:[#allocation8 + $0x310] sm:$0xff]
    %v1481 = vld [vmem:[#allocation8 + $0x318] sm:$0xff]
    %v1482 = vld [vmem:[#allocation8 + $0x320] sm:$0xff]
    %v1483 = vld [vmem:[#allocation8 + $0x328] sm:$0xff]
    %v1484 = vld [vmem:[#allocation8 + $0x330] sm:$0xff]
    %v1485 = vld [vmem:[#allocation8 + $0x338] sm:$0xff]
    %v1486 = vld [vmem:[#allocation8 + $0x340] sm:$0xff]
    %v1487 = vld [vmem:[#allocation8 + $0x348] sm:$0xff]
    %v1488 = vld [vmem:[#allocation8 + $0x350] sm:$0xff]
    %v1489 = vld [vmem:[#allocation8 + $0x358] sm:$0xff]
    %v1490 = vld [vmem:[#allocation8 + $0x360] sm:$0xff]
    %v1491 = vld [vmem:[#allocation8 + $0x368] sm:$0xff]
    %v1492 = vld [vmem:[#allocation8 + $0x370] sm:$0xff]
    %v1493 = vld [vmem:[#allocation8 + $0x378] sm:$0xff]
    %v1494 = vld [vmem:[#allocation8 + $0x380] sm:$0xff]
    %v1495 = vld [vmem:[#allocation8 + $0x388] sm:$0xff]
    %v1496 = vld [vmem:[#allocation8 + $0x390] sm:$0xff]
    %v1497 = vld [vmem:[#allocation8 + $0x398] sm:$0xff]
    %v1498 = vld [vmem:[#allocation8 + $0x3a0] sm:$0xff]
    %v1499 = vld [vmem:[#allocation8 + $0x3a8] sm:$0xff]
    %v1500 = vld [vmem:[#allocation8 + $0x3b0] sm:$0xff]
    %v1501 = vld [vmem:[#allocation8 + $0x3b8] sm:$0xff]
    %v1502 = vld [vmem:[#allocation8 + $0x3c0] sm:$0xff]
    %v1503 = vld [vmem:[#allocation8 + $0x3c8] sm:$0xff]
    %v1504 = vld [vmem:[#allocation8 + $0x3d0] sm:$0xff]
    %v1505 = vld [vmem:[#allocation8 + $0x3d8] sm:$0xff]
    %v1506 = vld [vmem:[#allocation8 + $0x3e0] sm:$0xff]
    %v1507 = vld [vmem:[#allocation8 + $0x3e8] sm:$0xff]
    %v1508 = vld [vmem:[#allocation8 + $0x3f0] sm:$0xff]
    %v1509 = vld [vmem:[#allocation8 + $0x3f8] sm:$0xff]
    %v1510 = vld [vmem:[#allocation8 + $0x400] sm:$0xff]
    %v1511 = vld [vmem:[#allocation8 + $0x408] sm:$0xff]
    %v1512 = vld [vmem:[#allocation8 + $0x410] sm:$0xff]
    %v1513 = vld [vmem:[#allocation8 + $0x418] sm:$0xff]
    %v1514 = vld [vmem:[#allocation8 + $0x420] sm:$0xff]
    %v1515 = vld [vmem:[#allocation8 + $0x428] sm:$0xff]
    %v1516 = vld [vmem:[#allocation8 + $0x430] sm:$0xff]
    %v1517 = vld [vmem:[#allocation8 + $0x438] sm:$0xff]
    %v1518 = vld [vmem:[#allocation8 + $0x440] sm:$0xff]
    %v1519 = vld [vmem:[#allocation8 + $0x448] sm:$0xff]
    %v1520 = vld [vmem:[#allocation8 + $0x450] sm:$0xff]
    %v1521 = vld [vmem:[#allocation8 + $0x458] sm:$0xff]
    %v1522 = vld [vmem:[#allocation8 + $0x460] sm:$0xff]
    %v1523 = vld [vmem:[#allocation8 + $0x468] sm:$0xff]
    %v1524 = vld [vmem:[#allocation8 + $0x470] sm:$0xff]
    %v1525 = vld [vmem:[#allocation8 + $0x478] sm:$0xff]
    %v1526 = vld [vmem:[#allocation8 + $0x480] sm:$0xff]
    %v1527 = vld [vmem:[#allocation8 + $0x488] sm:$0xff]
    %v1528 = vld [vmem:[#allocation8 + $0x490] sm:$0xff]
    %v1529 = vld [vmem:[#allocation8 + $0x498] sm:$0xff]
    %v1530 = vld [vmem:[#allocation8 + $0x4a0] sm:$0xff]
    %v1531 = vld [vmem:[#allocation8 + $0x4a8] sm:$0xff]
    %v1532 = vld [vmem:[#allocation8 + $0x4b0] sm:$0xff]
    %v1533 = vld [vmem:[#allocation8 + $0x4b8] sm:$0xff]
    %v1534 = vld [vmem:[#allocation8 + $0x4c0] sm:$0xff]
    %v1535 = vld [vmem:[#allocation8 + $0x4c8] sm:$0xff]
    %v1536 = vld [vmem:[#allocation8 + $0x4d0] sm:$0xff]
    %v1537 = vld [vmem:[#allocation8 + $0x4d8] sm:$0xff]
    %v1538 = vld [vmem:[#allocation8 + $0x4e0] sm:$0xff]
    %v1539 = vld [vmem:[#allocation8 + $0x4e8] sm:$0xff]
    %v1540 = vld [vmem:[#allocation8 + $0x4f0] sm:$0xff]
    %v1541 = vld [vmem:[#allocation8 + $0x4f8] sm:$0xff]
    %v1542 = vld [vmem:[#allocation8 + $0x500] sm:$0xff]
    %v1543 = vld [vmem:[#allocation8 + $0x508] sm:$0xff]
    %v1544 = vld [vmem:[#allocation8 + $0x510] sm:$0xff]
    %v1545 = vld [vmem:[#allocation8 + $0x518] sm:$0xff]
    %v1546 = vld [vmem:[#allocation8 + $0x520] sm:$0xff]
    %v1547 = vld [vmem:[#allocation8 + $0x528] sm:$0xff]
    %v1548 = vld [vmem:[#allocation8 + $0x530] sm:$0xff]
    %v1549 = vld [vmem:[#allocation8 + $0x538] sm:$0xff]
    %v1550 = vld [vmem:[#allocation8 + $0x540] sm:$0xff]
    %v1551 = vld [vmem:[#allocation8 + $0x548] sm:$0xff]
    %v1552 = vld [vmem:[#allocation8 + $0x550] sm:$0xff]
    %v1553 = vld [vmem:[#allocation8 + $0x558] sm:$0xff]
    %v1554 = vld [vmem:[#allocation8 + $0x560] sm:$0xff]
    %v1555 = vld [vmem:[#allocation8 + $0x568] sm:$0xff]
    %v1556 = vld [vmem:[#allocation8 + $0x570] sm:$0xff]
    %v1557 = vld [vmem:[#allocation8 + $0x578] sm:$0xff]
    %v1558 = vld [vmem:[#allocation8 + $0x580] sm:$0xff]
    %v1559 = vld [vmem:[#allocation8 + $0x588] sm:$0xff]
    %v1560 = vld [vmem:[#allocation8 + $0x590] sm:$0xff]
    %v1561 = vld [vmem:[#allocation8 + $0x598] sm:$0xff]
    %v1562 = vld [vmem:[#allocation8 + $0x5a0] sm:$0xff]
    %v1563 = vld [vmem:[#allocation8 + $0x5a8] sm:$0xff]
    %v1564 = vld [vmem:[#allocation8 + $0x5b0] sm:$0xff]
    %v1565 = vld [vmem:[#allocation8 + $0x5b8] sm:$0xff]
    %v1566 = vld [vmem:[#allocation8 + $0x5c0] sm:$0xff]
    %v1567 = vld [vmem:[#allocation8 + $0x5c8] sm:$0xff]
    %v1568 = vld [vmem:[#allocation8 + $0x5d0] sm:$0xff]
    %v1569 = vld [vmem:[#allocation8 + $0x5d8] sm:$0xff]
    %v1570 = vld [vmem:[#allocation8 + $0x5e0] sm:$0xff]
    %v1571 = vld [vmem:[#allocation8 + $0x5e8] sm:$0xff]
    %v1572 = vld [vmem:[#allocation8 + $0x5f0] sm:$0xff]
    %v1573 = vld [vmem:[#allocation8 + $0x5f8] sm:$0xff]
    %v1574 = vld [vmem:[#allocation8 + $0x600] sm:$0xff]
    %v1575 = vld [vmem:[#allocation8 + $0x608] sm:$0xff]
    %v1576 = vld [vmem:[#allocation8 + $0x610] sm:$0xff]
    %v1577 = vld [vmem:[#allocation8 + $0x618] sm:$0xff]
    %v1578 = vld [vmem:[#allocation8 + $0x620] sm:$0xff]
    %v1579 = vld [vmem:[#allocation8 + $0x628] sm:$0xff]
    %v1580 = vld [vmem:[#allocation8 + $0x630] sm:$0xff]
    %v1581 = vld [vmem:[#allocation8 + $0x638] sm:$0xff]
    %v1582 = vld [vmem:[#allocation8 + $0x640] sm:$0xff]
    %v1583 = vld [vmem:[#allocation8 + $0x648] sm:$0xff]
    %v1584 = vld [vmem:[#allocation8 + $0x650] sm:$0xff]
    %v1585 = vld [vmem:[#allocation8 + $0x658] sm:$0xff]
    %v1586 = vld [vmem:[#allocation8 + $0x660] sm:$0xff]
    %v1587 = vld [vmem:[#allocation8 + $0x668] sm:$0xff]
    %v1588 = vld [vmem:[#allocation8 + $0x670] sm:$0xff]
    %v1589 = vld [vmem:[#allocation8 + $0x678] sm:$0xff]
    %v1590 = vld [vmem:[#allocation8 + $0x680] sm:$0xff]
    %v1591 = vld [vmem:[#allocation8 + $0x688] sm:$0xff]
    %v1592 = vld [vmem:[#allocation8 + $0x690] sm:$0xff]
    %v1593 = vld [vmem:[#allocation8 + $0x698] sm:$0xff]
    %v1594 = vld [vmem:[#allocation8 + $0x6a0] sm:$0xff]
    %v1595 = vld [vmem:[#allocation8 + $0x6a8] sm:$0xff]
    %v1596 = vld [vmem:[#allocation8 + $0x6b0] sm:$0xff]
    %v1597 = vld [vmem:[#allocation8 + $0x6b8] sm:$0xff]
    %v1598 = vld [vmem:[#allocation8 + $0x6c0] sm:$0xff]
    %v1599 = vld [vmem:[#allocation8 + $0x6c8] sm:$0xff]
    %v1600 = vld [vmem:[#allocation8 + $0x6d0] sm:$0xff]
    %v1601 = vld [vmem:[#allocation8 + $0x6d8] sm:$0xff]
    %v1602 = vld [vmem:[#allocation8 + $0x6e0] sm:$0xff]
    %v1603 = vld [vmem:[#allocation8 + $0x6e8] sm:$0xff]
    %v1604 = vld [vmem:[#allocation8 + $0x6f0] sm:$0xff]
    %v1605 = vld [vmem:[#allocation8 + $0x6f8] sm:$0xff]
    %v1606 = vld [vmem:[#allocation8 + $0x700] sm:$0xff]
    %v1607 = vld [vmem:[#allocation8 + $0x708] sm:$0xff]
    %v1608 = vld [vmem:[#allocation8 + $0x710] sm:$0xff]
    %v1609 = vld [vmem:[#allocation8 + $0x718] sm:$0xff]
    %v1610 = vld [vmem:[#allocation8 + $0x720] sm:$0xff]
    %v1611 = vld [vmem:[#allocation8 + $0x728] sm:$0xff]
    %v1612 = vld [vmem:[#allocation8 + $0x730] sm:$0xff]
    %v1613 = vld [vmem:[#allocation8 + $0x738] sm:$0xff]
    %v1614 = vld [vmem:[#allocation8 + $0x740] sm:$0xff]
    %v1615 = vld [vmem:[#allocation8 + $0x748] sm:$0xff]
    %v1616 = vld [vmem:[#allocation8 + $0x750] sm:$0xff]
    %v1617 = vld [vmem:[#allocation8 + $0x758] sm:$0xff]
    %v1618 = vld [vmem:[#allocation8 + $0x760] sm:$0xff]
    %v1619 = vld [vmem:[#allocation8 + $0x768] sm:$0xff]
    %v1620 = vld [vmem:[#allocation8 + $0x770] sm:$0xff]
    %v1621 = vld [vmem:[#allocation8 + $0x778] sm:$0xff]
    %v1622 = vld [vmem:[#allocation8 + $0x780] sm:$0xff]
    %v1623 = vld [vmem:[#allocation8 + $0x788] sm:$0xff]
    %v1624 = vld [vmem:[#allocation8 + $0x790] sm:$0xff]
    %v1625 = vld [vmem:[#allocation8 + $0x798] sm:$0xff]
    %v1626 = vld [vmem:[#allocation8 + $0x7a0] sm:$0xff]
    %v1627 = vld [vmem:[#allocation8 + $0x7a8] sm:$0xff]
    %v1628 = vld [vmem:[#allocation8 + $0x7b0] sm:$0xff]
    %v1629 = vld [vmem:[#allocation8 + $0x7b8] sm:$0xff]
    %v1630 = vld [vmem:[#allocation8 + $0x7c0] sm:$0xff]
    %v1631 = vld [vmem:[#allocation8 + $0x7c8] sm:$0xff]
    %v1632 = vld [vmem:[#allocation8 + $0x7d0] sm:$0xff]
    %v1633 = vld [vmem:[#allocation8 + $0x7d8] sm:$0xff]
    %v1634 = vld [vmem:[#allocation8 + $0x7e0] sm:$0xff]
    %v1635 = vld [vmem:[#allocation8 + $0x7e8] sm:$0xff]
    %v1636 = vld [vmem:[#allocation8 + $0x7f0] sm:$0xff]
    %v1637 = vld [vmem:[#allocation8 + $0x7f8] sm:$0xff]
    %v1638 = vld [vmem:[#allocation8 + $0x800] sm:$0xff]
    %v1639 = vld [vmem:[#allocation8 + $0x808] sm:$0xff]
    %v1640 = vld [vmem:[#allocation8 + $0x810] sm:$0xff]
    %v1641 = vld [vmem:[#allocation8 + $0x818] sm:$0xff]
    %v1642 = vld [vmem:[#allocation8 + $0x820] sm:$0xff]
    %v1643 = vld [vmem:[#allocation8 + $0x828] sm:$0xff]
    %v1644 = vld [vmem:[#allocation8 + $0x830] sm:$0xff]
    %v1645 = vld [vmem:[#allocation8 + $0x838] sm:$0xff]
    %v1646 = vld [vmem:[#allocation8 + $0x840] sm:$0xff]
    %v1647 = vld [vmem:[#allocation8 + $0x848] sm:$0xff]
    %v1648 = vld [vmem:[#allocation8 + $0x850] sm:$0xff]
    %v1649 = vld [vmem:[#allocation8 + $0x858] sm:$0xff]
    %v1650 = vld [vmem:[#allocation8 + $0x860] sm:$0xff]
    %v1651 = vld [vmem:[#allocation8 + $0x868] sm:$0xff]
    %v1652 = vld [vmem:[#allocation8 + $0x870] sm:$0xff]
    %v1653 = vld [vmem:[#allocation8 + $0x878] sm:$0xff]
    %v1654 = vld [vmem:[#allocation8 + $0x880] sm:$0xff]
    %v1655 = vld [vmem:[#allocation8 + $0x888] sm:$0xff]
    %v1656 = vld [vmem:[#allocation8 + $0x890] sm:$0xff]
    %v1657 = vld [vmem:[#allocation8 + $0x898] sm:$0xff]
    %v1658 = vld [vmem:[#allocation8 + $0x8a0] sm:$0xff]
    %v1659 = vld [vmem:[#allocation8 + $0x8a8] sm:$0xff]
    %v1660 = vld [vmem:[#allocation8 + $0x8b0] sm:$0xff]
    %v1661 = vld [vmem:[#allocation8 + $0x8b8] sm:$0xff]
    %v1662 = vld [vmem:[#allocation8 + $0x8c0] sm:$0xff]
    %v1663 = vld [vmem:[#allocation8 + $0x8c8] sm:$0xff]
    %v1664 = vld [vmem:[#allocation8 + $0x8d0] sm:$0xff]
    %v1665 = vld [vmem:[#allocation8 + $0x8d8] sm:$0xff]
    %v1666 = vld [vmem:[#allocation8 + $0x8e0] sm:$0xff]
    %v1667 = vld [vmem:[#allocation8 + $0x8e8] sm:$0xff]
    %v1668 = vld [vmem:[#allocation8 + $0x8f0] sm:$0xff]
    %v1669 = vld [vmem:[#allocation8 + $0x8f8] sm:$0xff]
    %v1670 = vld [vmem:[#allocation8 + $0x900] sm:$0xff]
    %v1671 = vld [vmem:[#allocation8 + $0x908] sm:$0xff]
    %v1672 = vld [vmem:[#allocation8 + $0x910] sm:$0xff]
    %v1673 = vld [vmem:[#allocation8 + $0x918] sm:$0xff]
    %v1674 = vld [vmem:[#allocation8 + $0x920] sm:$0xff]
    %v1675 = vld [vmem:[#allocation8 + $0x928] sm:$0xff]
    %v1676 = vld [vmem:[#allocation8 + $0x930] sm:$0xff]
    %v1677 = vld [vmem:[#allocation8 + $0x938] sm:$0xff]
    %v1678 = vld [vmem:[#allocation8 + $0x940] sm:$0xff]
    %v1679 = vld [vmem:[#allocation8 + $0x948] sm:$0xff]
    %v1680 = vld [vmem:[#allocation8 + $0x950] sm:$0xff]
    %v1681 = vld [vmem:[#allocation8 + $0x958] sm:$0xff]
    %v1682 = vld [vmem:[#allocation8 + $0x960] sm:$0xff]
    %v1683 = vld [vmem:[#allocation8 + $0x968] sm:$0xff]
    %v1684 = vld [vmem:[#allocation8 + $0x970] sm:$0xff]
    %v1685 = vld [vmem:[#allocation8 + $0x978] sm:$0xff]
    %v1686 = vld [vmem:[#allocation8 + $0x980] sm:$0xff]
    %v1687 = vld [vmem:[#allocation8 + $0x988] sm:$0xff]
    %v1688 = vld [vmem:[#allocation8 + $0x990] sm:$0xff]
    %v1689 = vld [vmem:[#allocation8 + $0x998] sm:$0xff]
    %v1690 = vld [vmem:[#allocation8 + $0x9a0] sm:$0xff]
    %v1691 = vld [vmem:[#allocation8 + $0x9a8] sm:$0xff]
    %v1692 = vld [vmem:[#allocation8 + $0x9b0] sm:$0xff]
    %v1693 = vld [vmem:[#allocation8 + $0x9b8] sm:$0xff]
    %v1694 = vld [vmem:[#allocation8 + $0x9c0] sm:$0xff]
    %v1695 = vld [vmem:[#allocation8 + $0x9c8] sm:$0xff]
    %v1696 = vld [vmem:[#allocation8 + $0x9d0] sm:$0xff]
    %v1697 = vld [vmem:[#allocation8 + $0x9d8] sm:$0xff]
    %v1698 = vld [vmem:[#allocation8 + $0x9e0] sm:$0xff]
    %v1699 = vld [vmem:[#allocation8 + $0x9e8] sm:$0xff]
    %v1700 = vld [vmem:[#allocation8 + $0x9f0] sm:$0xff]
    %v1701 = vld [vmem:[#allocation8 + $0x9f8] sm:$0xff]
    %v1702 = vld [vmem:[#allocation8 + $0xa00] sm:$0xff]
    %v1703 = vld [vmem:[#allocation8 + $0xa08] sm:$0xff]
    %v1704 = vld [vmem:[#allocation8 + $0xa10] sm:$0xff]
    %v1705 = vld [vmem:[#allocation8 + $0xa18] sm:$0xff]
    %v1706 = vld [vmem:[#allocation8 + $0xa20] sm:$0xff]
    %v1707 = vld [vmem:[#allocation8 + $0xa28] sm:$0xff]
    %v1708 = vld [vmem:[#allocation8 + $0xa30] sm:$0xff]
    %v1709 = vld [vmem:[#allocation8 + $0xa38] sm:$0xff]
    %v1710 = vld [vmem:[#allocation8 + $0xa40] sm:$0xff]
    %v1711 = vld [vmem:[#allocation8 + $0xa48] sm:$0xff]
    %v1712 = vld [vmem:[#allocation8 + $0xa50] sm:$0xff]
    %v1713 = vld [vmem:[#allocation8 + $0xa58] sm:$0xff]
    %v1714 = vld [vmem:[#allocation8 + $0xa60] sm:$0xff]
    %v1715 = vld [vmem:[#allocation8 + $0xa68] sm:$0xff]
    %v1716 = vld [vmem:[#allocation8 + $0xa70] sm:$0xff]
    %v1717 = vld [vmem:[#allocation8 + $0xa78] sm:$0xff]
    %v1718 = vld [vmem:[#allocation8 + $0xa80] sm:$0xff]
    %v1719 = vld [vmem:[#allocation8 + $0xa88] sm:$0xff]
    %v1720 = vld [vmem:[#allocation8 + $0xa90] sm:$0xff]
    %v1721 = vld [vmem:[#allocation8 + $0xa98] sm:$0xff]
    %v1722 = vld [vmem:[#allocation8 + $0xaa0] sm:$0xff]
    %v1723 = vld [vmem:[#allocation8 + $0xaa8] sm:$0xff]
    %v1724 = vld [vmem:[#allocation8 + $0xab0] sm:$0xff]
    %v1725 = vld [vmem:[#allocation8 + $0xab8] sm:$0xff]
    %v1726 = vld [vmem:[#allocation8 + $0xac0] sm:$0xff]
    %v1727 = vld [vmem:[#allocation8 + $0xac8] sm:$0xff]
    %v1728 = vld [vmem:[#allocation8 + $0xad0] sm:$0xff]
    %v1729 = vld [vmem:[#allocation8 + $0xad8] sm:$0xff]
    %v1730 = vld [vmem:[#allocation8 + $0xae0] sm:$0xff]
    %v1731 = vld [vmem:[#allocation8 + $0xae8] sm:$0xff]
    %v1732 = vld [vmem:[#allocation8 + $0xaf0] sm:$0xff]
    %v1733 = vld [vmem:[#allocation8 + $0xaf8] sm:$0xff]
    %v1734 = vld [vmem:[#allocation8 + $0xb00] sm:$0xff]
    %v1735 = vld [vmem:[#allocation8 + $0xb08] sm:$0xff]
    %v1736 = vld [vmem:[#allocation8 + $0xb10] sm:$0xff]
    %v1737 = vld [vmem:[#allocation8 + $0xb18] sm:$0xff]
    %v1738 = vld [vmem:[#allocation8 + $0xb20] sm:$0xff]
    %v1739 = vld [vmem:[#allocation8 + $0xb28] sm:$0xff]
    %v1740 = vld [vmem:[#allocation8 + $0xb30] sm:$0xff]
    %v1741 = vld [vmem:[#allocation8 + $0xb38] sm:$0xff]
    %v1742 = vld [vmem:[#allocation8 + $0xb40] sm:$0xff]
    %v1743 = vld [vmem:[#allocation8 + $0xb48] sm:$0xff]
    %v1744 = vld [vmem:[#allocation8 + $0xb50] sm:$0xff]
    %v1745 = vld [vmem:[#allocation8 + $0xb58] sm:$0xff]
    %v1746 = vld [vmem:[#allocation8 + $0xb60] sm:$0xff]
    %v1747 = vld [vmem:[#allocation8 + $0xb68] sm:$0xff]
    %v1748 = vld [vmem:[#allocation8 + $0xb70] sm:$0xff]
    %v1749 = vld [vmem:[#allocation8 + $0xb78] sm:$0xff]
    %v1750 = vld [vmem:[#allocation8 + $0xb80] sm:$0xff]
    %v1751 = vld [vmem:[#allocation8 + $0xb88] sm:$0xff]
    %v1752 = vld [vmem:[#allocation8 + $0xb90] sm:$0xff]
    %v1753 = vld [vmem:[#allocation8 + $0xb98] sm:$0xff]
    %v1754 = vld [vmem:[#allocation8 + $0xba0] sm:$0xff]
    %v1755 = vld [vmem:[#allocation8 + $0xba8] sm:$0xff]
    %v1756 = vld [vmem:[#allocation8 + $0xbb0] sm:$0xff]
    %v1757 = vld [vmem:[#allocation8 + $0xbb8] sm:$0xff]
    %v1758 = vld [vmem:[#allocation8 + $0xbc0] sm:$0xff]
    %v1759 = vld [vmem:[#allocation8 + $0xbc8] sm:$0xff]
    %v1760 = vld [vmem:[#allocation8 + $0xbd0] sm:$0xff]
    %v1761 = vld [vmem:[#allocation8 + $0xbd8] sm:$0xff]
    %v1762 = vld [vmem:[#allocation8 + $0xbe0] sm:$0xff]
    %v1763 = vld [vmem:[#allocation8 + $0xbe8] sm:$0xff]
    %v1764 = vld [vmem:[#allocation8 + $0xbf0] sm:$0xff]
    %v1765 = vld [vmem:[#allocation8 + $0xbf8] sm:$0xff]
    %v1766 = vld [vmem:[#allocation8 + $0xc00] sm:$0xff]
    %v1767 = vld [vmem:[#allocation8 + $0xc08] sm:$0xff]
    %v1768 = vld [vmem:[#allocation8 + $0xc10] sm:$0xff]
    %v1769 = vld [vmem:[#allocation8 + $0xc18] sm:$0xff]
    %v1770 = vld [vmem:[#allocation8 + $0xc20] sm:$0xff]
    %v1771 = vld [vmem:[#allocation8 + $0xc28] sm:$0xff]
    %v1772 = vld [vmem:[#allocation8 + $0xc30] sm:$0xff]
    %v1773 = vld [vmem:[#allocation8 + $0xc38] sm:$0xff]
    %v1774 = vld [vmem:[#allocation8 + $0xc40] sm:$0xff]
    %v1775 = vld [vmem:[#allocation8 + $0xc48] sm:$0xff]
    %v1776 = vld [vmem:[#allocation8 + $0xc50] sm:$0xff]
    %v1777 = vld [vmem:[#allocation8 + $0xc58] sm:$0xff]
    %v1778 = vld [vmem:[#allocation8 + $0xc60] sm:$0xff]
    %v1779 = vld [vmem:[#allocation8 + $0xc68] sm:$0xff]
    %v1780 = vld [vmem:[#allocation8 + $0xc70] sm:$0xff]
    %v1781 = vld [vmem:[#allocation8 + $0xc78] sm:$0xff]
    %v1782 = vld [vmem:[#allocation8 + $0xc80] sm:$0xff]
    %v1783 = vld [vmem:[#allocation8 + $0xc88] sm:$0xff]
    %v1784 = vld [vmem:[#allocation8 + $0xc90] sm:$0xff]
    %v1785 = vld [vmem:[#allocation8 + $0xc98] sm:$0xff]
    %v1786 = vld [vmem:[#allocation8 + $0xca0] sm:$0xff]
    %v1787 = vld [vmem:[#allocation8 + $0xca8] sm:$0xff]
    %v1788 = vld [vmem:[#allocation8 + $0xcb0] sm:$0xff]
    %v1789 = vld [vmem:[#allocation8 + $0xcb8] sm:$0xff]
    %v1790 = vld [vmem:[#allocation8 + $0xcc0] sm:$0xff]
    %v1791 = vld [vmem:[#allocation8 + $0xcc8] sm:$0xff]
    %v1792 = vld [vmem:[#allocation8 + $0xcd0] sm:$0xff]
    %v1793 = vld [vmem:[#allocation8 + $0xcd8] sm:$0xff]
    %v1794 = vld [vmem:[#allocation8 + $0xce0] sm:$0xff]
    %v1795 = vld [vmem:[#allocation8 + $0xce8] sm:$0xff]
    %v1796 = vld [vmem:[#allocation8 + $0xcf0] sm:$0xff]
    %v1797 = vld [vmem:[#allocation8 + $0xcf8] sm:$0xff]
    %v1798 = vld [vmem:[#allocation8 + $0xd00] sm:$0xff]
    %v1799 = vld [vmem:[#allocation8 + $0xd08] sm:$0xff]
    %v1800 = vld [vmem:[#allocation8 + $0xd10] sm:$0xff]
    %v1801 = vld [vmem:[#allocation8 + $0xd18] sm:$0xff]
    %v1802 = vld [vmem:[#allocation8 + $0xd20] sm:$0xff]
    %v1803 = vld [vmem:[#allocation8 + $0xd28] sm:$0xff]
    %v1804 = vld [vmem:[#allocation8 + $0xd30] sm:$0xff]
    %v1805 = vld [vmem:[#allocation8 + $0xd38] sm:$0xff]
    %v1806 = vld [vmem:[#allocation8 + $0xd40] sm:$0xff]
    %v1807 = vld [vmem:[#allocation8 + $0xd48] sm:$0xff]
    %v1808 = vld [vmem:[#allocation8 + $0xd50] sm:$0xff]
    %v1809 = vld [vmem:[#allocation8 + $0xd58] sm:$0xff]
    %v1810 = vld [vmem:[#allocation8 + $0xd60] sm:$0xff]
    %v1811 = vld [vmem:[#allocation8 + $0xd68] sm:$0xff]
    %v1812 = vld [vmem:[#allocation8 + $0xd70] sm:$0xff]
    %v1813 = vld [vmem:[#allocation8 + $0xd78] sm:$0xff]
    %v1814 = vld [vmem:[#allocation8 + $0xd80] sm:$0xff]
    %v1815 = vld [vmem:[#allocation8 + $0xd88] sm:$0xff]
    %v1816 = vld [vmem:[#allocation8 + $0xd90] sm:$0xff]
    %v1817 = vld [vmem:[#allocation8 + $0xd98] sm:$0xff]
    %v1818 = vld [vmem:[#allocation8 + $0xda0] sm:$0xff]
    %v1819 = vld [vmem:[#allocation8 + $0xda8] sm:$0xff]
    %v1820 = vld [vmem:[#allocation8 + $0xdb0] sm:$0xff]
    %v1821 = vld [vmem:[#allocation8 + $0xdb8] sm:$0xff]
    %v1822 = vld [vmem:[#allocation8 + $0xdc0] sm:$0xff]
    %v1823 = vld [vmem:[#allocation8 + $0xdc8] sm:$0xff]
    %v1824 = vld [vmem:[#allocation8 + $0xdd0] sm:$0xff]
    %v1825 = vld [vmem:[#allocation8 + $0xdd8] sm:$0xff]
    %v1826 = vld [vmem:[#allocation8 + $0xde0] sm:$0xff]
    %v1827 = vld [vmem:[#allocation8 + $0xde8] sm:$0xff]
    %v1828 = vld [vmem:[#allocation8 + $0xdf0] sm:$0xff]
    %v1829 = vld [vmem:[#allocation8 + $0xdf8] sm:$0xff]
    %v1830 = vld [vmem:[#allocation8 + $0xe00] sm:$0xff]
    %v1831 = vld [vmem:[#allocation8 + $0xe08] sm:$0xff]
    %v1832 = vld [vmem:[#allocation8 + $0xe10] sm:$0xff]
    %v1833 = vld [vmem:[#allocation8 + $0xe18] sm:$0xff]
    %v1834 = vld [vmem:[#allocation8 + $0xe20] sm:$0xff]
    %v1835 = vld [vmem:[#allocation8 + $0xe28] sm:$0xff]
    %v1836 = vld [vmem:[#allocation8 + $0xe30] sm:$0xff]
    %v1837 = vld [vmem:[#allocation8 + $0xe38] sm:$0xff]
    %v1838 = vld [vmem:[#allocation8 + $0xe40] sm:$0xff]
    %v1839 = vld [vmem:[#allocation8 + $0xe48] sm:$0xff]
    %v1840 = vld [vmem:[#allocation8 + $0xe50] sm:$0xff]
    %v1841 = vld [vmem:[#allocation8 + $0xe58] sm:$0xff]
    %v1842 = vld [vmem:[#allocation8 + $0xe60] sm:$0xff]
    %v1843 = vld [vmem:[#allocation8 + $0xe68] sm:$0xff]
    %v1844 = vld [vmem:[#allocation8 + $0xe70] sm:$0xff]
    %v1845 = vld [vmem:[#allocation8 + $0xe78] sm:$0xff]
    %v1846 = vld [vmem:[#allocation8 + $0xe80] sm:$0xff]
    %v1847 = vld [vmem:[#allocation8 + $0xe88] sm:$0xff]
    %v1848 = vld [vmem:[#allocation8 + $0xe90] sm:$0xff]
    %v1849 = vld [vmem:[#allocation8 + $0xe98] sm:$0xff]
    %v1850 = vld [vmem:[#allocation8 + $0xea0] sm:$0xff]
    %v1851 = vld [vmem:[#allocation8 + $0xea8] sm:$0xff]
    %v1852 = vld [vmem:[#allocation8 + $0xeb0] sm:$0xff]
    %v1853 = vld [vmem:[#allocation8 + $0xeb8] sm:$0xff]
    %v1854 = vld [vmem:[#allocation8 + $0xec0] sm:$0xff]
    %v1855 = vld [vmem:[#allocation8 + $0xec8] sm:$0xff]
    %v1856 = vld [vmem:[#allocation8 + $0xed0] sm:$0xff]
    %v1857 = vld [vmem:[#allocation8 + $0xed8] sm:$0xff]
    %v1858 = vld [vmem:[#allocation8 + $0xee0] sm:$0xff]
    %v1859 = vld [vmem:[#allocation8 + $0xee8] sm:$0xff]
    %v1860 = vld [vmem:[#allocation8 + $0xef0] sm:$0xff]
    %v1861 = vld [vmem:[#allocation8 + $0xef8] sm:$0xff]
    %v1862 = vld [vmem:[#allocation8 + $0xf00] sm:$0xff]
    %v1863 = vld [vmem:[#allocation8 + $0xf08] sm:$0xff]
    %v1864 = vld [vmem:[#allocation8 + $0xf10] sm:$0xff]
    %v1865 = vld [vmem:[#allocation8 + $0xf18] sm:$0xff]
    %v1866 = vld [vmem:[#allocation8 + $0xf20] sm:$0xff]
    %v1867 = vld [vmem:[#allocation8 + $0xf28] sm:$0xff]
    %v1868 = vld [vmem:[#allocation8 + $0xf30] sm:$0xff]
    %v1869 = vld [vmem:[#allocation8 + $0xf38] sm:$0xff]
    %v1870 = vld [vmem:[#allocation8 + $0xf40] sm:$0xff]
    %v1871 = vld [vmem:[#allocation8 + $0xf48] sm:$0xff]
    %v1872 = vld [vmem:[#allocation8 + $0xf50] sm:$0xff]
    %v1873 = vld [vmem:[#allocation8 + $0xf58] sm:$0xff]
    %v1874 = vld [vmem:[#allocation8 + $0xf60] sm:$0xff]
    %v1875 = vld [vmem:[#allocation8 + $0xf68] sm:$0xff]
    %v1876 = vld [vmem:[#allocation8 + $0xf70] sm:$0xff]
    %v1877 = vld [vmem:[#allocation8 + $0xf78] sm:$0xff]
    %v1878 = vld [vmem:[#allocation8 + $0xf80] sm:$0xff]
    %v1879 = vld [vmem:[#allocation8 + $0xf88] sm:$0xff]
    %v1880 = vld [vmem:[#allocation8 + $0xf90] sm:$0xff]
    %v1881 = vld [vmem:[#allocation8 + $0xf98] sm:$0xff]
    %v1882 = vld [vmem:[#allocation8 + $0xfa0] sm:$0xff]
    %v1883 = vld [vmem:[#allocation8 + $0xfa8] sm:$0xff]
    %v1884 = vld [vmem:[#allocation8 + $0xfb0] sm:$0xff]
    %v1885 = vld [vmem:[#allocation8 + $0xfb8] sm:$0xff]
    %v1886 = vld [vmem:[#allocation8 + $0xfc0] sm:$0xff]
    %v1887 = vld [vmem:[#allocation8 + $0xfc8] sm:$0xff]
    %v1888 = vld [vmem:[#allocation8 + $0xfd0] sm:$0xff]
    %v1889 = vld [vmem:[#allocation8 + $0xfd8] sm:$0xff]
    %v1890 = vld [vmem:[#allocation8 + $0xfe0] sm:$0xff]
    %v1891 = vld [vmem:[#allocation8 + $0xfe8] sm:$0xff]
    %v1892 = vld [vmem:[#allocation8 + $0xff0] sm:$0xff]
    %v1893 = vld [vmem:[#allocation8 + $0xff8] sm:$0xff]
    %v1894 = vld [vmem:[#allocation10] sm:$0xff]
    %v1896 = vlaneseq
    %v1897 = vshrl.u32 %v1896, 7
    %v1898 = vsub.s32 0, %v1897
    %v1899 = vrot.slane %v1894, %v1898
    %v1900 = vlaneseq
    %v1901 = vshrl.u32 %v1900, 7
    %v1902 = vsub.s32 1, %v1901
    %v1903 = vrot.slane %v1894, %v1902
    %v1904 = vlaneseq
    %v1905 = vshrl.u32 %v1904, 7
    %v1906 = vsub.s32 2, %v1905
    %v1907 = vrot.slane %v1894, %v1906
    %v1908 = vlaneseq
    %v1909 = vshrl.u32 %v1908, 7
    %v1910 = vsub.s32 3, %v1909
    %v1911 = vrot.slane %v1894, %v1910
    %v1912 = vlaneseq
    %v1913 = vshrl.u32 %v1912, 7
    %v1914 = vsub.s32 4, %v1913
    %v1915 = vrot.slane %v1894, %v1914
    %v1916 = vlaneseq
    %v1917 = vshrl.u32 %v1916, 7
    %v1918 = vsub.s32 5, %v1917
    %v1919 = vrot.slane %v1894, %v1918
    %v1920 = vlaneseq
    %v1921 = vshrl.u32 %v1920, 7
    %v1922 = vsub.s32 6, %v1921
    %v1923 = vrot.slane %v1894, %v1922
    %v1924 = vlaneseq
    %v1925 = vshrl.u32 %v1924, 7
    %v1926 = vsub.s32 7, %v1925
    %v1927 = vrot.slane %v1894, %v1926
    %v2448 = vunpack.c.l.b16 %v1382
    %v2449 = vunpack.c.h.b16 %v1382
    %v2450 = vunpack.c.l.b16 %v1383
    %v2451 = vunpack.c.h.b16 %v1383
    %v2452 = vunpack.c.l.b16 %v1384
    %v2453 = vunpack.c.h.b16 %v1384
    %v2454 = vunpack.c.l.b16 %v1385
    %v2455 = vunpack.c.h.b16 %v1385
    %v2456 = vunpack.c.l.b16 %v1386
    %v2457 = vunpack.c.h.b16 %v1386
    %v2458 = vunpack.c.l.b16 %v1387
    %v2459 = vunpack.c.h.b16 %v1387
    %v2460 = vunpack.c.l.b16 %v1388
    %v2461 = vunpack.c.h.b16 %v1388
    %v2462 = vunpack.c.l.b16 %v1389
    %v2463 = vunpack.c.h.b16 %v1389
    %v2464 = vunpack.c.l.b16 %v1390
    %v2465 = vunpack.c.h.b16 %v1390
    %v2466 = vunpack.c.l.b16 %v1391
    %v2467 = vunpack.c.h.b16 %v1391
    %v2468 = vunpack.c.l.b16 %v1392
    %v2469 = vunpack.c.h.b16 %v1392
    %v2470 = vunpack.c.l.b16 %v1393
    %v2471 = vunpack.c.h.b16 %v1393
    %v2472 = vunpack.c.l.b16 %v1394
    %v2473 = vunpack.c.h.b16 %v1394
    %v2474 = vunpack.c.l.b16 %v1395
    %v2475 = vunpack.c.h.b16 %v1395
    %v2476 = vunpack.c.l.b16 %v1396
    %v2477 = vunpack.c.h.b16 %v1396
    %v2478 = vunpack.c.l.b16 %v1397
    %v2479 = vunpack.c.h.b16 %v1397
    %v2480 = vunpack.c.l.b16 %v1398
    %v2481 = vunpack.c.h.b16 %v1398
    %v2482 = vunpack.c.l.b16 %v1399
    %v2483 = vunpack.c.h.b16 %v1399
    %v2484 = vunpack.c.l.b16 %v1400
    %v2485 = vunpack.c.h.b16 %v1400
    %v2486 = vunpack.c.l.b16 %v1401
    %v2487 = vunpack.c.h.b16 %v1401
    %v2488 = vunpack.c.l.b16 %v1402
    %v2489 = vunpack.c.h.b16 %v1402
    %v2490 = vunpack.c.l.b16 %v1403
    %v2491 = vunpack.c.h.b16 %v1403
    %v2492 = vunpack.c.l.b16 %v1404
    %v2493 = vunpack.c.h.b16 %v1404
    %v2494 = vunpack.c.l.b16 %v1405
    %v2495 = vunpack.c.h.b16 %v1405
    %v2496 = vunpack.c.l.b16 %v1406
    %v2497 = vunpack.c.h.b16 %v1406
    %v2498 = vunpack.c.l.b16 %v1407
    %v2499 = vunpack.c.h.b16 %v1407
    %v2500 = vunpack.c.l.b16 %v1408
    %v2501 = vunpack.c.h.b16 %v1408
    %v2502 = vunpack.c.l.b16 %v1409
    %v2503 = vunpack.c.h.b16 %v1409
    %v2504 = vunpack.c.l.b16 %v1410
    %v2505 = vunpack.c.h.b16 %v1410
    %v2506 = vunpack.c.l.b16 %v1411
    %v2507 = vunpack.c.h.b16 %v1411
    %v2508 = vunpack.c.l.b16 %v1412
    %v2509 = vunpack.c.h.b16 %v1412
    %v2510 = vunpack.c.l.b16 %v1413
    %v2511 = vunpack.c.h.b16 %v1413
    %v2512 = vunpack.c.l.b16 %v1414
    %v2513 = vunpack.c.h.b16 %v1414
    %v2514 = vunpack.c.l.b16 %v1415
    %v2515 = vunpack.c.h.b16 %v1415
    %v2516 = vunpack.c.l.b16 %v1416
    %v2517 = vunpack.c.h.b16 %v1416
    %v2518 = vunpack.c.l.b16 %v1417
    %v2519 = vunpack.c.h.b16 %v1417
    %v2520 = vunpack.c.l.b16 %v1418
    %v2521 = vunpack.c.h.b16 %v1418
    %v2522 = vunpack.c.l.b16 %v1419
    %v2523 = vunpack.c.h.b16 %v1419
    %v2524 = vunpack.c.l.b16 %v1420
    %v2525 = vunpack.c.h.b16 %v1420
    %v2526 = vunpack.c.l.b16 %v1421
    %v2527 = vunpack.c.h.b16 %v1421
    %v2528 = vunpack.c.l.b16 %v1422
    %v2529 = vunpack.c.h.b16 %v1422
    %v2530 = vunpack.c.l.b16 %v1423
    %v2531 = vunpack.c.h.b16 %v1423
    %v2532 = vunpack.c.l.b16 %v1424
    %v2533 = vunpack.c.h.b16 %v1424
    %v2534 = vunpack.c.l.b16 %v1425
    %v2535 = vunpack.c.h.b16 %v1425
    %v2536 = vunpack.c.l.b16 %v1426
    %v2537 = vunpack.c.h.b16 %v1426
    %v2538 = vunpack.c.l.b16 %v1427
    %v2539 = vunpack.c.h.b16 %v1427
    %v2540 = vunpack.c.l.b16 %v1428
    %v2541 = vunpack.c.h.b16 %v1428
    %v2542 = vunpack.c.l.b16 %v1429
    %v2543 = vunpack.c.h.b16 %v1429
    %v2544 = vunpack.c.l.b16 %v1430
    %v2545 = vunpack.c.h.b16 %v1430
    %v2546 = vunpack.c.l.b16 %v1431
    %v2547 = vunpack.c.h.b16 %v1431
    %v2548 = vunpack.c.l.b16 %v1432
    %v2549 = vunpack.c.h.b16 %v1432
    %v2550 = vunpack.c.l.b16 %v1433
    %v2551 = vunpack.c.h.b16 %v1433
    %v2552 = vunpack.c.l.b16 %v1434
    %v2553 = vunpack.c.h.b16 %v1434
    %v2554 = vunpack.c.l.b16 %v1435
    %v2555 = vunpack.c.h.b16 %v1435
    %v2556 = vunpack.c.l.b16 %v1436
    %v2557 = vunpack.c.h.b16 %v1436
    %v2558 = vunpack.c.l.b16 %v1437
    %v2559 = vunpack.c.h.b16 %v1437
    %v2560 = vunpack.c.l.b16 %v1438
    %v2561 = vunpack.c.h.b16 %v1438
    %v2562 = vunpack.c.l.b16 %v1439
    %v2563 = vunpack.c.h.b16 %v1439
    %v2564 = vunpack.c.l.b16 %v1440
    %v2565 = vunpack.c.h.b16 %v1440
    %v2566 = vunpack.c.l.b16 %v1441
    %v2567 = vunpack.c.h.b16 %v1441
    %v2568 = vunpack.c.l.b16 %v1442
    %v2569 = vunpack.c.h.b16 %v1442
    %v2570 = vunpack.c.l.b16 %v1443
    %v2571 = vunpack.c.h.b16 %v1443
    %v2572 = vunpack.c.l.b16 %v1444
    %v2573 = vunpack.c.h.b16 %v1444
    %v2574 = vunpack.c.l.b16 %v1445
    %v2575 = vunpack.c.h.b16 %v1445
    %v2576 = vunpack.c.l.b16 %v1446
    %v2577 = vunpack.c.h.b16 %v1446
    %v2578 = vunpack.c.l.b16 %v1447
    %v2579 = vunpack.c.h.b16 %v1447
    %v2580 = vunpack.c.l.b16 %v1448
    %v2581 = vunpack.c.h.b16 %v1448
    %v2582 = vunpack.c.l.b16 %v1449
    %v2583 = vunpack.c.h.b16 %v1449
    %v2584 = vunpack.c.l.b16 %v1450
    %v2585 = vunpack.c.h.b16 %v1450
    %v2586 = vunpack.c.l.b16 %v1451
    %v2587 = vunpack.c.h.b16 %v1451
    %v2588 = vunpack.c.l.b16 %v1452
    %v2589 = vunpack.c.h.b16 %v1452
    %v2590 = vunpack.c.l.b16 %v1453
    %v2591 = vunpack.c.h.b16 %v1453
    %v2592 = vunpack.c.l.b16 %v1454
    %v2593 = vunpack.c.h.b16 %v1454
    %v2594 = vunpack.c.l.b16 %v1455
    %v2595 = vunpack.c.h.b16 %v1455
    %v2596 = vunpack.c.l.b16 %v1456
    %v2597 = vunpack.c.h.b16 %v1456
    %v2598 = vunpack.c.l.b16 %v1457
    %v2599 = vunpack.c.h.b16 %v1457
    %v2600 = vunpack.c.l.b16 %v1458
    %v2601 = vunpack.c.h.b16 %v1458
    %v2602 = vunpack.c.l.b16 %v1459
    %v2603 = vunpack.c.h.b16 %v1459
    %v2604 = vunpack.c.l.b16 %v1460
    %v2605 = vunpack.c.h.b16 %v1460
    %v2606 = vunpack.c.l.b16 %v1461
    %v2607 = vunpack.c.h.b16 %v1461
    %v2608 = vunpack.c.l.b16 %v1462
    %v2609 = vunpack.c.h.b16 %v1462
    %v2610 = vunpack.c.l.b16 %v1463
    %v2611 = vunpack.c.h.b16 %v1463
    %v2612 = vunpack.c.l.b16 %v1464
    %v2613 = vunpack.c.h.b16 %v1464
    %v2614 = vunpack.c.l.b16 %v1465
    %v2615 = vunpack.c.h.b16 %v1465
    %v2616 = vunpack.c.l.b16 %v1466
    %v2617 = vunpack.c.h.b16 %v1466
    %v2618 = vunpack.c.l.b16 %v1467
    %v2619 = vunpack.c.h.b16 %v1467
    %v2620 = vunpack.c.l.b16 %v1468
    %v2621 = vunpack.c.h.b16 %v1468
    %v2622 = vunpack.c.l.b16 %v1469
    %v2623 = vunpack.c.h.b16 %v1469
    %v2624 = vunpack.c.l.b16 %v1470
    %v2625 = vunpack.c.h.b16 %v1470
    %v2626 = vunpack.c.l.b16 %v1471
    %v2627 = vunpack.c.h.b16 %v1471
    %v2628 = vunpack.c.l.b16 %v1472
    %v2629 = vunpack.c.h.b16 %v1472
    %v2630 = vunpack.c.l.b16 %v1473
    %v2631 = vunpack.c.h.b16 %v1473
    %v2632 = vunpack.c.l.b16 %v1474
    %v2633 = vunpack.c.h.b16 %v1474
    %v2634 = vunpack.c.l.b16 %v1475
    %v2635 = vunpack.c.h.b16 %v1475
    %v2636 = vunpack.c.l.b16 %v1476
    %v2637 = vunpack.c.h.b16 %v1476
    %v2638 = vunpack.c.l.b16 %v1477
    %v2639 = vunpack.c.h.b16 %v1477
    %v2640 = vunpack.c.l.b16 %v1478
    %v2641 = vunpack.c.h.b16 %v1478
    %v2642 = vunpack.c.l.b16 %v1479
    %v2643 = vunpack.c.h.b16 %v1479
    %v2644 = vunpack.c.l.b16 %v1480
    %v2645 = vunpack.c.h.b16 %v1480
    %v2646 = vunpack.c.l.b16 %v1481
    %v2647 = vunpack.c.h.b16 %v1481
    %v2648 = vunpack.c.l.b16 %v1482
    %v2649 = vunpack.c.h.b16 %v1482
    %v2650 = vunpack.c.l.b16 %v1483
    %v2651 = vunpack.c.h.b16 %v1483
    %v2652 = vunpack.c.l.b16 %v1484
    %v2653 = vunpack.c.h.b16 %v1484
    %v2654 = vunpack.c.l.b16 %v1485
    %v2655 = vunpack.c.h.b16 %v1485
    %v2656 = vunpack.c.l.b16 %v1486
    %v2657 = vunpack.c.h.b16 %v1486
    %v2658 = vunpack.c.l.b16 %v1487
    %v2659 = vunpack.c.h.b16 %v1487
    %v2660 = vunpack.c.l.b16 %v1488
    %v2661 = vunpack.c.h.b16 %v1488
    %v2662 = vunpack.c.l.b16 %v1489
    %v2663 = vunpack.c.h.b16 %v1489
    %v2664 = vunpack.c.l.b16 %v1490
    %v2665 = vunpack.c.h.b16 %v1490
    %v2666 = vunpack.c.l.b16 %v1491
    %v2667 = vunpack.c.h.b16 %v1491
    %v2668 = vunpack.c.l.b16 %v1492
    %v2669 = vunpack.c.h.b16 %v1492
    %v2670 = vunpack.c.l.b16 %v1493
    %v2671 = vunpack.c.h.b16 %v1493
    %v2672 = vunpack.c.l.b16 %v1494
    %v2673 = vunpack.c.h.b16 %v1494
    %v2674 = vunpack.c.l.b16 %v1495
    %v2675 = vunpack.c.h.b16 %v1495
    %v2676 = vunpack.c.l.b16 %v1496
    %v2677 = vunpack.c.h.b16 %v1496
    %v2678 = vunpack.c.l.b16 %v1497
    %v2679 = vunpack.c.h.b16 %v1497
    %v2680 = vunpack.c.l.b16 %v1498
    %v2681 = vunpack.c.h.b16 %v1498
    %v2682 = vunpack.c.l.b16 %v1499
    %v2683 = vunpack.c.h.b16 %v1499
    %v2684 = vunpack.c.l.b16 %v1500
    %v2685 = vunpack.c.h.b16 %v1500
    %v2686 = vunpack.c.l.b16 %v1501
    %v2687 = vunpack.c.h.b16 %v1501
    %v2688 = vunpack.c.l.b16 %v1502
    %v2689 = vunpack.c.h.b16 %v1502
    %v2690 = vunpack.c.l.b16 %v1503
    %v2691 = vunpack.c.h.b16 %v1503
    %v2692 = vunpack.c.l.b16 %v1504
    %v2693 = vunpack.c.h.b16 %v1504
    %v2694 = vunpack.c.l.b16 %v1505
    %v2695 = vunpack.c.h.b16 %v1505
    %v2696 = vunpack.c.l.b16 %v1506
    %v2697 = vunpack.c.h.b16 %v1506
    %v2698 = vunpack.c.l.b16 %v1507
    %v2699 = vunpack.c.h.b16 %v1507
    %v2700 = vunpack.c.l.b16 %v1508
    %v2701 = vunpack.c.h.b16 %v1508
    %v2702 = vunpack.c.l.b16 %v1509
    %v2703 = vunpack.c.h.b16 %v1509
    %v2704 = vunpack.c.l.b16 %v1510
    %v2705 = vunpack.c.h.b16 %v1510
    %v2706 = vunpack.c.l.b16 %v1511
    %v2707 = vunpack.c.h.b16 %v1511
    %v2708 = vunpack.c.l.b16 %v1512
    %v2709 = vunpack.c.h.b16 %v1512
    %v2710 = vunpack.c.l.b16 %v1513
    %v2711 = vunpack.c.h.b16 %v1513
    %v2712 = vunpack.c.l.b16 %v1514
    %v2713 = vunpack.c.h.b16 %v1514
    %v2714 = vunpack.c.l.b16 %v1515
    %v2715 = vunpack.c.h.b16 %v1515
    %v2716 = vunpack.c.l.b16 %v1516
    %v2717 = vunpack.c.h.b16 %v1516
    %v2718 = vunpack.c.l.b16 %v1517
    %v2719 = vunpack.c.h.b16 %v1517
    %v2720 = vunpack.c.l.b16 %v1518
    %v2721 = vunpack.c.h.b16 %v1518
    %v2722 = vunpack.c.l.b16 %v1519
    %v2723 = vunpack.c.h.b16 %v1519
    %v2724 = vunpack.c.l.b16 %v1520
    %v2725 = vunpack.c.h.b16 %v1520
    %v2726 = vunpack.c.l.b16 %v1521
    %v2727 = vunpack.c.h.b16 %v1521
    %v2728 = vunpack.c.l.b16 %v1522
    %v2729 = vunpack.c.h.b16 %v1522
    %v2730 = vunpack.c.l.b16 %v1523
    %v2731 = vunpack.c.h.b16 %v1523
    %v2732 = vunpack.c.l.b16 %v1524
    %v2733 = vunpack.c.h.b16 %v1524
    %v2734 = vunpack.c.l.b16 %v1525
    %v2735 = vunpack.c.h.b16 %v1525
    %v2736 = vunpack.c.l.b16 %v1526
    %v2737 = vunpack.c.h.b16 %v1526
    %v2738 = vunpack.c.l.b16 %v1527
    %v2739 = vunpack.c.h.b16 %v1527
    %v2740 = vunpack.c.l.b16 %v1528
    %v2741 = vunpack.c.h.b16 %v1528
    %v2742 = vunpack.c.l.b16 %v1529
    %v2743 = vunpack.c.h.b16 %v1529
    %v2744 = vunpack.c.l.b16 %v1530
    %v2745 = vunpack.c.h.b16 %v1530
    %v2746 = vunpack.c.l.b16 %v1531
    %v2747 = vunpack.c.h.b16 %v1531
    %v2748 = vunpack.c.l.b16 %v1532
    %v2749 = vunpack.c.h.b16 %v1532
    %v2750 = vunpack.c.l.b16 %v1533
    %v2751 = vunpack.c.h.b16 %v1533
    %v2752 = vunpack.c.l.b16 %v1534
    %v2753 = vunpack.c.h.b16 %v1534
    %v2754 = vunpack.c.l.b16 %v1535
    %v2755 = vunpack.c.h.b16 %v1535
    %v2756 = vunpack.c.l.b16 %v1536
    %v2757 = vunpack.c.h.b16 %v1536
    %v2758 = vunpack.c.l.b16 %v1537
    %v2759 = vunpack.c.h.b16 %v1537
    %v2760 = vunpack.c.l.b16 %v1538
    %v2761 = vunpack.c.h.b16 %v1538
    %v2762 = vunpack.c.l.b16 %v1539
    %v2763 = vunpack.c.h.b16 %v1539
    %v2764 = vunpack.c.l.b16 %v1540
    %v2765 = vunpack.c.h.b16 %v1540
    %v2766 = vunpack.c.l.b16 %v1541
    %v2767 = vunpack.c.h.b16 %v1541
    %v2768 = vunpack.c.l.b16 %v1542
    %v2769 = vunpack.c.h.b16 %v1542
    %v2770 = vunpack.c.l.b16 %v1543
    %v2771 = vunpack.c.h.b16 %v1543
    %v2772 = vunpack.c.l.b16 %v1544
    %v2773 = vunpack.c.h.b16 %v1544
    %v2774 = vunpack.c.l.b16 %v1545
    %v2775 = vunpack.c.h.b16 %v1545
    %v2776 = vunpack.c.l.b16 %v1546
    %v2777 = vunpack.c.h.b16 %v1546
    %v2778 = vunpack.c.l.b16 %v1547
    %v2779 = vunpack.c.h.b16 %v1547
    %v2780 = vunpack.c.l.b16 %v1548
    %v2781 = vunpack.c.h.b16 %v1548
    %v2782 = vunpack.c.l.b16 %v1549
    %v2783 = vunpack.c.h.b16 %v1549
    %v2784 = vunpack.c.l.b16 %v1550
    %v2785 = vunpack.c.h.b16 %v1550
    %v2786 = vunpack.c.l.b16 %v1551
    %v2787 = vunpack.c.h.b16 %v1551
    %v2788 = vunpack.c.l.b16 %v1552
    %v2789 = vunpack.c.h.b16 %v1552
    %v2790 = vunpack.c.l.b16 %v1553
    %v2791 = vunpack.c.h.b16 %v1553
    %v2792 = vunpack.c.l.b16 %v1554
    %v2793 = vunpack.c.h.b16 %v1554
    %v2794 = vunpack.c.l.b16 %v1555
    %v2795 = vunpack.c.h.b16 %v1555
    %v2796 = vunpack.c.l.b16 %v1556
    %v2797 = vunpack.c.h.b16 %v1556
    %v2798 = vunpack.c.l.b16 %v1557
    %v2799 = vunpack.c.h.b16 %v1557
    %v2800 = vunpack.c.l.b16 %v1558
    %v2801 = vunpack.c.h.b16 %v1558
    %v2802 = vunpack.c.l.b16 %v1559
    %v2803 = vunpack.c.h.b16 %v1559
    %v2804 = vunpack.c.l.b16 %v1560
    %v2805 = vunpack.c.h.b16 %v1560
    %v2806 = vunpack.c.l.b16 %v1561
    %v2807 = vunpack.c.h.b16 %v1561
    %v2808 = vunpack.c.l.b16 %v1562
    %v2809 = vunpack.c.h.b16 %v1562
    %v2810 = vunpack.c.l.b16 %v1563
    %v2811 = vunpack.c.h.b16 %v1563
    %v2812 = vunpack.c.l.b16 %v1564
    %v2813 = vunpack.c.h.b16 %v1564
    %v2814 = vunpack.c.l.b16 %v1565
    %v2815 = vunpack.c.h.b16 %v1565
    %v2816 = vunpack.c.l.b16 %v1566
    %v2817 = vunpack.c.h.b16 %v1566
    %v2818 = vunpack.c.l.b16 %v1567
    %v2819 = vunpack.c.h.b16 %v1567
    %v2820 = vunpack.c.l.b16 %v1568
    %v2821 = vunpack.c.h.b16 %v1568
    %v2822 = vunpack.c.l.b16 %v1569
    %v2823 = vunpack.c.h.b16 %v1569
    %v2824 = vunpack.c.l.b16 %v1570
    %v2825 = vunpack.c.h.b16 %v1570
    %v2826 = vunpack.c.l.b16 %v1571
    %v2827 = vunpack.c.h.b16 %v1571
    %v2828 = vunpack.c.l.b16 %v1572
    %v2829 = vunpack.c.h.b16 %v1572
    %v2830 = vunpack.c.l.b16 %v1573
    %v2831 = vunpack.c.h.b16 %v1573
    %v2832 = vunpack.c.l.b16 %v1574
    %v2833 = vunpack.c.h.b16 %v1574
    %v2834 = vunpack.c.l.b16 %v1575
    %v2835 = vunpack.c.h.b16 %v1575
    %v2836 = vunpack.c.l.b16 %v1576
    %v2837 = vunpack.c.h.b16 %v1576
    %v2838 = vunpack.c.l.b16 %v1577
    %v2839 = vunpack.c.h.b16 %v1577
    %v2840 = vunpack.c.l.b16 %v1578
    %v2841 = vunpack.c.h.b16 %v1578
    %v2842 = vunpack.c.l.b16 %v1579
    %v2843 = vunpack.c.h.b16 %v1579
    %v2844 = vunpack.c.l.b16 %v1580
    %v2845 = vunpack.c.h.b16 %v1580
    %v2846 = vunpack.c.l.b16 %v1581
    %v2847 = vunpack.c.h.b16 %v1581
    %v2848 = vunpack.c.l.b16 %v1582
    %v2849 = vunpack.c.h.b16 %v1582
    %v2850 = vunpack.c.l.b16 %v1583
    %v2851 = vunpack.c.h.b16 %v1583
    %v2852 = vunpack.c.l.b16 %v1584
    %v2853 = vunpack.c.h.b16 %v1584
    %v2854 = vunpack.c.l.b16 %v1585
    %v2855 = vunpack.c.h.b16 %v1585
    %v2856 = vunpack.c.l.b16 %v1586
    %v2857 = vunpack.c.h.b16 %v1586
    %v2858 = vunpack.c.l.b16 %v1587
    %v2859 = vunpack.c.h.b16 %v1587
    %v2860 = vunpack.c.l.b16 %v1588
    %v2861 = vunpack.c.h.b16 %v1588
    %v2862 = vunpack.c.l.b16 %v1589
    %v2863 = vunpack.c.h.b16 %v1589
    %v2864 = vunpack.c.l.b16 %v1590
    %v2865 = vunpack.c.h.b16 %v1590
    %v2866 = vunpack.c.l.b16 %v1591
    %v2867 = vunpack.c.h.b16 %v1591
    %v2868 = vunpack.c.l.b16 %v1592
    %v2869 = vunpack.c.h.b16 %v1592
    %v2870 = vunpack.c.l.b16 %v1593
    %v2871 = vunpack.c.h.b16 %v1593
    %v2872 = vunpack.c.l.b16 %v1594
    %v2873 = vunpack.c.h.b16 %v1594
    %v2874 = vunpack.c.l.b16 %v1595
    %v2875 = vunpack.c.h.b16 %v1595
    %v2876 = vunpack.c.l.b16 %v1596
    %v2877 = vunpack.c.h.b16 %v1596
    %v2878 = vunpack.c.l.b16 %v1597
    %v2879 = vunpack.c.h.b16 %v1597
    %v2880 = vunpack.c.l.b16 %v1598
    %v2881 = vunpack.c.h.b16 %v1598
    %v2882 = vunpack.c.l.b16 %v1599
    %v2883 = vunpack.c.h.b16 %v1599
    %v2884 = vunpack.c.l.b16 %v1600
    %v2885 = vunpack.c.h.b16 %v1600
    %v2886 = vunpack.c.l.b16 %v1601
    %v2887 = vunpack.c.h.b16 %v1601
    %v2888 = vunpack.c.l.b16 %v1602
    %v2889 = vunpack.c.h.b16 %v1602
    %v2890 = vunpack.c.l.b16 %v1603
    %v2891 = vunpack.c.h.b16 %v1603
    %v2892 = vunpack.c.l.b16 %v1604
    %v2893 = vunpack.c.h.b16 %v1604
    %v2894 = vunpack.c.l.b16 %v1605
    %v2895 = vunpack.c.h.b16 %v1605
    %v2896 = vunpack.c.l.b16 %v1606
    %v2897 = vunpack.c.h.b16 %v1606
    %v2898 = vunpack.c.l.b16 %v1607
    %v2899 = vunpack.c.h.b16 %v1607
    %v2900 = vunpack.c.l.b16 %v1608
    %v2901 = vunpack.c.h.b16 %v1608
    %v2902 = vunpack.c.l.b16 %v1609
    %v2903 = vunpack.c.h.b16 %v1609
    %v2904 = vunpack.c.l.b16 %v1610
    %v2905 = vunpack.c.h.b16 %v1610
    %v2906 = vunpack.c.l.b16 %v1611
    %v2907 = vunpack.c.h.b16 %v1611
    %v2908 = vunpack.c.l.b16 %v1612
    %v2909 = vunpack.c.h.b16 %v1612
    %v2910 = vunpack.c.l.b16 %v1613
    %v2911 = vunpack.c.h.b16 %v1613
    %v2912 = vunpack.c.l.b16 %v1614
    %v2913 = vunpack.c.h.b16 %v1614
    %v2914 = vunpack.c.l.b16 %v1615
    %v2915 = vunpack.c.h.b16 %v1615
    %v2916 = vunpack.c.l.b16 %v1616
    %v2917 = vunpack.c.h.b16 %v1616
    %v2918 = vunpack.c.l.b16 %v1617
    %v2919 = vunpack.c.h.b16 %v1617
    %v2920 = vunpack.c.l.b16 %v1618
    %v2921 = vunpack.c.h.b16 %v1618
    %v2922 = vunpack.c.l.b16 %v1619
    %v2923 = vunpack.c.h.b16 %v1619
    %v2924 = vunpack.c.l.b16 %v1620
    %v2925 = vunpack.c.h.b16 %v1620
    %v2926 = vunpack.c.l.b16 %v1621
    %v2927 = vunpack.c.h.b16 %v1621
    %v2928 = vunpack.c.l.b16 %v1622
    %v2929 = vunpack.c.h.b16 %v1622
    %v2930 = vunpack.c.l.b16 %v1623
    %v2931 = vunpack.c.h.b16 %v1623
    %v2932 = vunpack.c.l.b16 %v1624
    %v2933 = vunpack.c.h.b16 %v1624
    %v2934 = vunpack.c.l.b16 %v1625
    %v2935 = vunpack.c.h.b16 %v1625
    %v2936 = vunpack.c.l.b16 %v1626
    %v2937 = vunpack.c.h.b16 %v1626
    %v2938 = vunpack.c.l.b16 %v1627
    %v2939 = vunpack.c.h.b16 %v1627
    %v2940 = vunpack.c.l.b16 %v1628
    %v2941 = vunpack.c.h.b16 %v1628
    %v2942 = vunpack.c.l.b16 %v1629
    %v2943 = vunpack.c.h.b16 %v1629
    %v2944 = vunpack.c.l.b16 %v1630
    %v2945 = vunpack.c.h.b16 %v1630
    %v2946 = vunpack.c.l.b16 %v1631
    %v2947 = vunpack.c.h.b16 %v1631
    %v2948 = vunpack.c.l.b16 %v1632
    %v2949 = vunpack.c.h.b16 %v1632
    %v2950 = vunpack.c.l.b16 %v1633
    %v2951 = vunpack.c.h.b16 %v1633
    %v2952 = vunpack.c.l.b16 %v1634
    %v2953 = vunpack.c.h.b16 %v1634
    %v2954 = vunpack.c.l.b16 %v1635
    %v2955 = vunpack.c.h.b16 %v1635
    %v2956 = vunpack.c.l.b16 %v1636
    %v2957 = vunpack.c.h.b16 %v1636
    %v2958 = vunpack.c.l.b16 %v1637
    %v2959 = vunpack.c.h.b16 %v1637
    %v2960 = vunpack.c.l.b16 %v1638
    %v2961 = vunpack.c.h.b16 %v1638
    %v2962 = vunpack.c.l.b16 %v1639
    %v2963 = vunpack.c.h.b16 %v1639
    %v2964 = vunpack.c.l.b16 %v1640
    %v2965 = vunpack.c.h.b16 %v1640
    %v2966 = vunpack.c.l.b16 %v1641
    %v2967 = vunpack.c.h.b16 %v1641
    %v2968 = vunpack.c.l.b16 %v1642
    %v2969 = vunpack.c.h.b16 %v1642
    %v2970 = vunpack.c.l.b16 %v1643
    %v2971 = vunpack.c.h.b16 %v1643
    %v2972 = vunpack.c.l.b16 %v1644
    %v2973 = vunpack.c.h.b16 %v1644
    %v2974 = vunpack.c.l.b16 %v1645
    %v2975 = vunpack.c.h.b16 %v1645
    %v2976 = vunpack.c.l.b16 %v1646
    %v2977 = vunpack.c.h.b16 %v1646
    %v2978 = vunpack.c.l.b16 %v1647
    %v2979 = vunpack.c.h.b16 %v1647
    %v2980 = vunpack.c.l.b16 %v1648
    %v2981 = vunpack.c.h.b16 %v1648
    %v2982 = vunpack.c.l.b16 %v1649
    %v2983 = vunpack.c.h.b16 %v1649
    %v2984 = vunpack.c.l.b16 %v1650
    %v2985 = vunpack.c.h.b16 %v1650
    %v2986 = vunpack.c.l.b16 %v1651
    %v2987 = vunpack.c.h.b16 %v1651
    %v2988 = vunpack.c.l.b16 %v1652
    %v2989 = vunpack.c.h.b16 %v1652
    %v2990 = vunpack.c.l.b16 %v1653
    %v2991 = vunpack.c.h.b16 %v1653
    %v2992 = vunpack.c.l.b16 %v1654
    %v2993 = vunpack.c.h.b16 %v1654
    %v2994 = vunpack.c.l.b16 %v1655
    %v2995 = vunpack.c.h.b16 %v1655
    %v2996 = vunpack.c.l.b16 %v1656
    %v2997 = vunpack.c.h.b16 %v1656
    %v2998 = vunpack.c.l.b16 %v1657
    %v2999 = vunpack.c.h.b16 %v1657
    %v3000 = vunpack.c.l.b16 %v1658
    %v3001 = vunpack.c.h.b16 %v1658
    %v3002 = vunpack.c.l.b16 %v1659
    %v3003 = vunpack.c.h.b16 %v1659
    %v3004 = vunpack.c.l.b16 %v1660
    %v3005 = vunpack.c.h.b16 %v1660
    %v3006 = vunpack.c.l.b16 %v1661
    %v3007 = vunpack.c.h.b16 %v1661
    %v3008 = vunpack.c.l.b16 %v1662
    %v3009 = vunpack.c.h.b16 %v1662
    %v3010 = vunpack.c.l.b16 %v1663
    %v3011 = vunpack.c.h.b16 %v1663
    %v3012 = vunpack.c.l.b16 %v1664
    %v3013 = vunpack.c.h.b16 %v1664
    %v3014 = vunpack.c.l.b16 %v1665
    %v3015 = vunpack.c.h.b16 %v1665
    %v3016 = vunpack.c.l.b16 %v1666
    %v3017 = vunpack.c.h.b16 %v1666
    %v3018 = vunpack.c.l.b16 %v1667
    %v3019 = vunpack.c.h.b16 %v1667
    %v3020 = vunpack.c.l.b16 %v1668
    %v3021 = vunpack.c.h.b16 %v1668
    %v3022 = vunpack.c.l.b16 %v1669
    %v3023 = vunpack.c.h.b16 %v1669
    %v3024 = vunpack.c.l.b16 %v1670
    %v3025 = vunpack.c.h.b16 %v1670
    %v3026 = vunpack.c.l.b16 %v1671
    %v3027 = vunpack.c.h.b16 %v1671
    %v3028 = vunpack.c.l.b16 %v1672
    %v3029 = vunpack.c.h.b16 %v1672
    %v3030 = vunpack.c.l.b16 %v1673
    %v3031 = vunpack.c.h.b16 %v1673
    %v3032 = vunpack.c.l.b16 %v1674
    %v3033 = vunpack.c.h.b16 %v1674
    %v3034 = vunpack.c.l.b16 %v1675
    %v3035 = vunpack.c.h.b16 %v1675
    %v3036 = vunpack.c.l.b16 %v1676
    %v3037 = vunpack.c.h.b16 %v1676
    %v3038 = vunpack.c.l.b16 %v1677
    %v3039 = vunpack.c.h.b16 %v1677
    %v3040 = vunpack.c.l.b16 %v1678
    %v3041 = vunpack.c.h.b16 %v1678
    %v3042 = vunpack.c.l.b16 %v1679
    %v3043 = vunpack.c.h.b16 %v1679
    %v3044 = vunpack.c.l.b16 %v1680
    %v3045 = vunpack.c.h.b16 %v1680
    %v3046 = vunpack.c.l.b16 %v1681
    %v3047 = vunpack.c.h.b16 %v1681
    %v3048 = vunpack.c.l.b16 %v1682
    %v3049 = vunpack.c.h.b16 %v1682
    %v3050 = vunpack.c.l.b16 %v1683
    %v3051 = vunpack.c.h.b16 %v1683
    %v3052 = vunpack.c.l.b16 %v1684
    %v3053 = vunpack.c.h.b16 %v1684
    %v3054 = vunpack.c.l.b16 %v1685
    %v3055 = vunpack.c.h.b16 %v1685
    %v3056 = vunpack.c.l.b16 %v1686
    %v3057 = vunpack.c.h.b16 %v1686
    %v3058 = vunpack.c.l.b16 %v1687
    %v3059 = vunpack.c.h.b16 %v1687
    %v3060 = vunpack.c.l.b16 %v1688
    %v3061 = vunpack.c.h.b16 %v1688
    %v3062 = vunpack.c.l.b16 %v1689
    %v3063 = vunpack.c.h.b16 %v1689
    %v3064 = vunpack.c.l.b16 %v1690
    %v3065 = vunpack.c.h.b16 %v1690
    %v3066 = vunpack.c.l.b16 %v1691
    %v3067 = vunpack.c.h.b16 %v1691
    %v3068 = vunpack.c.l.b16 %v1692
    %v3069 = vunpack.c.h.b16 %v1692
    %v3070 = vunpack.c.l.b16 %v1693
    %v3071 = vunpack.c.h.b16 %v1693
    %v3072 = vunpack.c.l.b16 %v1694
    %v3073 = vunpack.c.h.b16 %v1694
    %v3074 = vunpack.c.l.b16 %v1695
    %v3075 = vunpack.c.h.b16 %v1695
    %v3076 = vunpack.c.l.b16 %v1696
    %v3077 = vunpack.c.h.b16 %v1696
    %v3078 = vunpack.c.l.b16 %v1697
    %v3079 = vunpack.c.h.b16 %v1697
    %v3080 = vunpack.c.l.b16 %v1698
    %v3081 = vunpack.c.h.b16 %v1698
    %v3082 = vunpack.c.l.b16 %v1699
    %v3083 = vunpack.c.h.b16 %v1699
    %v3084 = vunpack.c.l.b16 %v1700
    %v3085 = vunpack.c.h.b16 %v1700
    %v3086 = vunpack.c.l.b16 %v1701
    %v3087 = vunpack.c.h.b16 %v1701
    %v3088 = vunpack.c.l.b16 %v1702
    %v3089 = vunpack.c.h.b16 %v1702
    %v3090 = vunpack.c.l.b16 %v1703
    %v3091 = vunpack.c.h.b16 %v1703
    %v3092 = vunpack.c.l.b16 %v1704
    %v3093 = vunpack.c.h.b16 %v1704
    %v3094 = vunpack.c.l.b16 %v1705
    %v3095 = vunpack.c.h.b16 %v1705
    %v3096 = vunpack.c.l.b16 %v1706
    %v3097 = vunpack.c.h.b16 %v1706
    %v3098 = vunpack.c.l.b16 %v1707
    %v3099 = vunpack.c.h.b16 %v1707
    %v3100 = vunpack.c.l.b16 %v1708
    %v3101 = vunpack.c.h.b16 %v1708
    %v3102 = vunpack.c.l.b16 %v1709
    %v3103 = vunpack.c.h.b16 %v1709
    %v3104 = vunpack.c.l.b16 %v1710
    %v3105 = vunpack.c.h.b16 %v1710
    %v3106 = vunpack.c.l.b16 %v1711
    %v3107 = vunpack.c.h.b16 %v1711
    %v3108 = vunpack.c.l.b16 %v1712
    %v3109 = vunpack.c.h.b16 %v1712
    %v3110 = vunpack.c.l.b16 %v1713
    %v3111 = vunpack.c.h.b16 %v1713
    %v3112 = vunpack.c.l.b16 %v1714
    %v3113 = vunpack.c.h.b16 %v1714
    %v3114 = vunpack.c.l.b16 %v1715
    %v3115 = vunpack.c.h.b16 %v1715
    %v3116 = vunpack.c.l.b16 %v1716
    %v3117 = vunpack.c.h.b16 %v1716
    %v3118 = vunpack.c.l.b16 %v1717
    %v3119 = vunpack.c.h.b16 %v1717
    %v3120 = vunpack.c.l.b16 %v1718
    %v3121 = vunpack.c.h.b16 %v1718
    %v3122 = vunpack.c.l.b16 %v1719
    %v3123 = vunpack.c.h.b16 %v1719
    %v3124 = vunpack.c.l.b16 %v1720
    %v3125 = vunpack.c.h.b16 %v1720
    %v3126 = vunpack.c.l.b16 %v1721
    %v3127 = vunpack.c.h.b16 %v1721
    %v3128 = vunpack.c.l.b16 %v1722
    %v3129 = vunpack.c.h.b16 %v1722
    %v3130 = vunpack.c.l.b16 %v1723
    %v3131 = vunpack.c.h.b16 %v1723
    %v3132 = vunpack.c.l.b16 %v1724
    %v3133 = vunpack.c.h.b16 %v1724
    %v3134 = vunpack.c.l.b16 %v1725
    %v3135 = vunpack.c.h.b16 %v1725
    %v3136 = vunpack.c.l.b16 %v1726
    %v3137 = vunpack.c.h.b16 %v1726
    %v3138 = vunpack.c.l.b16 %v1727
    %v3139 = vunpack.c.h.b16 %v1727
    %v3140 = vunpack.c.l.b16 %v1728
    %v3141 = vunpack.c.h.b16 %v1728
    %v3142 = vunpack.c.l.b16 %v1729
    %v3143 = vunpack.c.h.b16 %v1729
    %v3144 = vunpack.c.l.b16 %v1730
    %v3145 = vunpack.c.h.b16 %v1730
    %v3146 = vunpack.c.l.b16 %v1731
    %v3147 = vunpack.c.h.b16 %v1731
    %v3148 = vunpack.c.l.b16 %v1732
    %v3149 = vunpack.c.h.b16 %v1732
    %v3150 = vunpack.c.l.b16 %v1733
    %v3151 = vunpack.c.h.b16 %v1733
    %v3152 = vunpack.c.l.b16 %v1734
    %v3153 = vunpack.c.h.b16 %v1734
    %v3154 = vunpack.c.l.b16 %v1735
    %v3155 = vunpack.c.h.b16 %v1735
    %v3156 = vunpack.c.l.b16 %v1736
    %v3157 = vunpack.c.h.b16 %v1736
    %v3158 = vunpack.c.l.b16 %v1737
    %v3159 = vunpack.c.h.b16 %v1737
    %v3160 = vunpack.c.l.b16 %v1738
    %v3161 = vunpack.c.h.b16 %v1738
    %v3162 = vunpack.c.l.b16 %v1739
    %v3163 = vunpack.c.h.b16 %v1739
    %v3164 = vunpack.c.l.b16 %v1740
    %v3165 = vunpack.c.h.b16 %v1740
    %v3166 = vunpack.c.l.b16 %v1741
    %v3167 = vunpack.c.h.b16 %v1741
    %v3168 = vunpack.c.l.b16 %v1742
    %v3169 = vunpack.c.h.b16 %v1742
    %v3170 = vunpack.c.l.b16 %v1743
    %v3171 = vunpack.c.h.b16 %v1743
    %v3172 = vunpack.c.l.b16 %v1744
    %v3173 = vunpack.c.h.b16 %v1744
    %v3174 = vunpack.c.l.b16 %v1745
    %v3175 = vunpack.c.h.b16 %v1745
    %v3176 = vunpack.c.l.b16 %v1746
    %v3177 = vunpack.c.h.b16 %v1746
    %v3178 = vunpack.c.l.b16 %v1747
    %v3179 = vunpack.c.h.b16 %v1747
    %v3180 = vunpack.c.l.b16 %v1748
    %v3181 = vunpack.c.h.b16 %v1748
    %v3182 = vunpack.c.l.b16 %v1749
    %v3183 = vunpack.c.h.b16 %v1749
    %v3184 = vunpack.c.l.b16 %v1750
    %v3185 = vunpack.c.h.b16 %v1750
    %v3186 = vunpack.c.l.b16 %v1751
    %v3187 = vunpack.c.h.b16 %v1751
    %v3188 = vunpack.c.l.b16 %v1752
    %v3189 = vunpack.c.h.b16 %v1752
    %v3190 = vunpack.c.l.b16 %v1753
    %v3191 = vunpack.c.h.b16 %v1753
    %v3192 = vunpack.c.l.b16 %v1754
    %v3193 = vunpack.c.h.b16 %v1754
    %v3194 = vunpack.c.l.b16 %v1755
    %v3195 = vunpack.c.h.b16 %v1755
    %v3196 = vunpack.c.l.b16 %v1756
    %v3197 = vunpack.c.h.b16 %v1756
    %v3198 = vunpack.c.l.b16 %v1757
    %v3199 = vunpack.c.h.b16 %v1757
    %v3200 = vunpack.c.l.b16 %v1758
    %v3201 = vunpack.c.h.b16 %v1758
    %v3202 = vunpack.c.l.b16 %v1759
    %v3203 = vunpack.c.h.b16 %v1759
    %v3204 = vunpack.c.l.b16 %v1760
    %v3205 = vunpack.c.h.b16 %v1760
    %v3206 = vunpack.c.l.b16 %v1761
    %v3207 = vunpack.c.h.b16 %v1761
    %v3208 = vunpack.c.l.b16 %v1762
    %v3209 = vunpack.c.h.b16 %v1762
    %v3210 = vunpack.c.l.b16 %v1763
    %v3211 = vunpack.c.h.b16 %v1763
    %v3212 = vunpack.c.l.b16 %v1764
    %v3213 = vunpack.c.h.b16 %v1764
    %v3214 = vunpack.c.l.b16 %v1765
    %v3215 = vunpack.c.h.b16 %v1765
    %v3216 = vunpack.c.l.b16 %v1766
    %v3217 = vunpack.c.h.b16 %v1766
    %v3218 = vunpack.c.l.b16 %v1767
    %v3219 = vunpack.c.h.b16 %v1767
    %v3220 = vunpack.c.l.b16 %v1768
    %v3221 = vunpack.c.h.b16 %v1768
    %v3222 = vunpack.c.l.b16 %v1769
    %v3223 = vunpack.c.h.b16 %v1769
    %v3224 = vunpack.c.l.b16 %v1770
    %v3225 = vunpack.c.h.b16 %v1770
    %v3226 = vunpack.c.l.b16 %v1771
    %v3227 = vunpack.c.h.b16 %v1771
    %v3228 = vunpack.c.l.b16 %v1772
    %v3229 = vunpack.c.h.b16 %v1772
    %v3230 = vunpack.c.l.b16 %v1773
    %v3231 = vunpack.c.h.b16 %v1773
    %v3232 = vunpack.c.l.b16 %v1774
    %v3233 = vunpack.c.h.b16 %v1774
    %v3234 = vunpack.c.l.b16 %v1775
    %v3235 = vunpack.c.h.b16 %v1775
    %v3236 = vunpack.c.l.b16 %v1776
    %v3237 = vunpack.c.h.b16 %v1776
    %v3238 = vunpack.c.l.b16 %v1777
    %v3239 = vunpack.c.h.b16 %v1777
    %v3240 = vunpack.c.l.b16 %v1778
    %v3241 = vunpack.c.h.b16 %v1778
    %v3242 = vunpack.c.l.b16 %v1779
    %v3243 = vunpack.c.h.b16 %v1779
    %v3244 = vunpack.c.l.b16 %v1780
    %v3245 = vunpack.c.h.b16 %v1780
    %v3246 = vunpack.c.l.b16 %v1781
    %v3247 = vunpack.c.h.b16 %v1781
    %v3248 = vunpack.c.l.b16 %v1782
    %v3249 = vunpack.c.h.b16 %v1782
    %v3250 = vunpack.c.l.b16 %v1783
    %v3251 = vunpack.c.h.b16 %v1783
    %v3252 = vunpack.c.l.b16 %v1784
    %v3253 = vunpack.c.h.b16 %v1784
    %v3254 = vunpack.c.l.b16 %v1785
    %v3255 = vunpack.c.h.b16 %v1785
    %v3256 = vunpack.c.l.b16 %v1786
    %v3257 = vunpack.c.h.b16 %v1786
    %v3258 = vunpack.c.l.b16 %v1787
    %v3259 = vunpack.c.h.b16 %v1787
    %v3260 = vunpack.c.l.b16 %v1788
    %v3261 = vunpack.c.h.b16 %v1788
    %v3262 = vunpack.c.l.b16 %v1789
    %v3263 = vunpack.c.h.b16 %v1789
    %v3264 = vunpack.c.l.b16 %v1790
    %v3265 = vunpack.c.h.b16 %v1790
    %v3266 = vunpack.c.l.b16 %v1791
    %v3267 = vunpack.c.h.b16 %v1791
    %v3268 = vunpack.c.l.b16 %v1792
    %v3269 = vunpack.c.h.b16 %v1792
    %v3270 = vunpack.c.l.b16 %v1793
    %v3271 = vunpack.c.h.b16 %v1793
    %v3272 = vunpack.c.l.b16 %v1794
    %v3273 = vunpack.c.h.b16 %v1794
    %v3274 = vunpack.c.l.b16 %v1795
    %v3275 = vunpack.c.h.b16 %v1795
    %v3276 = vunpack.c.l.b16 %v1796
    %v3277 = vunpack.c.h.b16 %v1796
    %v3278 = vunpack.c.l.b16 %v1797
    %v3279 = vunpack.c.h.b16 %v1797
    %v3280 = vunpack.c.l.b16 %v1798
    %v3281 = vunpack.c.h.b16 %v1798
    %v3282 = vunpack.c.l.b16 %v1799
    %v3283 = vunpack.c.h.b16 %v1799
    %v3284 = vunpack.c.l.b16 %v1800
    %v3285 = vunpack.c.h.b16 %v1800
    %v3286 = vunpack.c.l.b16 %v1801
    %v3287 = vunpack.c.h.b16 %v1801
    %v3288 = vunpack.c.l.b16 %v1802
    %v3289 = vunpack.c.h.b16 %v1802
    %v3290 = vunpack.c.l.b16 %v1803
    %v3291 = vunpack.c.h.b16 %v1803
    %v3292 = vunpack.c.l.b16 %v1804
    %v3293 = vunpack.c.h.b16 %v1804
    %v3294 = vunpack.c.l.b16 %v1805
    %v3295 = vunpack.c.h.b16 %v1805
    %v3296 = vunpack.c.l.b16 %v1806
    %v3297 = vunpack.c.h.b16 %v1806
    %v3298 = vunpack.c.l.b16 %v1807
    %v3299 = vunpack.c.h.b16 %v1807
    %v3300 = vunpack.c.l.b16 %v1808
    %v3301 = vunpack.c.h.b16 %v1808
    %v3302 = vunpack.c.l.b16 %v1809
    %v3303 = vunpack.c.h.b16 %v1809
    %v3304 = vunpack.c.l.b16 %v1810
    %v3305 = vunpack.c.h.b16 %v1810
    %v3306 = vunpack.c.l.b16 %v1811
    %v3307 = vunpack.c.h.b16 %v1811
    %v3308 = vunpack.c.l.b16 %v1812
    %v3309 = vunpack.c.h.b16 %v1812
    %v3310 = vunpack.c.l.b16 %v1813
    %v3311 = vunpack.c.h.b16 %v1813
    %v3312 = vunpack.c.l.b16 %v1814
    %v3313 = vunpack.c.h.b16 %v1814
    %v3314 = vunpack.c.l.b16 %v1815
    %v3315 = vunpack.c.h.b16 %v1815
    %v3316 = vunpack.c.l.b16 %v1816
    %v3317 = vunpack.c.h.b16 %v1816
    %v3318 = vunpack.c.l.b16 %v1817
    %v3319 = vunpack.c.h.b16 %v1817
    %v3320 = vunpack.c.l.b16 %v1818
    %v3321 = vunpack.c.h.b16 %v1818
    %v3322 = vunpack.c.l.b16 %v1819
    %v3323 = vunpack.c.h.b16 %v1819
    %v3324 = vunpack.c.l.b16 %v1820
    %v3325 = vunpack.c.h.b16 %v1820
    %v3326 = vunpack.c.l.b16 %v1821
    %v3327 = vunpack.c.h.b16 %v1821
    %v3328 = vunpack.c.l.b16 %v1822
    %v3329 = vunpack.c.h.b16 %v1822
    %v3330 = vunpack.c.l.b16 %v1823
    %v3331 = vunpack.c.h.b16 %v1823
    %v3332 = vunpack.c.l.b16 %v1824
    %v3333 = vunpack.c.h.b16 %v1824
    %v3334 = vunpack.c.l.b16 %v1825
    %v3335 = vunpack.c.h.b16 %v1825
    %v3336 = vunpack.c.l.b16 %v1826
    %v3337 = vunpack.c.h.b16 %v1826
    %v3338 = vunpack.c.l.b16 %v1827
    %v3339 = vunpack.c.h.b16 %v1827
    %v3340 = vunpack.c.l.b16 %v1828
    %v3341 = vunpack.c.h.b16 %v1828
    %v3342 = vunpack.c.l.b16 %v1829
    %v3343 = vunpack.c.h.b16 %v1829
    %v3344 = vunpack.c.l.b16 %v1830
    %v3345 = vunpack.c.h.b16 %v1830
    %v3346 = vunpack.c.l.b16 %v1831
    %v3347 = vunpack.c.h.b16 %v1831
    %v3348 = vunpack.c.l.b16 %v1832
    %v3349 = vunpack.c.h.b16 %v1832
    %v3350 = vunpack.c.l.b16 %v1833
    %v3351 = vunpack.c.h.b16 %v1833
    %v3352 = vunpack.c.l.b16 %v1834
    %v3353 = vunpack.c.h.b16 %v1834
    %v3354 = vunpack.c.l.b16 %v1835
    %v3355 = vunpack.c.h.b16 %v1835
    %v3356 = vunpack.c.l.b16 %v1836
    %v3357 = vunpack.c.h.b16 %v1836
    %v3358 = vunpack.c.l.b16 %v1837
    %v3359 = vunpack.c.h.b16 %v1837
    %v3360 = vunpack.c.l.b16 %v1838
    %v3361 = vunpack.c.h.b16 %v1838
    %v3362 = vunpack.c.l.b16 %v1839
    %v3363 = vunpack.c.h.b16 %v1839
    %v3364 = vunpack.c.l.b16 %v1840
    %v3365 = vunpack.c.h.b16 %v1840
    %v3366 = vunpack.c.l.b16 %v1841
    %v3367 = vunpack.c.h.b16 %v1841
    %v3368 = vunpack.c.l.b16 %v1842
    %v3369 = vunpack.c.h.b16 %v1842
    %v3370 = vunpack.c.l.b16 %v1843
    %v3371 = vunpack.c.h.b16 %v1843
    %v3372 = vunpack.c.l.b16 %v1844
    %v3373 = vunpack.c.h.b16 %v1844
    %v3374 = vunpack.c.l.b16 %v1845
    %v3375 = vunpack.c.h.b16 %v1845
    %v3376 = vunpack.c.l.b16 %v1846
    %v3377 = vunpack.c.h.b16 %v1846
    %v3378 = vunpack.c.l.b16 %v1847
    %v3379 = vunpack.c.h.b16 %v1847
    %v3380 = vunpack.c.l.b16 %v1848
    %v3381 = vunpack.c.h.b16 %v1848
    %v3382 = vunpack.c.l.b16 %v1849
    %v3383 = vunpack.c.h.b16 %v1849
    %v3384 = vunpack.c.l.b16 %v1850
    %v3385 = vunpack.c.h.b16 %v1850
    %v3386 = vunpack.c.l.b16 %v1851
    %v3387 = vunpack.c.h.b16 %v1851
    %v3388 = vunpack.c.l.b16 %v1852
    %v3389 = vunpack.c.h.b16 %v1852
    %v3390 = vunpack.c.l.b16 %v1853
    %v3391 = vunpack.c.h.b16 %v1853
    %v3392 = vunpack.c.l.b16 %v1854
    %v3393 = vunpack.c.h.b16 %v1854
    %v3394 = vunpack.c.l.b16 %v1855
    %v3395 = vunpack.c.h.b16 %v1855
    %v3396 = vunpack.c.l.b16 %v1856
    %v3397 = vunpack.c.h.b16 %v1856
    %v3398 = vunpack.c.l.b16 %v1857
    %v3399 = vunpack.c.h.b16 %v1857
    %v3400 = vunpack.c.l.b16 %v1858
    %v3401 = vunpack.c.h.b16 %v1858
    %v3402 = vunpack.c.l.b16 %v1859
    %v3403 = vunpack.c.h.b16 %v1859
    %v3404 = vunpack.c.l.b16 %v1860
    %v3405 = vunpack.c.h.b16 %v1860
    %v3406 = vunpack.c.l.b16 %v1861
    %v3407 = vunpack.c.h.b16 %v1861
    %v3408 = vunpack.c.l.b16 %v1862
    %v3409 = vunpack.c.h.b16 %v1862
    %v3410 = vunpack.c.l.b16 %v1863
    %v3411 = vunpack.c.h.b16 %v1863
    %v3412 = vunpack.c.l.b16 %v1864
    %v3413 = vunpack.c.h.b16 %v1864
    %v3414 = vunpack.c.l.b16 %v1865
    %v3415 = vunpack.c.h.b16 %v1865
    %v3416 = vunpack.c.l.b16 %v1866
    %v3417 = vunpack.c.h.b16 %v1866
    %v3418 = vunpack.c.l.b16 %v1867
    %v3419 = vunpack.c.h.b16 %v1867
    %v3420 = vunpack.c.l.b16 %v1868
    %v3421 = vunpack.c.h.b16 %v1868
    %v3422 = vunpack.c.l.b16 %v1869
    %v3423 = vunpack.c.h.b16 %v1869
    %v3424 = vunpack.c.l.b16 %v1870
    %v3425 = vunpack.c.h.b16 %v1870
    %v3426 = vunpack.c.l.b16 %v1871
    %v3427 = vunpack.c.h.b16 %v1871
    %v3428 = vunpack.c.l.b16 %v1872
    %v3429 = vunpack.c.h.b16 %v1872
    %v3430 = vunpack.c.l.b16 %v1873
    %v3431 = vunpack.c.h.b16 %v1873
    %v3432 = vunpack.c.l.b16 %v1874
    %v3433 = vunpack.c.h.b16 %v1874
    %v3434 = vunpack.c.l.b16 %v1875
    %v3435 = vunpack.c.h.b16 %v1875
    %v3436 = vunpack.c.l.b16 %v1876
    %v3437 = vunpack.c.h.b16 %v1876
    %v3438 = vunpack.c.l.b16 %v1877
    %v3439 = vunpack.c.h.b16 %v1877
    %v3440 = vunpack.c.l.b16 %v1878
    %v3441 = vunpack.c.h.b16 %v1878
    %v3442 = vunpack.c.l.b16 %v1879
    %v3443 = vunpack.c.h.b16 %v1879
    %v3444 = vunpack.c.l.b16 %v1880
    %v3445 = vunpack.c.h.b16 %v1880
    %v3446 = vunpack.c.l.b16 %v1881
    %v3447 = vunpack.c.h.b16 %v1881
    %v3448 = vunpack.c.l.b16 %v1882
    %v3449 = vunpack.c.h.b16 %v1882
    %v3450 = vunpack.c.l.b16 %v1883
    %v3451 = vunpack.c.h.b16 %v1883
    %v3452 = vunpack.c.l.b16 %v1884
    %v3453 = vunpack.c.h.b16 %v1884
    %v3454 = vunpack.c.l.b16 %v1885
    %v3455 = vunpack.c.h.b16 %v1885
    %v3456 = vunpack.c.l.b16 %v1886
    %v3457 = vunpack.c.h.b16 %v1886
    %v3458 = vunpack.c.l.b16 %v1887
    %v3459 = vunpack.c.h.b16 %v1887
    %v3460 = vunpack.c.l.b16 %v1888
    %v3461 = vunpack.c.h.b16 %v1888
    %v3462 = vunpack.c.l.b16 %v1889
    %v3463 = vunpack.c.h.b16 %v1889
    %v3464 = vunpack.c.l.b16 %v1890
    %v3465 = vunpack.c.h.b16 %v1890
    %v3466 = vunpack.c.l.b16 %v1891
    %v3467 = vunpack.c.h.b16 %v1891
    %v3468 = vunpack.c.l.b16 %v1892
    %v3469 = vunpack.c.h.b16 %v1892
    %v3470 = vunpack.c.l.b16 %v1893
    %v3471 = vunpack.c.h.b16 %v1893
    %v3472 = vpack.c.b16 %v2456, %v2448
    %v3473 = vpack.c.b16 %v2457, %v2449
    %v3474 = vpack.c.b16 %v2458, %v2450
    %v3475 = vpack.c.b16 %v2459, %v2451
    %v3476 = vpack.c.b16 %v2460, %v2452
    %v3477 = vpack.c.b16 %v2461, %v2453
    %v3478 = vpack.c.b16 %v2462, %v2454
    %v3479 = vpack.c.b16 %v2463, %v2455
    %v3480 = vpack.c.b16 %v2472, %v2464
    %v3481 = vpack.c.b16 %v2473, %v2465
    %v3482 = vpack.c.b16 %v2474, %v2466
    %v3483 = vpack.c.b16 %v2475, %v2467
    %v3484 = vpack.c.b16 %v2476, %v2468
    %v3485 = vpack.c.b16 %v2477, %v2469
    %v3486 = vpack.c.b16 %v2478, %v2470
    %v3487 = vpack.c.b16 %v2479, %v2471
    %v3488 = vpack.c.b16 %v2488, %v2480
    %v3489 = vpack.c.b16 %v2489, %v2481
    %v3490 = vpack.c.b16 %v2490, %v2482
    %v3491 = vpack.c.b16 %v2491, %v2483
    %v3492 = vpack.c.b16 %v2492, %v2484
    %v3493 = vpack.c.b16 %v2493, %v2485
    %v3494 = vpack.c.b16 %v2494, %v2486
    %v3495 = vpack.c.b16 %v2495, %v2487
    %v3496 = vpack.c.b16 %v2504, %v2496
    %v3497 = vpack.c.b16 %v2505, %v2497
    %v3498 = vpack.c.b16 %v2506, %v2498
    %v3499 = vpack.c.b16 %v2507, %v2499
    %v3500 = vpack.c.b16 %v2508, %v2500
    %v3501 = vpack.c.b16 %v2509, %v2501
    %v3502 = vpack.c.b16 %v2510, %v2502
    %v3503 = vpack.c.b16 %v2511, %v2503
    %v3504 = vpack.c.b16 %v2520, %v2512
    %v3505 = vpack.c.b16 %v2521, %v2513
    %v3506 = vpack.c.b16 %v2522, %v2514
    %v3507 = vpack.c.b16 %v2523, %v2515
    %v3508 = vpack.c.b16 %v2524, %v2516
    %v3509 = vpack.c.b16 %v2525, %v2517
    %v3510 = vpack.c.b16 %v2526, %v2518
    %v3511 = vpack.c.b16 %v2527, %v2519
    %v3512 = vpack.c.b16 %v2536, %v2528
    %v3513 = vpack.c.b16 %v2537, %v2529
    %v3514 = vpack.c.b16 %v2538, %v2530
    %v3515 = vpack.c.b16 %v2539, %v2531
    %v3516 = vpack.c.b16 %v2540, %v2532
    %v3517 = vpack.c.b16 %v2541, %v2533
    %v3518 = vpack.c.b16 %v2542, %v2534
    %v3519 = vpack.c.b16 %v2543, %v2535
    %v3520 = vpack.c.b16 %v2552, %v2544
    %v3521 = vpack.c.b16 %v2553, %v2545
    %v3522 = vpack.c.b16 %v2554, %v2546
    %v3523 = vpack.c.b16 %v2555, %v2547
    %v3524 = vpack.c.b16 %v2556, %v2548
    %v3525 = vpack.c.b16 %v2557, %v2549
    %v3526 = vpack.c.b16 %v2558, %v2550
    %v3527 = vpack.c.b16 %v2559, %v2551
    %v3528 = vpack.c.b16 %v2568, %v2560
    %v3529 = vpack.c.b16 %v2569, %v2561
    %v3530 = vpack.c.b16 %v2570, %v2562
    %v3531 = vpack.c.b16 %v2571, %v2563
    %v3532 = vpack.c.b16 %v2572, %v2564
    %v3533 = vpack.c.b16 %v2573, %v2565
    %v3534 = vpack.c.b16 %v2574, %v2566
    %v3535 = vpack.c.b16 %v2575, %v2567
    %v3536 = vpack.c.b16 %v2584, %v2576
    %v3537 = vpack.c.b16 %v2585, %v2577
    %v3538 = vpack.c.b16 %v2586, %v2578
    %v3539 = vpack.c.b16 %v2587, %v2579
    %v3540 = vpack.c.b16 %v2588, %v2580
    %v3541 = vpack.c.b16 %v2589, %v2581
    %v3542 = vpack.c.b16 %v2590, %v2582
    %v3543 = vpack.c.b16 %v2591, %v2583
    %v3544 = vpack.c.b16 %v2600, %v2592
    %v3545 = vpack.c.b16 %v2601, %v2593
    %v3546 = vpack.c.b16 %v2602, %v2594
    %v3547 = vpack.c.b16 %v2603, %v2595
    %v3548 = vpack.c.b16 %v2604, %v2596
    %v3549 = vpack.c.b16 %v2605, %v2597
    %v3550 = vpack.c.b16 %v2606, %v2598
    %v3551 = vpack.c.b16 %v2607, %v2599
    %v3552 = vpack.c.b16 %v2616, %v2608
    %v3553 = vpack.c.b16 %v2617, %v2609
    %v3554 = vpack.c.b16 %v2618, %v2610
    %v3555 = vpack.c.b16 %v2619, %v2611
    %v3556 = vpack.c.b16 %v2620, %v2612
    %v3557 = vpack.c.b16 %v2621, %v2613
    %v3558 = vpack.c.b16 %v2622, %v2614
    %v3559 = vpack.c.b16 %v2623, %v2615
    %v3560 = vpack.c.b16 %v2632, %v2624
    %v3561 = vpack.c.b16 %v2633, %v2625
    %v3562 = vpack.c.b16 %v2634, %v2626
    %v3563 = vpack.c.b16 %v2635, %v2627
    %v3564 = vpack.c.b16 %v2636, %v2628
    %v3565 = vpack.c.b16 %v2637, %v2629
    %v3566 = vpack.c.b16 %v2638, %v2630
    %v3567 = vpack.c.b16 %v2639, %v2631
    %v3568 = vpack.c.b16 %v2648, %v2640
    %v3569 = vpack.c.b16 %v2649, %v2641
    %v3570 = vpack.c.b16 %v2650, %v2642
    %v3571 = vpack.c.b16 %v2651, %v2643
    %v3572 = vpack.c.b16 %v2652, %v2644
    %v3573 = vpack.c.b16 %v2653, %v2645
    %v3574 = vpack.c.b16 %v2654, %v2646
    %v3575 = vpack.c.b16 %v2655, %v2647
    %v3576 = vpack.c.b16 %v2664, %v2656
    %v3577 = vpack.c.b16 %v2665, %v2657
    %v3578 = vpack.c.b16 %v2666, %v2658
    %v3579 = vpack.c.b16 %v2667, %v2659
    %v3580 = vpack.c.b16 %v2668, %v2660
    %v3581 = vpack.c.b16 %v2669, %v2661
    %v3582 = vpack.c.b16 %v2670, %v2662
    %v3583 = vpack.c.b16 %v2671, %v2663
    %v3584 = vpack.c.b16 %v2680, %v2672
    %v3585 = vpack.c.b16 %v2681, %v2673
    %v3586 = vpack.c.b16 %v2682, %v2674
    %v3587 = vpack.c.b16 %v2683, %v2675
    %v3588 = vpack.c.b16 %v2684, %v2676
    %v3589 = vpack.c.b16 %v2685, %v2677
    %v3590 = vpack.c.b16 %v2686, %v2678
    %v3591 = vpack.c.b16 %v2687, %v2679
    %v3592 = vpack.c.b16 %v2696, %v2688
    %v3593 = vpack.c.b16 %v2697, %v2689
    %v3594 = vpack.c.b16 %v2698, %v2690
    %v3595 = vpack.c.b16 %v2699, %v2691
    %v3596 = vpack.c.b16 %v2700, %v2692
    %v3597 = vpack.c.b16 %v2701, %v2693
    %v3598 = vpack.c.b16 %v2702, %v2694
    %v3599 = vpack.c.b16 %v2703, %v2695
    %v3600 = vpack.c.b16 %v2712, %v2704
    %v3601 = vpack.c.b16 %v2713, %v2705
    %v3602 = vpack.c.b16 %v2714, %v2706
    %v3603 = vpack.c.b16 %v2715, %v2707
    %v3604 = vpack.c.b16 %v2716, %v2708
    %v3605 = vpack.c.b16 %v2717, %v2709
    %v3606 = vpack.c.b16 %v2718, %v2710
    %v3607 = vpack.c.b16 %v2719, %v2711
    %v3608 = vpack.c.b16 %v2728, %v2720
    %v3609 = vpack.c.b16 %v2729, %v2721
    %v3610 = vpack.c.b16 %v2730, %v2722
    %v3611 = vpack.c.b16 %v2731, %v2723
    %v3612 = vpack.c.b16 %v2732, %v2724
    %v3613 = vpack.c.b16 %v2733, %v2725
    %v3614 = vpack.c.b16 %v2734, %v2726
    %v3615 = vpack.c.b16 %v2735, %v2727
    %v3616 = vpack.c.b16 %v2744, %v2736
    %v3617 = vpack.c.b16 %v2745, %v2737
    %v3618 = vpack.c.b16 %v2746, %v2738
    %v3619 = vpack.c.b16 %v2747, %v2739
    %v3620 = vpack.c.b16 %v2748, %v2740
    %v3621 = vpack.c.b16 %v2749, %v2741
    %v3622 = vpack.c.b16 %v2750, %v2742
    %v3623 = vpack.c.b16 %v2751, %v2743
    %v3624 = vpack.c.b16 %v2760, %v2752
    %v3625 = vpack.c.b16 %v2761, %v2753
    %v3626 = vpack.c.b16 %v2762, %v2754
    %v3627 = vpack.c.b16 %v2763, %v2755
    %v3628 = vpack.c.b16 %v2764, %v2756
    %v3629 = vpack.c.b16 %v2765, %v2757
    %v3630 = vpack.c.b16 %v2766, %v2758
    %v3631 = vpack.c.b16 %v2767, %v2759
    %v3632 = vpack.c.b16 %v2776, %v2768
    %v3633 = vpack.c.b16 %v2777, %v2769
    %v3634 = vpack.c.b16 %v2778, %v2770
    %v3635 = vpack.c.b16 %v2779, %v2771
    %v3636 = vpack.c.b16 %v2780, %v2772
    %v3637 = vpack.c.b16 %v2781, %v2773
    %v3638 = vpack.c.b16 %v2782, %v2774
    %v3639 = vpack.c.b16 %v2783, %v2775
    %v3640 = vpack.c.b16 %v2792, %v2784
    %v3641 = vpack.c.b16 %v2793, %v2785
    %v3642 = vpack.c.b16 %v2794, %v2786
    %v3643 = vpack.c.b16 %v2795, %v2787
    %v3644 = vpack.c.b16 %v2796, %v2788
    %v3645 = vpack.c.b16 %v2797, %v2789
    %v3646 = vpack.c.b16 %v2798, %v2790
    %v3647 = vpack.c.b16 %v2799, %v2791
    %v3648 = vpack.c.b16 %v2808, %v2800
    %v3649 = vpack.c.b16 %v2809, %v2801
    %v3650 = vpack.c.b16 %v2810, %v2802
    %v3651 = vpack.c.b16 %v2811, %v2803
    %v3652 = vpack.c.b16 %v2812, %v2804
    %v3653 = vpack.c.b16 %v2813, %v2805
    %v3654 = vpack.c.b16 %v2814, %v2806
    %v3655 = vpack.c.b16 %v2815, %v2807
    %v3656 = vpack.c.b16 %v2824, %v2816
    %v3657 = vpack.c.b16 %v2825, %v2817
    %v3658 = vpack.c.b16 %v2826, %v2818
    %v3659 = vpack.c.b16 %v2827, %v2819
    %v3660 = vpack.c.b16 %v2828, %v2820
    %v3661 = vpack.c.b16 %v2829, %v2821
    %v3662 = vpack.c.b16 %v2830, %v2822
    %v3663 = vpack.c.b16 %v2831, %v2823
    %v3664 = vpack.c.b16 %v2840, %v2832
    %v3665 = vpack.c.b16 %v2841, %v2833
    %v3666 = vpack.c.b16 %v2842, %v2834
    %v3667 = vpack.c.b16 %v2843, %v2835
    %v3668 = vpack.c.b16 %v2844, %v2836
    %v3669 = vpack.c.b16 %v2845, %v2837
    %v3670 = vpack.c.b16 %v2846, %v2838
    %v3671 = vpack.c.b16 %v2847, %v2839
    %v3672 = vpack.c.b16 %v2856, %v2848
    %v3673 = vpack.c.b16 %v2857, %v2849
    %v3674 = vpack.c.b16 %v2858, %v2850
    %v3675 = vpack.c.b16 %v2859, %v2851
    %v3676 = vpack.c.b16 %v2860, %v2852
    %v3677 = vpack.c.b16 %v2861, %v2853
    %v3678 = vpack.c.b16 %v2862, %v2854
    %v3679 = vpack.c.b16 %v2863, %v2855
    %v3680 = vpack.c.b16 %v2872, %v2864
    %v3681 = vpack.c.b16 %v2873, %v2865
    %v3682 = vpack.c.b16 %v2874, %v2866
    %v3683 = vpack.c.b16 %v2875, %v2867
    %v3684 = vpack.c.b16 %v2876, %v2868
    %v3685 = vpack.c.b16 %v2877, %v2869
    %v3686 = vpack.c.b16 %v2878, %v2870
    %v3687 = vpack.c.b16 %v2879, %v2871
    %v3688 = vpack.c.b16 %v2888, %v2880
    %v3689 = vpack.c.b16 %v2889, %v2881
    %v3690 = vpack.c.b16 %v2890, %v2882
    %v3691 = vpack.c.b16 %v2891, %v2883
    %v3692 = vpack.c.b16 %v2892, %v2884
    %v3693 = vpack.c.b16 %v2893, %v2885
    %v3694 = vpack.c.b16 %v2894, %v2886
    %v3695 = vpack.c.b16 %v2895, %v2887
    %v3696 = vpack.c.b16 %v2904, %v2896
    %v3697 = vpack.c.b16 %v2905, %v2897
    %v3698 = vpack.c.b16 %v2906, %v2898
    %v3699 = vpack.c.b16 %v2907, %v2899
    %v3700 = vpack.c.b16 %v2908, %v2900
    %v3701 = vpack.c.b16 %v2909, %v2901
    %v3702 = vpack.c.b16 %v2910, %v2902
    %v3703 = vpack.c.b16 %v2911, %v2903
    %v3704 = vpack.c.b16 %v2920, %v2912
    %v3705 = vpack.c.b16 %v2921, %v2913
    %v3706 = vpack.c.b16 %v2922, %v2914
    %v3707 = vpack.c.b16 %v2923, %v2915
    %v3708 = vpack.c.b16 %v2924, %v2916
    %v3709 = vpack.c.b16 %v2925, %v2917
    %v3710 = vpack.c.b16 %v2926, %v2918
    %v3711 = vpack.c.b16 %v2927, %v2919
    %v3712 = vpack.c.b16 %v2936, %v2928
    %v3713 = vpack.c.b16 %v2937, %v2929
    %v3714 = vpack.c.b16 %v2938, %v2930
    %v3715 = vpack.c.b16 %v2939, %v2931
    %v3716 = vpack.c.b16 %v2940, %v2932
    %v3717 = vpack.c.b16 %v2941, %v2933
    %v3718 = vpack.c.b16 %v2942, %v2934
    %v3719 = vpack.c.b16 %v2943, %v2935
    %v3720 = vpack.c.b16 %v2952, %v2944
    %v3721 = vpack.c.b16 %v2953, %v2945
    %v3722 = vpack.c.b16 %v2954, %v2946
    %v3723 = vpack.c.b16 %v2955, %v2947
    %v3724 = vpack.c.b16 %v2956, %v2948
    %v3725 = vpack.c.b16 %v2957, %v2949
    %v3726 = vpack.c.b16 %v2958, %v2950
    %v3727 = vpack.c.b16 %v2959, %v2951
    %v3728 = vpack.c.b16 %v2968, %v2960
    %v3729 = vpack.c.b16 %v2969, %v2961
    %v3730 = vpack.c.b16 %v2970, %v2962
    %v3731 = vpack.c.b16 %v2971, %v2963
    %v3732 = vpack.c.b16 %v2972, %v2964
    %v3733 = vpack.c.b16 %v2973, %v2965
    %v3734 = vpack.c.b16 %v2974, %v2966
    %v3735 = vpack.c.b16 %v2975, %v2967
    %v3736 = vpack.c.b16 %v2984, %v2976
    %v3737 = vpack.c.b16 %v2985, %v2977
    %v3738 = vpack.c.b16 %v2986, %v2978
    %v3739 = vpack.c.b16 %v2987, %v2979
    %v3740 = vpack.c.b16 %v2988, %v2980
    %v3741 = vpack.c.b16 %v2989, %v2981
    %v3742 = vpack.c.b16 %v2990, %v2982
    %v3743 = vpack.c.b16 %v2991, %v2983
    %v3744 = vpack.c.b16 %v3000, %v2992
    %v3745 = vpack.c.b16 %v3001, %v2993
    %v3746 = vpack.c.b16 %v3002, %v2994
    %v3747 = vpack.c.b16 %v3003, %v2995
    %v3748 = vpack.c.b16 %v3004, %v2996
    %v3749 = vpack.c.b16 %v3005, %v2997
    %v3750 = vpack.c.b16 %v3006, %v2998
    %v3751 = vpack.c.b16 %v3007, %v2999
    %v3752 = vpack.c.b16 %v3016, %v3008
    %v3753 = vpack.c.b16 %v3017, %v3009
    %v3754 = vpack.c.b16 %v3018, %v3010
    %v3755 = vpack.c.b16 %v3019, %v3011
    %v3756 = vpack.c.b16 %v3020, %v3012
    %v3757 = vpack.c.b16 %v3021, %v3013
    %v3758 = vpack.c.b16 %v3022, %v3014
    %v3759 = vpack.c.b16 %v3023, %v3015
    %v3760 = vpack.c.b16 %v3032, %v3024
    %v3761 = vpack.c.b16 %v3033, %v3025
    %v3762 = vpack.c.b16 %v3034, %v3026
    %v3763 = vpack.c.b16 %v3035, %v3027
    %v3764 = vpack.c.b16 %v3036, %v3028
    %v3765 = vpack.c.b16 %v3037, %v3029
    %v3766 = vpack.c.b16 %v3038, %v3030
    %v3767 = vpack.c.b16 %v3039, %v3031
    %v3768 = vpack.c.b16 %v3048, %v3040
    %v3769 = vpack.c.b16 %v3049, %v3041
    %v3770 = vpack.c.b16 %v3050, %v3042
    %v3771 = vpack.c.b16 %v3051, %v3043
    %v3772 = vpack.c.b16 %v3052, %v3044
    %v3773 = vpack.c.b16 %v3053, %v3045
    %v3774 = vpack.c.b16 %v3054, %v3046
    %v3775 = vpack.c.b16 %v3055, %v3047
    %v3776 = vpack.c.b16 %v3064, %v3056
    %v3777 = vpack.c.b16 %v3065, %v3057
    %v3778 = vpack.c.b16 %v3066, %v3058
    %v3779 = vpack.c.b16 %v3067, %v3059
    %v3780 = vpack.c.b16 %v3068, %v3060
    %v3781 = vpack.c.b16 %v3069, %v3061
    %v3782 = vpack.c.b16 %v3070, %v3062
    %v3783 = vpack.c.b16 %v3071, %v3063
    %v3784 = vpack.c.b16 %v3080, %v3072
    %v3785 = vpack.c.b16 %v3081, %v3073
    %v3786 = vpack.c.b16 %v3082, %v3074
    %v3787 = vpack.c.b16 %v3083, %v3075
    %v3788 = vpack.c.b16 %v3084, %v3076
    %v3789 = vpack.c.b16 %v3085, %v3077
    %v3790 = vpack.c.b16 %v3086, %v3078
    %v3791 = vpack.c.b16 %v3087, %v3079
    %v3792 = vpack.c.b16 %v3096, %v3088
    %v3793 = vpack.c.b16 %v3097, %v3089
    %v3794 = vpack.c.b16 %v3098, %v3090
    %v3795 = vpack.c.b16 %v3099, %v3091
    %v3796 = vpack.c.b16 %v3100, %v3092
    %v3797 = vpack.c.b16 %v3101, %v3093
    %v3798 = vpack.c.b16 %v3102, %v3094
    %v3799 = vpack.c.b16 %v3103, %v3095
    %v3800 = vpack.c.b16 %v3112, %v3104
    %v3801 = vpack.c.b16 %v3113, %v3105
    %v3802 = vpack.c.b16 %v3114, %v3106
    %v3803 = vpack.c.b16 %v3115, %v3107
    %v3804 = vpack.c.b16 %v3116, %v3108
    %v3805 = vpack.c.b16 %v3117, %v3109
    %v3806 = vpack.c.b16 %v3118, %v3110
    %v3807 = vpack.c.b16 %v3119, %v3111
    %v3808 = vpack.c.b16 %v3128, %v3120
    %v3809 = vpack.c.b16 %v3129, %v3121
    %v3810 = vpack.c.b16 %v3130, %v3122
    %v3811 = vpack.c.b16 %v3131, %v3123
    %v3812 = vpack.c.b16 %v3132, %v3124
    %v3813 = vpack.c.b16 %v3133, %v3125
    %v3814 = vpack.c.b16 %v3134, %v3126
    %v3815 = vpack.c.b16 %v3135, %v3127
    %v3816 = vpack.c.b16 %v3144, %v3136
    %v3817 = vpack.c.b16 %v3145, %v3137
    %v3818 = vpack.c.b16 %v3146, %v3138
    %v3819 = vpack.c.b16 %v3147, %v3139
    %v3820 = vpack.c.b16 %v3148, %v3140
    %v3821 = vpack.c.b16 %v3149, %v3141
    %v3822 = vpack.c.b16 %v3150, %v3142
    %v3823 = vpack.c.b16 %v3151, %v3143
    %v3824 = vpack.c.b16 %v3160, %v3152
    %v3825 = vpack.c.b16 %v3161, %v3153
    %v3826 = vpack.c.b16 %v3162, %v3154
    %v3827 = vpack.c.b16 %v3163, %v3155
    %v3828 = vpack.c.b16 %v3164, %v3156
    %v3829 = vpack.c.b16 %v3165, %v3157
    %v3830 = vpack.c.b16 %v3166, %v3158
    %v3831 = vpack.c.b16 %v3167, %v3159
    %v3832 = vpack.c.b16 %v3176, %v3168
    %v3833 = vpack.c.b16 %v3177, %v3169
    %v3834 = vpack.c.b16 %v3178, %v3170
    %v3835 = vpack.c.b16 %v3179, %v3171
    %v3836 = vpack.c.b16 %v3180, %v3172
    %v3837 = vpack.c.b16 %v3181, %v3173
    %v3838 = vpack.c.b16 %v3182, %v3174
    %v3839 = vpack.c.b16 %v3183, %v3175
    %v3840 = vpack.c.b16 %v3192, %v3184
    %v3841 = vpack.c.b16 %v3193, %v3185
    %v3842 = vpack.c.b16 %v3194, %v3186
    %v3843 = vpack.c.b16 %v3195, %v3187
    %v3844 = vpack.c.b16 %v3196, %v3188
    %v3845 = vpack.c.b16 %v3197, %v3189
    %v3846 = vpack.c.b16 %v3198, %v3190
    %v3847 = vpack.c.b16 %v3199, %v3191
    %v3848 = vpack.c.b16 %v3208, %v3200
    %v3849 = vpack.c.b16 %v3209, %v3201
    %v3850 = vpack.c.b16 %v3210, %v3202
    %v3851 = vpack.c.b16 %v3211, %v3203
    %v3852 = vpack.c.b16 %v3212, %v3204
    %v3853 = vpack.c.b16 %v3213, %v3205
    %v3854 = vpack.c.b16 %v3214, %v3206
    %v3855 = vpack.c.b16 %v3215, %v3207
    %v3856 = vpack.c.b16 %v3224, %v3216
    %v3857 = vpack.c.b16 %v3225, %v3217
    %v3858 = vpack.c.b16 %v3226, %v3218
    %v3859 = vpack.c.b16 %v3227, %v3219
    %v3860 = vpack.c.b16 %v3228, %v3220
    %v3861 = vpack.c.b16 %v3229, %v3221
    %v3862 = vpack.c.b16 %v3230, %v3222
    %v3863 = vpack.c.b16 %v3231, %v3223
    %v3864 = vpack.c.b16 %v3240, %v3232
    %v3865 = vpack.c.b16 %v3241, %v3233
    %v3866 = vpack.c.b16 %v3242, %v3234
    %v3867 = vpack.c.b16 %v3243, %v3235
    %v3868 = vpack.c.b16 %v3244, %v3236
    %v3869 = vpack.c.b16 %v3245, %v3237
    %v3870 = vpack.c.b16 %v3246, %v3238
    %v3871 = vpack.c.b16 %v3247, %v3239
    %v3872 = vpack.c.b16 %v3256, %v3248
    %v3873 = vpack.c.b16 %v3257, %v3249
    %v3874 = vpack.c.b16 %v3258, %v3250
    %v3875 = vpack.c.b16 %v3259, %v3251
    %v3876 = vpack.c.b16 %v3260, %v3252
    %v3877 = vpack.c.b16 %v3261, %v3253
    %v3878 = vpack.c.b16 %v3262, %v3254
    %v3879 = vpack.c.b16 %v3263, %v3255
    %v3880 = vpack.c.b16 %v3272, %v3264
    %v3881 = vpack.c.b16 %v3273, %v3265
    %v3882 = vpack.c.b16 %v3274, %v3266
    %v3883 = vpack.c.b16 %v3275, %v3267
    %v3884 = vpack.c.b16 %v3276, %v3268
    %v3885 = vpack.c.b16 %v3277, %v3269
    %v3886 = vpack.c.b16 %v3278, %v3270
    %v3887 = vpack.c.b16 %v3279, %v3271
    %v3888 = vpack.c.b16 %v3288, %v3280
    %v3889 = vpack.c.b16 %v3289, %v3281
    %v3890 = vpack.c.b16 %v3290, %v3282
    %v3891 = vpack.c.b16 %v3291, %v3283
    %v3892 = vpack.c.b16 %v3292, %v3284
    %v3893 = vpack.c.b16 %v3293, %v3285
    %v3894 = vpack.c.b16 %v3294, %v3286
    %v3895 = vpack.c.b16 %v3295, %v3287
    %v3896 = vpack.c.b16 %v3304, %v3296
    %v3897 = vpack.c.b16 %v3305, %v3297
    %v3898 = vpack.c.b16 %v3306, %v3298
    %v3899 = vpack.c.b16 %v3307, %v3299
    %v3900 = vpack.c.b16 %v3308, %v3300
    %v3901 = vpack.c.b16 %v3309, %v3301
    %v3902 = vpack.c.b16 %v3310, %v3302
    %v3903 = vpack.c.b16 %v3311, %v3303
    %v3904 = vpack.c.b16 %v3320, %v3312
    %v3905 = vpack.c.b16 %v3321, %v3313
    %v3906 = vpack.c.b16 %v3322, %v3314
    %v3907 = vpack.c.b16 %v3323, %v3315
    %v3908 = vpack.c.b16 %v3324, %v3316
    %v3909 = vpack.c.b16 %v3325, %v3317
    %v3910 = vpack.c.b16 %v3326, %v3318
    %v3911 = vpack.c.b16 %v3327, %v3319
    %v3912 = vpack.c.b16 %v3336, %v3328
    %v3913 = vpack.c.b16 %v3337, %v3329
    %v3914 = vpack.c.b16 %v3338, %v3330
    %v3915 = vpack.c.b16 %v3339, %v3331
    %v3916 = vpack.c.b16 %v3340, %v3332
    %v3917 = vpack.c.b16 %v3341, %v3333
    %v3918 = vpack.c.b16 %v3342, %v3334
    %v3919 = vpack.c.b16 %v3343, %v3335
    %v3920 = vpack.c.b16 %v3352, %v3344
    %v3921 = vpack.c.b16 %v3353, %v3345
    %v3922 = vpack.c.b16 %v3354, %v3346
    %v3923 = vpack.c.b16 %v3355, %v3347
    %v3924 = vpack.c.b16 %v3356, %v3348
    %v3925 = vpack.c.b16 %v3357, %v3349
    %v3926 = vpack.c.b16 %v3358, %v3350
    %v3927 = vpack.c.b16 %v3359, %v3351
    %v3928 = vpack.c.b16 %v3368, %v3360
    %v3929 = vpack.c.b16 %v3369, %v3361
    %v3930 = vpack.c.b16 %v3370, %v3362
    %v3931 = vpack.c.b16 %v3371, %v3363
    %v3932 = vpack.c.b16 %v3372, %v3364
    %v3933 = vpack.c.b16 %v3373, %v3365
    %v3934 = vpack.c.b16 %v3374, %v3366
    %v3935 = vpack.c.b16 %v3375, %v3367
    %v3936 = vpack.c.b16 %v3384, %v3376
    %v3937 = vpack.c.b16 %v3385, %v3377
    %v3938 = vpack.c.b16 %v3386, %v3378
    %v3939 = vpack.c.b16 %v3387, %v3379
    %v3940 = vpack.c.b16 %v3388, %v3380
    %v3941 = vpack.c.b16 %v3389, %v3381
    %v3942 = vpack.c.b16 %v3390, %v3382
    %v3943 = vpack.c.b16 %v3391, %v3383
    %v3944 = vpack.c.b16 %v3400, %v3392
    %v3945 = vpack.c.b16 %v3401, %v3393
    %v3946 = vpack.c.b16 %v3402, %v3394
    %v3947 = vpack.c.b16 %v3403, %v3395
    %v3948 = vpack.c.b16 %v3404, %v3396
    %v3949 = vpack.c.b16 %v3405, %v3397
    %v3950 = vpack.c.b16 %v3406, %v3398
    %v3951 = vpack.c.b16 %v3407, %v3399
    %v3952 = vpack.c.b16 %v3416, %v3408
    %v3953 = vpack.c.b16 %v3417, %v3409
    %v3954 = vpack.c.b16 %v3418, %v3410
    %v3955 = vpack.c.b16 %v3419, %v3411
    %v3956 = vpack.c.b16 %v3420, %v3412
    %v3957 = vpack.c.b16 %v3421, %v3413
    %v3958 = vpack.c.b16 %v3422, %v3414
    %v3959 = vpack.c.b16 %v3423, %v3415
    %v3960 = vpack.c.b16 %v3432, %v3424
    %v3961 = vpack.c.b16 %v3433, %v3425
    %v3962 = vpack.c.b16 %v3434, %v3426
    %v3963 = vpack.c.b16 %v3435, %v3427
    %v3964 = vpack.c.b16 %v3436, %v3428
    %v3965 = vpack.c.b16 %v3437, %v3429
    %v3966 = vpack.c.b16 %v3438, %v3430
    %v3967 = vpack.c.b16 %v3439, %v3431
    %v3968 = vpack.c.b16 %v3448, %v3440
    %v3969 = vpack.c.b16 %v3449, %v3441
    %v3970 = vpack.c.b16 %v3450, %v3442
    %v3971 = vpack.c.b16 %v3451, %v3443
    %v3972 = vpack.c.b16 %v3452, %v3444
    %v3973 = vpack.c.b16 %v3453, %v3445
    %v3974 = vpack.c.b16 %v3454, %v3446
    %v3975 = vpack.c.b16 %v3455, %v3447
    %v3976 = vpack.c.b16 %v3464, %v3456
    %v3977 = vpack.c.b16 %v3465, %v3457
    %v3978 = vpack.c.b16 %v3466, %v3458
    %v3979 = vpack.c.b16 %v3467, %v3459
    %v3980 = vpack.c.b16 %v3468, %v3460
    %v3981 = vpack.c.b16 %v3469, %v3461
    %v3982 = vpack.c.b16 %v3470, %v3462
    %v3983 = vpack.c.b16 %v3471, %v3463
    %4496 = vmatprep.subr.bf16.mxu0 %v3473
    %4497 = vmatpush1.bf16.msra.mxu0 %v3472
    %4498 = vmatprep.subr.bf16.mxu0 %v3481
    %4499 = vmatpush1.bf16.msra.mxu0 %v3480
    %4500 = vmatprep.subr.bf16.mxu0 %v3489
    %4501 = vmatpush1.bf16.msra.mxu0 %v3488
    %4502 = vmatprep.subr.bf16.mxu0 %v3497
    %4503 = vmatpush1.bf16.msra.mxu0 %v3496
    %4504 = vmatprep.subr.bf16.mxu0 %v3505
    %4505 = vmatpush1.bf16.msra.mxu0 %v3504
    %4506 = vmatprep.subr.bf16.mxu0 %v3513
    %4507 = vmatpush1.bf16.msra.mxu0 %v3512
    %4508 = vmatprep.subr.bf16.mxu0 %v3521
    %4509 = vmatpush1.bf16.msra.mxu0 %v3520
    %4510 = vmatprep.subr.bf16.mxu0 %v3529
    %4511 = vmatpush1.bf16.msra.mxu0 %v3528
    %4512 = vmatprep.subr.bf16.mxu0 %v3537
    %4513 = vmatpush1.bf16.msra.mxu0 %v3536
    %4514 = vmatprep.subr.bf16.mxu0 %v3545
    %4515 = vmatpush1.bf16.msra.mxu0 %v3544
    %4516 = vmatprep.subr.bf16.mxu0 %v3553
    %4517 = vmatpush1.bf16.msra.mxu0 %v3552
    %4518 = vmatprep.subr.bf16.mxu0 %v3561
    %4519 = vmatpush1.bf16.msra.mxu0 %v3560
    %4520 = vmatprep.subr.bf16.mxu0 %v3569
    %4521 = vmatpush1.bf16.msra.mxu0 %v3568
    %4522 = vmatprep.subr.bf16.mxu0 %v3577
    %4523 = vmatpush1.bf16.msra.mxu0 %v3576
    %4524 = vmatprep.subr.bf16.mxu0 %v3585
    %4525 = vmatpush1.bf16.msra.mxu0 %v3584
    %4526 = vmatprep.subr.bf16.mxu0 %v3593
    %4527 = vmatpush1.bf16.msra.mxu0 %v3592
    %4528 = vmatprep.mubr.bf16.mxu0 %v1375
    %4529 = vmatmul.mubr.bf16.gmra.mrb[0].mxu0 %v1374
    %v4530 = vpop.f32.mrb[0].mxu0
    %v4531 = vadd.f32 %v1899, %v4530
    %v4532 = vpop.f32.mrb[0].mxu0
    %v4533 = vadd.f32 %v1903, %v4532
    %v4534 = vpop.f32.mrb[0].mxu0
    %v4535 = vpop.f32.mrb[0].mxu0
    %4536 = vdwg.mxu0
    %4537 = vmatprep.subr.bf16.mxu0 %v3601
    %4538 = vmatpush1.bf16.msra.mxu0 %v3600
    %4539 = vmatprep.subr.bf16.mxu0 %v3609
    %4540 = vmatpush1.bf16.msra.mxu0 %v3608
    %4541 = vmatprep.subr.bf16.mxu0 %v3617
    %4542 = vmatpush1.bf16.msra.mxu0 %v3616
    %4543 = vmatprep.subr.bf16.mxu0 %v3625
    %4544 = vmatpush1.bf16.msra.mxu0 %v3624
    %4545 = vmatprep.subr.bf16.mxu0 %v3633
    %4546 = vmatpush1.bf16.msra.mxu0 %v3632
    %4547 = vmatprep.subr.bf16.mxu0 %v3641
    %4548 = vmatpush1.bf16.msra.mxu0 %v3640
    %4549 = vmatprep.subr.bf16.mxu0 %v3649
    %4550 = vmatpush1.bf16.msra.mxu0 %v3648
    %4551 = vmatprep.subr.bf16.mxu0 %v3657
    %4552 = vmatpush1.bf16.msra.mxu0 %v3656
    %4553 = vmatprep.subr.bf16.mxu0 %v3665
    %4554 = vmatpush1.bf16.msra.mxu0 %v3664
    %4555 = vmatprep.subr.bf16.mxu0 %v3673
    %4556 = vmatpush1.bf16.msra.mxu0 %v3672
    %4557 = vmatprep.subr.bf16.mxu0 %v3681
    %4558 = vmatpush1.bf16.msra.mxu0 %v3680
    %4559 = vmatprep.subr.bf16.mxu0 %v3689
    %4560 = vmatpush1.bf16.msra.mxu0 %v3688
    %4561 = vmatprep.subr.bf16.mxu0 %v3697
    %4562 = vmatpush1.bf16.msra.mxu0 %v3696
    %4563 = vmatprep.subr.bf16.mxu0 %v3705
    %4564 = vmatpush1.bf16.msra.mxu0 %v3704
    %4565 = vmatprep.subr.bf16.mxu0 %v3713
    %4566 = vmatpush1.bf16.msra.mxu0 %v3712
    %4567 = vmatprep.subr.bf16.mxu0 %v3721
    %4568 = vmatpush1.bf16.msra.mxu0 %v3720
    %4569 = vmatprep.mubr.bf16.mxu0 %v1377
    %4570 = vmatmul.mubr.bf16.gmra.mrb[0].mxu0 %v1376
    %v4571 = vpop.f32.mrb[0].mxu0
    %v4572 = vadd.f32 %v4531, %v4571
    %v4573 = vpop.f32.mrb[0].mxu0
    %v4574 = vadd.f32 %v4533, %v4573
    %v4575 = vpop.f32.mrb[0].mxu0
    %v4576 = vpop.f32.mrb[0].mxu0
    %4577 = vdwg.mxu0
    %4578 = vmatprep.subr.bf16.mxu0 %v3729
    %4579 = vmatpush1.bf16.msra.mxu0 %v3728
    %4580 = vmatprep.subr.bf16.mxu0 %v3737
    %4581 = vmatpush1.bf16.msra.mxu0 %v3736
    %4582 = vmatprep.subr.bf16.mxu0 %v3745
    %4583 = vmatpush1.bf16.msra.mxu0 %v3744
    %4584 = vmatprep.subr.bf16.mxu0 %v3753
    %4585 = vmatpush1.bf16.msra.mxu0 %v3752
    %4586 = vmatprep.subr.bf16.mxu0 %v3761
    %4587 = vmatpush1.bf16.msra.mxu0 %v3760
    %4588 = vmatprep.subr.bf16.mxu0 %v3769
    %4589 = vmatpush1.bf16.msra.mxu0 %v3768
    %4590 = vmatprep.subr.bf16.mxu0 %v3777
    %4591 = vmatpush1.bf16.msra.mxu0 %v3776
    %4592 = vmatprep.subr.bf16.mxu0 %v3785
    %4593 = vmatpush1.bf16.msra.mxu0 %v3784
    %4594 = vmatprep.subr.bf16.mxu0 %v3793
    %4595 = vmatpush1.bf16.msra.mxu0 %v3792
    %4596 = vmatprep.subr.bf16.mxu0 %v3801
    %4597 = vmatpush1.bf16.msra.mxu0 %v3800
    %4598 = vmatprep.subr.bf16.mxu0 %v3809
    %4599 = vmatpush1.bf16.msra.mxu0 %v3808
    %4600 = vmatprep.subr.bf16.mxu0 %v3817
    %4601 = vmatpush1.bf16.msra.mxu0 %v3816
    %4602 = vmatprep.subr.bf16.mxu0 %v3825
    %4603 = vmatpush1.bf16.msra.mxu0 %v3824
    %4604 = vmatprep.subr.bf16.mxu0 %v3833
    %4605 = vmatpush1.bf16.msra.mxu0 %v3832
    %4606 = vmatprep.subr.bf16.mxu0 %v3841
    %4607 = vmatpush1.bf16.msra.mxu0 %v3840
    %4608 = vmatprep.subr.bf16.mxu0 %v3849
    %4609 = vmatpush1.bf16.msra.mxu0 %v3848
    %4610 = vmatprep.mubr.bf16.mxu0 %v1379
    %4611 = vmatmul.mubr.bf16.gmra.mrb[0].mxu0 %v1378
    %v4612 = vpop.f32.mrb[0].mxu0
    %v4613 = vadd.f32 %v4572, %v4612
    %v4614 = vpop.f32.mrb[0].mxu0
    %v4615 = vadd.f32 %v4574, %v4614
    %v4616 = vpop.f32.mrb[0].mxu0
    %v4617 = vpop.f32.mrb[0].mxu0
    %4618 = vdwg.mxu0
    %4619 = vmatprep.subr.bf16.mxu0 %v3857
    %4620 = vmatpush1.bf16.msra.mxu0 %v3856
    %4621 = vmatprep.subr.bf16.mxu0 %v3865
    %4622 = vmatpush1.bf16.msra.mxu0 %v3864
    %4623 = vmatprep.subr.bf16.mxu0 %v3873
    %4624 = vmatpush1.bf16.msra.mxu0 %v3872
    %4625 = vmatprep.subr.bf16.mxu0 %v3881
    %4626 = vmatpush1.bf16.msra.mxu0 %v3880
    %4627 = vmatprep.subr.bf16.mxu0 %v3889
    %4628 = vmatpush1.bf16.msra.mxu0 %v3888
    %4629 = vmatprep.subr.bf16.mxu0 %v3897
    %4630 = vmatpush1.bf16.msra.mxu0 %v3896
    %4631 = vmatprep.subr.bf16.mxu0 %v3905
    %4632 = vmatpush1.bf16.msra.mxu0 %v3904
    %4633 = vmatprep.subr.bf16.mxu0 %v3913
    %4634 = vmatpush1.bf16.msra.mxu0 %v3912
    %4635 = vmatprep.subr.bf16.mxu0 %v3921
    %4636 = vmatpush1.bf16.msra.mxu0 %v3920
    %4637 = vmatprep.subr.bf16.mxu0 %v3929
    %4638 = vmatpush1.bf16.msra.mxu0 %v3928
    %4639 = vmatprep.subr.bf16.mxu0 %v3937
    %4640 = vmatpush1.bf16.msra.mxu0 %v3936
    %4641 = vmatprep.subr.bf16.mxu0 %v3945
    %4642 = vmatpush1.bf16.msra.mxu0 %v3944
    %4643 = vmatprep.subr.bf16.mxu0 %v3953
    %4644 = vmatpush1.bf16.msra.mxu0 %v3952
    %4645 = vmatprep.subr.bf16.mxu0 %v3961
    %4646 = vmatpush1.bf16.msra.mxu0 %v3960
    %4647 = vmatprep.subr.bf16.mxu0 %v3969
    %4648 = vmatpush1.bf16.msra.mxu0 %v3968
    %4649 = vmatprep.subr.bf16.mxu0 %v3977
    %4650 = vmatpush1.bf16.msra.mxu0 %v3976
    %4651 = vmatprep.mubr.bf16.mxu0 %v1381
    %4652 = vmatmul.mubr.bf16.gmra.mrb[0].mxu0 %v1380
    %v4653 = vpop.f32.mrb[0].mxu0
    %v4654 = vadd.f32 %v4613, %v4653
    %v4655 = vpop.f32.mrb[0].mxu0
    %v4656 = vadd.f32 %v4615, %v4655
    %v4657 = vpop.f32.mrb[0].mxu0
    %v4658 = vpop.f32.mrb[0].mxu0
    %4659 = vdwg.mxu0
    %4660 = vmatprep.subr.bf16.mxu0 %v3475
    %4661 = vmatpush1.bf16.msra.mxu0 %v3474
    %4662 = vmatprep.subr.bf16.mxu0 %v3483
    %4663 = vmatpush1.bf16.msra.mxu0 %v3482
    %4664 = vmatprep.subr.bf16.mxu0 %v3491
    %4665 = vmatpush1.bf16.msra.mxu0 %v3490
    %4666 = vmatprep.subr.bf16.mxu0 %v3499
    %4667 = vmatpush1.bf16.msra.mxu0 %v3498
    %4668 = vmatprep.subr.bf16.mxu0 %v3507
    %4669 = vmatpush1.bf16.msra.mxu0 %v3506
    %4670 = vmatprep.subr.bf16.mxu0 %v3515
    %4671 = vmatpush1.bf16.msra.mxu0 %v3514
    %4672 = vmatprep.subr.bf16.mxu0 %v3523
    %4673 = vmatpush1.bf16.msra.mxu0 %v3522
    %4674 = vmatprep.subr.bf16.mxu0 %v3531
    %4675 = vmatpush1.bf16.msra.mxu0 %v3530
    %4676 = vmatprep.subr.bf16.mxu0 %v3539
    %4677 = vmatpush1.bf16.msra.mxu0 %v3538
    %4678 = vmatprep.subr.bf16.mxu0 %v3547
    %4679 = vmatpush1.bf16.msra.mxu0 %v3546
    %4680 = vmatprep.subr.bf16.mxu0 %v3555
    %4681 = vmatpush1.bf16.msra.mxu0 %v3554
    %4682 = vmatprep.subr.bf16.mxu0 %v3563
    %4683 = vmatpush1.bf16.msra.mxu0 %v3562
    %4684 = vmatprep.subr.bf16.mxu0 %v3571
    %4685 = vmatpush1.bf16.msra.mxu0 %v3570
    %4686 = vmatprep.subr.bf16.mxu0 %v3579
    %4687 = vmatpush1.bf16.msra.mxu0 %v3578
    %4688 = vmatprep.subr.bf16.mxu0 %v3587
    %4689 = vmatpush1.bf16.msra.mxu0 %v3586
    %4690 = vmatprep.subr.bf16.mxu0 %v3595
    %4691 = vmatpush1.bf16.msra.mxu0 %v3594
    %4692 = vmatprep.mubr.bf16.mxu0 %v1375
    %4693 = vmatmul.mubr.bf16.gmra.mrb[0].mxu0 %v1374
    %v4694 = vpop.f32.mrb[0].mxu0
    %v4695 = vadd.f32 %v1907, %v4694
    %v4696 = vpop.f32.mrb[0].mxu0
    %v4697 = vadd.f32 %v1911, %v4696
    %v4698 = vpop.f32.mrb[0].mxu0
    %v4699 = vpop.f32.mrb[0].mxu0
    %4700 = vdwg.mxu0
    %4701 = vmatprep.subr.bf16.mxu0 %v3603
    %4702 = vmatpush1.bf16.msra.mxu0 %v3602
    %4703 = vmatprep.subr.bf16.mxu0 %v3611
    %4704 = vmatpush1.bf16.msra.mxu0 %v3610
    %4705 = vmatprep.subr.bf16.mxu0 %v3619
    %4706 = vmatpush1.bf16.msra.mxu0 %v3618
    %4707 = vmatprep.subr.bf16.mxu0 %v3627
    %4708 = vmatpush1.bf16.msra.mxu0 %v3626
    %4709 = vmatprep.subr.bf16.mxu0 %v3635
    %4710 = vmatpush1.bf16.msra.mxu0 %v3634
    %4711 = vmatprep.subr.bf16.mxu0 %v3643
    %4712 = vmatpush1.bf16.msra.mxu0 %v3642
    %4713 = vmatprep.subr.bf16.mxu0 %v3651
    %4714 = vmatpush1.bf16.msra.mxu0 %v3650
    %4715 = vmatprep.subr.bf16.mxu0 %v3659
    %4716 = vmatpush1.bf16.msra.mxu0 %v3658
    %4717 = vmatprep.subr.bf16.mxu0 %v3667
    %4718 = vmatpush1.bf16.msra.mxu0 %v3666
    %4719 = vmatprep.subr.bf16.mxu0 %v3675
    %4720 = vmatpush1.bf16.msra.mxu0 %v3674
    %4721 = vmatprep.subr.bf16.mxu0 %v3683
    %4722 = vmatpush1.bf16.msra.mxu0 %v3682
    %4723 = vmatprep.subr.bf16.mxu0 %v3691
    %4724 = vmatpush1.bf16.msra.mxu0 %v3690
    %4725 = vmatprep.subr.bf16.mxu0 %v3699
    %4726 = vmatpush1.bf16.msra.mxu0 %v3698
    %4727 = vmatprep.subr.bf16.mxu0 %v3707
    %4728 = vmatpush1.bf16.msra.mxu0 %v3706
    %4729 = vmatprep.subr.bf16.mxu0 %v3715
    %4730 = vmatpush1.bf16.msra.mxu0 %v3714
    %4731 = vmatprep.subr.bf16.mxu0 %v3723
    %4732 = vmatpush1.bf16.msra.mxu0 %v3722
    %4733 = vmatprep.mubr.bf16.mxu0 %v1377
    %4734 = vmatmul.mubr.bf16.gmra.mrb[0].mxu0 %v1376
    %v4735 = vpop.f32.mrb[0].mxu0
    %v4736 = vadd.f32 %v4695, %v4735
    %v4737 = vpop.f32.mrb[0].mxu0
    %v4738 = vadd.f32 %v4697, %v4737
    %v4739 = vpop.f32.mrb[0].mxu0
    %v4740 = vpop.f32.mrb[0].mxu0
    %4741 = vdwg.mxu0
    %4742 = vmatprep.subr.bf16.mxu0 %v3731
    %4743 = vmatpush1.bf16.msra.mxu0 %v3730
    %4744 = vmatprep.subr.bf16.mxu0 %v3739
    %4745 = vmatpush1.bf16.msra.mxu0 %v3738
    %4746 = vmatprep.subr.bf16.mxu0 %v3747
    %4747 = vmatpush1.bf16.msra.mxu0 %v3746
    %4748 = vmatprep.subr.bf16.mxu0 %v3755
    %4749 = vmatpush1.bf16.msra.mxu0 %v3754
    %4750 = vmatprep.subr.bf16.mxu0 %v3763
    %4751 = vmatpush1.bf16.msra.mxu0 %v3762
    %4752 = vmatprep.subr.bf16.mxu0 %v3771
    %4753 = vmatpush1.bf16.msra.mxu0 %v3770
    %4754 = vmatprep.subr.bf16.mxu0 %v3779
    %4755 = vmatpush1.bf16.msra.mxu0 %v3778
    %4756 = vmatprep.subr.bf16.mxu0 %v3787
    %4757 = vmatpush1.bf16.msra.mxu0 %v3786
    %4758 = vmatprep.subr.bf16.mxu0 %v3795
    %4759 = vmatpush1.bf16.msra.mxu0 %v3794
    %4760 = vmatprep.subr.bf16.mxu0 %v3803
    %4761 = vmatpush1.bf16.msra.mxu0 %v3802
    %4762 = vmatprep.subr.bf16.mxu0 %v3811
    %4763 = vmatpush1.bf16.msra.mxu0 %v3810
    %4764 = vmatprep.subr.bf16.mxu0 %v3819
    %4765 = vmatpush1.bf16.msra.mxu0 %v3818
    %4766 = vmatprep.subr.bf16.mxu0 %v3827
    %4767 = vmatpush1.bf16.msra.mxu0 %v3826
    %4768 = vmatprep.subr.bf16.mxu0 %v3835
    %4769 = vmatpush1.bf16.msra.mxu0 %v3834
    %4770 = vmatprep.subr.bf16.mxu0 %v3843
    %4771 = vmatpush1.bf16.msra.mxu0 %v3842
    %4772 = vmatprep.subr.bf16.mxu0 %v3851
    %4773 = vmatpush1.bf16.msra.mxu0 %v3850
    %4774 = vmatprep.mubr.bf16.mxu0 %v1379
    %4775 = vmatmul.mubr.bf16.gmra.mrb[0].mxu0 %v1378
    %v4776 = vpop.f32.mrb[0].mxu0
    %v4777 = vadd.f32 %v4736, %v4776
    %v4778 = vpop.f32.mrb[0].mxu0
    %v4779 = vadd.f32 %v4738, %v4778
    %v4780 = vpop.f32.mrb[0].mxu0
    %v4781 = vpop.f32.mrb[0].mxu0
    %4782 = vdwg.mxu0
    %4783 = vmatprep.subr.bf16.mxu0 %v3859
    %4784 = vmatpush1.bf16.msra.mxu0 %v3858
    %4785 = vmatprep.subr.bf16.mxu0 %v3867
    %4786 = vmatpush1.bf16.msra.mxu0 %v3866
    %4787 = vmatprep.subr.bf16.mxu0 %v3875
    %4788 = vmatpush1.bf16.msra.mxu0 %v3874
    %4789 = vmatprep.subr.bf16.mxu0 %v3883
    %4790 = vmatpush1.bf16.msra.mxu0 %v3882
    %4791 = vmatprep.subr.bf16.mxu0 %v3891
    %4792 = vmatpush1.bf16.msra.mxu0 %v3890
    %4793 = vmatprep.subr.bf16.mxu0 %v3899
    %4794 = vmatpush1.bf16.msra.mxu0 %v3898
    %4795 = vmatprep.subr.bf16.mxu0 %v3907
    %4796 = vmatpush1.bf16.msra.mxu0 %v3906
    %4797 = vmatprep.subr.bf16.mxu0 %v3915
    %4798 = vmatpush1.bf16.msra.mxu0 %v3914
    %4799 = vmatprep.subr.bf16.mxu0 %v3923
    %4800 = vmatpush1.bf16.msra.mxu0 %v3922
    %4801 = vmatprep.subr.bf16.mxu0 %v3931
    %4802 = vmatpush1.bf16.msra.mxu0 %v3930
    %4803 = vmatprep.subr.bf16.mxu0 %v3939
    %4804 = vmatpush1.bf16.msra.mxu0 %v3938
    %4805 = vmatprep.subr.bf16.mxu0 %v3947
    %4806 = vmatpush1.bf16.msra.mxu0 %v3946
    %4807 = vmatprep.subr.bf16.mxu0 %v3955
    %4808 = vmatpush1.bf16.msra.mxu0 %v3954
    %4809 = vmatprep.subr.bf16.mxu0 %v3963
    %4810 = vmatpush1.bf16.msra.mxu0 %v3962
    %4811 = vmatprep.subr.bf16.mxu0 %v3971
    %4812 = vmatpush1.bf16.msra.mxu0 %v3970
    %4813 = vmatprep.subr.bf16.mxu0 %v3979
    %4814 = vmatpush1.bf16.msra.mxu0 %v3978
    %4815 = vmatprep.mubr.bf16.mxu0 %v1381
    %4816 = vmatmul.mubr.bf16.gmra.mrb[0].mxu0 %v1380
    %v4817 = vpop.f32.mrb[0].mxu0
    %v4818 = vadd.f32 %v4777, %v4817
    %v4819 = vpop.f32.mrb[0].mxu0
    %v4820 = vadd.f32 %v4779, %v4819
    %v4821 = vpop.f32.mrb[0].mxu0
    %v4822 = vpop.f32.mrb[0].mxu0
    %4823 = vdwg.mxu0
    %4824 = vmatprep.subr.bf16.mxu0 %v3477
    %4825 = vmatpush1.bf16.msra.mxu0 %v3476
    %4826 = vmatprep.subr.bf16.mxu0 %v3485
    %4827 = vmatpush1.bf16.msra.mxu0 %v3484
    %4828 = vmatprep.subr.bf16.mxu0 %v3493
    %4829 = vmatpush1.bf16.msra.mxu0 %v3492
    %4830 = vmatprep.subr.bf16.mxu0 %v3501
    %4831 = vmatpush1.bf16.msra.mxu0 %v3500
    %4832 = vmatprep.subr.bf16.mxu0 %v3509
    %4833 = vmatpush1.bf16.msra.mxu0 %v3508
    %4834 = vmatprep.subr.bf16.mxu0 %v3517
    %4835 = vmatpush1.bf16.msra.mxu0 %v3516
    %4836 = vmatprep.subr.bf16.mxu0 %v3525
    %4837 = vmatpush1.bf16.msra.mxu0 %v3524
    %4838 = vmatprep.subr.bf16.mxu0 %v3533
    %4839 = vmatpush1.bf16.msra.mxu0 %v3532
    %4840 = vmatprep.subr.bf16.mxu0 %v3541
    %4841 = vmatpush1.bf16.msra.mxu0 %v3540
    %4842 = vmatprep.subr.bf16.mxu0 %v3549
    %4843 = vmatpush1.bf16.msra.mxu0 %v3548
    %4844 = vmatprep.subr.bf16.mxu0 %v3557
    %4845 = vmatpush1.bf16.msra.mxu0 %v3556
    %4846 = vmatprep.subr.bf16.mxu0 %v3565
    %4847 = vmatpush1.bf16.msra.mxu0 %v3564
    %4848 = vmatprep.subr.bf16.mxu0 %v3573
    %4849 = vmatpush1.bf16.msra.mxu0 %v3572
    %4850 = vmatprep.subr.bf16.mxu0 %v3581
    %4851 = vmatpush1.bf16.msra.mxu0 %v3580
    %4852 = vmatprep.subr.bf16.mxu0 %v3589
    %4853 = vmatpush1.bf16.msra.mxu0 %v3588
    %4854 = vmatprep.subr.bf16.mxu0 %v3597
    %4855 = vmatpush1.bf16.msra.mxu0 %v3596
    %4856 = vmatprep.mubr.bf16.mxu0 %v1375
    %4857 = vmatmul.mubr.bf16.gmra.mrb[0].mxu0 %v1374
    %v4858 = vpop.f32.mrb[0].mxu0
    %v4859 = vadd.f32 %v1915, %v4858
    %v4860 = vpop.f32.mrb[0].mxu0
    %v4861 = vadd.f32 %v1919, %v4860
    %v4862 = vpop.f32.mrb[0].mxu0
    %v4863 = vpop.f32.mrb[0].mxu0
    %4864 = vdwg.mxu0
    %4865 = vmatprep.subr.bf16.mxu0 %v3605
    %4866 = vmatpush1.bf16.msra.mxu0 %v3604
    %4867 = vmatprep.subr.bf16.mxu0 %v3613
    %4868 = vmatpush1.bf16.msra.mxu0 %v3612
    %4869 = vmatprep.subr.bf16.mxu0 %v3621
    %4870 = vmatpush1.bf16.msra.mxu0 %v3620
    %4871 = vmatprep.subr.bf16.mxu0 %v3629
    %4872 = vmatpush1.bf16.msra.mxu0 %v3628
    %4873 = vmatprep.subr.bf16.mxu0 %v3637
    %4874 = vmatpush1.bf16.msra.mxu0 %v3636
    %4875 = vmatprep.subr.bf16.mxu0 %v3645
    %4876 = vmatpush1.bf16.msra.mxu0 %v3644
    %4877 = vmatprep.subr.bf16.mxu0 %v3653
    %4878 = vmatpush1.bf16.msra.mxu0 %v3652
    %4879 = vmatprep.subr.bf16.mxu0 %v3661
    %4880 = vmatpush1.bf16.msra.mxu0 %v3660
    %4881 = vmatprep.subr.bf16.mxu0 %v3669
    %4882 = vmatpush1.bf16.msra.mxu0 %v3668
    %4883 = vmatprep.subr.bf16.mxu0 %v3677
    %4884 = vmatpush1.bf16.msra.mxu0 %v3676
    %4885 = vmatprep.subr.bf16.mxu0 %v3685
    %4886 = vmatpush1.bf16.msra.mxu0 %v3684
    %4887 = vmatprep.subr.bf16.mxu0 %v3693
    %4888 = vmatpush1.bf16.msra.mxu0 %v3692
    %4889 = vmatprep.subr.bf16.mxu0 %v3701
    %4890 = vmatpush1.bf16.msra.mxu0 %v3700
    %4891 = vmatprep.subr.bf16.mxu0 %v3709
    %4892 = vmatpush1.bf16.msra.mxu0 %v3708
    %4893 = vmatprep.subr.bf16.mxu0 %v3717
    %4894 = vmatpush1.bf16.msra.mxu0 %v3716
    %4895 = vmatprep.subr.bf16.mxu0 %v3725
    %4896 = vmatpush1.bf16.msra.mxu0 %v3724
    %4897 = vmatprep.mubr.bf16.mxu0 %v1377
    %4898 = vmatmul.mubr.bf16.gmra.mrb[0].mxu0 %v1376
    %v4899 = vpop.f32.mrb[0].mxu0
    %v4900 = vadd.f32 %v4859, %v4899
    %v4901 = vpop.f32.mrb[0].mxu0
    %v4902 = vadd.f32 %v4861, %v4901
    %v4903 = vpop.f32.mrb[0].mxu0
    %v4904 = vpop.f32.mrb[0].mxu0
    %4905 = vdwg.mxu0
    %4906 = vmatprep.subr.bf16.mxu0 %v3733
    %4907 = vmatpush1.bf16.msra.mxu0 %v3732
    %4908 = vmatprep.subr.bf16.mxu0 %v3741
    %4909 = vmatpush1.bf16.msra.mxu0 %v3740
    %4910 = vmatprep.subr.bf16.mxu0 %v3749
    %4911 = vmatpush1.bf16.msra.mxu0 %v3748
    %4912 = vmatprep.subr.bf16.mxu0 %v3757
    %4913 = vmatpush1.bf16.msra.mxu0 %v3756
    %4914 = vmatprep.subr.bf16.mxu0 %v3765
    %4915 = vmatpush1.bf16.msra.mxu0 %v3764
    %4916 = vmatprep.subr.bf16.mxu0 %v3773
    %4917 = vmatpush1.bf16.msra.mxu0 %v3772
    %4918 = vmatprep.subr.bf16.mxu0 %v3781
    %4919 = vmatpush1.bf16.msra.mxu0 %v3780
    %4920 = vmatprep.subr.bf16.mxu0 %v3789
    %4921 = vmatpush1.bf16.msra.mxu0 %v3788
    %4922 = vmatprep.subr.bf16.mxu0 %v3797
    %4923 = vmatpush1.bf16.msra.mxu0 %v3796
    %4924 = vmatprep.subr.bf16.mxu0 %v3805
    %4925 = vmatpush1.bf16.msra.mxu0 %v3804
    %4926 = vmatprep.subr.bf16.mxu0 %v3813
    %4927 = vmatpush1.bf16.msra.mxu0 %v3812
    %4928 = vmatprep.subr.bf16.mxu0 %v3821
    %4929 = vmatpush1.bf16.msra.mxu0 %v3820
    %4930 = vmatprep.subr.bf16.mxu0 %v3829
    %4931 = vmatpush1.bf16.msra.mxu0 %v3828
    %4932 = vmatprep.subr.bf16.mxu0 %v3837
    %4933 = vmatpush1.bf16.msra.mxu0 %v3836
    %4934 = vmatprep.subr.bf16.mxu0 %v3845
    %4935 = vmatpush1.bf16.msra.mxu0 %v3844
    %4936 = vmatprep.subr.bf16.mxu0 %v3853
    %4937 = vmatpush1.bf16.msra.mxu0 %v3852
    %4938 = vmatprep.mubr.bf16.mxu0 %v1379
    %4939 = vmatmul.mubr.bf16.gmra.mrb[0].mxu0 %v1378
    %v4940 = vpop.f32.mrb[0].mxu0
    %v4941 = vadd.f32 %v4900, %v4940
    %v4942 = vpop.f32.mrb[0].mxu0
    %v4943 = vadd.f32 %v4902, %v4942
    %v4944 = vpop.f32.mrb[0].mxu0
    %v4945 = vpop.f32.mrb[0].mxu0
    %4946 = vdwg.mxu0
    %4947 = vmatprep.subr.bf16.mxu0 %v3861
    %4948 = vmatpush1.bf16.msra.mxu0 %v3860
    %4949 = vmatprep.subr.bf16.mxu0 %v3869
    %4950 = vmatpush1.bf16.msra.mxu0 %v3868
    %4951 = vmatprep.subr.bf16.mxu0 %v3877
    %4952 = vmatpush1.bf16.msra.mxu0 %v3876
    %4953 = vmatprep.subr.bf16.mxu0 %v3885
    %4954 = vmatpush1.bf16.msra.mxu0 %v3884
    %4955 = vmatprep.subr.bf16.mxu0 %v3893
    %4956 = vmatpush1.bf16.msra.mxu0 %v3892
    %4957 = vmatprep.subr.bf16.mxu0 %v3901
    %4958 = vmatpush1.bf16.msra.mxu0 %v3900
    %4959 = vmatprep.subr.bf16.mxu0 %v3909
    %4960 = vmatpush1.bf16.msra.mxu0 %v3908
    %4961 = vmatprep.subr.bf16.mxu0 %v3917
    %4962 = vmatpush1.bf16.msra.mxu0 %v3916
    %4963 = vmatprep.subr.bf16.mxu0 %v3925
    %4964 = vmatpush1.bf16.msra.mxu0 %v3924
    %4965 = vmatprep.subr.bf16.mxu0 %v3933
    %4966 = vmatpush1.bf16.msra.mxu0 %v3932
    %4967 = vmatprep.subr.bf16.mxu0 %v3941
    %4968 = vmatpush1.bf16.msra.mxu0 %v3940
    %4969 = vmatprep.subr.bf16.mxu0 %v3949
    %4970 = vmatpush1.bf16.msra.mxu0 %v3948
    %4971 = vmatprep.subr.bf16.mxu0 %v3957
    %4972 = vmatpush1.bf16.msra.mxu0 %v3956
    %4973 = vmatprep.subr.bf16.mxu0 %v3965
    %4974 = vmatpush1.bf16.msra.mxu0 %v3964
    %4975 = vmatprep.subr.bf16.mxu0 %v3973
    %4976 = vmatpush1.bf16.msra.mxu0 %v3972
    %4977 = vmatprep.subr.bf16.mxu0 %v3981
    %4978 = vmatpush1.bf16.msra.mxu0 %v3980
    %4979 = vmatprep.mubr.bf16.mxu0 %v1381
    %4980 = vmatmul.mubr.bf16.gmra.mrb[0].mxu0 %v1380
    %v4981 = vpop.f32.mrb[0].mxu0
    %v4982 = vadd.f32 %v4941, %v4981
    %v4983 = vpop.f32.mrb[0].mxu0
    %v4984 = vadd.f32 %v4943, %v4983
    %v4985 = vpop.f32.mrb[0].mxu0
    %v4986 = vpop.f32.mrb[0].mxu0
    %4987 = vdwg.mxu0
    %4988 = vmatprep.subr.bf16.mxu0 %v3479
    %4989 = vmatpush1.bf16.msra.mxu0 %v3478
    %4990 = vmatprep.subr.bf16.mxu0 %v3487
    %4991 = vmatpush1.bf16.msra.mxu0 %v3486
    %4992 = vmatprep.subr.bf16.mxu0 %v3495
    %4993 = vmatpush1.bf16.msra.mxu0 %v3494
    %4994 = vmatprep.subr.bf16.mxu0 %v3503
    %4995 = vmatpush1.bf16.msra.mxu0 %v3502
    %4996 = vmatprep.subr.bf16.mxu0 %v3511
    %4997 = vmatpush1.bf16.msra.mxu0 %v3510
    %4998 = vmatprep.subr.bf16.mxu0 %v3519
    %4999 = vmatpush1.bf16.msra.mxu0 %v3518
    %5000 = vmatprep.subr.bf16.mxu0 %v3527
    %5001 = vmatpush1.bf16.msra.mxu0 %v3526
    %5002 = vmatprep.subr.bf16.mxu0 %v3535
    %5003 = vmatpush1.bf16.msra.mxu0 %v3534
    %5004 = vmatprep.subr.bf16.mxu0 %v3543
    %5005 = vmatpush1.bf16.msra.mxu0 %v3542
    %5006 = vmatprep.subr.bf16.mxu0 %v3551
    %5007 = vmatpush1.bf16.msra.mxu0 %v3550
    %5008 = vmatprep.subr.bf16.mxu0 %v3559
    %5009 = vmatpush1.bf16.msra.mxu0 %v3558
    %5010 = vmatprep.subr.bf16.mxu0 %v3567
    %5011 = vmatpush1.bf16.msra.mxu0 %v3566
    %5012 = vmatprep.subr.bf16.mxu0 %v3575
    %5013 = vmatpush1.bf16.msra.mxu0 %v3574
    %5014 = vmatprep.subr.bf16.mxu0 %v3583
    %5015 = vmatpush1.bf16.msra.mxu0 %v3582
    %5016 = vmatprep.subr.bf16.mxu0 %v3591
    %5017 = vmatpush1.bf16.msra.mxu0 %v3590
    %5018 = vmatprep.subr.bf16.mxu0 %v3599
    %5019 = vmatpush1.bf16.msra.mxu0 %v3598
    %5020 = vmatprep.mubr.bf16.mxu0 %v1375
    %5021 = vmatmul.mubr.bf16.gmra.mrb[0].mxu0 %v1374
    %v5022 = vpop.f32.mrb[0].mxu0
    %v5023 = vadd.f32 %v1923, %v5022
    %v5024 = vpop.f32.mrb[0].mxu0
    %v5025 = vadd.f32 %v1927, %v5024
    %v5026 = vpop.f32.mrb[0].mxu0
    %v5027 = vpop.f32.mrb[0].mxu0
    %5028 = vdwg.mxu0
    %5029 = vmatprep.subr.bf16.mxu0 %v3607
    %5030 = vmatpush1.bf16.msra.mxu0 %v3606
    %5031 = vmatprep.subr.bf16.mxu0 %v3615
    %5032 = vmatpush1.bf16.msra.mxu0 %v3614
    %5033 = vmatprep.subr.bf16.mxu0 %v3623
    %5034 = vmatpush1.bf16.msra.mxu0 %v3622
    %5035 = vmatprep.subr.bf16.mxu0 %v3631
    %5036 = vmatpush1.bf16.msra.mxu0 %v3630
    %5037 = vmatprep.subr.bf16.mxu0 %v3639
    %5038 = vmatpush1.bf16.msra.mxu0 %v3638
    %5039 = vmatprep.subr.bf16.mxu0 %v3647
    %5040 = vmatpush1.bf16.msra.mxu0 %v3646
    %5041 = vmatprep.subr.bf16.mxu0 %v3655
    %5042 = vmatpush1.bf16.msra.mxu0 %v3654
    %5043 = vmatprep.subr.bf16.mxu0 %v3663
    %5044 = vmatpush1.bf16.msra.mxu0 %v3662
    %5045 = vmatprep.subr.bf16.mxu0 %v3671
    %5046 = vmatpush1.bf16.msra.mxu0 %v3670
    %5047 = vmatprep.subr.bf16.mxu0 %v3679
    %5048 = vmatpush1.bf16.msra.mxu0 %v3678
    %5049 = vmatprep.subr.bf16.mxu0 %v3687
    %5050 = vmatpush1.bf16.msra.mxu0 %v3686
    %5051 = vmatprep.subr.bf16.mxu0 %v3695
    %5052 = vmatpush1.bf16.msra.mxu0 %v3694
    %5053 = vmatprep.subr.bf16.mxu0 %v3703
    %5054 = vmatpush1.bf16.msra.mxu0 %v3702
    %5055 = vmatprep.subr.bf16.mxu0 %v3711
    %5056 = vmatpush1.bf16.msra.mxu0 %v3710
    %5057 = vmatprep.subr.bf16.mxu0 %v3719
    %5058 = vmatpush1.bf16.msra.mxu0 %v3718
    %5059 = vmatprep.subr.bf16.mxu0 %v3727
    %5060 = vmatpush1.bf16.msra.mxu0 %v3726
    %5061 = vmatprep.mubr.bf16.mxu0 %v1377
    %5062 = vmatmul.mubr.bf16.gmra.mrb[0].mxu0 %v1376
    %v5063 = vpop.f32.mrb[0].mxu0
    %v5064 = vadd.f32 %v5023, %v5063
    %v5065 = vpop.f32.mrb[0].mxu0
    %v5066 = vadd.f32 %v5025, %v5065
    %v5067 = vpop.f32.mrb[0].mxu0
    %v5068 = vpop.f32.mrb[0].mxu0
    %5069 = vdwg.mxu0
    %5070 = vmatprep.subr.bf16.mxu0 %v3735
    %5071 = vmatpush1.bf16.msra.mxu0 %v3734
    %5072 = vmatprep.subr.bf16.mxu0 %v3743
    %5073 = vmatpush1.bf16.msra.mxu0 %v3742
    %5074 = vmatprep.subr.bf16.mxu0 %v3751
    %5075 = vmatpush1.bf16.msra.mxu0 %v3750
    %5076 = vmatprep.subr.bf16.mxu0 %v3759
    %5077 = vmatpush1.bf16.msra.mxu0 %v3758
    %5078 = vmatprep.subr.bf16.mxu0 %v3767
    %5079 = vmatpush1.bf16.msra.mxu0 %v3766
    %5080 = vmatprep.subr.bf16.mxu0 %v3775
    %5081 = vmatpush1.bf16.msra.mxu0 %v3774
    %5082 = vmatprep.subr.bf16.mxu0 %v3783
    %5083 = vmatpush1.bf16.msra.mxu0 %v3782
    %5084 = vmatprep.subr.bf16.mxu0 %v3791
    %5085 = vmatpush1.bf16.msra.mxu0 %v3790
    %5086 = vmatprep.subr.bf16.mxu0 %v3799
    %5087 = vmatpush1.bf16.msra.mxu0 %v3798
    %5088 = vmatprep.subr.bf16.mxu0 %v3807
    %5089 = vmatpush1.bf16.msra.mxu0 %v3806
    %5090 = vmatprep.subr.bf16.mxu0 %v3815
    %5091 = vmatpush1.bf16.msra.mxu0 %v3814
    %5092 = vmatprep.subr.bf16.mxu0 %v3823
    %5093 = vmatpush1.bf16.msra.mxu0 %v3822
    %5094 = vmatprep.subr.bf16.mxu0 %v3831
    %5095 = vmatpush1.bf16.msra.mxu0 %v3830
    %5096 = vmatprep.subr.bf16.mxu0 %v3839
    %5097 = vmatpush1.bf16.msra.mxu0 %v3838
    %5098 = vmatprep.subr.bf16.mxu0 %v3847
    %5099 = vmatpush1.bf16.msra.mxu0 %v3846
    %5100 = vmatprep.subr.bf16.mxu0 %v3855
    %5101 = vmatpush1.bf16.msra.mxu0 %v3854
    %5102 = vmatprep.mubr.bf16.mxu0 %v1379
    %5103 = vmatmul.mubr.bf16.gmra.mrb[0].mxu0 %v1378
    %v5104 = vpop.f32.mrb[0].mxu0
    %v5105 = vadd.f32 %v5064, %v5104
    %v5106 = vpop.f32.mrb[0].mxu0
    %v5107 = vadd.f32 %v5066, %v5106
    %v5108 = vpop.f32.mrb[0].mxu0
    %v5109 = vpop.f32.mrb[0].mxu0
    %5110 = vdwg.mxu0
    %5111 = vmatprep.subr.bf16.mxu0 %v3863
    %5112 = vmatpush1.bf16.msra.mxu0 %v3862
    %5113 = vmatprep.subr.bf16.mxu0 %v3871
    %5114 = vmatpush1.bf16.msra.mxu0 %v3870
    %5115 = vmatprep.subr.bf16.mxu0 %v3879
    %5116 = vmatpush1.bf16.msra.mxu0 %v3878
    %5117 = vmatprep.subr.bf16.mxu0 %v3887
    %5118 = vmatpush1.bf16.msra.mxu0 %v3886
    %5119 = vmatprep.subr.bf16.mxu0 %v3895
    %5120 = vmatpush1.bf16.msra.mxu0 %v3894
    %5121 = vmatprep.subr.bf16.mxu0 %v3903
    %5122 = vmatpush1.bf16.msra.mxu0 %v3902
    %5123 = vmatprep.subr.bf16.mxu0 %v3911
    %5124 = vmatpush1.bf16.msra.mxu0 %v3910
    %5125 = vmatprep.subr.bf16.mxu0 %v3919
    %5126 = vmatpush1.bf16.msra.mxu0 %v3918
    %5127 = vmatprep.subr.bf16.mxu0 %v3927
    %5128 = vmatpush1.bf16.msra.mxu0 %v3926
    %5129 = vmatprep.subr.bf16.mxu0 %v3935
    %5130 = vmatpush1.bf16.msra.mxu0 %v3934
    %5131 = vmatprep.subr.bf16.mxu0 %v3943
    %5132 = vmatpush1.bf16.msra.mxu0 %v3942
    %5133 = vmatprep.subr.bf16.mxu0 %v3951
    %5134 = vmatpush1.bf16.msra.mxu0 %v3950
    %5135 = vmatprep.subr.bf16.mxu0 %v3959
    %5136 = vmatpush1.bf16.msra.mxu0 %v3958
    %5137 = vmatprep.subr.bf16.mxu0 %v3967
    %5138 = vmatpush1.bf16.msra.mxu0 %v3966
    %5139 = vmatprep.subr.bf16.mxu0 %v3975
    %5140 = vmatpush1.bf16.msra.mxu0 %v3974
    %5141 = vmatprep.subr.bf16.mxu0 %v3983
    %5142 = vmatpush1.bf16.msra.mxu0 %v3982
    %5143 = vmatprep.mubr.bf16.mxu0 %v1381
    %5144 = vmatmul.mubr.bf16.gmra.mrb[0].mxu0 %v1380
    %v5145 = vpop.f32.mrb[0].mxu0
    %v5146 = vadd.f32 %v5105, %v5145
    %v5147 = vpop.f32.mrb[0].mxu0
    %v5148 = vadd.f32 %v5107, %v5147
    %v5149 = vpop.f32.mrb[0].mxu0
    %v5150 = vpop.f32.mrb[0].mxu0
    %5151 = vdwg.mxu0
    %v5152 = vmax.f32 %v4654, %v4982
    %v5153 = vmax.f32 %v4656, %v4984
    %v5154 = vmax.f32 %v4818, %v5146
    %v5155 = vmax.f32 %v4820, %v5148
    %v5156 = vmax.f32 %v5152, 0.0
    %v5157 = vmax.f32 %v5153, 0.0
    %v5158 = vmax.f32 %v5154, 0.0
    %v5159 = vmax.f32 %v5155, 0.0
    %v5160 = vpack.c.bf16 %v5156, %v5156
    %v5161 = vpack.c.bf16 %v5157, %v5157
    %v5162 = vpack.c.bf16 %v5158, %v5158
    %v5163 = vpack.c.bf16 %v5159, %v5159
    %v5164 = vld [vmem:[#allocation11] sm:$0xff]
    %v5165 = vld [vmem:[#allocation11 + $0x8] sm:$0xff]
    %v5166 = vld [vmem:[#allocation11 + $0x10] sm:$0xff]
    %v5167 = vld [vmem:[#allocation11 + $0x18] sm:$0xff]
    %v5168 = vld [vmem:[#allocation11 + $0x20] sm:$0xff]
    %v5169 = vld [vmem:[#allocation11 + $0x28] sm:$0xff]
    %v5170 = vld [vmem:[#allocation11 + $0x30] sm:$0xff]
    %v5171 = vld [vmem:[#allocation11 + $0x38] sm:$0xff]
    %v5172 = vld [vmem:[#allocation11 + $0x40] sm:$0xff]
    %v5173 = vld [vmem:[#allocation11 + $0x48] sm:$0xff]
    %v5174 = vld [vmem:[#allocation11 + $0x50] sm:$0xff]
    %v5175 = vld [vmem:[#allocation11 + $0x58] sm:$0xff]
    %v5176 = vld [vmem:[#allocation11 + $0x60] sm:$0xff]
    %v5177 = vld [vmem:[#allocation11 + $0x68] sm:$0xff]
    %v5178 = vld [vmem:[#allocation11 + $0x70] sm:$0xff]
    %v5179 = vld [vmem:[#allocation11 + $0x78] sm:$0xff]
    %v5180 = vld [vmem:[#allocation11 + $0x80] sm:$0xff]
    %v5181 = vld [vmem:[#allocation11 + $0x88] sm:$0xff]
    %v5182 = vld [vmem:[#allocation11 + $0x90] sm:$0xff]
    %v5183 = vld [vmem:[#allocation11 + $0x98] sm:$0xff]
    %v5184 = vld [vmem:[#allocation11 + $0xa0] sm:$0xff]
    %v5185 = vld [vmem:[#allocation11 + $0xa8] sm:$0xff]
    %v5186 = vld [vmem:[#allocation11 + $0xb0] sm:$0xff]
    %v5187 = vld [vmem:[#allocation11 + $0xb8] sm:$0xff]
    %v5188 = vld [vmem:[#allocation11 + $0xc0] sm:$0xff]
    %v5189 = vld [vmem:[#allocation11 + $0xc8] sm:$0xff]
    %v5190 = vld [vmem:[#allocation11 + $0xd0] sm:$0xff]
    %v5191 = vld [vmem:[#allocation11 + $0xd8] sm:$0xff]
    %v5192 = vld [vmem:[#allocation11 + $0xe0] sm:$0xff]
    %v5193 = vld [vmem:[#allocation11 + $0xe8] sm:$0xff]
    %v5194 = vld [vmem:[#allocation11 + $0xf0] sm:$0xff]
    %v5195 = vld [vmem:[#allocation11 + $0xf8] sm:$0xff]
    %v5196 = vld [vmem:[#allocation11 + $0x100] sm:$0xff]
    %v5197 = vld [vmem:[#allocation11 + $0x108] sm:$0xff]
    %v5198 = vld [vmem:[#allocation11 + $0x110] sm:$0xff]
    %v5199 = vld [vmem:[#allocation11 + $0x118] sm:$0xff]
    %v5200 = vld [vmem:[#allocation11 + $0x120] sm:$0xff]
    %v5201 = vld [vmem:[#allocation11 + $0x128] sm:$0xff]
    %v5202 = vld [vmem:[#allocation11 + $0x130] sm:$0xff]
    %v5203 = vld [vmem:[#allocation11 + $0x138] sm:$0xff]
    %v5204 = vld [vmem:[#allocation11 + $0x140] sm:$0xff]
    %v5205 = vld [vmem:[#allocation11 + $0x148] sm:$0xff]
    %v5206 = vld [vmem:[#allocation11 + $0x150] sm:$0xff]
    %v5207 = vld [vmem:[#allocation11 + $0x158] sm:$0xff]
    %v5208 = vld [vmem:[#allocation11 + $0x160] sm:$0xff]
    %v5209 = vld [vmem:[#allocation11 + $0x168] sm:$0xff]
    %v5210 = vld [vmem:[#allocation11 + $0x170] sm:$0xff]
    %v5211 = vld [vmem:[#allocation11 + $0x178] sm:$0xff]
    %v5212 = vld [vmem:[#allocation11 + $0x180] sm:$0xff]
    %v5213 = vld [vmem:[#allocation11 + $0x188] sm:$0xff]
    %v5214 = vld [vmem:[#allocation11 + $0x190] sm:$0xff]
    %v5215 = vld [vmem:[#allocation11 + $0x198] sm:$0xff]
    %v5216 = vld [vmem:[#allocation11 + $0x1a0] sm:$0xff]
    %v5217 = vld [vmem:[#allocation11 + $0x1a8] sm:$0xff]
    %v5218 = vld [vmem:[#allocation11 + $0x1b0] sm:$0xff]
    %v5219 = vld [vmem:[#allocation11 + $0x1b8] sm:$0xff]
    %v5220 = vld [vmem:[#allocation11 + $0x1c0] sm:$0xff]
    %v5221 = vld [vmem:[#allocation11 + $0x1c8] sm:$0xff]
    %v5222 = vld [vmem:[#allocation11 + $0x1d0] sm:$0xff]
    %v5223 = vld [vmem:[#allocation11 + $0x1d8] sm:$0xff]
    %v5224 = vld [vmem:[#allocation11 + $0x1e0] sm:$0xff]
    %v5225 = vld [vmem:[#allocation11 + $0x1e8] sm:$0xff]
    %v5226 = vld [vmem:[#allocation11 + $0x1f0] sm:$0xff]
    %v5227 = vld [vmem:[#allocation11 + $0x1f8] sm:$0xff]
    %v5228 = vld [vmem:[#allocation13] sm:$0x3]
    %v5230 = vlaneseq
    %v5231 = vshrl.u32 %v5230, 7
    %v5232 = vsub.s32 0, %v5231
    %v5233 = vrot.slane %v5228, %v5232
    %v5234 = vlaneseq
    %v5235 = vshrl.u32 %v5234, 7
    %v5236 = vsub.s32 1, %v5235
    %v5237 = vrot.slane %v5228, %v5236
    %v5304 = vunpack.c.l.b16 %v5164
    %v5305 = vunpack.c.h.b16 %v5164
    %v5306 = vunpack.c.l.b16 %v5165
    %v5307 = vunpack.c.h.b16 %v5165
    %v5308 = vunpack.c.l.b16 %v5166
    %v5309 = vunpack.c.h.b16 %v5166
    %v5310 = vunpack.c.l.b16 %v5167
    %v5311 = vunpack.c.h.b16 %v5167
    %v5312 = vunpack.c.l.b16 %v5168
    %v5313 = vunpack.c.h.b16 %v5168
    %v5314 = vunpack.c.l.b16 %v5169
    %v5315 = vunpack.c.h.b16 %v5169
    %v5316 = vunpack.c.l.b16 %v5170
    %v5317 = vunpack.c.h.b16 %v5170
    %v5318 = vunpack.c.l.b16 %v5171
    %v5319 = vunpack.c.h.b16 %v5171
    %v5320 = vunpack.c.l.b16 %v5172
    %v5321 = vunpack.c.h.b16 %v5172
    %v5322 = vunpack.c.l.b16 %v5173
    %v5323 = vunpack.c.h.b16 %v5173
    %v5324 = vunpack.c.l.b16 %v5174
    %v5325 = vunpack.c.h.b16 %v5174
    %v5326 = vunpack.c.l.b16 %v5175
    %v5327 = vunpack.c.h.b16 %v5175
    %v5328 = vunpack.c.l.b16 %v5176
    %v5329 = vunpack.c.h.b16 %v5176
    %v5330 = vunpack.c.l.b16 %v5177
    %v5331 = vunpack.c.h.b16 %v5177
    %v5332 = vunpack.c.l.b16 %v5178
    %v5333 = vunpack.c.h.b16 %v5178
    %v5334 = vunpack.c.l.b16 %v5179
    %v5335 = vunpack.c.h.b16 %v5179
    %v5336 = vunpack.c.l.b16 %v5180
    %v5337 = vunpack.c.h.b16 %v5180
    %v5338 = vunpack.c.l.b16 %v5181
    %v5339 = vunpack.c.h.b16 %v5181
    %v5340 = vunpack.c.l.b16 %v5182
    %v5341 = vunpack.c.h.b16 %v5182
    %v5342 = vunpack.c.l.b16 %v5183
    %v5343 = vunpack.c.h.b16 %v5183
    %v5344 = vunpack.c.l.b16 %v5184
    %v5345 = vunpack.c.h.b16 %v5184
    %v5346 = vunpack.c.l.b16 %v5185
    %v5347 = vunpack.c.h.b16 %v5185
    %v5348 = vunpack.c.l.b16 %v5186
    %v5349 = vunpack.c.h.b16 %v5186
    %v5350 = vunpack.c.l.b16 %v5187
    %v5351 = vunpack.c.h.b16 %v5187
    %v5352 = vunpack.c.l.b16 %v5188
    %v5353 = vunpack.c.h.b16 %v5188
    %v5354 = vunpack.c.l.b16 %v5189
    %v5355 = vunpack.c.h.b16 %v5189
    %v5356 = vunpack.c.l.b16 %v5190
    %v5357 = vunpack.c.h.b16 %v5190
    %v5358 = vunpack.c.l.b16 %v5191
    %v5359 = vunpack.c.h.b16 %v5191
    %v5360 = vunpack.c.l.b16 %v5192
    %v5361 = vunpack.c.h.b16 %v5192
    %v5362 = vunpack.c.l.b16 %v5193
    %v5363 = vunpack.c.h.b16 %v5193
    %v5364 = vunpack.c.l.b16 %v5194
    %v5365 = vunpack.c.h.b16 %v5194
    %v5366 = vunpack.c.l.b16 %v5195
    %v5367 = vunpack.c.h.b16 %v5195
    %v5368 = vunpack.c.l.b16 %v5196
    %v5369 = vunpack.c.h.b16 %v5196
    %v5370 = vunpack.c.l.b16 %v5197
    %v5371 = vunpack.c.h.b16 %v5197
    %v5372 = vunpack.c.l.b16 %v5198
    %v5373 = vunpack.c.h.b16 %v5198
    %v5374 = vunpack.c.l.b16 %v5199
    %v5375 = vunpack.c.h.b16 %v5199
    %v5376 = vunpack.c.l.b16 %v5200
    %v5377 = vunpack.c.h.b16 %v5200
    %v5378 = vunpack.c.l.b16 %v5201
    %v5379 = vunpack.c.h.b16 %v5201
    %v5380 = vunpack.c.l.b16 %v5202
    %v5381 = vunpack.c.h.b16 %v5202
    %v5382 = vunpack.c.l.b16 %v5203
    %v5383 = vunpack.c.h.b16 %v5203
    %v5384 = vunpack.c.l.b16 %v5204
    %v5385 = vunpack.c.h.b16 %v5204
    %v5386 = vunpack.c.l.b16 %v5205
    %v5387 = vunpack.c.h.b16 %v5205
    %v5388 = vunpack.c.l.b16 %v5206
    %v5389 = vunpack.c.h.b16 %v5206
    %v5390 = vunpack.c.l.b16 %v5207
    %v5391 = vunpack.c.h.b16 %v5207
    %v5392 = vunpack.c.l.b16 %v5208
    %v5393 = vunpack.c.h.b16 %v5208
    %v5394 = vunpack.c.l.b16 %v5209
    %v5395 = vunpack.c.h.b16 %v5209
    %v5396 = vunpack.c.l.b16 %v5210
    %v5397 = vunpack.c.h.b16 %v5210
    %v5398 = vunpack.c.l.b16 %v5211
    %v5399 = vunpack.c.h.b16 %v5211
    %v5400 = vunpack.c.l.b16 %v5212
    %v5401 = vunpack.c.h.b16 %v5212
    %v5402 = vunpack.c.l.b16 %v5213
    %v5403 = vunpack.c.h.b16 %v5213
    %v5404 = vunpack.c.l.b16 %v5214
    %v5405 = vunpack.c.h.b16 %v5214
    %v5406 = vunpack.c.l.b16 %v5215
    %v5407 = vunpack.c.h.b16 %v5215
    %v5408 = vunpack.c.l.b16 %v5216
    %v5409 = vunpack.c.h.b16 %v5216
    %v5410 = vunpack.c.l.b16 %v5217
    %v5411 = vunpack.c.h.b16 %v5217
    %v5412 = vunpack.c.l.b16 %v5218
    %v5413 = vunpack.c.h.b16 %v5218
    %v5414 = vunpack.c.l.b16 %v5219
    %v5415 = vunpack.c.h.b16 %v5219
    %v5416 = vunpack.c.l.b16 %v5220
    %v5417 = vunpack.c.h.b16 %v5220
    %v5418 = vunpack.c.l.b16 %v5221
    %v5419 = vunpack.c.h.b16 %v5221
    %v5420 = vunpack.c.l.b16 %v5222
    %v5421 = vunpack.c.h.b16 %v5222
    %v5422 = vunpack.c.l.b16 %v5223
    %v5423 = vunpack.c.h.b16 %v5223
    %v5424 = vunpack.c.l.b16 %v5224
    %v5425 = vunpack.c.h.b16 %v5224
    %v5426 = vunpack.c.l.b16 %v5225
    %v5427 = vunpack.c.h.b16 %v5225
    %v5428 = vunpack.c.l.b16 %v5226
    %v5429 = vunpack.c.h.b16 %v5226
    %v5430 = vunpack.c.l.b16 %v5227
    %v5431 = vunpack.c.h.b16 %v5227
    %v5432 = vpack.c.b16 %v5306, %v5304
    %v5433 = vpack.c.b16 %v5307, %v5305
    %v5434 = vpack.c.b16 %v5310, %v5308
    %v5435 = vpack.c.b16 %v5311, %v5309
    %v5436 = vpack.c.b16 %v5314, %v5312
    %v5437 = vpack.c.b16 %v5315, %v5313
    %v5438 = vpack.c.b16 %v5318, %v5316
    %v5439 = vpack.c.b16 %v5319, %v5317
    %v5440 = vpack.c.b16 %v5322, %v5320
    %v5441 = vpack.c.b16 %v5323, %v5321
    %v5442 = vpack.c.b16 %v5326, %v5324
    %v5443 = vpack.c.b16 %v5327, %v5325
    %v5444 = vpack.c.b16 %v5330, %v5328
    %v5445 = vpack.c.b16 %v5331, %v5329
    %v5446 = vpack.c.b16 %v5334, %v5332
    %v5447 = vpack.c.b16 %v5335, %v5333
    %v5448 = vpack.c.b16 %v5338, %v5336
    %v5449 = vpack.c.b16 %v5339, %v5337
    %v5450 = vpack.c.b16 %v5342, %v5340
    %v5451 = vpack.c.b16 %v5343, %v5341
    %v5452 = vpack.c.b16 %v5346, %v5344
    %v5453 = vpack.c.b16 %v5347, %v5345
    %v5454 = vpack.c.b16 %v5350, %v5348
    %v5455 = vpack.c.b16 %v5351, %v5349
    %v5456 = vpack.c.b16 %v5354, %v5352
    %v5457 = vpack.c.b16 %v5355, %v5353
    %v5458 = vpack.c.b16 %v5358, %v5356
    %v5459 = vpack.c.b16 %v5359, %v5357
    %v5460 = vpack.c.b16 %v5362, %v5360
    %v5461 = vpack.c.b16 %v5363, %v5361
    %v5462 = vpack.c.b16 %v5366, %v5364
    %v5463 = vpack.c.b16 %v5367, %v5365
    %v5464 = vpack.c.b16 %v5370, %v5368
    %v5465 = vpack.c.b16 %v5371, %v5369
    %v5466 = vpack.c.b16 %v5374, %v5372
    %v5467 = vpack.c.b16 %v5375, %v5373
    %v5468 = vpack.c.b16 %v5378, %v5376
    %v5469 = vpack.c.b16 %v5379, %v5377
    %v5470 = vpack.c.b16 %v5382, %v5380
    %v5471 = vpack.c.b16 %v5383, %v5381
    %v5472 = vpack.c.b16 %v5386, %v5384
    %v5473 = vpack.c.b16 %v5387, %v5385
    %v5474 = vpack.c.b16 %v5390, %v5388
    %v5475 = vpack.c.b16 %v5391, %v5389
    %v5476 = vpack.c.b16 %v5394, %v5392
    %v5477 = vpack.c.b16 %v5395, %v5393
    %v5478 = vpack.c.b16 %v5398, %v5396
    %v5479 = vpack.c.b16 %v5399, %v5397
    %v5480 = vpack.c.b16 %v5402, %v5400
    %v5481 = vpack.c.b16 %v5403, %v5401
    %v5482 = vpack.c.b16 %v5406, %v5404
    %v5483 = vpack.c.b16 %v5407, %v5405
    %v5484 = vpack.c.b16 %v5410, %v5408
    %v5485 = vpack.c.b16 %v5411, %v5409
    %v5486 = vpack.c.b16 %v5414, %v5412
    %v5487 = vpack.c.b16 %v5415, %v5413
    %v5488 = vpack.c.b16 %v5418, %v5416
    %v5489 = vpack.c.b16 %v5419, %v5417
    %v5490 = vpack.c.b16 %v5422, %v5420
    %v5491 = vpack.c.b16 %v5423, %v5421
    %v5492 = vpack.c.b16 %v5426, %v5424
    %v5493 = vpack.c.b16 %v5427, %v5425
    %v5494 = vpack.c.b16 %v5430, %v5428
    %v5495 = vpack.c.b16 %v5431, %v5429
    %5560 = vmatprep.subr.bf16.mxu0 %v5433
    %5561 = vmatpush1.bf16.msra.mxu0 %v5432
    %5562 = vmatprep.subr.bf16.mxu0 %v5435
    %5563 = vmatpush1.bf16.msra.mxu0 %v5434
    %5564 = vmatprep.subr.bf16.mxu0 %v5437
    %5565 = vmatpush1.bf16.msra.mxu0 %v5436
    %5566 = vmatprep.subr.bf16.mxu0 %v5439
    %5567 = vmatpush1.bf16.msra.mxu0 %v5438
    %5568 = vmatprep.subr.bf16.mxu0 %v5441
    %5569 = vmatpush1.bf16.msra.mxu0 %v5440
    %5570 = vmatprep.subr.bf16.mxu0 %v5443
    %5571 = vmatpush1.bf16.msra.mxu0 %v5442
    %5572 = vmatprep.subr.bf16.mxu0 %v5445
    %5573 = vmatpush1.bf16.msra.mxu0 %v5444
    %5574 = vmatprep.subr.bf16.mxu0 %v5447
    %5575 = vmatpush1.bf16.msra.mxu0 %v5446
    %5576 = vmatprep.subr.bf16.mxu0 %v5449
    %5577 = vmatpush1.bf16.msra.mxu0 %v5448
    %5578 = vmatprep.subr.bf16.mxu0 %v5451
    %5579 = vmatpush1.bf16.msra.mxu0 %v5450
    %5580 = vmatprep.subr.bf16.mxu0 %v5453
    %5581 = vmatpush1.bf16.msra.mxu0 %v5452
    %5582 = vmatprep.subr.bf16.mxu0 %v5455
    %5583 = vmatpush1.bf16.msra.mxu0 %v5454
    %5584 = vmatprep.subr.bf16.mxu0 %v5457
    %5585 = vmatpush1.bf16.msra.mxu0 %v5456
    %5586 = vmatprep.subr.bf16.mxu0 %v5459
    %5587 = vmatpush1.bf16.msra.mxu0 %v5458
    %5588 = vmatprep.subr.bf16.mxu0 %v5461
    %5589 = vmatpush1.bf16.msra.mxu0 %v5460
    %5590 = vmatprep.subr.bf16.mxu0 %v5463
    %5591 = vmatpush1.bf16.msra.mxu0 %v5462
    %5592 = vmatprep.mubr.bf16.mxu0 %v5161
    %5593 = vmatmul.mubr.bf16.gmra.mrb[0].mxu0 %v5160
    %v5594 = vpop.f32.mrb[0].mxu0
    %v5595 = vadd.f32 %v5233, %v5594
    %v5596 = vpop.f32.mrb[0].mxu0
    %v5597 = vadd.f32 %v5237, %v5596
    %v5598 = vpop.f32.mrb[0].mxu0
    %v5599 = vpop.f32.mrb[0].mxu0
    %5600 = vdwg.mxu0
    %5601 = vmatprep.subr.bf16.mxu0 %v5465
    %5602 = vmatpush1.bf16.msra.mxu0 %v5464
    %5603 = vmatprep.subr.bf16.mxu0 %v5467
    %5604 = vmatpush1.bf16.msra.mxu0 %v5466
    %5605 = vmatprep.subr.bf16.mxu0 %v5469
    %5606 = vmatpush1.bf16.msra.mxu0 %v5468
    %5607 = vmatprep.subr.bf16.mxu0 %v5471
    %5608 = vmatpush1.bf16.msra.mxu0 %v5470
    %5609 = vmatprep.subr.bf16.mxu0 %v5473
    %5610 = vmatpush1.bf16.msra.mxu0 %v5472
    %5611 = vmatprep.subr.bf16.mxu0 %v5475
    %5612 = vmatpush1.bf16.msra.mxu0 %v5474
    %5613 = vmatprep.subr.bf16.mxu0 %v5477
    %5614 = vmatpush1.bf16.msra.mxu0 %v5476
    %5615 = vmatprep.subr.bf16.mxu0 %v5479
    %5616 = vmatpush1.bf16.msra.mxu0 %v5478
    %5617 = vmatprep.subr.bf16.mxu0 %v5481
    %5618 = vmatpush1.bf16.msra.mxu0 %v5480
    %5619 = vmatprep.subr.bf16.mxu0 %v5483
    %5620 = vmatpush1.bf16.msra.mxu0 %v5482
    %5621 = vmatprep.subr.bf16.mxu0 %v5485
    %5622 = vmatpush1.bf16.msra.mxu0 %v5484
    %5623 = vmatprep.subr.bf16.mxu0 %v5487
    %5624 = vmatpush1.bf16.msra.mxu0 %v5486
    %5625 = vmatprep.subr.bf16.mxu0 %v5489
    %5626 = vmatpush1.bf16.msra.mxu0 %v5488
    %5627 = vmatprep.subr.bf16.mxu0 %v5491
    %5628 = vmatpush1.bf16.msra.mxu0 %v5490
    %5629 = vmatprep.subr.bf16.mxu0 %v5493
    %5630 = vmatpush1.bf16.msra.mxu0 %v5492
    %5631 = vmatprep.subr.bf16.mxu0 %v5495
    %5632 = vmatpush1.bf16.msra.mxu0 %v5494
    %5633 = vmatprep.mubr.bf16.mxu0 %v5163
    %5634 = vmatmul.mubr.bf16.gmra.mrb[0].mxu0 %v5162
    %v5635 = vpop.f32.mrb[0].mxu0
    %v5636 = vadd.f32 %v5595, %v5635
    %v5637 = vpop.f32.mrb[0].mxu0
    %v5638 = vadd.f32 %v5597, %v5637
    %v5639 = vpop.f32.mrb[0].mxu0
    %v5640 = vpop.f32.mrb[0].mxu0
    %5641 = vdwg.mxu0
    %v5642 = vmax.f32 %v5636, 0.0
    %v5643 = vmax.f32 %v5638, 0.0
    %v5644 = vpack.c.bf16 %v5642, %v5642
    %v5645 = vpack.c.bf16 %v5643, %v5643
    %v5646 = vld [vmem:[#allocation14] sm:$0xf]
    %v5647 = vld [vmem:[#allocation14 + $0x4] sm:$0xf]
    %v5648 = vld [vmem:[#allocation14 + $0x8] sm:$0xf]
    %v5649 = vld [vmem:[#allocation14 + $0xc] sm:$0xf]
    %v5650 = vld [vmem:[#allocation14 + $0x10] sm:$0xf]
    %v5651 = vld [vmem:[#allocation14 + $0x14] sm:$0xf]
    %v5652 = vld [vmem:[#allocation14 + $0x18] sm:$0xf]
    %v5653 = vld [vmem:[#allocation14 + $0x1c] sm:$0xf]
    %v5654 = vld [vmem:[#allocation14 + $0x20] sm:$0xf]
    %v5655 = vld [vmem:[#allocation14 + $0x24] sm:$0xf]
    %v5656 = vld [vmem:[#allocation14 + $0x28] sm:$0xf]
    %v5657 = vld [vmem:[#allocation14 + $0x2c] sm:$0xf]
    %v5658 = vld [vmem:[#allocation14 + $0x30] sm:$0xf]
    %v5659 = vld [vmem:[#allocation14 + $0x34] sm:$0xf]
    %v5660 = vld [vmem:[#allocation14 + $0x38] sm:$0xf]
    %v5661 = vld [vmem:[#allocation14 + $0x3c] sm:$0xf]
    %v5662 = vld [vmem:[#allocation14 + $0x40] sm:$0xf]
    %v5663 = vld [vmem:[#allocation14 + $0x44] sm:$0xf]
    %v5664 = vld [vmem:[#allocation14 + $0x48] sm:$0xf]
    %v5665 = vld [vmem:[#allocation14 + $0x4c] sm:$0xf]
    %v5666 = vld [vmem:[#allocation14 + $0x50] sm:$0xf]
    %v5667 = vld [vmem:[#allocation14 + $0x54] sm:$0xf]
    %v5668 = vld [vmem:[#allocation14 + $0x58] sm:$0xf]
    %v5669 = vld [vmem:[#allocation14 + $0x5c] sm:$0xf]
    %v5670 = vld [vmem:[#allocation14 + $0x60] sm:$0xf]
    %v5671 = vld [vmem:[#allocation14 + $0x64] sm:$0xf]
    %v5672 = vld [vmem:[#allocation14 + $0x68] sm:$0xf]
    %v5673 = vld [vmem:[#allocation14 + $0x6c] sm:$0xf]
    %v5674 = vld [vmem:[#allocation14 + $0x70] sm:$0xf]
    %v5675 = vld [vmem:[#allocation14 + $0x74] sm:$0xf]
    %v5676 = vld [vmem:[#allocation14 + $0x78] sm:$0xf]
    %v5677 = vld [vmem:[#allocation14 + $0x7c] sm:$0xf]
    %v5678 = vld [vmem:[#allocation16] sm:$0x1]
    %v5680 = vlaneseq
    %v5681 = vshrl.u32 %v5680, 7
    %v5682 = vsub.s32 0, %v5681
    %v5683 = vrot.slane %v5678, %v5682
    %v5717 = vunpack.c.l.b16 %v5646
    %v5718 = vunpack.c.l.b16 %v5647
    %v5719 = vunpack.c.l.b16 %v5648
    %v5720 = vunpack.c.l.b16 %v5649
    %v5721 = vunpack.c.l.b16 %v5650
    %v5722 = vunpack.c.l.b16 %v5651
    %v5723 = vunpack.c.l.b16 %v5652
    %v5724 = vunpack.c.l.b16 %v5653
    %v5725 = vunpack.c.l.b16 %v5654
    %v5726 = vunpack.c.l.b16 %v5655
    %v5727 = vunpack.c.l.b16 %v5656
    %v5728 = vunpack.c.l.b16 %v5657
    %v5729 = vunpack.c.l.b16 %v5658
    %v5730 = vunpack.c.l.b16 %v5659
    %v5731 = vunpack.c.l.b16 %v5660
    %v5732 = vunpack.c.l.b16 %v5661
    %v5733 = vunpack.c.l.b16 %v5662
    %v5734 = vunpack.c.l.b16 %v5663
    %v5735 = vunpack.c.l.b16 %v5664
    %v5736 = vunpack.c.l.b16 %v5665
    %v5737 = vunpack.c.l.b16 %v5666
    %v5738 = vunpack.c.l.b16 %v5667
    %v5739 = vunpack.c.l.b16 %v5668
    %v5740 = vunpack.c.l.b16 %v5669
    %v5741 = vunpack.c.l.b16 %v5670
    %v5742 = vunpack.c.l.b16 %v5671
    %v5743 = vunpack.c.l.b16 %v5672
    %v5744 = vunpack.c.l.b16 %v5673
    %v5745 = vunpack.c.l.b16 %v5674
    %v5746 = vunpack.c.l.b16 %v5675
    %v5747 = vunpack.c.l.b16 %v5676
    %v5748 = vunpack.c.l.b16 %v5677
    %v5749 = vpack.c.b16 %v5718, %v5717
    %v5750 = vpack.c.b16 %v5720, %v5719
    %v5751 = vpack.c.b16 %v5722, %v5721
    %v5752 = vpack.c.b16 %v5724, %v5723
    %v5753 = vpack.c.b16 %v5726, %v5725
    %v5754 = vpack.c.b16 %v5728, %v5727
    %v5755 = vpack.c.b16 %v5730, %v5729
    %v5756 = vpack.c.b16 %v5732, %v5731
    %v5757 = vpack.c.b16 %v5734, %v5733
    %v5758 = vpack.c.b16 %v5736, %v5735
    %v5759 = vpack.c.b16 %v5738, %v5737
    %v5760 = vpack.c.b16 %v5740, %v5739
    %v5761 = vpack.c.b16 %v5742, %v5741
    %v5762 = vpack.c.b16 %v5744, %v5743
    %v5763 = vpack.c.b16 %v5746, %v5745
    %v5764 = vpack.c.b16 %v5748, %v5747
    %5781 = vmatprep.subr.bf16.mxu0 0
    %5782 = vmatpush1.bf16.msra.mxu0 %v5749
    %5783 = vmatprep.subr.bf16.mxu0 0
    %5784 = vmatpush1.bf16.msra.mxu0 %v5750
    %5785 = vmatprep.subr.bf16.mxu0 0
    %5786 = vmatpush1.bf16.msra.mxu0 %v5751
    %5787 = vmatprep.subr.bf16.mxu0 0
    %5788 = vmatpush1.bf16.msra.mxu0 %v5752
    %5789 = vmatprep.subr.bf16.mxu0 0
    %5790 = vmatpush1.bf16.msra.mxu0 %v5753
    %5791 = vmatprep.subr.bf16.mxu0 0
    %5792 = vmatpush1.bf16.msra.mxu0 %v5754
    %5793 = vmatprep.subr.bf16.mxu0 0
    %5794 = vmatpush1.bf16.msra.mxu0 %v5755
    %5795 = vmatprep.subr.bf16.mxu0 0
    %5796 = vmatpush1.bf16.msra.mxu0 %v5756
    %5797 = vmatprep.subr.bf16.mxu0 0
    %5798 = vmatpush1.bf16.msra.mxu0 %v5757
    %5799 = vmatprep.subr.bf16.mxu0 0
    %5800 = vmatpush1.bf16.msra.mxu0 %v5758
    %5801 = vmatprep.subr.bf16.mxu0 0
    %5802 = vmatpush1.bf16.msra.mxu0 %v5759
    %5803 = vmatprep.subr.bf16.mxu0 0
    %5804 = vmatpush1.bf16.msra.mxu0 %v5760
    %5805 = vmatprep.subr.bf16.mxu0 0
    %5806 = vmatpush1.bf16.msra.mxu0 %v5761
    %5807 = vmatprep.subr.bf16.mxu0 0
    %5808 = vmatpush1.bf16.msra.mxu0 %v5762
    %5809 = vmatprep.subr.bf16.mxu0 0
    %5810 = vmatpush1.bf16.msra.mxu0 %v5763
    %5811 = vmatprep.subr.bf16.mxu0 0
    %5812 = vmatpush1.bf16.msra.mxu0 %v5764
    %5813 = vmatprep.mubr.bf16.mxu0 %v5645
    %5814 = vmatmul.mubr.bf16.gmra.mrb[0].mxu0 %v5644
    %v5815 = vpop.f32.mrb[0].mxu0
    %v5816 = vadd.f32 %v5683, %v5815
    %v5817 = vpop.f32.mrb[0].mxu0
    %v5818 = vpop.f32.mrb[0].mxu0
    %v5819 = vpop.f32.mrb[0].mxu0
    %5820 = vdwg.mxu0
    %v5821 = vmax.f32 %v5816, 0.0
    %v5822 = vpack.c.bf16 %v5821, %v5821
    %v5823 = vld [vmem:[#allocation17] sm:$0xf]
    %v5824 = vld [vmem:[#allocation17 + $0x4] sm:$0xf]
    %v5825 = vld [vmem:[#allocation17 + $0x8] sm:$0xf]
    %v5826 = vld [vmem:[#allocation17 + $0xc] sm:$0xf]
    %v5827 = vld [vmem:[#allocation17 + $0x10] sm:$0xf]
    %v5828 = vld [vmem:[#allocation17 + $0x14] sm:$0xf]
    %v5829 = vld [vmem:[#allocation17 + $0x18] sm:$0xf]
    %v5830 = vld [vmem:[#allocation17 + $0x1c] sm:$0xf]
    %v5831 = vld [vmem:[#allocation17 + $0x20] sm:$0xf]
    %v5832 = vld [vmem:[#allocation17 + $0x24] sm:$0xf]
    %v5833 = vld [vmem:[#allocation17 + $0x28] sm:$0xf]
    %v5834 = vld [vmem:[#allocation17 + $0x2c] sm:$0xf]
    %v5835 = vld [vmem:[#allocation17 + $0x30] sm:$0xf]
    %v5836 = vld [vmem:[#allocation17 + $0x34] sm:$0xf]
    %v5837 = vld [vmem:[#allocation17 + $0x38] sm:$0xf]
    %v5838 = vld [vmem:[#allocation17 + $0x3c] sm:$0xf]
    %v5839 = vld [vmem:[#allocation19] sm:$0x1]
    %v5841 = vlaneseq
    %v5842 = vshrl.u32 %v5841, 7
    %v5843 = vsub.s32 0, %v5842
    %v5844 = vrot.slane %v5839, %v5843
    %v5862 = vunpack.c.l.b16 %v5823
    %v5863 = vunpack.c.l.b16 %v5824
    %v5864 = vunpack.c.l.b16 %v5825
    %v5865 = vunpack.c.l.b16 %v5826
    %v5866 = vunpack.c.l.b16 %v5827
    %v5867 = vunpack.c.l.b16 %v5828
    %v5868 = vunpack.c.l.b16 %v5829
    %v5869 = vunpack.c.l.b16 %v5830
    %v5870 = vunpack.c.l.b16 %v5831
    %v5871 = vunpack.c.l.b16 %v5832
    %v5872 = vunpack.c.l.b16 %v5833
    %v5873 = vunpack.c.l.b16 %v5834
    %v5874 = vunpack.c.l.b16 %v5835
    %v5875 = vunpack.c.l.b16 %v5836
    %v5876 = vunpack.c.l.b16 %v5837
    %v5877 = vunpack.c.l.b16 %v5838
    %v5878 = vpack.c.b16 %v5863, %v5862
    %v5879 = vpack.c.b16 %v5865, %v5864
    %v5880 = vpack.c.b16 %v5867, %v5866
    %v5881 = vpack.c.b16 %v5869, %v5868
    %v5882 = vpack.c.b16 %v5871, %v5870
    %v5883 = vpack.c.b16 %v5873, %v5872
    %v5884 = vpack.c.b16 %v5875, %v5874
    %v5885 = vpack.c.b16 %v5877, %v5876
    %5894 = vmatprep.subr.bf16.mxu0 0
    %5895 = vmatpush1.bf16.msra.mxu0 %v5878
    %5896 = vmatprep.subr.bf16.mxu0 0
    %5897 = vmatpush1.bf16.msra.mxu0 %v5879
    %5898 = vmatprep.subr.bf16.mxu0 0
    %5899 = vmatpush1.bf16.msra.mxu0 %v5880
    %5900 = vmatprep.subr.bf16.mxu0 0
    %5901 = vmatpush1.bf16.msra.mxu0 %v5881
    %5902 = vmatprep.subr.bf16.mxu0 0
    %5903 = vmatpush1.bf16.msra.mxu0 %v5882
    %5904 = vmatprep.subr.bf16.mxu0 0
    %5905 = vmatpush1.bf16.msra.mxu0 %v5883
    %5906 = vmatprep.subr.bf16.mxu0 0
    %5907 = vmatpush1.bf16.msra.mxu0 %v5884
    %5908 = vmatprep.subr.bf16.mxu0 0
    %5909 = vmatpush1.bf16.msra.mxu0 %v5885
    %5910 = vmatprep.subr.bf16.mxu0 0
    %5911 = vmatpush1.bf16.msra.mxu0 0
    %5912 = vmatprep.subr.bf16.mxu0 0
    %5913 = vmatpush1.bf16.msra.mxu0 0
    %5914 = vmatprep.subr.bf16.mxu0 0
    %5915 = vmatpush1.bf16.msra.mxu0 0
    %5916 = vmatprep.subr.bf16.mxu0 0
    %5917 = vmatpush1.bf16.msra.mxu0 0
    %5918 = vmatprep.subr.bf16.mxu0 0
    %5919 = vmatpush1.bf16.msra.mxu0 0
    %5920 = vmatprep.subr.bf16.mxu0 0
    %5921 = vmatpush1.bf16.msra.mxu0 0
    %5922 = vmatprep.subr.bf16.mxu0 0
    %5923 = vmatpush1.bf16.msra.mxu0 0
    %5924 = vmatprep.subr.bf16.mxu0 0
    %5925 = vmatpush1.bf16.msra.mxu0 0
    %5926 = vmatprep.mubr.bf16.mxu0 0
    %5927 = vmatmul.mubr.bf16.gmra.mrb[0].mxu0 %v5822
    %v5928 = vpop.f32.mrb[0].mxu0
    %v5929 = vadd.f32 %v5844, %v5928
    %v5930 = vpop.f32.mrb[0].mxu0
    %v5931 = vpop.f32.mrb[0].mxu0
    %v5932 = vpop.f32.mrb[0].mxu0
    %5933 = vdwg.mxu0
    %v5934 = vxor.u32 %v5929, 2147483648
    %v5935 = vmul.f32 %v5934, 1.442695
    %v5936 = vpow.pop %v5935
    %v5937 = vadd.f32 %v5936, 1.0
    %v5938 = vrcp.pop %v5937
    %v5939 = vmul.f32 1.0, %v5938
    %5940 = vst [vmem:[#allocation20] sm:$0xff] %v5939
    // Predicated region
    $region90: #{tpu_custom_call.1} parent=1 // pred_check
      _
    $region91: #{tpu_custom_call.1} parent=1 // pred_check_branch
      %5942 = sbr.rel (0) target = $region93
    $region92: #{tpu_custom_call.1} parent=1 // pred_region
      %s5944 = ssub.s32 128, 128
      %5945 = vsyncadd [#allocation4], %s5944
      %s5947 = sshll.u32 [#allocation20], 4
      %s5948 = int_to_ptr.vmem [resolvable:$true] %s5947
      %5950 = dma.vmem_to_hbm [thread:$0]  %s5948, 128, %s11, [#allocation4]
    $region93: #{tpu_custom_call.1} parent=1 // pred_fallthru
      _
    // Predicated region
    $region94: #{tpu_custom_call.1} parent=1 // pred_check
      _
    $region95: #{tpu_custom_call.1} parent=1 // pred_check_branch
      %5952 = sbr.rel (0) target = $region97
    $region96: #{tpu_custom_call.1} parent=1 // pred_region
      %5953 = dma.done [#allocation4], 128
    $region97: #{tpu_custom_call.1} parent=1 // pred_fallthru
      _
    %5954 = vsyncpa [#allocation3], 1
    %5955 = vsyncpa [#allocation6], 1
    %5956 = vsyncpa [#allocation9], 1
    %5957 = vsyncpa [#allocation12], 1
    %5958 = vsyncpa [#allocation15], 1
    %5959 = vsyncpa [#allocation18], 1
    %5960 = vsyncpa [#allocation4], 1

// kernel: tpu_custom_call.1
$region0: #{tpu_custom_call.1}
  #allocation0 [shape = 'u32[]', space=smem, size = 0x4, offset = 0x4, fixed_abs, tag = 'smem constant byte address 0x4 - core index']
  #allocation1 [shape = 'u32[144,128]{1,0:T(1,128)}', space=vmem, size = 0x12000, scoped, tag = 'internal scratch']
  %s0 = inlined_call_operand.hbm [shape: bf16[8,128], index: 0, kind: input, shape index: {}]
  %s1 = inlined_call_operand.hbm [shape: bf16[128,2048], index: 1, kind: input, shape index: {}]
  %s2 = inlined_call_operand.hbm [shape: f32[1,2048], index: 2, kind: input, shape index: {}]
  %s3 = inlined_call_operand.hbm [shape: bf16[1024,1024], index: 3, kind: input, shape index: {}]
  %s4 = inlined_call_operand.hbm [shape: f32[1,1024], index: 4, kind: input, shape index: {}]
  %s5 = inlined_call_operand.hbm [shape: bf16[512,256], index: 5, kind: input, shape index: {}]
  %s6 = inlined_call_operand.hbm [shape: f32[1,256], index: 6, kind: input, shape index: {}]
  %s7 = inlined_call_operand.hbm [shape: bf16[256,128], index: 7, kind: input, shape index: {}]
  %s8 = inlined_call_operand.hbm [shape: f32[1,128], index: 8, kind: input, shape index: {}]
  %s9 = inlined_call_operand.hbm [shape: bf16[128,128], index: 9, kind: input, shape index: {}]
  %s10 = inlined_call_operand.hbm [shape: f32[1,128], index: 10, kind: input, shape index: {}]
  %s11 = inlined_call_operand.hbm [shape: f32[8,128], index: 11, kind: output, shape index: {}]
  %s12 = sld [smem:[#allocation0]]
  $region98: #{tpu_custom_call.1} parent=0
    _
  %s14 = ssub.s32 1, %s12
  %s15 = scalar_select 0, %s14, %s12
  $region1: #{tpu_custom_call.1} parent=0
    #allocation2 [shape = 'u8[2048]{0}', space=vmem, size = 0x800, scoped, tag = 'input window, operand 0, single buffered']
    #allocation3 [shape = 's32[1]{0}', space=sflag, size = 0x4, scoped, tag = 'scoped memory for tpu_custom_call.1']
    #allocation4 [shape = 's32[1]{0}', space=sflag, size = 0x4, scoped, tag = 'scoped memory for tpu_custom_call.1']
    #allocation5 [shape = 'u8[524288]{0}', space=vmem, size = 0x80000, scoped, tag = 'input window, operand 1, single buffered']
    #allocation6 [shape = 's32[1]{0}', space=sflag, size = 0x4, scoped, tag = 'scoped memory for tpu_custom_call.1']
    #allocation7 [shape = 'u8[8192]{0}', space=vmem, size = 0x2000, scoped, tag = 'input window, operand 2, single buffered']
    #allocation8 [shape = 'u8[2097152]{0}', space=vmem, size = 0x200000, scoped, tag = 'input window, operand 3, single buffered']
    #allocation9 [shape = 's32[1]{0}', space=sflag, size = 0x4, scoped, tag = 'scoped memory for tpu_custom_call.1']
    #allocation10 [shape = 'u8[4096]{0}', space=vmem, size = 0x1000, scoped, tag = 'input window, operand 4, single buffered']
    #allocation11 [shape = 'u8[262144]{0}', space=vmem, size = 0x40000, scoped, tag = 'input window, operand 5, single buffered']
    #allocation12 [shape = 's32[1]{0}', space=sflag, size = 0x4, scoped, tag = 'scoped memory for tpu_custom_call.1']
    #allocation13 [shape = 'u8[1024]{0}', space=vmem, size = 0x400, scoped, tag = 'input window, operand 6, single buffered']
    #allocation14 [shape = 'u8[65536]{0}', space=vmem, size = 0x10000, scoped, tag = 'input window, operand 7, single buffered']
    #allocation15 [shape = 's32[1]{0}', space=sflag, size = 0x4, scoped, tag = 'scoped memory for tpu_custom_call.1']
    #allocation16 [shape = 'u8[512]{0}', space=vmem, size = 0x400, scoped, tag = 'input window, operand 8, single buffered']
    #allocation17 [shape = 'u8[32768]{0}', space=vmem, size = 0x8000, scoped, tag = 'input window, operand 9, single buffered']
    #allocation18 [shape = 's32[1]{0}', space=sflag, size = 0x4, scoped, tag = 'scoped memory for tpu_custom_call.1']
    #allocation19 [shape = 'u8[512]{0}', space=vmem, size = 0x400, scoped, tag = 'input window, operand 10, single buffered']
    #allocation20 [shape = 'u8[4096]{0}', space=vmem, size = 0x1000, scoped, tag = 'output window, operand 0, single buffered']
    %16 = vsyncpa [#allocation3], 0
    %17 = vsyncpa [#allocation6], 0
    %18 = vsyncpa [#allocation9], 0
    %19 = vsyncpa [#allocation12], 0
    %20 = vsyncpa [#allocation15], 0
    %21 = vsyncpa [#allocation18], 0
    %22 = vsyncpa [#allocation4], 0
    // Predicated region
    $region2: #{tpu_custom_call.1} parent=1 // pred_check
      _
    $region3: #{tpu_custom_call.1} parent=1 // pred_check_branch
      %24 = sbr.rel (0) target = $region5
    $region4: #{tpu_custom_call.1} parent=1 // pred_region
      %s26 = ssub.s32 64, 64
      %27 = vsyncadd [#allocation3], %s26
      %s29 = sshll.u32 [#allocation2], 4
      %s30 = int_to_ptr.vmem [resolvable:$true] %s29
      %32 = dma.hbm_to_vmem [thread:$0]  %s0, 64, %s30, [#allocation3]
    $region5: #{tpu_custom_call.1} parent=1 // pred_fallthru
      _
    // Predicated region
    $region6: #{tpu_custom_call.1} parent=1 // pred_check
      _
    $region7: #{tpu_custom_call.1} parent=1 // pred_check_branch
      %34 = sbr.rel (0) target = $region9
    $region8: #{tpu_custom_call.1} parent=1 // pred_region
      %s36 = ssub.s32 16384, 16384
      %37 = vsyncadd [#allocation6], %s36
      %s38 = sshll.u32 [#allocation5], 4
      %s39 = int_to_ptr.vmem [resolvable:$true] %s38
      %44 = dma.hbm_to_vmem [thread:$0]  %s1, 16384, %s39, [#allocation6], 1024, 1024, 64
    $region9: #{tpu_custom_call.1} parent=1 // pred_fallthru
      _
    // Predicated region
    $region10: #{tpu_custom_call.1} parent=1 // pred_check
      _
    $region11: #{tpu_custom_call.1} parent=1 // pred_check_branch
      %46 = sbr.rel (0) target = $region13
    $region12: #{tpu_custom_call.1} parent=1 // pred_region
      %s48 = ssub.s32 256, 256
      %49 = vsyncadd [#allocation6], %s48
      %s51 = sshll.u32 [#allocation7], 4
      %s52 = int_to_ptr.vmem [resolvable:$true] %s51
      %54 = dma.hbm_to_vmem [thread:$0]  %s2, 256, %s52, [#allocation6]
    $region13: #{tpu_custom_call.1} parent=1 // pred_fallthru
      _
    // Predicated region
    $region14: #{tpu_custom_call.1} parent=1 // pred_check
      _
    $region15: #{tpu_custom_call.1} parent=1 // pred_check_branch
      %56 = sbr.rel (0) target = $region17
    $region16: #{tpu_custom_call.1} parent=1 // pred_region
      %s58 = ssub.s32 65536, 65536
      %59 = vsyncadd [#allocation9], %s58
      %s60 = sshll.u32 [#allocation8], 4
      %s61 = int_to_ptr.vmem [resolvable:$true] %s60
      %66 = dma.hbm_to_vmem [thread:$0]  %s3, 65536, %s61, [#allocation9], 512, 512, 32
    $region17: #{tpu_custom_call.1} parent=1 // pred_fallthru
      _
    // Predicated region
    $region18: #{tpu_custom_call.1} parent=1 // pred_check
      _
    $region19: #{tpu_custom_call.1} parent=1 // pred_check_branch
      %68 = sbr.rel (0) target = $region21
    $region20: #{tpu_custom_call.1} parent=1 // pred_region
      %s70 = ssub.s32 128, 128
      %71 = vsyncadd [#allocation9], %s70
      %s73 = sshll.u32 [#allocation10], 4
      %s74 = int_to_ptr.vmem [resolvable:$true] %s73
      %76 = dma.hbm_to_vmem [thread:$0]  %s4, 128, %s74, [#allocation9]
    $region21: #{tpu_custom_call.1} parent=1 // pred_fallthru
      _
    // Predicated region
    $region22: #{tpu_custom_call.1} parent=1 // pred_check
      _
    $region23: #{tpu_custom_call.1} parent=1 // pred_check_branch
      %78 = sbr.rel (0) target = $region25
    $region24: #{tpu_custom_call.1} parent=1 // pred_region
      %s80 = ssub.s32 8192, 8192
      %81 = vsyncadd [#allocation12], %s80
      %s82 = sshll.u32 [#allocation11], 4
      %s83 = int_to_ptr.vmem [resolvable:$true] %s82
      %88 = dma.hbm_to_vmem [thread:$0]  %s5, 8192, %s83, [#allocation12], 128, 128, 8
    $region25: #{tpu_custom_call.1} parent=1 // pred_fallthru
      _
    // Predicated region
    $region26: #{tpu_custom_call.1} parent=1 // pred_check
      _
    $region27: #{tpu_custom_call.1} parent=1 // pred_check_branch
      %90 = sbr.rel (0) target = $region29
    $region28: #{tpu_custom_call.1} parent=1 // pred_region
      %s92 = ssub.s32 32, 32
      %93 = vsyncadd [#allocation12], %s92
      %s95 = sshll.u32 [#allocation13], 4
      %s96 = int_to_ptr.vmem [resolvable:$true] %s95
      %98 = dma.hbm_to_vmem [thread:$0]  %s6, 32, %s96, [#allocation12]
    $region29: #{tpu_custom_call.1} parent=1 // pred_fallthru
      _
    // Predicated region
    $region30: #{tpu_custom_call.1} parent=1 // pred_check
      _
    $region31: #{tpu_custom_call.1} parent=1 // pred_check_branch
      %100 = sbr.rel (0) target = $region33
    $region32: #{tpu_custom_call.1} parent=1 // pred_region
      %s102 = ssub.s32 2048, 2048
      %103 = vsyncadd [#allocation15], %s102
      %s104 = sshll.u32 [#allocation14], 4
      %s105 = int_to_ptr.vmem [resolvable:$true] %s104
      %110 = dma.hbm_to_vmem [thread:$0]  %s7, 2048, %s105, [#allocation15], 64, 64, 4
    $region33: #{tpu_custom_call.1} parent=1 // pred_fallthru
      _
    // Predicated region
    $region34: #{tpu_custom_call.1} parent=1 // pred_check
      _
    $region35: #{tpu_custom_call.1} parent=1 // pred_check_branch
      %112 = sbr.rel (0) target = $region37
    $region36: #{tpu_custom_call.1} parent=1 // pred_region
      %s114 = ssub.s32 16, 16
      %115 = vsyncadd [#allocation15], %s114
      %s117 = sshll.u32 [#allocation16], 4
      %s118 = int_to_ptr.vmem [resolvable:$true] %s117
      %120 = dma.hbm_to_vmem [thread:$0]  %s8, 16, %s118, [#allocation15]
    $region37: #{tpu_custom_call.1} parent=1 // pred_fallthru
      _
    // Predicated region
    $region38: #{tpu_custom_call.1} parent=1 // pred_check
      _
    $region39: #{tpu_custom_call.1} parent=1 // pred_check_branch
      %122 = sbr.rel (0) target = $region41
    $region40: #{tpu_custom_call.1} parent=1 // pred_region
      %s124 = ssub.s32 1024, 1024
      %125 = vsyncadd [#allocation18], %s124
      %s126 = sshll.u32 [#allocation17], 4
      %s127 = int_to_ptr.vmem [resolvable:$true] %s126
      %132 = dma.hbm_to_vmem [thread:$0]  %s9, 1024, %s127, [#allocation18], 64, 64, 4
    $region41: #{tpu_custom_call.1} parent=1 // pred_fallthru
      _
    // Predicated region
    $region42: #{tpu_custom_call.1} parent=1 // pred_check
      _
    $region43: #{tpu_custom_call.1} parent=1 // pred_check_branch
      %134 = sbr.rel (0) target = $region45
    $region44: #{tpu_custom_call.1} parent=1 // pred_region
      %s136 = ssub.s32 16, 16
      %137 = vsyncadd [#allocation18], %s136
      %s139 = sshll.u32 [#allocation19], 4
      %s140 = int_to_ptr.vmem [resolvable:$true] %s139
      %142 = dma.hbm_to_vmem [thread:$0]  %s10, 16, %s140, [#allocation18]
    $region45: #{tpu_custom_call.1} parent=1 // pred_fallthru
      _
    // Predicated region
    $region46: #{tpu_custom_call.1} parent=1 // pred_check
      _
    $region47: #{tpu_custom_call.1} parent=1 // pred_check_branch
      %144 = sbr.rel (0) target = $region49
    $region48: #{tpu_custom_call.1} parent=1 // pred_region
      %145 = dma.done [#allocation3], 64
    $region49: #{tpu_custom_call.1} parent=1 // pred_fallthru
      _
    // Predicated region
    $region50: #{tpu_custom_call.1} parent=1 // pred_check
      _
    $region51: #{tpu_custom_call.1} parent=1 // pred_check_branch
      %147 = sbr.rel (0) target = $region53
    $region52: #{tpu_custom_call.1} parent=1 // pred_region
      %148 = dma.done [#allocation6], 16384
    $region53: #{tpu_custom_call.1} parent=1 // pred_fallthru
      _
    // Predicated region
    $region54: #{tpu_custom_call.1} parent=1 // pred_check
      _
    $region55: #{tpu_custom_call.1} parent=1 // pred_check_branch
      %150 = sbr.rel (0) target = $region57
    $region56: #{tpu_custom_call.1} parent=1 // pred_region
      %151 = dma.done [#allocation6], 256
    $region57: #{tpu_custom_call.1} parent=1 // pred_fallthru
      _
    // Predicated region
    $region58: #{tpu_custom_call.1} parent=1 // pred_check
      _
    $region59: #{tpu_custom_call.1} parent=1 // pred_check_branch
      %153 = sbr.rel (0) target = $region61
    $region60: #{tpu_custom_call.1} parent=1 // pred_region
      %154 = dma.done [#allocation9], 65536
    $region61: #{tpu_custom_call.1} parent=1 // pred_fallthru
      _
    // Predicated region
    $region62: #{tpu_custom_call.1} parent=1 // pred_check
      _
    $region63: #{tpu_custom_call.1} parent=1 // pred_check_branch
      %156 = sbr.rel (0) target = $region65
    $region64: #{tpu_custom_call.1} parent=1 // pred_region
      %157 = dma.done [#allocation9], 128
    $region65: #{tpu_custom_call.1} parent=1 // pred_fallthru
      _
    // Predicated region
    $region66: #{tpu_custom_call.1} parent=1 // pred_check
      _
    $region67: #{tpu_custom_call.1} parent=1 // pred_check_branch
      %159 = sbr.rel (0) target = $region69
    $region68: #{tpu_custom_call.1} parent=1 // pred_region
      %160 = dma.done [#allocation12], 8192
    $region69: #{tpu_custom_call.1} parent=1 // pred_fallthru
      _
    // Predicated region
    $region70: #{tpu_custom_call.1} parent=1 // pred_check
      _
    $region71: #{tpu_custom_call.1} parent=1 // pred_check_branch
      %162 = sbr.rel (0) target = $region73
    $region72: #{tpu_custom_call.1} parent=1 // pred_region
      %163 = dma.done [#allocation12], 32
    $region73: #{tpu_custom_call.1} parent=1 // pred_fallthru
      _
    // Predicated region
    $region74: #{tpu_custom_call.1} parent=1 // pred_check
      _
    $region75: #{tpu_custom_call.1} parent=1 // pred_check_branch
      %165 = sbr.rel (0) target = $region77
    $region76: #{tpu_custom_call.1} parent=1 // pred_region
      %166 = dma.done [#allocation15], 2048
    $region77: #{tpu_custom_call.1} parent=1 // pred_fallthru
      _
    // Predicated region
    $region78: #{tpu_custom_call.1} parent=1 // pred_check
      _
    $region79: #{tpu_custom_call.1} parent=1 // pred_check_branch
      %168 = sbr.rel (0) target = $region81
    $region80: #{tpu_custom_call.1} parent=1 // pred_region
      %169 = dma.done [#allocation15], 16
    $region81: #{tpu_custom_call.1} parent=1 // pred_fallthru
      _
    // Predicated region
    $region82: #{tpu_custom_call.1} parent=1 // pred_check
      _
    $region83: #{tpu_custom_call.1} parent=1 // pred_check_branch
      %171 = sbr.rel (0) target = $region85
    $region84: #{tpu_custom_call.1} parent=1 // pred_region
      %172 = dma.done [#allocation18], 1024
    $region85: #{tpu_custom_call.1} parent=1 // pred_fallthru
      _
    // Predicated region
    $region86: #{tpu_custom_call.1} parent=1 // pred_check
      _
    $region87: #{tpu_custom_call.1} parent=1 // pred_check_branch
      %174 = sbr.rel (0) target = $region89
    $region88: #{tpu_custom_call.1} parent=1 // pred_region
      %175 = dma.done [#allocation18], 16
    $region89: #{tpu_custom_call.1} parent=1 // pred_fallthru
      _
    %v177 = vld [vmem:[#allocation2] sm:$0xf]
    %v178 = vld [vmem:[#allocation5] sm:$0xff]
    %v179 = vld [vmem:[#allocation5 + $0x8] sm:$0xff]
    %v180 = vld [vmem:[#allocation5 + $0x10] sm:$0xff]
    %v181 = vld [vmem:[#allocation5 + $0x18] sm:$0xff]
    %v182 = vld [vmem:[#allocation5 + $0x20] sm:$0xff]
    %v183 = vld [vmem:[#allocation5 + $0x28] sm:$0xff]
    %v184 = vld [vmem:[#allocation5 + $0x30] sm:$0xff]
    %v185 = vld [vmem:[#allocation5 + $0x38] sm:$0xff]
    %v186 = vld [vmem:[#allocation5 + $0x40] sm:$0xff]
    %v187 = vld [vmem:[#allocation5 + $0x48] sm:$0xff]
    %v188 = vld [vmem:[#allocation5 + $0x50] sm:$0xff]
    %v189 = vld [vmem:[#allocation5 + $0x58] sm:$0xff]
    %v190 = vld [vmem:[#allocation5 + $0x60] sm:$0xff]
    %v191 = vld [vmem:[#allocation5 + $0x68] sm:$0xff]
    %v192 = vld [vmem:[#allocation5 + $0x70] sm:$0xff]
    %v193 = vld [vmem:[#allocation5 + $0x78] sm:$0xff]
    %v194 = vld [vmem:[#allocation5 + $0x80] sm:$0xff]
    %v195 = vld [vmem:[#allocation5 + $0x88] sm:$0xff]
    %v196 = vld [vmem:[#allocation5 + $0x90] sm:$0xff]
    %v197 = vld [vmem:[#allocation5 + $0x98] sm:$0xff]
    %v198 = vld [vmem:[#allocation5 + $0xa0] sm:$0xff]
    %v199 = vld [vmem:[#allocation5 + $0xa8] sm:$0xff]
    %v200 = vld [vmem:[#allocation5 + $0xb0] sm:$0xff]
    %v201 = vld [vmem:[#allocation5 + $0xb8] sm:$0xff]
    %v202 = vld [vmem:[#allocation5 + $0xc0] sm:$0xff]
    %v203 = vld [vmem:[#allocation5 + $0xc8] sm:$0xff]
    %v204 = vld [vmem:[#allocation5 + $0xd0] sm:$0xff]
    %v205 = vld [vmem:[#allocation5 + $0xd8] sm:$0xff]
    %v206 = vld [vmem:[#allocation5 + $0xe0] sm:$0xff]
    %v207 = vld [vmem:[#allocation5 + $0xe8] sm:$0xff]
    %v208 = vld [vmem:[#allocation5 + $0xf0] sm:$0xff]
    %v209 = vld [vmem:[#allocation5 + $0xf8] sm:$0xff]
    %v210 = vld [vmem:[#allocation5 + $0x100] sm:$0xff]
    %v211 = vld [vmem:[#allocation5 + $0x108] sm:$0xff]
    %v212 = vld [vmem:[#allocation5 + $0x110] sm:$0xff]
    %v213 = vld [vmem:[#allocation5 + $0x118] sm:$0xff]
    %v214 = vld [vmem:[#allocation5 + $0x120] sm:$0xff]
    %v215 = vld [vmem:[#allocation5 + $0x128] sm:$0xff]
    %v216 = vld [vmem:[#allocation5 + $0x130] sm:$0xff]
    %v217 = vld [vmem:[#allocation5 + $0x138] sm:$0xff]
    %v218 = vld [vmem:[#allocation5 + $0x140] sm:$0xff]
    %v219 = vld [vmem:[#allocation5 + $0x148] sm:$0xff]
    %v220 = vld [vmem:[#allocation5 + $0x150] sm:$0xff]
    %v221 = vld [vmem:[#allocation5 + $0x158] sm:$0xff]
    %v222 = vld [vmem:[#allocation5 + $0x160] sm:$0xff]
    %v223 = vld [vmem:[#allocation5 + $0x168] sm:$0xff]
    %v224 = vld [vmem:[#allocation5 + $0x170] sm:$0xff]
    %v225 = vld [vmem:[#allocation5 + $0x178] sm:$0xff]
    %v226 = vld [vmem:[#allocation5 + $0x180] sm:$0xff]
    %v227 = vld [vmem:[#allocation5 + $0x188] sm:$0xff]
    %v228 = vld [vmem:[#allocation5 + $0x190] sm:$0xff]
    %v229 = vld [vmem:[#allocation5 + $0x198] sm:$0xff]
    %v230 = vld [vmem:[#allocation5 + $0x1a0] sm:$0xff]
    %v231 = vld [vmem:[#allocation5 + $0x1a8] sm:$0xff]
    %v232 = vld [vmem:[#allocation5 + $0x1b0] sm:$0xff]
    %v233 = vld [vmem:[#allocation5 + $0x1b8] sm:$0xff]
    %v234 = vld [vmem:[#allocation5 + $0x1c0] sm:$0xff]
    %v235 = vld [vmem:[#allocation5 + $0x1c8] sm:$0xff]
    %v236 = vld [vmem:[#allocation5 + $0x1d0] sm:$0xff]
    %v237 = vld [vmem:[#allocation5 + $0x1d8] sm:$0xff]
    %v238 = vld [vmem:[#allocation5 + $0x1e0] sm:$0xff]
    %v239 = vld [vmem:[#allocation5 + $0x1e8] sm:$0xff]
    %v240 = vld [vmem:[#allocation5 + $0x1f0] sm:$0xff]
    %v241 = vld [vmem:[#allocation5 + $0x1f8] sm:$0xff]
    %v242 = vld [vmem:[#allocation5 + $0x200] sm:$0xff]
    %v243 = vld [vmem:[#allocation5 + $0x208] sm:$0xff]
    %v244 = vld [vmem:[#allocation5 + $0x210] sm:$0xff]
    %v245 = vld [vmem:[#allocation5 + $0x218] sm:$0xff]
    %v246 = vld [vmem:[#allocation5 + $0x220] sm:$0xff]
    %v247 = vld [vmem:[#allocation5 + $0x228] sm:$0xff]
    %v248 = vld [vmem:[#allocation5 + $0x230] sm:$0xff]
    %v249 = vld [vmem:[#allocation5 + $0x238] sm:$0xff]
    %v250 = vld [vmem:[#allocation5 + $0x240] sm:$0xff]
    %v251 = vld [vmem:[#allocation5 + $0x248] sm:$0xff]
    %v252 = vld [vmem:[#allocation5 + $0x250] sm:$0xff]
    %v253 = vld [vmem:[#allocation5 + $0x258] sm:$0xff]
    %v254 = vld [vmem:[#allocation5 + $0x260] sm:$0xff]
    %v255 = vld [vmem:[#allocation5 + $0x268] sm:$0xff]
    %v256 = vld [vmem:[#allocation5 + $0x270] sm:$0xff]
    %v257 = vld [vmem:[#allocation5 + $0x278] sm:$0xff]
    %v258 = vld [vmem:[#allocation5 + $0x280] sm:$0xff]
    %v259 = vld [vmem:[#allocation5 + $0x288] sm:$0xff]
    %v260 = vld [vmem:[#allocation5 + $0x290] sm:$0xff]
    %v261 = vld [vmem:[#allocation5 + $0x298] sm:$0xff]
    %v262 = vld [vmem:[#allocation5 + $0x2a0] sm:$0xff]
    %v263 = vld [vmem:[#allocation5 + $0x2a8] sm:$0xff]
    %v264 = vld [vmem:[#allocation5 + $0x2b0] sm:$0xff]
    %v265 = vld [vmem:[#allocation5 + $0x2b8] sm:$0xff]
    %v266 = vld [vmem:[#allocation5 + $0x2c0] sm:$0xff]
    %v267 = vld [vmem:[#allocation5 + $0x2c8] sm:$0xff]
    %v268 = vld [vmem:[#allocation5 + $0x2d0] sm:$0xff]
    %v269 = vld [vmem:[#allocation5 + $0x2d8] sm:$0xff]
    %v270 = vld [vmem:[#allocation5 + $0x2e0] sm:$0xff]
    %v271 = vld [vmem:[#allocation5 + $0x2e8] sm:$0xff]
    %v272 = vld [vmem:[#allocation5 + $0x2f0] sm:$0xff]
    %v273 = vld [vmem:[#allocation5 + $0x2f8] sm:$0xff]
    %v274 = vld [vmem:[#allocation5 + $0x300] sm:$0xff]
    %v275 = vld [vmem:[#allocation5 + $0x308] sm:$0xff]
    %v276 = vld [vmem:[#allocation5 + $0x310] sm:$0xff]
    %v277 = vld [vmem:[#allocation5 + $0x318] sm:$0xff]
    %v278 = vld [vmem:[#allocation5 + $0x320] sm:$0xff]
    %v279 = vld [vmem:[#allocation5 + $0x328] sm:$0xff]
    %v280 = vld [vmem:[#allocation5 + $0x330] sm:$0xff]
    %v281 = vld [vmem:[#allocation5 + $0x338] sm:$0xff]
    %v282 = vld [vmem:[#allocation5 + $0x340] sm:$0xff]
    %v283 = vld [vmem:[#allocation5 + $0x348] sm:$0xff]
    %v284 = vld [vmem:[#allocation5 + $0x350] sm:$0xff]
    %v285 = vld [vmem:[#allocation5 + $0x358] sm:$0xff]
    %v286 = vld [vmem:[#allocation5 + $0x360] sm:$0xff]
    %v287 = vld [vmem:[#allocation5 + $0x368] sm:$0xff]
    %v288 = vld [vmem:[#allocation5 + $0x370] sm:$0xff]
    %v289 = vld [vmem:[#allocation5 + $0x378] sm:$0xff]
    %v290 = vld [vmem:[#allocation5 + $0x380] sm:$0xff]
    %v291 = vld [vmem:[#allocation5 + $0x388] sm:$0xff]
    %v292 = vld [vmem:[#allocation5 + $0x390] sm:$0xff]
    %v293 = vld [vmem:[#allocation5 + $0x398] sm:$0xff]
    %v294 = vld [vmem:[#allocation5 + $0x3a0] sm:$0xff]
    %v295 = vld [vmem:[#allocation5 + $0x3a8] sm:$0xff]
    %v296 = vld [vmem:[#allocation5 + $0x3b0] sm:$0xff]
    %v297 = vld [vmem:[#allocation5 + $0x3b8] sm:$0xff]
    %v298 = vld [vmem:[#allocation5 + $0x3c0] sm:$0xff]
    %v299 = vld [vmem:[#allocation5 + $0x3c8] sm:$0xff]
    %v300 = vld [vmem:[#allocation5 + $0x3d0] sm:$0xff]
    %v301 = vld [vmem:[#allocation5 + $0x3d8] sm:$0xff]
    %v302 = vld [vmem:[#allocation5 + $0x3e0] sm:$0xff]
    %v303 = vld [vmem:[#allocation5 + $0x3e8] sm:$0xff]
    %v304 = vld [vmem:[#allocation5 + $0x3f0] sm:$0xff]
    %v305 = vld [vmem:[#allocation5 + $0x3f8] sm:$0xff]
    %v306 = vld [vmem:[#allocation7] sm:$0xff]
    %v307 = vld [vmem:[#allocation7 + $0x8] sm:$0xff]
    %v310 = vlaneseq
    %v311 = vshrl.u32 %v310, 7
    %v312 = vsub.s32 0, %v311
    %v313 = vrot.slane %v306, %v312
    %v314 = vlaneseq
    %v315 = vshrl.u32 %v314, 7
    %v316 = vsub.s32 1, %v315
    %v317 = vrot.slane %v306, %v316
    %v318 = vlaneseq
    %v319 = vshrl.u32 %v318, 7
    %v320 = vsub.s32 2, %v319
    %v321 = vrot.slane %v306, %v320
    %v322 = vlaneseq
    %v323 = vshrl.u32 %v322, 7
    %v324 = vsub.s32 3, %v323
    %v325 = vrot.slane %v306, %v324
    %v326 = vlaneseq
    %v327 = vshrl.u32 %v326, 7
    %v328 = vsub.s32 4, %v327
    %v329 = vrot.slane %v306, %v328
    %v330 = vlaneseq
    %v331 = vshrl.u32 %v330, 7
    %v332 = vsub.s32 5, %v331
    %v333 = vrot.slane %v306, %v332
    %v334 = vlaneseq
    %v335 = vshrl.u32 %v334, 7
    %v336 = vsub.s32 6, %v335
    %v337 = vrot.slane %v306, %v336
    %v338 = vlaneseq
    %v339 = vshrl.u32 %v338, 7
    %v340 = vsub.s32 7, %v339
    %v341 = vrot.slane %v306, %v340
    %v342 = vlaneseq
    %v343 = vshrl.u32 %v342, 7
    %v344 = vsub.s32 0, %v343
    %v345 = vrot.slane %v307, %v344
    %v346 = vlaneseq
    %v347 = vshrl.u32 %v346, 7
    %v348 = vsub.s32 1, %v347
    %v349 = vrot.slane %v307, %v348
    %v350 = vlaneseq
    %v351 = vshrl.u32 %v350, 7
    %v352 = vsub.s32 2, %v351
    %v353 = vrot.slane %v307, %v352
    %v354 = vlaneseq
    %v355 = vshrl.u32 %v354, 7
    %v356 = vsub.s32 3, %v355
    %v357 = vrot.slane %v307, %v356
    %v358 = vlaneseq
    %v359 = vshrl.u32 %v358, 7
    %v360 = vsub.s32 4, %v359
    %v361 = vrot.slane %v307, %v360
    %v362 = vlaneseq
    %v363 = vshrl.u32 %v362, 7
    %v364 = vsub.s32 5, %v363
    %v365 = vrot.slane %v307, %v364
    %v366 = vlaneseq
    %v367 = vshrl.u32 %v366, 7
    %v368 = vsub.s32 6, %v367
    %v369 = vrot.slane %v307, %v368
    %v370 = vlaneseq
    %v371 = vshrl.u32 %v370, 7
    %v372 = vsub.s32 7, %v371
    %v373 = vrot.slane %v307, %v372
    %v518 = vunpack.c.l.b16 %v178
    %v519 = vunpack.c.h.b16 %v178
    %v520 = vunpack.c.l.b16 %v179
    %v521 = vunpack.c.h.b16 %v179
    %v522 = vunpack.c.l.b16 %v180
    %v523 = vunpack.c.h.b16 %v180
    %v524 = vunpack.c.l.b16 %v181
    %v525 = vunpack.c.h.b16 %v181
    %v526 = vunpack.c.l.b16 %v182
    %v527 = vunpack.c.h.b16 %v182
    %v528 = vunpack.c.l.b16 %v183
    %v529 = vunpack.c.h.b16 %v183
    %v530 = vunpack.c.l.b16 %v184
    %v531 = vunpack.c.h.b16 %v184
    %v532 = vunpack.c.l.b16 %v185
    %v533 = vunpack.c.h.b16 %v185
    %v534 = vunpack.c.l.b16 %v186
    %v535 = vunpack.c.h.b16 %v186
    %v536 = vunpack.c.l.b16 %v187
    %v537 = vunpack.c.h.b16 %v187
    %v538 = vunpack.c.l.b16 %v188
    %v539 = vunpack.c.h.b16 %v188
    %v540 = vunpack.c.l.b16 %v189
    %v541 = vunpack.c.h.b16 %v189
    %v542 = vunpack.c.l.b16 %v190
    %v543 = vunpack.c.h.b16 %v190
    %v544 = vunpack.c.l.b16 %v191
    %v545 = vunpack.c.h.b16 %v191
    %v546 = vunpack.c.l.b16 %v192
    %v547 = vunpack.c.h.b16 %v192
    %v548 = vunpack.c.l.b16 %v193
    %v549 = vunpack.c.h.b16 %v193
    %v550 = vunpack.c.l.b16 %v194
    %v551 = vunpack.c.h.b16 %v194
    %v552 = vunpack.c.l.b16 %v195
    %v553 = vunpack.c.h.b16 %v195
    %v554 = vunpack.c.l.b16 %v196
    %v555 = vunpack.c.h.b16 %v196
    %v556 = vunpack.c.l.b16 %v197
    %v557 = vunpack.c.h.b16 %v197
    %v558 = vunpack.c.l.b16 %v198
    %v559 = vunpack.c.h.b16 %v198
    %v560 = vunpack.c.l.b16 %v199
    %v561 = vunpack.c.h.b16 %v199
    %v562 = vunpack.c.l.b16 %v200
    %v563 = vunpack.c.h.b16 %v200
    %v564 = vunpack.c.l.b16 %v201
    %v565 = vunpack.c.h.b16 %v201
    %v566 = vunpack.c.l.b16 %v202
    %v567 = vunpack.c.h.b16 %v202
    %v568 = vunpack.c.l.b16 %v203
    %v569 = vunpack.c.h.b16 %v203
    %v570 = vunpack.c.l.b16 %v204
    %v571 = vunpack.c.h.b16 %v204
    %v572 = vunpack.c.l.b16 %v205
    %v573 = vunpack.c.h.b16 %v205
    %v574 = vunpack.c.l.b16 %v206
    %v575 = vunpack.c.h.b16 %v206
    %v576 = vunpack.c.l.b16 %v207
    %v577 = vunpack.c.h.b16 %v207
    %v578 = vunpack.c.l.b16 %v208
    %v579 = vunpack.c.h.b16 %v208
    %v580 = vunpack.c.l.b16 %v209
    %v581 = vunpack.c.h.b16 %v209
    %v582 = vunpack.c.l.b16 %v210
    %v583 = vunpack.c.h.b16 %v210
    %v584 = vunpack.c.l.b16 %v211
    %v585 = vunpack.c.h.b16 %v211
    %v586 = vunpack.c.l.b16 %v212
    %v587 = vunpack.c.h.b16 %v212
    %v588 = vunpack.c.l.b16 %v213
    %v589 = vunpack.c.h.b16 %v213
    %v590 = vunpack.c.l.b16 %v214
    %v591 = vunpack.c.h.b16 %v214
    %v592 = vunpack.c.l.b16 %v215
    %v593 = vunpack.c.h.b16 %v215
    %v594 = vunpack.c.l.b16 %v216
    %v595 = vunpack.c.h.b16 %v216
    %v596 = vunpack.c.l.b16 %v217
    %v597 = vunpack.c.h.b16 %v217
    %v598 = vunpack.c.l.b16 %v218
    %v599 = vunpack.c.h.b16 %v218
    %v600 = vunpack.c.l.b16 %v219
    %v601 = vunpack.c.h.b16 %v219
    %v602 = vunpack.c.l.b16 %v220
    %v603 = vunpack.c.h.b16 %v220
    %v604 = vunpack.c.l.b16 %v221
    %v605 = vunpack.c.h.b16 %v221
    %v606 = vunpack.c.l.b16 %v222
    %v607 = vunpack.c.h.b16 %v222
    %v608 = vunpack.c.l.b16 %v223
    %v609 = vunpack.c.h.b16 %v223
    %v610 = vunpack.c.l.b16 %v224
    %v611 = vunpack.c.h.b16 %v224
    %v612 = vunpack.c.l.b16 %v225
    %v613 = vunpack.c.h.b16 %v225
    %v614 = vunpack.c.l.b16 %v226
    %v615 = vunpack.c.h.b16 %v226
    %v616 = vunpack.c.l.b16 %v227
    %v617 = vunpack.c.h.b16 %v227
    %v618 = vunpack.c.l.b16 %v228
    %v619 = vunpack.c.h.b16 %v228
    %v620 = vunpack.c.l.b16 %v229
    %v621 = vunpack.c.h.b16 %v229
    %v622 = vunpack.c.l.b16 %v230
    %v623 = vunpack.c.h.b16 %v230
    %v624 = vunpack.c.l.b16 %v231
    %v625 = vunpack.c.h.b16 %v231
    %v626 = vunpack.c.l.b16 %v232
    %v627 = vunpack.c.h.b16 %v232
    %v628 = vunpack.c.l.b16 %v233
    %v629 = vunpack.c.h.b16 %v233
    %v630 = vunpack.c.l.b16 %v234
    %v631 = vunpack.c.h.b16 %v234
    %v632 = vunpack.c.l.b16 %v235
    %v633 = vunpack.c.h.b16 %v235
    %v634 = vunpack.c.l.b16 %v236
    %v635 = vunpack.c.h.b16 %v236
    %v636 = vunpack.c.l.b16 %v237
    %v637 = vunpack.c.h.b16 %v237
    %v638 = vunpack.c.l.b16 %v238
    %v639 = vunpack.c.h.b16 %v238
    %v640 = vunpack.c.l.b16 %v239
    %v641 = vunpack.c.h.b16 %v239
    %v642 = vunpack.c.l.b16 %v240
    %v643 = vunpack.c.h.b16 %v240
    %v644 = vunpack.c.l.b16 %v241
    %v645 = vunpack.c.h.b16 %v241
    %v646 = vunpack.c.l.b16 %v242
    %v647 = vunpack.c.h.b16 %v242
    %v648 = vunpack.c.l.b16 %v243
    %v649 = vunpack.c.h.b16 %v243
    %v650 = vunpack.c.l.b16 %v244
    %v651 = vunpack.c.h.b16 %v244
    %v652 = vunpack.c.l.b16 %v245
    %v653 = vunpack.c.h.b16 %v245
    %v654 = vunpack.c.l.b16 %v246
    %v655 = vunpack.c.h.b16 %v246
    %v656 = vunpack.c.l.b16 %v247
    %v657 = vunpack.c.h.b16 %v247
    %v658 = vunpack.c.l.b16 %v248
    %v659 = vunpack.c.h.b16 %v248
    %v660 = vunpack.c.l.b16 %v249
    %v661 = vunpack.c.h.b16 %v249
    %v662 = vunpack.c.l.b16 %v250
    %v663 = vunpack.c.h.b16 %v250
    %v664 = vunpack.c.l.b16 %v251
    %v665 = vunpack.c.h.b16 %v251
    %v666 = vunpack.c.l.b16 %v252
    %v667 = vunpack.c.h.b16 %v252
    %v668 = vunpack.c.l.b16 %v253
    %v669 = vunpack.c.h.b16 %v253
    %v670 = vunpack.c.l.b16 %v254
    %v671 = vunpack.c.h.b16 %v254
    %v672 = vunpack.c.l.b16 %v255
    %v673 = vunpack.c.h.b16 %v255
    %v674 = vunpack.c.l.b16 %v256
    %v675 = vunpack.c.h.b16 %v256
    %v676 = vunpack.c.l.b16 %v257
    %v677 = vunpack.c.h.b16 %v257
    %v678 = vunpack.c.l.b16 %v258
    %v679 = vunpack.c.h.b16 %v258
    %v680 = vunpack.c.l.b16 %v259
    %v681 = vunpack.c.h.b16 %v259
    %v682 = vunpack.c.l.b16 %v260
    %v683 = vunpack.c.h.b16 %v260
    %v684 = vunpack.c.l.b16 %v261
    %v685 = vunpack.c.h.b16 %v261
    %v686 = vunpack.c.l.b16 %v262
    %v687 = vunpack.c.h.b16 %v262
    %v688 = vunpack.c.l.b16 %v263
    %v689 = vunpack.c.h.b16 %v263
    %v690 = vunpack.c.l.b16 %v264
    %v691 = vunpack.c.h.b16 %v264
    %v692 = vunpack.c.l.b16 %v265
    %v693 = vunpack.c.h.b16 %v265
    %v694 = vunpack.c.l.b16 %v266
    %v695 = vunpack.c.h.b16 %v266
    %v696 = vunpack.c.l.b16 %v267
    %v697 = vunpack.c.h.b16 %v267
    %v698 = vunpack.c.l.b16 %v268
    %v699 = vunpack.c.h.b16 %v268
    %v700 = vunpack.c.l.b16 %v269
    %v701 = vunpack.c.h.b16 %v269
    %v702 = vunpack.c.l.b16 %v270
    %v703 = vunpack.c.h.b16 %v270
    %v704 = vunpack.c.l.b16 %v271
    %v705 = vunpack.c.h.b16 %v271
    %v706 = vunpack.c.l.b16 %v272
    %v707 = vunpack.c.h.b16 %v272
    %v708 = vunpack.c.l.b16 %v273
    %v709 = vunpack.c.h.b16 %v273
    %v710 = vunpack.c.l.b16 %v274
    %v711 = vunpack.c.h.b16 %v274
    %v712 = vunpack.c.l.b16 %v275
    %v713 = vunpack.c.h.b16 %v275
    %v714 = vunpack.c.l.b16 %v276
    %v715 = vunpack.c.h.b16 %v276
    %v716 = vunpack.c.l.b16 %v277
    %v717 = vunpack.c.h.b16 %v277
    %v718 = vunpack.c.l.b16 %v278
    %v719 = vunpack.c.h.b16 %v278
    %v720 = vunpack.c.l.b16 %v279
    %v721 = vunpack.c.h.b16 %v279
    %v722 = vunpack.c.l.b16 %v280
    %v723 = vunpack.c.h.b16 %v280
    %v724 = vunpack.c.l.b16 %v281
    %v725 = vunpack.c.h.b16 %v281
    %v726 = vunpack.c.l.b16 %v282
    %v727 = vunpack.c.h.b16 %v282
    %v728 = vunpack.c.l.b16 %v283
    %v729 = vunpack.c.h.b16 %v283
    %v730 = vunpack.c.l.b16 %v284
    %v731 = vunpack.c.h.b16 %v284
    %v732 = vunpack.c.l.b16 %v285
    %v733 = vunpack.c.h.b16 %v285
    %v734 = vunpack.c.l.b16 %v286
    %v735 = vunpack.c.h.b16 %v286
    %v736 = vunpack.c.l.b16 %v287
    %v737 = vunpack.c.h.b16 %v287
    %v738 = vunpack.c.l.b16 %v288
    %v739 = vunpack.c.h.b16 %v288
    %v740 = vunpack.c.l.b16 %v289
    %v741 = vunpack.c.h.b16 %v289
    %v742 = vunpack.c.l.b16 %v290
    %v743 = vunpack.c.h.b16 %v290
    %v744 = vunpack.c.l.b16 %v291
    %v745 = vunpack.c.h.b16 %v291
    %v746 = vunpack.c.l.b16 %v292
    %v747 = vunpack.c.h.b16 %v292
    %v748 = vunpack.c.l.b16 %v293
    %v749 = vunpack.c.h.b16 %v293
    %v750 = vunpack.c.l.b16 %v294
    %v751 = vunpack.c.h.b16 %v294
    %v752 = vunpack.c.l.b16 %v295
    %v753 = vunpack.c.h.b16 %v295
    %v754 = vunpack.c.l.b16 %v296
    %v755 = vunpack.c.h.b16 %v296
    %v756 = vunpack.c.l.b16 %v297
    %v757 = vunpack.c.h.b16 %v297
    %v758 = vunpack.c.l.b16 %v298
    %v759 = vunpack.c.h.b16 %v298
    %v760 = vunpack.c.l.b16 %v299
    %v761 = vunpack.c.h.b16 %v299
    %v762 = vunpack.c.l.b16 %v300
    %v763 = vunpack.c.h.b16 %v300
    %v764 = vunpack.c.l.b16 %v301
    %v765 = vunpack.c.h.b16 %v301
    %v766 = vunpack.c.l.b16 %v302
    %v767 = vunpack.c.h.b16 %v302
    %v768 = vunpack.c.l.b16 %v303
    %v769 = vunpack.c.h.b16 %v303
    %v770 = vunpack.c.l.b16 %v304
    %v771 = vunpack.c.h.b16 %v304
    %v772 = vunpack.c.l.b16 %v305
    %v773 = vunpack.c.h.b16 %v305
    %v774 = vpack.c.b16 %v534, %v518
    %v775 = vpack.c.b16 %v535, %v519
    %v776 = vpack.c.b16 %v536, %v520
    %v777 = vpack.c.b16 %v537, %v521
    %v778 = vpack.c.b16 %v538, %v522
    %v779 = vpack.c.b16 %v539, %v523
    %v780 = vpack.c.b16 %v540, %v524
    %v781 = vpack.c.b16 %v541, %v525
    %v782 = vpack.c.b16 %v542, %v526
    %v783 = vpack.c.b16 %v543, %v527
    %v784 = vpack.c.b16 %v544, %v528
    %v785 = vpack.c.b16 %v545, %v529
    %v786 = vpack.c.b16 %v546, %v530
    %v787 = vpack.c.b16 %v547, %v531
    %v788 = vpack.c.b16 %v548, %v532
    %v789 = vpack.c.b16 %v549, %v533
    %v790 = vpack.c.b16 %v566, %v550
    %v791 = vpack.c.b16 %v567, %v551
    %v792 = vpack.c.b16 %v568, %v552
    %v793 = vpack.c.b16 %v569, %v553
    %v794 = vpack.c.b16 %v570, %v554
    %v795 = vpack.c.b16 %v571, %v555
    %v796 = vpack.c.b16 %v572, %v556
    %v797 = vpack.c.b16 %v573, %v557
    %v798 = vpack.c.b16 %v574, %v558
    %v799 = vpack.c.b16 %v575, %v559
    %v800 = vpack.c.b16 %v576, %v560
    %v801 = vpack.c.b16 %v577, %v561
    %v802 = vpack.c.b16 %v578, %v562
    %v803 = vpack.c.b16 %v579, %v563
    %v804 = vpack.c.b16 %v580, %v564
    %v805 = vpack.c.b16 %v581, %v565
    %v806 = vpack.c.b16 %v598, %v582
    %v807 = vpack.c.b16 %v599, %v583
    %v808 = vpack.c.b16 %v600, %v584
    %v809 = vpack.c.b16 %v601, %v585
    %v810 = vpack.c.b16 %v602, %v586
    %v811 = vpack.c.b16 %v603, %v587
    %v812 = vpack.c.b16 %v604, %v588
    %v813 = vpack.c.b16 %v605, %v589
    %v814 = vpack.c.b16 %v606, %v590
    %v815 = vpack.c.b16 %v607, %v591
    %v816 = vpack.c.b16 %v608, %v592
    %v817 = vpack.c.b16 %v609, %v593
    %v818 = vpack.c.b16 %v610, %v594
    %v819 = vpack.c.b16 %v611, %v595
    %v820 = vpack.c.b16 %v612, %v596
    %v821 = vpack.c.b16 %v613, %v597
    %v822 = vpack.c.b16 %v630, %v614
    %v823 = vpack.c.b16 %v631, %v615
    %v824 = vpack.c.b16 %v632, %v616
    %v825 = vpack.c.b16 %v633, %v617
    %v826 = vpack.c.b16 %v634, %v618
    %v827 = vpack.c.b16 %v635, %v619
    %v828 = vpack.c.b16 %v636, %v620
    %v829 = vpack.c.b16 %v637, %v621
    %v830 = vpack.c.b16 %v638, %v622
    %v831 = vpack.c.b16 %v639, %v623
    %v832 = vpack.c.b16 %v640, %v624
    %v833 = vpack.c.b16 %v641, %v625
    %v834 = vpack.c.b16 %v642, %v626
    %v835 = vpack.c.b16 %v643, %v627
    %v836 = vpack.c.b16 %v644, %v628
    %v837 = vpack.c.b16 %v645, %v629
    %v838 = vpack.c.b16 %v662, %v646
    %v839 = vpack.c.b16 %v663, %v647
    %v840 = vpack.c.b16 %v664, %v648
    %v841 = vpack.c.b16 %v665, %v649
    %v842 = vpack.c.b16 %v666, %v650
    %v843 = vpack.c.b16 %v667, %v651
    %v844 = vpack.c.b16 %v668, %v652
    %v845 = vpack.c.b16 %v669, %v653
    %v846 = vpack.c.b16 %v670, %v654
    %v847 = vpack.c.b16 %v671, %v655
    %v848 = vpack.c.b16 %v672, %v656
    %v849 = vpack.c.b16 %v673, %v657
    %v850 = vpack.c.b16 %v674, %v658
    %v851 = vpack.c.b16 %v675, %v659
    %v852 = vpack.c.b16 %v676, %v660
    %v853 = vpack.c.b16 %v677, %v661
    %v854 = vpack.c.b16 %v694, %v678
    %v855 = vpack.c.b16 %v695, %v679
    %v856 = vpack.c.b16 %v696, %v680
    %v857 = vpack.c.b16 %v697, %v681
    %v858 = vpack.c.b16 %v698, %v682
    %v859 = vpack.c.b16 %v699, %v683
    %v860 = vpack.c.b16 %v700, %v684
    %v861 = vpack.c.b16 %v701, %v685
    %v862 = vpack.c.b16 %v702, %v686
    %v863 = vpack.c.b16 %v703, %v687
    %v864 = vpack.c.b16 %v704, %v688
    %v865 = vpack.c.b16 %v705, %v689
    %v866 = vpack.c.b16 %v706, %v690
    %v867 = vpack.c.b16 %v707, %v691
    %v868 = vpack.c.b16 %v708, %v692
    %v869 = vpack.c.b16 %v709, %v693
    %v870 = vpack.c.b16 %v726, %v710
    %v871 = vpack.c.b16 %v727, %v711
    %v872 = vpack.c.b16 %v728, %v712
    %v873 = vpack.c.b16 %v729, %v713
    %v874 = vpack.c.b16 %v730, %v714
    %v875 = vpack.c.b16 %v731, %v715
    %v876 = vpack.c.b16 %v732, %v716
    %v877 = vpack.c.b16 %v733, %v717
    %v878 = vpack.c.b16 %v734, %v718
    %v879 = vpack.c.b16 %v735, %v719
    %v880 = vpack.c.b16 %v736, %v720
    %v881 = vpack.c.b16 %v737, %v721
    %v882 = vpack.c.b16 %v738, %v722
    %v883 = vpack.c.b16 %v739, %v723
    %v884 = vpack.c.b16 %v740, %v724
    %v885 = vpack.c.b16 %v741, %v725
    %v886 = vpack.c.b16 %v758, %v742
    %v887 = vpack.c.b16 %v759, %v743
    %v888 = vpack.c.b16 %v760, %v744
    %v889 = vpack.c.b16 %v761, %v745
    %v890 = vpack.c.b16 %v762, %v746
    %v891 = vpack.c.b16 %v763, %v747
    %v892 = vpack.c.b16 %v764, %v748
    %v893 = vpack.c.b16 %v765, %v749
    %v894 = vpack.c.b16 %v766, %v750
    %v895 = vpack.c.b16 %v767, %v751
    %v896 = vpack.c.b16 %v768, %v752
    %v897 = vpack.c.b16 %v769, %v753
    %v898 = vpack.c.b16 %v770, %v754
    %v899 = vpack.c.b16 %v771, %v755
    %v900 = vpack.c.b16 %v772, %v756
    %v901 = vpack.c.b16 %v773, %v757
    %1030 = vmatprep.subr.bf16.mxu0 %v775
    %1031 = vmatpush1.bf16.msra.mxu0 %v774
    %1032 = vmatprep.subr.bf16.mxu0 %v791
    %1033 = vmatpush1.bf16.msra.mxu0 %v790
    %1034 = vmatprep.subr.bf16.mxu0 %v807
    %1035 = vmatpush1.bf16.msra.mxu0 %v806
    %1036 = vmatprep.subr.bf16.mxu0 %v823
    %1037 = vmatpush1.bf16.msra.mxu0 %v822
    %1038 = vmatprep.subr.bf16.mxu0 %v839
    %1039 = vmatpush1.bf16.msra.mxu0 %v838
    %1040 = vmatprep.subr.bf16.mxu0 %v855
    %1041 = vmatpush1.bf16.msra.mxu0 %v854
    %1042 = vmatprep.subr.bf16.mxu0 %v871
    %1043 = vmatpush1.bf16.msra.mxu0 %v870
    %1044 = vmatprep.subr.bf16.mxu0 %v887
    %1045 = vmatpush1.bf16.msra.mxu0 %v886
    %1046 = vmatprep.subr.bf16.mxu0 0
    %1047 = vmatpush1.bf16.msra.mxu0 0
    %1048 = vmatprep.subr.bf16.mxu0 0
    %1049 = vmatpush1.bf16.msra.mxu0 0
    %1050 = vmatprep.subr.bf16.mxu0 0
    %1051 = vmatpush1.bf16.msra.mxu0 0
    %1052 = vmatprep.subr.bf16.mxu0 0
    %1053 = vmatpush1.bf16.msra.mxu0 0
    %1054 = vmatprep.subr.bf16.mxu0 0
    %1055 = vmatpush1.bf16.msra.mxu0 0
    %1056 = vmatprep.subr.bf16.mxu0 0
    %1057 = vmatpush1.bf16.msra.mxu0 0
    %1058 = vmatprep.subr.bf16.mxu0 0
    %1059 = vmatpush1.bf16.msra.mxu0 0
    %1060 = vmatprep.subr.bf16.mxu0 0
    %1061 = vmatpush1.bf16.msra.mxu0 0
    %1062 = vmatprep.mubr.bf16.mxu0 0
    %1063 = vmatmul.mubr.bf16.gmra.mrb[0].mxu0 %v177
    %v1064 = vpop.f32.mrb[0].mxu0
    %v1065 = vadd.f32 %v313, %v1064
    %v1066 = vpop.f32.mrb[0].mxu0
    %v1067 = vadd.f32 %v317, %v1066
    %v1068 = vpop.f32.mrb[0].mxu0
    %v1069 = vpop.f32.mrb[0].mxu0
    %1070 = vdwg.mxu0
    %1071 = vmatprep.subr.bf16.mxu0 %v777
    %1072 = vmatpush1.bf16.msra.mxu0 %v776
    %1073 = vmatprep.subr.bf16.mxu0 %v793
    %1074 = vmatpush1.bf16.msra.mxu0 %v792
    %1075 = vmatprep.subr.bf16.mxu0 %v809
    %1076 = vmatpush1.bf16.msra.mxu0 %v808
    %1077 = vmatprep.subr.bf16.mxu0 %v825
    %1078 = vmatpush1.bf16.msra.mxu0 %v824
    %1079 = vmatprep.subr.bf16.mxu0 %v841
    %1080 = vmatpush1.bf16.msra.mxu0 %v840
    %1081 = vmatprep.subr.bf16.mxu0 %v857
    %1082 = vmatpush1.bf16.msra.mxu0 %v856
    %1083 = vmatprep.subr.bf16.mxu0 %v873
    %1084 = vmatpush1.bf16.msra.mxu0 %v872
    %1085 = vmatprep.subr.bf16.mxu0 %v889
    %1086 = vmatpush1.bf16.msra.mxu0 %v888
    %1087 = vmatprep.subr.bf16.mxu0 0
    %1088 = vmatpush1.bf16.msra.mxu0 0
    %1089 = vmatprep.subr.bf16.mxu0 0
    %1090 = vmatpush1.bf16.msra.mxu0 0
    %1091 = vmatprep.subr.bf16.mxu0 0
    %1092 = vmatpush1.bf16.msra.mxu0 0
    %1093 = vmatprep.subr.bf16.mxu0 0
    %1094 = vmatpush1.bf16.msra.mxu0 0
    %1095 = vmatprep.subr.bf16.mxu0 0
    %1096 = vmatpush1.bf16.msra.mxu0 0
    %1097 = vmatprep.subr.bf16.mxu0 0
    %1098 = vmatpush1.bf16.msra.mxu0 0
    %1099 = vmatprep.subr.bf16.mxu0 0
    %1100 = vmatpush1.bf16.msra.mxu0 0
    %1101 = vmatprep.subr.bf16.mxu0 0
    %1102 = vmatpush1.bf16.msra.mxu0 0
    %1103 = vmatprep.mubr.bf16.mxu0 0
    %1104 = vmatmul.mubr.bf16.gmra.mrb[0].mxu0 %v177
    %v1105 = vpop.f32.mrb[0].mxu0
    %v1106 = vadd.f32 %v321, %v1105
    %v1107 = vpop.f32.mrb[0].mxu0
    %v1108 = vadd.f32 %v325, %v1107
    %v1109 = vpop.f32.mrb[0].mxu0
    %v1110 = vpop.f32.mrb[0].mxu0
    %1111 = vdwg.mxu0
    %1112 = vmatprep.subr.bf16.mxu0 %v779
    %1113 = vmatpush1.bf16.msra.mxu0 %v778
    %1114 = vmatprep.subr.bf16.mxu0 %v795
    %1115 = vmatpush1.bf16.msra.mxu0 %v794
    %1116 = vmatprep.subr.bf16.mxu0 %v811
    %1117 = vmatpush1.bf16.msra.mxu0 %v810
    %1118 = vmatprep.subr.bf16.mxu0 %v827
    %1119 = vmatpush1.bf16.msra.mxu0 %v826
    %1120 = vmatprep.subr.bf16.mxu0 %v843
    %1121 = vmatpush1.bf16.msra.mxu0 %v842
    %1122 = vmatprep.subr.bf16.mxu0 %v859
    %1123 = vmatpush1.bf16.msra.mxu0 %v858
    %1124 = vmatprep.subr.bf16.mxu0 %v875
    %1125 = vmatpush1.bf16.msra.mxu0 %v874
    %1126 = vmatprep.subr.bf16.mxu0 %v891
    %1127 = vmatpush1.bf16.msra.mxu0 %v890
    %1128 = vmatprep.subr.bf16.mxu0 0
    %1129 = vmatpush1.bf16.msra.mxu0 0
    %1130 = vmatprep.subr.bf16.mxu0 0
    %1131 = vmatpush1.bf16.msra.mxu0 0
    %1132 = vmatprep.subr.bf16.mxu0 0
    %1133 = vmatpush1.bf16.msra.mxu0 0
    %1134 = vmatprep.subr.bf16.mxu0 0
    %1135 = vmatpush1.bf16.msra.mxu0 0
    %1136 = vmatprep.subr.bf16.mxu0 0
    %1137 = vmatpush1.bf16.msra.mxu0 0
    %1138 = vmatprep.subr.bf16.mxu0 0
    %1139 = vmatpush1.bf16.msra.mxu0 0
    %1140 = vmatprep.subr.bf16.mxu0 0
    %1141 = vmatpush1.bf16.msra.mxu0 0
    %1142 = vmatprep.subr.bf16.mxu0 0
    %1143 = vmatpush1.bf16.msra.mxu0 0
    %1144 = vmatprep.mubr.bf16.mxu0 0
    %1145 = vmatmul.mubr.bf16.gmra.mrb[0].mxu0 %v177
    %v1146 = vpop.f32.mrb[0].mxu0
    %v1147 = vadd.f32 %v329, %v1146
    %v1148 = vpop.f32.mrb[0].mxu0
    %v1149 = vadd.f32 %v333, %v1148
    %v1150 = vpop.f32.mrb[0].mxu0
    %v1151 = vpop.f32.mrb[0].mxu0
    %1152 = vdwg.mxu0
    %1153 = vmatprep.subr.bf16.mxu0 %v781
    %1154 = vmatpush1.bf16.msra.mxu0 %v780
    %1155 = vmatprep.subr.bf16.mxu0 %v797
    %1156 = vmatpush1.bf16.msra.mxu0 %v796
    %1157 = vmatprep.subr.bf16.mxu0 %v813
    %1158 = vmatpush1.bf16.msra.mxu0 %v812
    %1159 = vmatprep.subr.bf16.mxu0 %v829
    %1160 = vmatpush1.bf16.msra.mxu0 %v828
    %1161 = vmatprep.subr.bf16.mxu0 %v845
    %1162 = vmatpush1.bf16.msra.mxu0 %v844
    %1163 = vmatprep.subr.bf16.mxu0 %v861
    %1164 = vmatpush1.bf16.msra.mxu0 %v860
    %1165 = vmatprep.subr.bf16.mxu0 %v877
    %1166 = vmatpush1.bf16.msra.mxu0 %v876
    %1167 = vmatprep.subr.bf16.mxu0 %v893
    %1168 = vmatpush1.bf16.msra.mxu0 %v892
    %1169 = vmatprep.subr.bf16.mxu0 0
    %1170 = vmatpush1.bf16.msra.mxu0 0
    %1171 = vmatprep.subr.bf16.mxu0 0
    %1172 = vmatpush1.bf16.msra.mxu0 0
    %1173 = vmatprep.subr.bf16.mxu0 0
    %1174 = vmatpush1.bf16.msra.mxu0 0
    %1175 = vmatprep.subr.bf16.mxu0 0
    %1176 = vmatpush1.bf16.msra.mxu0 0
    %1177 = vmatprep.subr.bf16.mxu0 0
    %1178 = vmatpush1.bf16.msra.mxu0 0
    %1179 = vmatprep.subr.bf16.mxu0 0
    %1180 = vmatpush1.bf16.msra.mxu0 0
    %1181 = vmatprep.subr.bf16.mxu0 0
    %1182 = vmatpush1.bf16.msra.mxu0 0
    %1183 = vmatprep.subr.bf16.mxu0 0
    %1184 = vmatpush1.bf16.msra.mxu0 0
    %1185 = vmatprep.mubr.bf16.mxu0 0
    %1186 = vmatmul.mubr.bf16.gmra.mrb[0].mxu0 %v177
    %v1187 = vpop.f32.mrb[0].mxu0
    %v1188 = vadd.f32 %v337, %v1187
    %v1189 = vpop.f32.mrb[0].mxu0
    %v1190 = vadd.f32 %v341, %v1189
    %v1191 = vpop.f32.mrb[0].mxu0
    %v1192 = vpop.f32.mrb[0].mxu0
    %1193 = vdwg.mxu0
    %1194 = vmatprep.subr.bf16.mxu0 %v783
    %1195 = vmatpush1.bf16.msra.mxu0 %v782
    %1196 = vmatprep.subr.bf16.mxu0 %v799
    %1197 = vmatpush1.bf16.msra.mxu0 %v798
    %1198 = vmatprep.subr.bf16.mxu0 %v815
    %1199 = vmatpush1.bf16.msra.mxu0 %v814
    %1200 = vmatprep.subr.bf16.mxu0 %v831
    %1201 = vmatpush1.bf16.msra.mxu0 %v830
    %1202 = vmatprep.subr.bf16.mxu0 %v847
    %1203 = vmatpush1.bf16.msra.mxu0 %v846
    %1204 = vmatprep.subr.bf16.mxu0 %v863
    %1205 = vmatpush1.bf16.msra.mxu0 %v862
    %1206 = vmatprep.subr.bf16.mxu0 %v879
    %1207 = vmatpush1.bf16.msra.mxu0 %v878
    %1208 = vmatprep.subr.bf16.mxu0 %v895
    %1209 = vmatpush1.bf16.msra.mxu0 %v894
    %1210 = vmatprep.subr.bf16.mxu0 0
    %1211 = vmatpush1.bf16.msra.mxu0 0
    %1212 = vmatprep.subr.bf16.mxu0 0
    %1213 = vmatpush1.bf16.msra.mxu0 0
    %1214 = vmatprep.subr.bf16.mxu0 0
    %1215 = vmatpush1.bf16.msra.mxu0 0
    %1216 = vmatprep.subr.bf16.mxu0 0
    %1217 = vmatpush1.bf16.msra.mxu0 0
    %1218 = vmatprep.subr.bf16.mxu0 0
    %1219 = vmatpush1.bf16.msra.mxu0 0
    %1220 = vmatprep.subr.bf16.mxu0 0
    %1221 = vmatpush1.bf16.msra.mxu0 0
    %1222 = vmatprep.subr.bf16.mxu0 0
    %1223 = vmatpush1.bf16.msra.mxu0 0
    %1224 = vmatprep.subr.bf16.mxu0 0
    %1225 = vmatpush1.bf16.msra.mxu0 0
    %1226 = vmatprep.mubr.bf16.mxu0 0
    %1227 = vmatmul.mubr.bf16.gmra.mrb[0].mxu0 %v177
    %v1228 = vpop.f32.mrb[0].mxu0
    %v1229 = vadd.f32 %v345, %v1228
    %v1230 = vpop.f32.mrb[0].mxu0
    %v1231 = vadd.f32 %v349, %v1230
    %v1232 = vpop.f32.mrb[0].mxu0
    %v1233 = vpop.f32.mrb[0].mxu0
    %1234 = vdwg.mxu0
    %1235 = vmatprep.subr.bf16.mxu0 %v785
    %1236 = vmatpush1.bf16.msra.mxu0 %v784
    %1237 = vmatprep.subr.bf16.mxu0 %v801
    %1238 = vmatpush1.bf16.msra.mxu0 %v800
    %1239 = vmatprep.subr.bf16.mxu0 %v817
    %1240 = vmatpush1.bf16.msra.mxu0 %v816
    %1241 = vmatprep.subr.bf16.mxu0 %v833
    %1242 = vmatpush1.bf16.msra.mxu0 %v832
    %1243 = vmatprep.subr.bf16.mxu0 %v849
    %1244 = vmatpush1.bf16.msra.mxu0 %v848
    %1245 = vmatprep.subr.bf16.mxu0 %v865
    %1246 = vmatpush1.bf16.msra.mxu0 %v864
    %1247 = vmatprep.subr.bf16.mxu0 %v881
    %1248 = vmatpush1.bf16.msra.mxu0 %v880
    %1249 = vmatprep.subr.bf16.mxu0 %v897
    %1250 = vmatpush1.bf16.msra.mxu0 %v896
    %1251 = vmatprep.subr.bf16.mxu0 0
    %1252 = vmatpush1.bf16.msra.mxu0 0
    %1253 = vmatprep.subr.bf16.mxu0 0
    %1254 = vmatpush1.bf16.msra.mxu0 0
    %1255 = vmatprep.subr.bf16.mxu0 0
    %1256 = vmatpush1.bf16.msra.mxu0 0
    %1257 = vmatprep.subr.bf16.mxu0 0
    %1258 = vmatpush1.bf16.msra.mxu0 0
    %1259 = vmatprep.subr.bf16.mxu0 0
    %1260 = vmatpush1.bf16.msra.mxu0 0
    %1261 = vmatprep.subr.bf16.mxu0 0
    %1262 = vmatpush1.bf16.msra.mxu0 0
    %1263 = vmatprep.subr.bf16.mxu0 0
    %1264 = vmatpush1.bf16.msra.mxu0 0
    %1265 = vmatprep.subr.bf16.mxu0 0
    %1266 = vmatpush1.bf16.msra.mxu0 0
    %1267 = vmatprep.mubr.bf16.mxu0 0
    %1268 = vmatmul.mubr.bf16.gmra.mrb[0].mxu0 %v177
    %v1269 = vpop.f32.mrb[0].mxu0
    %v1270 = vadd.f32 %v353, %v1269
    %v1271 = vpop.f32.mrb[0].mxu0
    %v1272 = vadd.f32 %v357, %v1271
    %v1273 = vpop.f32.mrb[0].mxu0
    %v1274 = vpop.f32.mrb[0].mxu0
    %1275 = vdwg.mxu0
    %1276 = vmatprep.subr.bf16.mxu0 %v787
    %1277 = vmatpush1.bf16.msra.mxu0 %v786
    %1278 = vmatprep.subr.bf16.mxu0 %v803
    %1279 = vmatpush1.bf16.msra.mxu0 %v802
    %1280 = vmatprep.subr.bf16.mxu0 %v819
    %1281 = vmatpush1.bf16.msra.mxu0 %v818
    %1282 = vmatprep.subr.bf16.mxu0 %v835
    %1283 = vmatpush1.bf16.msra.mxu0 %v834
    %1284 = vmatprep.subr.bf16.mxu0 %v851
    %1285 = vmatpush1.bf16.msra.mxu0 %v850
    %1286 = vmatprep.subr.bf16.mxu0 %v867
    %1287 = vmatpush1.bf16.msra.mxu0 %v866
    %1288 = vmatprep.subr.bf16.mxu0 %v883
    %1289 = vmatpush1.bf16.msra.mxu0 %v882
    %1290 = vmatprep.subr.bf16.mxu0 %v899
    %1291 = vmatpush1.bf16.msra.mxu0 %v898
    %1292 = vmatprep.subr.bf16.mxu0 0
    %1293 = vmatpush1.bf16.msra.mxu0 0
    %1294 = vmatprep.subr.bf16.mxu0 0
    %1295 = vmatpush1.bf16.msra.mxu0 0
    %1296 = vmatprep.subr.bf16.mxu0 0
    %1297 = vmatpush1.bf16.msra.mxu0 0
    %1298 = vmatprep.subr.bf16.mxu0 0
    %1299 = vmatpush1.bf16.msra.mxu0 0
    %1300 = vmatprep.subr.bf16.mxu0 0
    %1301 = vmatpush1.bf16.msra.mxu0 0
    %1302 = vmatprep.subr.bf16.mxu0 0
    %1303 = vmatpush1.bf16.msra.mxu0 0
    %1304 = vmatprep.subr.bf16.mxu0 0
    %1305 = vmatpush1.bf16.msra.mxu0 0
    %1306 = vmatprep.subr.bf16.mxu0 0
    %1307 = vmatpush1.bf16.msra.mxu0 0
    %1308 = vmatprep.mubr.bf16.mxu0 0
    %1309 = vmatmul.mubr.bf16.gmra.mrb[0].mxu0 %v177
    %v1310 = vpop.f32.mrb[0].mxu0
    %v1311 = vadd.f32 %v361, %v1310
    %v1312 = vpop.f32.mrb[0].mxu0
    %v1313 = vadd.f32 %v365, %v1312
    %v1314 = vpop.f32.mrb[0].mxu0
    %v1315 = vpop.f32.mrb[0].mxu0
    %1316 = vdwg.mxu0
    %1317 = vmatprep.subr.bf16.mxu0 %v789
    %1318 = vmatpush1.bf16.msra.mxu0 %v788
    %1319 = vmatprep.subr.bf16.mxu0 %v805
    %1320 = vmatpush1.bf16.msra.mxu0 %v804
    %1321 = vmatprep.subr.bf16.mxu0 %v821
    %1322 = vmatpush1.bf16.msra.mxu0 %v820
    %1323 = vmatprep.subr.bf16.mxu0 %v837
    %1324 = vmatpush1.bf16.msra.mxu0 %v836
    %1325 = vmatprep.subr.bf16.mxu0 %v853
    %1326 = vmatpush1.bf16.msra.mxu0 %v852
    %1327 = vmatprep.subr.bf16.mxu0 %v869
    %1328 = vmatpush1.bf16.msra.mxu0 %v868
    %1329 = vmatprep.subr.bf16.mxu0 %v885
    %1330 = vmatpush1.bf16.msra.mxu0 %v884
    %1331 = vmatprep.subr.bf16.mxu0 %v901
    %1332 = vmatpush1.bf16.msra.mxu0 %v900
    %1333 = vmatprep.subr.bf16.mxu0 0
    %1334 = vmatpush1.bf16.msra.mxu0 0
    %1335 = vmatprep.subr.bf16.mxu0 0
    %1336 = vmatpush1.bf16.msra.mxu0 0
    %1337 = vmatprep.subr.bf16.mxu0 0
    %1338 = vmatpush1.bf16.msra.mxu0 0
    %1339 = vmatprep.subr.bf16.mxu0 0
    %1340 = vmatpush1.bf16.msra.mxu0 0
    %1341 = vmatprep.subr.bf16.mxu0 0
    %1342 = vmatpush1.bf16.msra.mxu0 0
    %1343 = vmatprep.subr.bf16.mxu0 0
    %1344 = vmatpush1.bf16.msra.mxu0 0
    %1345 = vmatprep.subr.bf16.mxu0 0
    %1346 = vmatpush1.bf16.msra.mxu0 0
    %1347 = vmatprep.subr.bf16.mxu0 0
    %1348 = vmatpush1.bf16.msra.mxu0 0
    %1349 = vmatprep.mubr.bf16.mxu0 0
    %1350 = vmatmul.mubr.bf16.gmra.mrb[0].mxu0 %v177
    %v1351 = vpop.f32.mrb[0].mxu0
    %v1352 = vadd.f32 %v369, %v1351
    %v1353 = vpop.f32.mrb[0].mxu0
    %v1354 = vadd.f32 %v373, %v1353
    %v1355 = vpop.f32.mrb[0].mxu0
    %v1356 = vpop.f32.mrb[0].mxu0
    %1357 = vdwg.mxu0
    %v1358 = vmax.f32 %v1065, %v1229
    %v1359 = vmax.f32 %v1067, %v1231
    %v1360 = vmax.f32 %v1106, %v1270
    %v1361 = vmax.f32 %v1108, %v1272
    %v1362 = vmax.f32 %v1147, %v1311
    %v1363 = vmax.f32 %v1149, %v1313
    %v1364 = vmax.f32 %v1188, %v1352
    %v1365 = vmax.f32 %v1190, %v1354
    %v1366 = vmax.f32 %v1358, 0.0
    %v1367 = vmax.f32 %v1359, 0.0
    %v1368 = vmax.f32 %v1360, 0.0
    %v1369 = vmax.f32 %v1361, 0.0
    %v1370 = vmax.f32 %v1362, 0.0
    %v1371 = vmax.f32 %v1363, 0.0
    %v1372 = vmax.f32 %v1364, 0.0
    %v1373 = vmax.f32 %v1365, 0.0
    %v1374 = vpack.c.bf16 %v1366, %v1366
    %v1375 = vpack.c.bf16 %v1367, %v1367
    %v1376 = vpack.c.bf16 %v1368, %v1368
    %v1377 = vpack.c.bf16 %v1369, %v1369
    %v1378 = vpack.c.bf16 %v1370, %v1370
    %v1379 = vpack.c.bf16 %v1371, %v1371
    %v1380 = vpack.c.bf16 %v1372, %v1372
    %v1381 = vpack.c.bf16 %v1373, %v1373
    %v1382 = vld [vmem:[#allocation8] sm:$0xff]
    %v1383 = vld [vmem:[#allocation8 + $0x8] sm:$0xff]
    %v1384 = vld [vmem:[#allocation8 + $0x10] sm:$0xff]
    %v1385 = vld [vmem:[#allocation8 + $0x18] sm:$0xff]
    %v1386 = vld [vmem:[#allocation8 + $0x20] sm:$0xff]
    %v1387 = vld [vmem:[#allocation8 + $0x28] sm:$0xff]
    %v1388 = vld [vmem:[#allocation8 + $0x30] sm:$0xff]
    %v1389 = vld [vmem:[#allocation8 + $0x38] sm:$0xff]
    %v1390 = vld [vmem:[#allocation8 + $0x40] sm:$0xff]
    %v1391 = vld [vmem:[#allocation8 + $0x48] sm:$0xff]
    %v1392 = vld [vmem:[#allocation8 + $0x50] sm:$0xff]
    %v1393 = vld [vmem:[#allocation8 + $0x58] sm:$0xff]
    %v1394 = vld [vmem:[#allocation8 + $0x60] sm:$0xff]
    %v1395 = vld [vmem:[#allocation8 + $0x68] sm:$0xff]
    %v1396 = vld [vmem:[#allocation8 + $0x70] sm:$0xff]
    %v1397 = vld [vmem:[#allocation8 + $0x78] sm:$0xff]
    %v1398 = vld [vmem:[#allocation8 + $0x80] sm:$0xff]
    %v1399 = vld [vmem:[#allocation8 + $0x88] sm:$0xff]
    %v1400 = vld [vmem:[#allocation8 + $0x90] sm:$0xff]
    %v1401 = vld [vmem:[#allocation8 + $0x98] sm:$0xff]
    %v1402 = vld [vmem:[#allocation8 + $0xa0] sm:$0xff]
    %v1403 = vld [vmem:[#allocation8 + $0xa8] sm:$0xff]
    %v1404 = vld [vmem:[#allocation8 + $0xb0] sm:$0xff]
    %v1405 = vld [vmem:[#allocation8 + $0xb8] sm:$0xff]
    %v1406 = vld [vmem:[#allocation8 + $0xc0] sm:$0xff]
    %v1407 = vld [vmem:[#allocation8 + $0xc8] sm:$0xff]
    %v1408 = vld [vmem:[#allocation8 + $0xd0] sm:$0xff]
    %v1409 = vld [vmem:[#allocation8 + $0xd8] sm:$0xff]
    %v1410 = vld [vmem:[#allocation8 + $0xe0] sm:$0xff]
    %v1411 = vld [vmem:[#allocation8 + $0xe8] sm:$0xff]
    %v1412 = vld [vmem:[#allocation8 + $0xf0] sm:$0xff]
    %v1413 = vld [vmem:[#allocation8 + $0xf8] sm:$0xff]
    %v1414 = vld [vmem:[#allocation8 + $0x100] sm:$0xff]
    %v1415 = vld [vmem:[#allocation8 + $0x108] sm:$0xff]
    %v1416 = vld [vmem:[#allocation8 + $0x110] sm:$0xff]
    %v1417 = vld [vmem:[#allocation8 + $0x118] sm:$0xff]
    %v1418 = vld [vmem:[#allocation8 + $0x120] sm:$0xff]
    %v1419 = vld [vmem:[#allocation8 + $0x128] sm:$0xff]
    %v1420 = vld [vmem:[#allocation8 + $0x130] sm:$0xff]
    %v1421 = vld [vmem:[#allocation8 + $0x138] sm:$0xff]
    %v1422 = vld [vmem:[#allocation8 + $0x140] sm:$0xff]
    %v1423 = vld [vmem:[#allocation8 + $0x148] sm:$0xff]
    %v1424 = vld [vmem:[#allocation8 + $0x150] sm:$0xff]
    %v1425 = vld [vmem:[#allocation8 + $0x158] sm:$0xff]
    %v1426 = vld [vmem:[#allocation8 + $0x160] sm:$0xff]
    %v1427 = vld [vmem:[#allocation8 + $0x168] sm:$0xff]
    %v1428 = vld [vmem:[#allocation8 + $0x170] sm:$0xff]
    %v1429 = vld [vmem:[#allocation8 + $0x178] sm:$0xff]
    %v1430 = vld [vmem:[#allocation8 + $0x180] sm:$0xff]
    %v1431 = vld [vmem:[#allocation8 + $0x188] sm:$0xff]
    %v1432 = vld [vmem:[#allocation8 + $0x190] sm:$0xff]
    %v1433 = vld [vmem:[#allocation8 + $0x198] sm:$0xff]
    %v1434 = vld [vmem:[#allocation8 + $0x1a0] sm:$0xff]
    %v1435 = vld [vmem:[#allocation8 + $0x1a8] sm:$0xff]
    %v1436 = vld [vmem:[#allocation8 + $0x1b0] sm:$0xff]
    %v1437 = vld [vmem:[#allocation8 + $0x1b8] sm:$0xff]
    %v1438 = vld [vmem:[#allocation8 + $0x1c0] sm:$0xff]
    %v1439 = vld [vmem:[#allocation8 + $0x1c8] sm:$0xff]
    %v1440 = vld [vmem:[#allocation8 + $0x1d0] sm:$0xff]
    %v1441 = vld [vmem:[#allocation8 + $0x1d8] sm:$0xff]
    %v1442 = vld [vmem:[#allocation8 + $0x1e0] sm:$0xff]
    %v1443 = vld [vmem:[#allocation8 + $0x1e8] sm:$0xff]
    %v1444 = vld [vmem:[#allocation8 + $0x1f0] sm:$0xff]
    %v1445 = vld [vmem:[#allocation8 + $0x1f8] sm:$0xff]
    %v1446 = vld [vmem:[#allocation8 + $0x200] sm:$0xff]
    %v1447 = vld [vmem:[#allocation8 + $0x208] sm:$0xff]
    %v1448 = vld [vmem:[#allocation8 + $0x210] sm:$0xff]
    %v1449 = vld [vmem:[#allocation8 + $0x218] sm:$0xff]
    %v1450 = vld [vmem:[#allocation8 + $0x220] sm:$0xff]
    %v1451 = vld [vmem:[#allocation8 + $0x228] sm:$0xff]
    %v1452 = vld [vmem:[#allocation8 + $0x230] sm:$0xff]
    %v1453 = vld [vmem:[#allocation8 + $0x238] sm:$0xff]
    %v1454 = vld [vmem:[#allocation8 + $0x240] sm:$0xff]
    %v1455 = vld [vmem:[#allocation8 + $0x248] sm:$0xff]
    %v1456 = vld [vmem:[#allocation8 + $0x250] sm:$0xff]
    %v1457 = vld [vmem:[#allocation8 + $0x258] sm:$0xff]
    %v1458 = vld [vmem:[#allocation8 + $0x260] sm:$0xff]
    %v1459 = vld [vmem:[#allocation8 + $0x268] sm:$0xff]
    %v1460 = vld [vmem:[#allocation8 + $0x270] sm:$0xff]
    %v1461 = vld [vmem:[#allocation8 + $0x278] sm:$0xff]
    %v1462 = vld [vmem:[#allocation8 + $0x280] sm:$0xff]
    %v1463 = vld [vmem:[#allocation8 + $0x288] sm:$0xff]
    %v1464 = vld [vmem:[#allocation8 + $0x290] sm:$0xff]
    %v1465 = vld [vmem:[#allocation8 + $0x298] sm:$0xff]
    %v1466 = vld [vmem:[#allocation8 + $0x2a0] sm:$0xff]
    %v1467 = vld [vmem:[#allocation8 + $0x2a8] sm:$0xff]
    %v1468 = vld [vmem:[#allocation8 + $0x2b0] sm:$0xff]
    %v1469 = vld [vmem:[#allocation8 + $0x2b8] sm:$0xff]
    %v1470 = vld [vmem:[#allocation8 + $0x2c0] sm:$0xff]
    %v1471 = vld [vmem:[#allocation8 + $0x2c8] sm:$0xff]
    %v1472 = vld [vmem:[#allocation8 + $0x2d0] sm:$0xff]
    %v1473 = vld [vmem:[#allocation8 + $0x2d8] sm:$0xff]
    %v1474 = vld [vmem:[#allocation8 + $0x2e0] sm:$0xff]
    %v1475 = vld [vmem:[#allocation8 + $0x2e8] sm:$0xff]
    %v1476 = vld [vmem:[#allocation8 + $0x2f0] sm:$0xff]
    %v1477 = vld [vmem:[#allocation8 + $0x2f8] sm:$0xff]
    %v1478 = vld [vmem:[#allocation8 + $0x300] sm:$0xff]
    %v1479 = vld [vmem:[#allocation8 + $0x308] sm:$0xff]
    %v1480 = vld [vmem:[#allocation8 + $0x310] sm:$0xff]
    %v1481 = vld [vmem:[#allocation8 + $0x318] sm:$0xff]
    %v1482 = vld [vmem:[#allocation8 + $0x320] sm:$0xff]
    %v1483 = vld [vmem:[#allocation8 + $0x328] sm:$0xff]
    %v1484 = vld [vmem:[#allocation8 + $0x330] sm:$0xff]
    %v1485 = vld [vmem:[#allocation8 + $0x338] sm:$0xff]
    %v1486 = vld [vmem:[#allocation8 + $0x340] sm:$0xff]
    %v1487 = vld [vmem:[#allocation8 + $0x348] sm:$0xff]
    %v1488 = vld [vmem:[#allocation8 + $0x350] sm:$0xff]
    %v1489 = vld [vmem:[#allocation8 + $0x358] sm:$0xff]
    %v1490 = vld [vmem:[#allocation8 + $0x360] sm:$0xff]
    %v1491 = vld [vmem:[#allocation8 + $0x368] sm:$0xff]
    %v1492 = vld [vmem:[#allocation8 + $0x370] sm:$0xff]
    %v1493 = vld [vmem:[#allocation8 + $0x378] sm:$0xff]
    %v1494 = vld [vmem:[#allocation8 + $0x380] sm:$0xff]
    %v1495 = vld [vmem:[#allocation8 + $0x388] sm:$0xff]
    %v1496 = vld [vmem:[#allocation8 + $0x390] sm:$0xff]
    %v1497 = vld [vmem:[#allocation8 + $0x398] sm:$0xff]
    %v1498 = vld [vmem:[#allocation8 + $0x3a0] sm:$0xff]
    %v1499 = vld [vmem:[#allocation8 + $0x3a8] sm:$0xff]
    %v1500 = vld [vmem:[#allocation8 + $0x3b0] sm:$0xff]
    %v1501 = vld [vmem:[#allocation8 + $0x3b8] sm:$0xff]
    %v1502 = vld [vmem:[#allocation8 + $0x3c0] sm:$0xff]
    %v1503 = vld [vmem:[#allocation8 + $0x3c8] sm:$0xff]
    %v1504 = vld [vmem:[#allocation8 + $0x3d0] sm:$0xff]
    %v1505 = vld [vmem:[#allocation8 + $0x3d8] sm:$0xff]
    %v1506 = vld [vmem:[#allocation8 + $0x3e0] sm:$0xff]
    %v1507 = vld [vmem:[#allocation8 + $0x3e8] sm:$0xff]
    %v1508 = vld [vmem:[#allocation8 + $0x3f0] sm:$0xff]
    %v1509 = vld [vmem:[#allocation8 + $0x3f8] sm:$0xff]
    %v1510 = vld [vmem:[#allocation8 + $0x400] sm:$0xff]
    %v1511 = vld [vmem:[#allocation8 + $0x408] sm:$0xff]
    %v1512 = vld [vmem:[#allocation8 + $0x410] sm:$0xff]
    %v1513 = vld [vmem:[#allocation8 + $0x418] sm:$0xff]
    %v1514 = vld [vmem:[#allocation8 + $0x420] sm:$0xff]
    %v1515 = vld [vmem:[#allocation8 + $0x428] sm:$0xff]
    %v1516 = vld [vmem:[#allocation8 + $0x430] sm:$0xff]
    %v1517 = vld [vmem:[#allocation8 + $0x438] sm:$0xff]
    %v1518 = vld [vmem:[#allocation8 + $0x440] sm:$0xff]
    %v1519 = vld [vmem:[#allocation8 + $0x448] sm:$0xff]
    %v1520 = vld [vmem:[#allocation8 + $0x450] sm:$0xff]
    %v1521 = vld [vmem:[#allocation8 + $0x458] sm:$0xff]
    %v1522 = vld [vmem:[#allocation8 + $0x460] sm:$0xff]
    %v1523 = vld [vmem:[#allocation8 + $0x468] sm:$0xff]
    %v1524 = vld [vmem:[#allocation8 + $0x470] sm:$0xff]
    %v1525 = vld [vmem:[#allocation8 + $0x478] sm:$0xff]
    %v1526 = vld [vmem:[#allocation8 + $0x480] sm:$0xff]
    %v1527 = vld [vmem:[#allocation8 + $0x488] sm:$0xff]
    %v1528 = vld [vmem:[#allocation8 + $0x490] sm:$0xff]
    %v1529 = vld [vmem:[#allocation8 + $0x498] sm:$0xff]
    %v1530 = vld [vmem:[#allocation8 + $0x4a0] sm:$0xff]
    %v1531 = vld [vmem:[#allocation8 + $0x4a8] sm:$0xff]
    %v1532 = vld [vmem:[#allocation8 + $0x4b0] sm:$0xff]
    %v1533 = vld [vmem:[#allocation8 + $0x4b8] sm:$0xff]
    %v1534 = vld [vmem:[#allocation8 + $0x4c0] sm:$0xff]
    %v1535 = vld [vmem:[#allocation8 + $0x4c8] sm:$0xff]
    %v1536 = vld [vmem:[#allocation8 + $0x4d0] sm:$0xff]
    %v1537 = vld [vmem:[#allocation8 + $0x4d8] sm:$0xff]
    %v1538 = vld [vmem:[#allocation8 + $0x4e0] sm:$0xff]
    %v1539 = vld [vmem:[#allocation8 + $0x4e8] sm:$0xff]
    %v1540 = vld [vmem:[#allocation8 + $0x4f0] sm:$0xff]
    %v1541 = vld [vmem:[#allocation8 + $0x4f8] sm:$0xff]
    %v1542 = vld [vmem:[#allocation8 + $0x500] sm:$0xff]
    %v1543 = vld [vmem:[#allocation8 + $0x508] sm:$0xff]
    %v1544 = vld [vmem:[#allocation8 + $0x510] sm:$0xff]
    %v1545 = vld [vmem:[#allocation8 + $0x518] sm:$0xff]
    %v1546 = vld [vmem:[#allocation8 + $0x520] sm:$0xff]
    %v1547 = vld [vmem:[#allocation8 + $0x528] sm:$0xff]
    %v1548 = vld [vmem:[#allocation8 + $0x530] sm:$0xff]
    %v1549 = vld [vmem:[#allocation8 + $0x538] sm:$0xff]
    %v1550 = vld [vmem:[#allocation8 + $0x540] sm:$0xff]
    %v1551 = vld [vmem:[#allocation8 + $0x548] sm:$0xff]
    %v1552 = vld [vmem:[#allocation8 + $0x550] sm:$0xff]
    %v1553 = vld [vmem:[#allocation8 + $0x558] sm:$0xff]
    %v1554 = vld [vmem:[#allocation8 + $0x560] sm:$0xff]
    %v1555 = vld [vmem:[#allocation8 + $0x568] sm:$0xff]
    %v1556 = vld [vmem:[#allocation8 + $0x570] sm:$0xff]
    %v1557 = vld [vmem:[#allocation8 + $0x578] sm:$0xff]
    %v1558 = vld [vmem:[#allocation8 + $0x580] sm:$0xff]
    %v1559 = vld [vmem:[#allocation8 + $0x588] sm:$0xff]
    %v1560 = vld [vmem:[#allocation8 + $0x590] sm:$0xff]
    %v1561 = vld [vmem:[#allocation8 + $0x598] sm:$0xff]
    %v1562 = vld [vmem:[#allocation8 + $0x5a0] sm:$0xff]
    %v1563 = vld [vmem:[#allocation8 + $0x5a8] sm:$0xff]
    %v1564 = vld [vmem:[#allocation8 + $0x5b0] sm:$0xff]
    %v1565 = vld [vmem:[#allocation8 + $0x5b8] sm:$0xff]
    %v1566 = vld [vmem:[#allocation8 + $0x5c0] sm:$0xff]
    %v1567 = vld [vmem:[#allocation8 + $0x5c8] sm:$0xff]
    %v1568 = vld [vmem:[#allocation8 + $0x5d0] sm:$0xff]
    %v1569 = vld [vmem:[#allocation8 + $0x5d8] sm:$0xff]
    %v1570 = vld [vmem:[#allocation8 + $0x5e0] sm:$0xff]
    %v1571 = vld [vmem:[#allocation8 + $0x5e8] sm:$0xff]
    %v1572 = vld [vmem:[#allocation8 + $0x5f0] sm:$0xff]
    %v1573 = vld [vmem:[#allocation8 + $0x5f8] sm:$0xff]
    %v1574 = vld [vmem:[#allocation8 + $0x600] sm:$0xff]
    %v1575 = vld [vmem:[#allocation8 + $0x608] sm:$0xff]
    %v1576 = vld [vmem:[#allocation8 + $0x610] sm:$0xff]
    %v1577 = vld [vmem:[#allocation8 + $0x618] sm:$0xff]
    %v1578 = vld [vmem:[#allocation8 + $0x620] sm:$0xff]
    %v1579 = vld [vmem:[#allocation8 + $0x628] sm:$0xff]
    %v1580 = vld [vmem:[#allocation8 + $0x630] sm:$0xff]
    %v1581 = vld [vmem:[#allocation8 + $0x638] sm:$0xff]
    %v1582 = vld [vmem:[#allocation8 + $0x640] sm:$0xff]
    %v1583 = vld [vmem:[#allocation8 + $0x648] sm:$0xff]
    %v1584 = vld [vmem:[#allocation8 + $0x650] sm:$0xff]
    %v1585 = vld [vmem:[#allocation8 + $0x658] sm:$0xff]
    %v1586 = vld [vmem:[#allocation8 + $0x660] sm:$0xff]
    %v1587 = vld [vmem:[#allocation8 + $0x668] sm:$0xff]
    %v1588 = vld [vmem:[#allocation8 + $0x670] sm:$0xff]
    %v1589 = vld [vmem:[#allocation8 + $0x678] sm:$0xff]
    %v1590 = vld [vmem:[#allocation8 + $0x680] sm:$0xff]
    %v1591 = vld [vmem:[#allocation8 + $0x688] sm:$0xff]
    %v1592 = vld [vmem:[#allocation8 + $0x690] sm:$0xff]
    %v1593 = vld [vmem:[#allocation8 + $0x698] sm:$0xff]
    %v1594 = vld [vmem:[#allocation8 + $0x6a0] sm:$0xff]
    %v1595 = vld [vmem:[#allocation8 + $0x6a8] sm:$0xff]
    %v1596 = vld [vmem:[#allocation8 + $0x6b0] sm:$0xff]
    %v1597 = vld [vmem:[#allocation8 + $0x6b8] sm:$0xff]
    %v1598 = vld [vmem:[#allocation8 + $0x6c0] sm:$0xff]
    %v1599 = vld [vmem:[#allocation8 + $0x6c8] sm:$0xff]
    %v1600 = vld [vmem:[#allocation8 + $0x6d0] sm:$0xff]
    %v1601 = vld [vmem:[#allocation8 + $0x6d8] sm:$0xff]
    %v1602 = vld [vmem:[#allocation8 + $0x6e0] sm:$0xff]
    %v1603 = vld [vmem:[#allocation8 + $0x6e8] sm:$0xff]
    %v1604 = vld [vmem:[#allocation8 + $0x6f0] sm:$0xff]
    %v1605 = vld [vmem:[#allocation8 + $0x6f8] sm:$0xff]
    %v1606 = vld [vmem:[#allocation8 + $0x700] sm:$0xff]
    %v1607 = vld [vmem:[#allocation8 + $0x708] sm:$0xff]
    %v1608 = vld [vmem:[#allocation8 + $0x710] sm:$0xff]
    %v1609 = vld [vmem:[#allocation8 + $0x718] sm:$0xff]
    %v1610 = vld [vmem:[#allocation8 + $0x720] sm:$0xff]
    %v1611 = vld [vmem:[#allocation8 + $0x728] sm:$0xff]
    %v1612 = vld [vmem:[#allocation8 + $0x730] sm:$0xff]
    %v1613 = vld [vmem:[#allocation8 + $0x738] sm:$0xff]
    %v1614 = vld [vmem:[#allocation8 + $0x740] sm:$0xff]
    %v1615 = vld [vmem:[#allocation8 + $0x748] sm:$0xff]
    %v1616 = vld [vmem:[#allocation8 + $0x750] sm:$0xff]
    %v1617 = vld [vmem:[#allocation8 + $0x758] sm:$0xff]
    %v1618 = vld [vmem:[#allocation8 + $0x760] sm:$0xff]
    %v1619 = vld [vmem:[#allocation8 + $0x768] sm:$0xff]
    %v1620 = vld [vmem:[#allocation8 + $0x770] sm:$0xff]
    %v1621 = vld [vmem:[#allocation8 + $0x778] sm:$0xff]
    %v1622 = vld [vmem:[#allocation8 + $0x780] sm:$0xff]
    %v1623 = vld [vmem:[#allocation8 + $0x788] sm:$0xff]
    %v1624 = vld [vmem:[#allocation8 + $0x790] sm:$0xff]
    %v1625 = vld [vmem:[#allocation8 + $0x798] sm:$0xff]
    %v1626 = vld [vmem:[#allocation8 + $0x7a0] sm:$0xff]
    %v1627 = vld [vmem:[#allocation8 + $0x7a8] sm:$0xff]
    %v1628 = vld [vmem:[#allocation8 + $0x7b0] sm:$0xff]
    %v1629 = vld [vmem:[#allocation8 + $0x7b8] sm:$0xff]
    %v1630 = vld [vmem:[#allocation8 + $0x7c0] sm:$0xff]
    %v1631 = vld [vmem:[#allocation8 + $0x7c8] sm:$0xff]
    %v1632 = vld [vmem:[#allocation8 + $0x7d0] sm:$0xff]
    %v1633 = vld [vmem:[#allocation8 + $0x7d8] sm:$0xff]
    %v1634 = vld [vmem:[#allocation8 + $0x7e0] sm:$0xff]
    %v1635 = vld [vmem:[#allocation8 + $0x7e8] sm:$0xff]
    %v1636 = vld [vmem:[#allocation8 + $0x7f0] sm:$0xff]
    %v1637 = vld [vmem:[#allocation8 + $0x7f8] sm:$0xff]
    %v1638 = vld [vmem:[#allocation8 + $0x800] sm:$0xff]
    %v1639 = vld [vmem:[#allocation8 + $0x808] sm:$0xff]
    %v1640 = vld [vmem:[#allocation8 + $0x810] sm:$0xff]
    %v1641 = vld [vmem:[#allocation8 + $0x818] sm:$0xff]
    %v1642 = vld [vmem:[#allocation8 + $0x820] sm:$0xff]
    %v1643 = vld [vmem:[#allocation8 + $0x828] sm:$0xff]
    %v1644 = vld [vmem:[#allocation8 + $0x830] sm:$0xff]
    %v1645 = vld [vmem:[#allocation8 + $0x838] sm:$0xff]
    %v1646 = vld [vmem:[#allocation8 + $0x840] sm:$0xff]
    %v1647 = vld [vmem:[#allocation8 + $0x848] sm:$0xff]
    %v1648 = vld [vmem:[#allocation8 + $0x850] sm:$0xff]
    %v1649 = vld [vmem:[#allocation8 + $0x858] sm:$0xff]
    %v1650 = vld [vmem:[#allocation8 + $0x860] sm:$0xff]
    %v1651 = vld [vmem:[#allocation8 + $0x868] sm:$0xff]
    %v1652 = vld [vmem:[#allocation8 + $0x870] sm:$0xff]
    %v1653 = vld [vmem:[#allocation8 + $0x878] sm:$0xff]
    %v1654 = vld [vmem:[#allocation8 + $0x880] sm:$0xff]
    %v1655 = vld [vmem:[#allocation8 + $0x888] sm:$0xff]
    %v1656 = vld [vmem:[#allocation8 + $0x890] sm:$0xff]
    %v1657 = vld [vmem:[#allocation8 + $0x898] sm:$0xff]
    %v1658 = vld [vmem:[#allocation8 + $0x8a0] sm:$0xff]
    %v1659 = vld [vmem:[#allocation8 + $0x8a8] sm:$0xff]
    %v1660 = vld [vmem:[#allocation8 + $0x8b0] sm:$0xff]
    %v1661 = vld [vmem:[#allocation8 + $0x8b8] sm:$0xff]
    %v1662 = vld [vmem:[#allocation8 + $0x8c0] sm:$0xff]
    %v1663 = vld [vmem:[#allocation8 + $0x8c8] sm:$0xff]
    %v1664 = vld [vmem:[#allocation8 + $0x8d0] sm:$0xff]
    %v1665 = vld [vmem:[#allocation8 + $0x8d8] sm:$0xff]
    %v1666 = vld [vmem:[#allocation8 + $0x8e0] sm:$0xff]
    %v1667 = vld [vmem:[#allocation8 + $0x8e8] sm:$0xff]
    %v1668 = vld [vmem:[#allocation8 + $0x8f0] sm:$0xff]
    %v1669 = vld [vmem:[#allocation8 + $0x8f8] sm:$0xff]
    %v1670 = vld [vmem:[#allocation8 + $0x900] sm:$0xff]
    %v1671 = vld [vmem:[#allocation8 + $0x908] sm:$0xff]
    %v1672 = vld [vmem:[#allocation8 + $0x910] sm:$0xff]
    %v1673 = vld [vmem:[#allocation8 + $0x918] sm:$0xff]
    %v1674 = vld [vmem:[#allocation8 + $0x920] sm:$0xff]
    %v1675 = vld [vmem:[#allocation8 + $0x928] sm:$0xff]
    %v1676 = vld [vmem:[#allocation8 + $0x930] sm:$0xff]
    %v1677 = vld [vmem:[#allocation8 + $0x938] sm:$0xff]
    %v1678 = vld [vmem:[#allocation8 + $0x940] sm:$0xff]
    %v1679 = vld [vmem:[#allocation8 + $0x948] sm:$0xff]
    %v1680 = vld [vmem:[#allocation8 + $0x950] sm:$0xff]
    %v1681 = vld [vmem:[#allocation8 + $0x958] sm:$0xff]
    %v1682 = vld [vmem:[#allocation8 + $0x960] sm:$0xff]
    %v1683 = vld [vmem:[#allocation8 + $0x968] sm:$0xff]
    %v1684 = vld [vmem:[#allocation8 + $0x970] sm:$0xff]
    %v1685 = vld [vmem:[#allocation8 + $0x978] sm:$0xff]
    %v1686 = vld [vmem:[#allocation8 + $0x980] sm:$0xff]
    %v1687 = vld [vmem:[#allocation8 + $0x988] sm:$0xff]
    %v1688 = vld [vmem:[#allocation8 + $0x990] sm:$0xff]
    %v1689 = vld [vmem:[#allocation8 + $0x998] sm:$0xff]
    %v1690 = vld [vmem:[#allocation8 + $0x9a0] sm:$0xff]
    %v1691 = vld [vmem:[#allocation8 + $0x9a8] sm:$0xff]
    %v1692 = vld [vmem:[#allocation8 + $0x9b0] sm:$0xff]
    %v1693 = vld [vmem:[#allocation8 + $0x9b8] sm:$0xff]
    %v1694 = vld [vmem:[#allocation8 + $0x9c0] sm:$0xff]
    %v1695 = vld [vmem:[#allocation8 + $0x9c8] sm:$0xff]
    %v1696 = vld [vmem:[#allocation8 + $0x9d0] sm:$0xff]
    %v1697 = vld [vmem:[#allocation8 + $0x9d8] sm:$0xff]
    %v1698 = vld [vmem:[#allocation8 + $0x9e0] sm:$0xff]
    %v1699 = vld [vmem:[#allocation8 + $0x9e8] sm:$0xff]
    %v1700 = vld [vmem:[#allocation8 + $0x9f0] sm:$0xff]
    %v1701 = vld [vmem:[#allocation8 + $0x9f8] sm:$0xff]
    %v1702 = vld [vmem:[#allocation8 + $0xa00] sm:$0xff]
    %v1703 = vld [vmem:[#allocation8 + $0xa08] sm:$0xff]
    %v1704 = vld [vmem:[#allocation8 + $0xa10] sm:$0xff]
    %v1705 = vld [vmem:[#allocation8 + $0xa18] sm:$0xff]
    %v1706 = vld [vmem:[#allocation8 + $0xa20] sm:$0xff]
    %v1707 = vld [vmem:[#allocation8 + $0xa28] sm:$0xff]
    %v1708 = vld [vmem:[#allocation8 + $0xa30] sm:$0xff]
    %v1709 = vld [vmem:[#allocation8 + $0xa38] sm:$0xff]
    %v1710 = vld [vmem:[#allocation8 + $0xa40] sm:$0xff]
    %v1711 = vld [vmem:[#allocation8 + $0xa48] sm:$0xff]
    %v1712 = vld [vmem:[#allocation8 + $0xa50] sm:$0xff]
    %v1713 = vld [vmem:[#allocation8 + $0xa58] sm:$0xff]
    %v1714 = vld [vmem:[#allocation8 + $0xa60] sm:$0xff]
    %v1715 = vld [vmem:[#allocation8 + $0xa68] sm:$0xff]
    %v1716 = vld [vmem:[#allocation8 + $0xa70] sm:$0xff]
    %v1717 = vld [vmem:[#allocation8 + $0xa78] sm:$0xff]
    %v1718 = vld [vmem:[#allocation8 + $0xa80] sm:$0xff]
    %v1719 = vld [vmem:[#allocation8 + $0xa88] sm:$0xff]
    %v1720 = vld [vmem:[#allocation8 + $0xa90] sm:$0xff]
    %v1721 = vld [vmem:[#allocation8 + $0xa98] sm:$0xff]
    %v1722 = vld [vmem:[#allocation8 + $0xaa0] sm:$0xff]
    %v1723 = vld [vmem:[#allocation8 + $0xaa8] sm:$0xff]
    %v1724 = vld [vmem:[#allocation8 + $0xab0] sm:$0xff]
    %v1725 = vld [vmem:[#allocation8 + $0xab8] sm:$0xff]
    %v1726 = vld [vmem:[#allocation8 + $0xac0] sm:$0xff]
    %v1727 = vld [vmem:[#allocation8 + $0xac8] sm:$0xff]
    %v1728 = vld [vmem:[#allocation8 + $0xad0] sm:$0xff]
    %v1729 = vld [vmem:[#allocation8 + $0xad8] sm:$0xff]
    %v1730 = vld [vmem:[#allocation8 + $0xae0] sm:$0xff]
    %v1731 = vld [vmem:[#allocation8 + $0xae8] sm:$0xff]
    %v1732 = vld [vmem:[#allocation8 + $0xaf0] sm:$0xff]
    %v1733 = vld [vmem:[#allocation8 + $0xaf8] sm:$0xff]
    %v1734 = vld [vmem:[#allocation8 + $0xb00] sm:$0xff]
    %v1735 = vld [vmem:[#allocation8 + $0xb08] sm:$0xff]
    %v1736 = vld [vmem:[#allocation8 + $0xb10] sm:$0xff]
    %v1737 = vld [vmem:[#allocation8 + $0xb18] sm:$0xff]
    %v1738 = vld [vmem:[#allocation8 + $0xb20] sm:$0xff]
    %v1739 = vld [vmem:[#allocation8 + $0xb28] sm:$0xff]
    %v1740 = vld [vmem:[#allocation8 + $0xb30] sm:$0xff]
    %v1741 = vld [vmem:[#allocation8 + $0xb38] sm:$0xff]
    %v1742 = vld [vmem:[#allocation8 + $0xb40] sm:$0xff]
    %v1743 = vld [vmem:[#allocation8 + $0xb48] sm:$0xff]
    %v1744 = vld [vmem:[#allocation8 + $0xb50] sm:$0xff]
    %v1745 = vld [vmem:[#allocation8 + $0xb58] sm:$0xff]
    %v1746 = vld [vmem:[#allocation8 + $0xb60] sm:$0xff]
    %v1747 = vld [vmem:[#allocation8 + $0xb68] sm:$0xff]
    %v1748 = vld [vmem:[#allocation8 + $0xb70] sm:$0xff]
    %v1749 = vld [vmem:[#allocation8 + $0xb78] sm:$0xff]
    %v1750 = vld [vmem:[#allocation8 + $0xb80] sm:$0xff]
    %v1751 = vld [vmem:[#allocation8 + $0xb88] sm:$0xff]
    %v1752 = vld [vmem:[#allocation8 + $0xb90] sm:$0xff]
    %v1753 = vld [vmem:[#allocation8 + $0xb98] sm:$0xff]
    %v1754 = vld [vmem:[#allocation8 + $0xba0] sm:$0xff]
    %v1755 = vld [vmem:[#allocation8 + $0xba8] sm:$0xff]
    %v1756 = vld [vmem:[#allocation8 + $0xbb0] sm:$0xff]
    %v1757 = vld [vmem:[#allocation8 + $0xbb8] sm:$0xff]
    %v1758 = vld [vmem:[#allocation8 + $0xbc0] sm:$0xff]
    %v1759 = vld [vmem:[#allocation8 + $0xbc8] sm:$0xff]
    %v1760 = vld [vmem:[#allocation8 + $0xbd0] sm:$0xff]
    %v1761 = vld [vmem:[#allocation8 + $0xbd8] sm:$0xff]
    %v1762 = vld [vmem:[#allocation8 + $0xbe0] sm:$0xff]
    %v1763 = vld [vmem:[#allocation8 + $0xbe8] sm:$0xff]
    %v1764 = vld [vmem:[#allocation8 + $0xbf0] sm:$0xff]
    %v1765 = vld [vmem:[#allocation8 + $0xbf8] sm:$0xff]
    %v1766 = vld [vmem:[#allocation8 + $0xc00] sm:$0xff]
    %v1767 = vld [vmem:[#allocation8 + $0xc08] sm:$0xff]
    %v1768 = vld [vmem:[#allocation8 + $0xc10] sm:$0xff]
    %v1769 = vld [vmem:[#allocation8 + $0xc18] sm:$0xff]
    %v1770 = vld [vmem:[#allocation8 + $0xc20] sm:$0xff]
    %v1771 = vld [vmem:[#allocation8 + $0xc28] sm:$0xff]
    %v1772 = vld [vmem:[#allocation8 + $0xc30] sm:$0xff]
    %v1773 = vld [vmem:[#allocation8 + $0xc38] sm:$0xff]
    %v1774 = vld [vmem:[#allocation8 + $0xc40] sm:$0xff]
    %v1775 = vld [vmem:[#allocation8 + $0xc48] sm:$0xff]
    %v1776 = vld [vmem:[#allocation8 + $0xc50] sm:$0xff]
    %v1777 = vld [vmem:[#allocation8 + $0xc58] sm:$0xff]
    %v1778 = vld [vmem:[#allocation8 + $0xc60] sm:$0xff]
    %v1779 = vld [vmem:[#allocation8 + $0xc68] sm:$0xff]
    %v1780 = vld [vmem:[#allocation8 + $0xc70] sm:$0xff]
    %v1781 = vld [vmem:[#allocation8 + $0xc78] sm:$0xff]
    %v1782 = vld [vmem:[#allocation8 + $0xc80] sm:$0xff]
    %v1783 = vld [vmem:[#allocation8 + $0xc88] sm:$0xff]
    %v1784 = vld [vmem:[#allocation8 + $0xc90] sm:$0xff]
    %v1785 = vld [vmem:[#allocation8 + $0xc98] sm:$0xff]
    %v1786 = vld [vmem:[#allocation8 + $0xca0] sm:$0xff]
    %v1787 = vld [vmem:[#allocation8 + $0xca8] sm:$0xff]
    %v1788 = vld [vmem:[#allocation8 + $0xcb0] sm:$0xff]
    %v1789 = vld [vmem:[#allocation8 + $0xcb8] sm:$0xff]
    %v1790 = vld [vmem:[#allocation8 + $0xcc0] sm:$0xff]
    %v1791 = vld [vmem:[#allocation8 + $0xcc8] sm:$0xff]
    %v1792 = vld [vmem:[#allocation8 + $0xcd0] sm:$0xff]
    %v1793 = vld [vmem:[#allocation8 + $0xcd8] sm:$0xff]
    %v1794 = vld [vmem:[#allocation8 + $0xce0] sm:$0xff]
    %v1795 = vld [vmem:[#allocation8 + $0xce8] sm:$0xff]
    %v1796 = vld [vmem:[#allocation8 + $0xcf0] sm:$0xff]
    %v1797 = vld [vmem:[#allocation8 + $0xcf8] sm:$0xff]
    %v1798 = vld [vmem:[#allocation8 + $0xd00] sm:$0xff]
    %v1799 = vld [vmem:[#allocation8 + $0xd08] sm:$0xff]
    %v1800 = vld [vmem:[#allocation8 + $0xd10] sm:$0xff]
    %v1801 = vld [vmem:[#allocation8 + $0xd18] sm:$0xff]
    %v1802 = vld [vmem:[#allocation8 + $0xd20] sm:$0xff]
    %v1803 = vld [vmem:[#allocation8 + $0xd28] sm:$0xff]
    %v1804 = vld [vmem:[#allocation8 + $0xd30] sm:$0xff]
    %v1805 = vld [vmem:[#allocation8 + $0xd38] sm:$0xff]
    %v1806 = vld [vmem:[#allocation8 + $0xd40] sm:$0xff]
    %v1807 = vld [vmem:[#allocation8 + $0xd48] sm:$0xff]
    %v1808 = vld [vmem:[#allocation8 + $0xd50] sm:$0xff]
    %v1809 = vld [vmem:[#allocation8 + $0xd58] sm:$0xff]
    %v1810 = vld [vmem:[#allocation8 + $0xd60] sm:$0xff]
    %v1811 = vld [vmem:[#allocation8 + $0xd68] sm:$0xff]
    %v1812 = vld [vmem:[#allocation8 + $0xd70] sm:$0xff]
    %v1813 = vld [vmem:[#allocation8 + $0xd78] sm:$0xff]
    %v1814 = vld [vmem:[#allocation8 + $0xd80] sm:$0xff]
    %v1815 = vld [vmem:[#allocation8 + $0xd88] sm:$0xff]
    %v1816 = vld [vmem:[#allocation8 + $0xd90] sm:$0xff]
    %v1817 = vld [vmem:[#allocation8 + $0xd98] sm:$0xff]
    %v1818 = vld [vmem:[#allocation8 + $0xda0] sm:$0xff]
    %v1819 = vld [vmem:[#allocation8 + $0xda8] sm:$0xff]
    %v1820 = vld [vmem:[#allocation8 + $0xdb0] sm:$0xff]
    %v1821 = vld [vmem:[#allocation8 + $0xdb8] sm:$0xff]
    %v1822 = vld [vmem:[#allocation8 + $0xdc0] sm:$0xff]
    %v1823 = vld [vmem:[#allocation8 + $0xdc8] sm:$0xff]
    %v1824 = vld [vmem:[#allocation8 + $0xdd0] sm:$0xff]
    %v1825 = vld [vmem:[#allocation8 + $0xdd8] sm:$0xff]
    %v1826 = vld [vmem:[#allocation8 + $0xde0] sm:$0xff]
    %v1827 = vld [vmem:[#allocation8 + $0xde8] sm:$0xff]
    %v1828 = vld [vmem:[#allocation8 + $0xdf0] sm:$0xff]
    %v1829 = vld [vmem:[#allocation8 + $0xdf8] sm:$0xff]
    %v1830 = vld [vmem:[#allocation8 + $0xe00] sm:$0xff]
    %v1831 = vld [vmem:[#allocation8 + $0xe08] sm:$0xff]
    %v1832 = vld [vmem:[#allocation8 + $0xe10] sm:$0xff]
    %v1833 = vld [vmem:[#allocation8 + $0xe18] sm:$0xff]
    %v1834 = vld [vmem:[#allocation8 + $0xe20] sm:$0xff]
    %v1835 = vld [vmem:[#allocation8 + $0xe28] sm:$0xff]
    %v1836 = vld [vmem:[#allocation8 + $0xe30] sm:$0xff]
    %v1837 = vld [vmem:[#allocation8 + $0xe38] sm:$0xff]
    %v1838 = vld [vmem:[#allocation8 + $0xe40] sm:$0xff]
    %v1839 = vld [vmem:[#allocation8 + $0xe48] sm:$0xff]
    %v1840 = vld [vmem:[#allocation8 + $0xe50] sm:$0xff]
    %v1841 = vld [vmem:[#allocation8 + $0xe58] sm:$0xff]
    %v1842 = vld [vmem:[#allocation8 + $0xe60] sm:$0xff]
    %v1843 = vld [vmem:[#allocation8 + $0xe68] sm:$0xff]
    %v1844 = vld [vmem:[#allocation8 + $0xe70] sm:$0xff]
    %v1845 = vld [vmem:[#allocation8 + $0xe78] sm:$0xff]
    %v1846 = vld [vmem:[#allocation8 + $0xe80] sm:$0xff]
    %v1847 = vld [vmem:[#allocation8 + $0xe88] sm:$0xff]
    %v1848 = vld [vmem:[#allocation8 + $0xe90] sm:$0xff]
    %v1849 = vld [vmem:[#allocation8 + $0xe98] sm:$0xff]
    %v1850 = vld [vmem:[#allocation8 + $0xea0] sm:$0xff]
    %v1851 = vld [vmem:[#allocation8 + $0xea8] sm:$0xff]
    %v1852 = vld [vmem:[#allocation8 + $0xeb0] sm:$0xff]
    %v1853 = vld [vmem:[#allocation8 + $0xeb8] sm:$0xff]
    %v1854 = vld [vmem:[#allocation8 + $0xec0] sm:$0xff]
    %v1855 = vld [vmem:[#allocation8 + $0xec8] sm:$0xff]
    %v1856 = vld [vmem:[#allocation8 + $0xed0] sm:$0xff]
    %v1857 = vld [vmem:[#allocation8 + $0xed8] sm:$0xff]
    %v1858 = vld [vmem:[#allocation8 + $0xee0] sm:$0xff]
    %v1859 = vld [vmem:[#allocation8 + $0xee8] sm:$0xff]
    %v1860 = vld [vmem:[#allocation8 + $0xef0] sm:$0xff]
    %v1861 = vld [vmem:[#allocation8 + $0xef8] sm:$0xff]
    %v1862 = vld [vmem:[#allocation8 + $0xf00] sm:$0xff]
    %v1863 = vld [vmem:[#allocation8 + $0xf08] sm:$0xff]
    %v1864 = vld [vmem:[#allocation8 + $0xf10] sm:$0xff]
    %v1865 = vld [vmem:[#allocation8 + $0xf18] sm:$0xff]
    %v1866 = vld [vmem:[#allocation8 + $0xf20] sm:$0xff]
    %v1867 = vld [vmem:[#allocation8 + $0xf28] sm:$0xff]
    %v1868 = vld [vmem:[#allocation8 + $0xf30] sm:$0xff]
    %v1869 = vld [vmem:[#allocation8 + $0xf38] sm:$0xff]
    %v1870 = vld [vmem:[#allocation8 + $0xf40] sm:$0xff]
    %v1871 = vld [vmem:[#allocation8 + $0xf48] sm:$0xff]
    %v1872 = vld [vmem:[#allocation8 + $0xf50] sm:$0xff]
    %v1873 = vld [vmem:[#allocation8 + $0xf58] sm:$0xff]
    %v1874 = vld [vmem:[#allocation8 + $0xf60] sm:$0xff]
    %v1875 = vld [vmem:[#allocation8 + $0xf68] sm:$0xff]
    %v1876 = vld [vmem:[#allocation8 + $0xf70] sm:$0xff]
    %v1877 = vld [vmem:[#allocation8 + $0xf78] sm:$0xff]
    %v1878 = vld [vmem:[#allocation8 + $0xf80] sm:$0xff]
    %v1879 = vld [vmem:[#allocation8 + $0xf88] sm:$0xff]
    %v1880 = vld [vmem:[#allocation8 + $0xf90] sm:$0xff]
    %v1881 = vld [vmem:[#allocation8 + $0xf98] sm:$0xff]
    %v1882 = vld [vmem:[#allocation8 + $0xfa0] sm:$0xff]
    %v1883 = vld [vmem:[#allocation8 + $0xfa8] sm:$0xff]
    %v1884 = vld [vmem:[#allocation8 + $0xfb0] sm:$0xff]
    %v1885 = vld [vmem:[#allocation8 + $0xfb8] sm:$0xff]
    %v1886 = vld [vmem:[#allocation8 + $0xfc0] sm:$0xff]
    %v1887 = vld [vmem:[#allocation8 + $0xfc8] sm:$0xff]
    %v1888 = vld [vmem:[#allocation8 + $0xfd0] sm:$0xff]
    %v1889 = vld [vmem:[#allocation8 + $0xfd8] sm:$0xff]
    %v1890 = vld [vmem:[#allocation8 + $0xfe0] sm:$0xff]
    %v1891 = vld [vmem:[#allocation8 + $0xfe8] sm:$0xff]
    %v1892 = vld [vmem:[#allocation8 + $0xff0] sm:$0xff]
    %v1893 = vld [vmem:[#allocation8 + $0xff8] sm:$0xff]
    %v1894 = vld [vmem:[#allocation10] sm:$0xff]
    %v1896 = vlaneseq
    %v1897 = vshrl.u32 %v1896, 7
    %v1898 = vsub.s32 0, %v1897
    %v1899 = vrot.slane %v1894, %v1898
    %v1900 = vlaneseq
    %v1901 = vshrl.u32 %v1900, 7
    %v1902 = vsub.s32 1, %v1901
    %v1903 = vrot.slane %v1894, %v1902
    %v1904 = vlaneseq
    %v1905 = vshrl.u32 %v1904, 7
    %v1906 = vsub.s32 2, %v1905
    %v1907 = vrot.slane %v1894, %v1906
    %v1908 = vlaneseq
    %v1909 = vshrl.u32 %v1908, 7
    %v1910 = vsub.s32 3, %v1909
    %v1911 = vrot.slane %v1894, %v1910
    %v1912 = vlaneseq
    %v1913 = vshrl.u32 %v1912, 7
    %v1914 = vsub.s32 4, %v1913
    %v1915 = vrot.slane %v1894, %v1914
    %v1916 = vlaneseq
    %v1917 = vshrl.u32 %v1916, 7
    %v1918 = vsub.s32 5, %v1917
    %v1919 = vrot.slane %v1894, %v1918
    %v1920 = vlaneseq
    %v1921 = vshrl.u32 %v1920, 7
    %v1922 = vsub.s32 6, %v1921
    %v1923 = vrot.slane %v1894, %v1922
    %v1924 = vlaneseq
    %v1925 = vshrl.u32 %v1924, 7
    %v1926 = vsub.s32 7, %v1925
    %v1927 = vrot.slane %v1894, %v1926
    %v2448 = vunpack.c.l.b16 %v1382
    %v2449 = vunpack.c.h.b16 %v1382
    %v2450 = vunpack.c.l.b16 %v1383
    %v2451 = vunpack.c.h.b16 %v1383
    %v2452 = vunpack.c.l.b16 %v1384
    %v2453 = vunpack.c.h.b16 %v1384
    %v2454 = vunpack.c.l.b16 %v1385
    %v2455 = vunpack.c.h.b16 %v1385
    %v2456 = vunpack.c.l.b16 %v1386
    %v2457 = vunpack.c.h.b16 %v1386
    %v2458 = vunpack.c.l.b16 %v1387
    %v2459 = vunpack.c.h.b16 %v1387
    %v2460 = vunpack.c.l.b16 %v1388
    %v2461 = vunpack.c.h.b16 %v1388
    %v2462 = vunpack.c.l.b16 %v1389
    %v2463 = vunpack.c.h.b16 %v1389
    %v2464 = vunpack.c.l.b16 %v1390
    %v2465 = vunpack.c.h.b16 %v1390
    %v2466 = vunpack.c.l.b16 %v1391
    %v2467 = vunpack.c.h.b16 %v1391
    %v2468 = vunpack.c.l.b16 %v1392
    %v2469 = vunpack.c.h.b16 %v1392
    %v2470 = vunpack.c.l.b16 %v1393
    %v2471 = vunpack.c.h.b16 %v1393
    %v2472 = vunpack.c.l.b16 %v1394
    %v2473 = vunpack.c.h.b16 %v1394
    %v2474 = vunpack.c.l.b16 %v1395
    %v2475 = vunpack.c.h.b16 %v1395
    %v2476 = vunpack.c.l.b16 %v1396
    %v2477 = vunpack.c.h.b16 %v1396
    %v2478 = vunpack.c.l.b16 %v1397
    %v2479 = vunpack.c.h.b16 %v1397
    %v2480 = vunpack.c.l.b16 %v1398
    %v2481 = vunpack.c.h.b16 %v1398
    %v2482 = vunpack.c.l.b16 %v1399
    %v2483 = vunpack.c.h.b16 %v1399
    %v2484 = vunpack.c.l.b16 %v1400
    %v2485 = vunpack.c.h.b16 %v1400
    %v2486 = vunpack.c.l.b16 %v1401
    %v2487 = vunpack.c.h.b16 %v1401
    %v2488 = vunpack.c.l.b16 %v1402
    %v2489 = vunpack.c.h.b16 %v1402
    %v2490 = vunpack.c.l.b16 %v1403
    %v2491 = vunpack.c.h.b16 %v1403
    %v2492 = vunpack.c.l.b16 %v1404
    %v2493 = vunpack.c.h.b16 %v1404
    %v2494 = vunpack.c.l.b16 %v1405
    %v2495 = vunpack.c.h.b16 %v1405
    %v2496 = vunpack.c.l.b16 %v1406
    %v2497 = vunpack.c.h.b16 %v1406
    %v2498 = vunpack.c.l.b16 %v1407
    %v2499 = vunpack.c.h.b16 %v1407
    %v2500 = vunpack.c.l.b16 %v1408
    %v2501 = vunpack.c.h.b16 %v1408
    %v2502 = vunpack.c.l.b16 %v1409
    %v2503 = vunpack.c.h.b16 %v1409
    %v2504 = vunpack.c.l.b16 %v1410
    %v2505 = vunpack.c.h.b16 %v1410
    %v2506 = vunpack.c.l.b16 %v1411
    %v2507 = vunpack.c.h.b16 %v1411
    %v2508 = vunpack.c.l.b16 %v1412
    %v2509 = vunpack.c.h.b16 %v1412
    %v2510 = vunpack.c.l.b16 %v1413
    %v2511 = vunpack.c.h.b16 %v1413
    %v2512 = vunpack.c.l.b16 %v1414
    %v2513 = vunpack.c.h.b16 %v1414
    %v2514 = vunpack.c.l.b16 %v1415
    %v2515 = vunpack.c.h.b16 %v1415
    %v2516 = vunpack.c.l.b16 %v1416
    %v2517 = vunpack.c.h.b16 %v1416
    %v2518 = vunpack.c.l.b16 %v1417
    %v2519 = vunpack.c.h.b16 %v1417
    %v2520 = vunpack.c.l.b16 %v1418
    %v2521 = vunpack.c.h.b16 %v1418
    %v2522 = vunpack.c.l.b16 %v1419
    %v2523 = vunpack.c.h.b16 %v1419
    %v2524 = vunpack.c.l.b16 %v1420
    %v2525 = vunpack.c.h.b16 %v1420
    %v2526 = vunpack.c.l.b16 %v1421
    %v2527 = vunpack.c.h.b16 %v1421
    %v2528 = vunpack.c.l.b16 %v1422
    %v2529 = vunpack.c.h.b16 %v1422
    %v2530 = vunpack.c.l.b16 %v1423
    %v2531 = vunpack.c.h.b16 %v1423
    %v2532 = vunpack.c.l.b16 %v1424
    %v2533 = vunpack.c.h.b16 %v1424
    %v2534 = vunpack.c.l.b16 %v1425
    %v2535 = vunpack.c.h.b16 %v1425
    %v2536 = vunpack.c.l.b16 %v1426
    %v2537 = vunpack.c.h.b16 %v1426
    %v2538 = vunpack.c.l.b16 %v1427
    %v2539 = vunpack.c.h.b16 %v1427
    %v2540 = vunpack.c.l.b16 %v1428
    %v2541 = vunpack.c.h.b16 %v1428
    %v2542 = vunpack.c.l.b16 %v1429
    %v2543 = vunpack.c.h.b16 %v1429
    %v2544 = vunpack.c.l.b16 %v1430
    %v2545 = vunpack.c.h.b16 %v1430
    %v2546 = vunpack.c.l.b16 %v1431
    %v2547 = vunpack.c.h.b16 %v1431
    %v2548 = vunpack.c.l.b16 %v1432
    %v2549 = vunpack.c.h.b16 %v1432
    %v2550 = vunpack.c.l.b16 %v1433
    %v2551 = vunpack.c.h.b16 %v1433
    %v2552 = vunpack.c.l.b16 %v1434
    %v2553 = vunpack.c.h.b16 %v1434
    %v2554 = vunpack.c.l.b16 %v1435
    %v2555 = vunpack.c.h.b16 %v1435
    %v2556 = vunpack.c.l.b16 %v1436
    %v2557 = vunpack.c.h.b16 %v1436
    %v2558 = vunpack.c.l.b16 %v1437
    %v2559 = vunpack.c.h.b16 %v1437
    %v2560 = vunpack.c.l.b16 %v1438
    %v2561 = vunpack.c.h.b16 %v1438
    %v2562 = vunpack.c.l.b16 %v1439
    %v2563 = vunpack.c.h.b16 %v1439
    %v2564 = vunpack.c.l.b16 %v1440
    %v2565 = vunpack.c.h.b16 %v1440
    %v2566 = vunpack.c.l.b16 %v1441
    %v2567 = vunpack.c.h.b16 %v1441
    %v2568 = vunpack.c.l.b16 %v1442
    %v2569 = vunpack.c.h.b16 %v1442
    %v2570 = vunpack.c.l.b16 %v1443
    %v2571 = vunpack.c.h.b16 %v1443
    %v2572 = vunpack.c.l.b16 %v1444
    %v2573 = vunpack.c.h.b16 %v1444
    %v2574 = vunpack.c.l.b16 %v1445
    %v2575 = vunpack.c.h.b16 %v1445
    %v2576 = vunpack.c.l.b16 %v1446
    %v2577 = vunpack.c.h.b16 %v1446
    %v2578 = vunpack.c.l.b16 %v1447
    %v2579 = vunpack.c.h.b16 %v1447
    %v2580 = vunpack.c.l.b16 %v1448
    %v2581 = vunpack.c.h.b16 %v1448
    %v2582 = vunpack.c.l.b16 %v1449
    %v2583 = vunpack.c.h.b16 %v1449
    %v2584 = vunpack.c.l.b16 %v1450
    %v2585 = vunpack.c.h.b16 %v1450
    %v2586 = vunpack.c.l.b16 %v1451
    %v2587 = vunpack.c.h.b16 %v1451
    %v2588 = vunpack.c.l.b16 %v1452
    %v2589 = vunpack.c.h.b16 %v1452
    %v2590 = vunpack.c.l.b16 %v1453
    %v2591 = vunpack.c.h.b16 %v1453
    %v2592 = vunpack.c.l.b16 %v1454
    %v2593 = vunpack.c.h.b16 %v1454
    %v2594 = vunpack.c.l.b16 %v1455
    %v2595 = vunpack.c.h.b16 %v1455
    %v2596 = vunpack.c.l.b16 %v1456
    %v2597 = vunpack.c.h.b16 %v1456
    %v2598 = vunpack.c.l.b16 %v1457
    %v2599 = vunpack.c.h.b16 %v1457
    %v2600 = vunpack.c.l.b16 %v1458
    %v2601 = vunpack.c.h.b16 %v1458
    %v2602 = vunpack.c.l.b16 %v1459
    %v2603 = vunpack.c.h.b16 %v1459
    %v2604 = vunpack.c.l.b16 %v1460
    %v2605 = vunpack.c.h.b16 %v1460
    %v2606 = vunpack.c.l.b16 %v1461
    %v2607 = vunpack.c.h.b16 %v1461
    %v2608 = vunpack.c.l.b16 %v1462
    %v2609 = vunpack.c.h.b16 %v1462
    %v2610 = vunpack.c.l.b16 %v1463
    %v2611 = vunpack.c.h.b16 %v1463
    %v2612 = vunpack.c.l.b16 %v1464
    %v2613 = vunpack.c.h.b16 %v1464
    %v2614 = vunpack.c.l.b16 %v1465
    %v2615 = vunpack.c.h.b16 %v1465
    %v2616 = vunpack.c.l.b16 %v1466
    %v2617 = vunpack.c.h.b16 %v1466
    %v2618 = vunpack.c.l.b16 %v1467
    %v2619 = vunpack.c.h.b16 %v1467
    %v2620 = vunpack.c.l.b16 %v1468
    %v2621 = vunpack.c.h.b16 %v1468
    %v2622 = vunpack.c.l.b16 %v1469
    %v2623 = vunpack.c.h.b16 %v1469
    %v2624 = vunpack.c.l.b16 %v1470
    %v2625 = vunpack.c.h.b16 %v1470
    %v2626 = vunpack.c.l.b16 %v1471
    %v2627 = vunpack.c.h.b16 %v1471
    %v2628 = vunpack.c.l.b16 %v1472
    %v2629 = vunpack.c.h.b16 %v1472
    %v2630 = vunpack.c.l.b16 %v1473
    %v2631 = vunpack.c.h.b16 %v1473
    %v2632 = vunpack.c.l.b16 %v1474
    %v2633 = vunpack.c.h.b16 %v1474
    %v2634 = vunpack.c.l.b16 %v1475
    %v2635 = vunpack.c.h.b16 %v1475
    %v2636 = vunpack.c.l.b16 %v1476
    %v2637 = vunpack.c.h.b16 %v1476
    %v2638 = vunpack.c.l.b16 %v1477
    %v2639 = vunpack.c.h.b16 %v1477
    %v2640 = vunpack.c.l.b16 %v1478
    %v2641 = vunpack.c.h.b16 %v1478
    %v2642 = vunpack.c.l.b16 %v1479
    %v2643 = vunpack.c.h.b16 %v1479
    %v2644 = vunpack.c.l.b16 %v1480
    %v2645 = vunpack.c.h.b16 %v1480
    %v2646 = vunpack.c.l.b16 %v1481
    %v2647 = vunpack.c.h.b16 %v1481
    %v2648 = vunpack.c.l.b16 %v1482
    %v2649 = vunpack.c.h.b16 %v1482
    %v2650 = vunpack.c.l.b16 %v1483
    %v2651 = vunpack.c.h.b16 %v1483
    %v2652 = vunpack.c.l.b16 %v1484
    %v2653 = vunpack.c.h.b16 %v1484
    %v2654 = vunpack.c.l.b16 %v1485
    %v2655 = vunpack.c.h.b16 %v1485
    %v2656 = vunpack.c.l.b16 %v1486
    %v2657 = vunpack.c.h.b16 %v1486
    %v2658 = vunpack.c.l.b16 %v1487
    %v2659 = vunpack.c.h.b16 %v1487
    %v2660 = vunpack.c.l.b16 %v1488
    %v2661 = vunpack.c.h.b16 %v1488
    %v2662 = vunpack.c.l.b16 %v1489
    %v2663 = vunpack.c.h.b16 %v1489
    %v2664 = vunpack.c.l.b16 %v1490
    %v2665 = vunpack.c.h.b16 %v1490
    %v2666 = vunpack.c.l.b16 %v1491
    %v2667 = vunpack.c.h.b16 %v1491
    %v2668 = vunpack.c.l.b16 %v1492
    %v2669 = vunpack.c.h.b16 %v1492
    %v2670 = vunpack.c.l.b16 %v1493
    %v2671 = vunpack.c.h.b16 %v1493
    %v2672 = vunpack.c.l.b16 %v1494
    %v2673 = vunpack.c.h.b16 %v1494
    %v2674 = vunpack.c.l.b16 %v1495
    %v2675 = vunpack.c.h.b16 %v1495
    %v2676 = vunpack.c.l.b16 %v1496
    %v2677 = vunpack.c.h.b16 %v1496
    %v2678 = vunpack.c.l.b16 %v1497
    %v2679 = vunpack.c.h.b16 %v1497
    %v2680 = vunpack.c.l.b16 %v1498
    %v2681 = vunpack.c.h.b16 %v1498
    %v2682 = vunpack.c.l.b16 %v1499
    %v2683 = vunpack.c.h.b16 %v1499
    %v2684 = vunpack.c.l.b16 %v1500
    %v2685 = vunpack.c.h.b16 %v1500
    %v2686 = vunpack.c.l.b16 %v1501
    %v2687 = vunpack.c.h.b16 %v1501
    %v2688 = vunpack.c.l.b16 %v1502
    %v2689 = vunpack.c.h.b16 %v1502
    %v2690 = vunpack.c.l.b16 %v1503
    %v2691 = vunpack.c.h.b16 %v1503
    %v2692 = vunpack.c.l.b16 %v1504
    %v2693 = vunpack.c.h.b16 %v1504
    %v2694 = vunpack.c.l.b16 %v1505
    %v2695 = vunpack.c.h.b16 %v1505
    %v2696 = vunpack.c.l.b16 %v1506
    %v2697 = vunpack.c.h.b16 %v1506
    %v2698 = vunpack.c.l.b16 %v1507
    %v2699 = vunpack.c.h.b16 %v1507
    %v2700 = vunpack.c.l.b16 %v1508
    %v2701 = vunpack.c.h.b16 %v1508
    %v2702 = vunpack.c.l.b16 %v1509
    %v2703 = vunpack.c.h.b16 %v1509
    %v2704 = vunpack.c.l.b16 %v1510
    %v2705 = vunpack.c.h.b16 %v1510
    %v2706 = vunpack.c.l.b16 %v1511
    %v2707 = vunpack.c.h.b16 %v1511
    %v2708 = vunpack.c.l.b16 %v1512
    %v2709 = vunpack.c.h.b16 %v1512
    %v2710 = vunpack.c.l.b16 %v1513
    %v2711 = vunpack.c.h.b16 %v1513
    %v2712 = vunpack.c.l.b16 %v1514
    %v2713 = vunpack.c.h.b16 %v1514
    %v2714 = vunpack.c.l.b16 %v1515
    %v2715 = vunpack.c.h.b16 %v1515
    %v2716 = vunpack.c.l.b16 %v1516
    %v2717 = vunpack.c.h.b16 %v1516
    %v2718 = vunpack.c.l.b16 %v1517
    %v2719 = vunpack.c.h.b16 %v1517
    %v2720 = vunpack.c.l.b16 %v1518
    %v2721 = vunpack.c.h.b16 %v1518
    %v2722 = vunpack.c.l.b16 %v1519
    %v2723 = vunpack.c.h.b16 %v1519
    %v2724 = vunpack.c.l.b16 %v1520
    %v2725 = vunpack.c.h.b16 %v1520
    %v2726 = vunpack.c.l.b16 %v1521
    %v2727 = vunpack.c.h.b16 %v1521
    %v2728 = vunpack.c.l.b16 %v1522
    %v2729 = vunpack.c.h.b16 %v1522
    %v2730 = vunpack.c.l.b16 %v1523
    %v2731 = vunpack.c.h.b16 %v1523
    %v2732 = vunpack.c.l.b16 %v1524
    %v2733 = vunpack.c.h.b16 %v1524
    %v2734 = vunpack.c.l.b16 %v1525
    %v2735 = vunpack.c.h.b16 %v1525
    %v2736 = vunpack.c.l.b16 %v1526
    %v2737 = vunpack.c.h.b16 %v1526
    %v2738 = vunpack.c.l.b16 %v1527
    %v2739 = vunpack.c.h.b16 %v1527
    %v2740 = vunpack.c.l.b16 %v1528
    %v2741 = vunpack.c.h.b16 %v1528
    %v2742 = vunpack.c.l.b16 %v1529
    %v2743 = vunpack.c.h.b16 %v1529
    %v2744 = vunpack.c.l.b16 %v1530
    %v2745 = vunpack.c.h.b16 %v1530
    %v2746 = vunpack.c.l.b16 %v1531
    %v2747 = vunpack.c.h.b16 %v1531
    %v2748 = vunpack.c.l.b16 %v1532
    %v2749 = vunpack.c.h.b16 %v1532
    %v2750 = vunpack.c.l.b16 %v1533
    %v2751 = vunpack.c.h.b16 %v1533
    %v2752 = vunpack.c.l.b16 %v1534
    %v2753 = vunpack.c.h.b16 %v1534
    %v2754 = vunpack.c.l.b16 %v1535
    %v2755 = vunpack.c.h.b16 %v1535
    %v2756 = vunpack.c.l.b16 %v1536
    %v2757 = vunpack.c.h.b16 %v1536
    %v2758 = vunpack.c.l.b16 %v1537
    %v2759 = vunpack.c.h.b16 %v1537
    %v2760 = vunpack.c.l.b16 %v1538
    %v2761 = vunpack.c.h.b16 %v1538
    %v2762 = vunpack.c.l.b16 %v1539
    %v2763 = vunpack.c.h.b16 %v1539
    %v2764 = vunpack.c.l.b16 %v1540
    %v2765 = vunpack.c.h.b16 %v1540
    %v2766 = vunpack.c.l.b16 %v1541
    %v2767 = vunpack.c.h.b16 %v1541
    %v2768 = vunpack.c.l.b16 %v1542
    %v2769 = vunpack.c.h.b16 %v1542
    %v2770 = vunpack.c.l.b16 %v1543
    %v2771 = vunpack.c.h.b16 %v1543
    %v2772 = vunpack.c.l.b16 %v1544
    %v2773 = vunpack.c.h.b16 %v1544
    %v2774 = vunpack.c.l.b16 %v1545
    %v2775 = vunpack.c.h.b16 %v1545
    %v2776 = vunpack.c.l.b16 %v1546
    %v2777 = vunpack.c.h.b16 %v1546
    %v2778 = vunpack.c.l.b16 %v1547
    %v2779 = vunpack.c.h.b16 %v1547
    %v2780 = vunpack.c.l.b16 %v1548
    %v2781 = vunpack.c.h.b16 %v1548
    %v2782 = vunpack.c.l.b16 %v1549
    %v2783 = vunpack.c.h.b16 %v1549
    %v2784 = vunpack.c.l.b16 %v1550
    %v2785 = vunpack.c.h.b16 %v1550
    %v2786 = vunpack.c.l.b16 %v1551
    %v2787 = vunpack.c.h.b16 %v1551
    %v2788 = vunpack.c.l.b16 %v1552
    %v2789 = vunpack.c.h.b16 %v1552
    %v2790 = vunpack.c.l.b16 %v1553
    %v2791 = vunpack.c.h.b16 %v1553
    %v2792 = vunpack.c.l.b16 %v1554
    %v2793 = vunpack.c.h.b16 %v1554
    %v2794 = vunpack.c.l.b16 %v1555
    %v2795 = vunpack.c.h.b16 %v1555
    %v2796 = vunpack.c.l.b16 %v1556
    %v2797 = vunpack.c.h.b16 %v1556
    %v2798 = vunpack.c.l.b16 %v1557
    %v2799 = vunpack.c.h.b16 %v1557
    %v2800 = vunpack.c.l.b16 %v1558
    %v2801 = vunpack.c.h.b16 %v1558
    %v2802 = vunpack.c.l.b16 %v1559
    %v2803 = vunpack.c.h.b16 %v1559
    %v2804 = vunpack.c.l.b16 %v1560
    %v2805 = vunpack.c.h.b16 %v1560
    %v2806 = vunpack.c.l.b16 %v1561
    %v2807 = vunpack.c.h.b16 %v1561
    %v2808 = vunpack.c.l.b16 %v1562
    %v2809 = vunpack.c.h.b16 %v1562
    %v2810 = vunpack.c.l.b16 %v1563
    %v2811 = vunpack.c.h.b16 %v1563
    %v2812 = vunpack.c.l.b16 %v1564
    %v2813 = vunpack.c.h.b16 %v1564
    %v2814 = vunpack.c.l.b16 %v1565
    %v2815 = vunpack.c.h.b16 %v1565
    %v2816 = vunpack.c.l.b16 %v1566
    %v2817 = vunpack.c.h.b16 %v1566
    %v2818 = vunpack.c.l.b16 %v1567
    %v2819 = vunpack.c.h.b16 %v1567
    %v2820 = vunpack.c.l.b16 %v1568
    %v2821 = vunpack.c.h.b16 %v1568
    %v2822 = vunpack.c.l.b16 %v1569
    %v2823 = vunpack.c.h.b16 %v1569
    %v2824 = vunpack.c.l.b16 %v1570
    %v2825 = vunpack.c.h.b16 %v1570
    %v2826 = vunpack.c.l.b16 %v1571
    %v2827 = vunpack.c.h.b16 %v1571
    %v2828 = vunpack.c.l.b16 %v1572
    %v2829 = vunpack.c.h.b16 %v1572
    %v2830 = vunpack.c.l.b16 %v1573
    %v2831 = vunpack.c.h.b16 %v1573
    %v2832 = vunpack.c.l.b16 %v1574
    %v2833 = vunpack.c.h.b16 %v1574
    %v2834 = vunpack.c.l.b16 %v1575
    %v2835 = vunpack.c.h.b16 %v1575
    %v2836 = vunpack.c.l.b16 %v1576
    %v2837 = vunpack.c.h.b16 %v1576
    %v2838 = vunpack.c.l.b16 %v1577
    %v2839 = vunpack.c.h.b16 %v1577
    %v2840 = vunpack.c.l.b16 %v1578
    %v2841 = vunpack.c.h.b16 %v1578
    %v2842 = vunpack.c.l.b16 %v1579
    %v2843 = vunpack.c.h.b16 %v1579
    %v2844 = vunpack.c.l.b16 %v1580
    %v2845 = vunpack.c.h.b16 %v1580
    %v2846 = vunpack.c.l.b16 %v1581
    %v2847 = vunpack.c.h.b16 %v1581
    %v2848 = vunpack.c.l.b16 %v1582
    %v2849 = vunpack.c.h.b16 %v1582
    %v2850 = vunpack.c.l.b16 %v1583
    %v2851 = vunpack.c.h.b16 %v1583
    %v2852 = vunpack.c.l.b16 %v1584
    %v2853 = vunpack.c.h.b16 %v1584
    %v2854 = vunpack.c.l.b16 %v1585
    %v2855 = vunpack.c.h.b16 %v1585
    %v2856 = vunpack.c.l.b16 %v1586
    %v2857 = vunpack.c.h.b16 %v1586
    %v2858 = vunpack.c.l.b16 %v1587
    %v2859 = vunpack.c.h.b16 %v1587
    %v2860 = vunpack.c.l.b16 %v1588
    %v2861 = vunpack.c.h.b16 %v1588
    %v2862 = vunpack.c.l.b16 %v1589
    %v2863 = vunpack.c.h.b16 %v1589
    %v2864 = vunpack.c.l.b16 %v1590
    %v2865 = vunpack.c.h.b16 %v1590
    %v2866 = vunpack.c.l.b16 %v1591
    %v2867 = vunpack.c.h.b16 %v1591
    %v2868 = vunpack.c.l.b16 %v1592
    %v2869 = vunpack.c.h.b16 %v1592
    %v2870 = vunpack.c.l.b16 %v1593
    %v2871 = vunpack.c.h.b16 %v1593
    %v2872 = vunpack.c.l.b16 %v1594
    %v2873 = vunpack.c.h.b16 %v1594
    %v2874 = vunpack.c.l.b16 %v1595
    %v2875 = vunpack.c.h.b16 %v1595
    %v2876 = vunpack.c.l.b16 %v1596
    %v2877 = vunpack.c.h.b16 %v1596
    %v2878 = vunpack.c.l.b16 %v1597
    %v2879 = vunpack.c.h.b16 %v1597
    %v2880 = vunpack.c.l.b16 %v1598
    %v2881 = vunpack.c.h.b16 %v1598
    %v2882 = vunpack.c.l.b16 %v1599
    %v2883 = vunpack.c.h.b16 %v1599
    %v2884 = vunpack.c.l.b16 %v1600
    %v2885 = vunpack.c.h.b16 %v1600
    %v2886 = vunpack.c.l.b16 %v1601
    %v2887 = vunpack.c.h.b16 %v1601
    %v2888 = vunpack.c.l.b16 %v1602
    %v2889 = vunpack.c.h.b16 %v1602
    %v2890 = vunpack.c.l.b16 %v1603
    %v2891 = vunpack.c.h.b16 %v1603
    %v2892 = vunpack.c.l.b16 %v1604
    %v2893 = vunpack.c.h.b16 %v1604
    %v2894 = vunpack.c.l.b16 %v1605
    %v2895 = vunpack.c.h.b16 %v1605
    %v2896 = vunpack.c.l.b16 %v1606
    %v2897 = vunpack.c.h.b16 %v1606
    %v2898 = vunpack.c.l.b16 %v1607
    %v2899 = vunpack.c.h.b16 %v1607
    %v2900 = vunpack.c.l.b16 %v1608
    %v2901 = vunpack.c.h.b16 %v1608
    %v2902 = vunpack.c.l.b16 %v1609
    %v2903 = vunpack.c.h.b16 %v1609
    %v2904 = vunpack.c.l.b16 %v1610
    %v2905 = vunpack.c.h.b16 %v1610
    %v2906 = vunpack.c.l.b16 %v1611
    %v2907 = vunpack.c.h.b16 %v1611
    %v2908 = vunpack.c.l.b16 %v1612
    %v2909 = vunpack.c.h.b16 %v1612
    %v2910 = vunpack.c.l.b16 %v1613
    %v2911 = vunpack.c.h.b16 %v1613
    %v2912 = vunpack.c.l.b16 %v1614
    %v2913 = vunpack.c.h.b16 %v1614
    %v2914 = vunpack.c.l.b16 %v1615
    %v2915 = vunpack.c.h.b16 %v1615
    %v2916 = vunpack.c.l.b16 %v1616
    %v2917 = vunpack.c.h.b16 %v1616
    %v2918 = vunpack.c.l.b16 %v1617
    %v2919 = vunpack.c.h.b16 %v1617
    %v2920 = vunpack.c.l.b16 %v1618
    %v2921 = vunpack.c.h.b16 %v1618
    %v2922 = vunpack.c.l.b16 %v1619
    %v2923 = vunpack.c.h.b16 %v1619
    %v2924 = vunpack.c.l.b16 %v1620
    %v2925 = vunpack.c.h.b16 %v1620
    %v2926 = vunpack.c.l.b16 %v1621
    %v2927 = vunpack.c.h.b16 %v1621
    %v2928 = vunpack.c.l.b16 %v1622
    %v2929 = vunpack.c.h.b16 %v1622
    %v2930 = vunpack.c.l.b16 %v1623
    %v2931 = vunpack.c.h.b16 %v1623
    %v2932 = vunpack.c.l.b16 %v1624
    %v2933 = vunpack.c.h.b16 %v1624
    %v2934 = vunpack.c.l.b16 %v1625
    %v2935 = vunpack.c.h.b16 %v1625
    %v2936 = vunpack.c.l.b16 %v1626
    %v2937 = vunpack.c.h.b16 %v1626
    %v2938 = vunpack.c.l.b16 %v1627
    %v2939 = vunpack.c.h.b16 %v1627
    %v2940 = vunpack.c.l.b16 %v1628
    %v2941 = vunpack.c.h.b16 %v1628
    %v2942 = vunpack.c.l.b16 %v1629
    %v2943 = vunpack.c.h.b16 %v1629
    %v2944 = vunpack.c.l.b16 %v1630
    %v2945 = vunpack.c.h.b16 %v1630
    %v2946 = vunpack.c.l.b16 %v1631
    %v2947 = vunpack.c.h.b16 %v1631
    %v2948 = vunpack.c.l.b16 %v1632
    %v2949 = vunpack.c.h.b16 %v1632
    %v2950 = vunpack.c.l.b16 %v1633
    %v2951 = vunpack.c.h.b16 %v1633
    %v2952 = vunpack.c.l.b16 %v1634
    %v2953 = vunpack.c.h.b16 %v1634
    %v2954 = vunpack.c.l.b16 %v1635
    %v2955 = vunpack.c.h.b16 %v1635
    %v2956 = vunpack.c.l.b16 %v1636
    %v2957 = vunpack.c.h.b16 %v1636
    %v2958 = vunpack.c.l.b16 %v1637
    %v2959 = vunpack.c.h.b16 %v1637
    %v2960 = vunpack.c.l.b16 %v1638
    %v2961 = vunpack.c.h.b16 %v1638
    %v2962 = vunpack.c.l.b16 %v1639
    %v2963 = vunpack.c.h.b16 %v1639
    %v2964 = vunpack.c.l.b16 %v1640
    %v2965 = vunpack.c.h.b16 %v1640
    %v2966 = vunpack.c.l.b16 %v1641
    %v2967 = vunpack.c.h.b16 %v1641
    %v2968 = vunpack.c.l.b16 %v1642
    %v2969 = vunpack.c.h.b16 %v1642
    %v2970 = vunpack.c.l.b16 %v1643
    %v2971 = vunpack.c.h.b16 %v1643
    %v2972 = vunpack.c.l.b16 %v1644
    %v2973 = vunpack.c.h.b16 %v1644
    %v2974 = vunpack.c.l.b16 %v1645
    %v2975 = vunpack.c.h.b16 %v1645
    %v2976 = vunpack.c.l.b16 %v1646
    %v2977 = vunpack.c.h.b16 %v1646
    %v2978 = vunpack.c.l.b16 %v1647
    %v2979 = vunpack.c.h.b16 %v1647
    %v2980 = vunpack.c.l.b16 %v1648
    %v2981 = vunpack.c.h.b16 %v1648
    %v2982 = vunpack.c.l.b16 %v1649
    %v2983 = vunpack.c.h.b16 %v1649
    %v2984 = vunpack.c.l.b16 %v1650
    %v2985 = vunpack.c.h.b16 %v1650
    %v2986 = vunpack.c.l.b16 %v1651
    %v2987 = vunpack.c.h.b16 %v1651
    %v2988 = vunpack.c.l.b16 %v1652
    %v2989 = vunpack.c.h.b16 %v1652
    %v2990 = vunpack.c.l.b16 %v1653
    %v2991 = vunpack.c.h.b16 %v1653
    %v2992 = vunpack.c.l.b16 %v1654
    %v2993 = vunpack.c.h.b16 %v1654
    %v2994 = vunpack.c.l.b16 %v1655
    %v2995 = vunpack.c.h.b16 %v1655
    %v2996 = vunpack.c.l.b16 %v1656
    %v2997 = vunpack.c.h.b16 %v1656
    %v2998 = vunpack.c.l.b16 %v1657
    %v2999 = vunpack.c.h.b16 %v1657
    %v3000 = vunpack.c.l.b16 %v1658
    %v3001 = vunpack.c.h.b16 %v1658
    %v3002 = vunpack.c.l.b16 %v1659
    %v3003 = vunpack.c.h.b16 %v1659
    %v3004 = vunpack.c.l.b16 %v1660
    %v3005 = vunpack.c.h.b16 %v1660
    %v3006 = vunpack.c.l.b16 %v1661
    %v3007 = vunpack.c.h.b16 %v1661
    %v3008 = vunpack.c.l.b16 %v1662
    %v3009 = vunpack.c.h.b16 %v1662
    %v3010 = vunpack.c.l.b16 %v1663
    %v3011 = vunpack.c.h.b16 %v1663
    %v3012 = vunpack.c.l.b16 %v1664
    %v3013 = vunpack.c.h.b16 %v1664
    %v3014 = vunpack.c.l.b16 %v1665
    %v3015 = vunpack.c.h.b16 %v1665
    %v3016 = vunpack.c.l.b16 %v1666
    %v3017 = vunpack.c.h.b16 %v1666
    %v3018 = vunpack.c.l.b16 %v1667
    %v3019 = vunpack.c.h.b16 %v1667
    %v3020 = vunpack.c.l.b16 %v1668
    %v3021 = vunpack.c.h.b16 %v1668
    %v3022 = vunpack.c.l.b16 %v1669
    %v3023 = vunpack.c.h.b16 %v1669
    %v3024 = vunpack.c.l.b16 %v1670
    %v3025 = vunpack.c.h.b16 %v1670
    %v3026 = vunpack.c.l.b16 %v1671
    %v3027 = vunpack.c.h.b16 %v1671
    %v3028 = vunpack.c.l.b16 %v1672
    %v3029 = vunpack.c.h.b16 %v1672
    %v3030 = vunpack.c.l.b16 %v1673
    %v3031 = vunpack.c.h.b16 %v1673
    %v3032 = vunpack.c.l.b16 %v1674
    %v3033 = vunpack.c.h.b16 %v1674
    %v3034 = vunpack.c.l.b16 %v1675
    %v3035 = vunpack.c.h.b16 %v1675
    %v3036 = vunpack.c.l.b16 %v1676
    %v3037 = vunpack.c.h.b16 %v1676
    %v3038 = vunpack.c.l.b16 %v1677
    %v3039 = vunpack.c.h.b16 %v1677
    %v3040 = vunpack.c.l.b16 %v1678
    %v3041 = vunpack.c.h.b16 %v1678
    %v3042 = vunpack.c.l.b16 %v1679
    %v3043 = vunpack.c.h.b16 %v1679
    %v3044 = vunpack.c.l.b16 %v1680
    %v3045 = vunpack.c.h.b16 %v1680
    %v3046 = vunpack.c.l.b16 %v1681
    %v3047 = vunpack.c.h.b16 %v1681
    %v3048 = vunpack.c.l.b16 %v1682
    %v3049 = vunpack.c.h.b16 %v1682
    %v3050 = vunpack.c.l.b16 %v1683
    %v3051 = vunpack.c.h.b16 %v1683
    %v3052 = vunpack.c.l.b16 %v1684
    %v3053 = vunpack.c.h.b16 %v1684
    %v3054 = vunpack.c.l.b16 %v1685
    %v3055 = vunpack.c.h.b16 %v1685
    %v3056 = vunpack.c.l.b16 %v1686
    %v3057 = vunpack.c.h.b16 %v1686
    %v3058 = vunpack.c.l.b16 %v1687
    %v3059 = vunpack.c.h.b16 %v1687
    %v3060 = vunpack.c.l.b16 %v1688
    %v3061 = vunpack.c.h.b16 %v1688
    %v3062 = vunpack.c.l.b16 %v1689
    %v3063 = vunpack.c.h.b16 %v1689
    %v3064 = vunpack.c.l.b16 %v1690
    %v3065 = vunpack.c.h.b16 %v1690
    %v3066 = vunpack.c.l.b16 %v1691
    %v3067 = vunpack.c.h.b16 %v1691
    %v3068 = vunpack.c.l.b16 %v1692
    %v3069 = vunpack.c.h.b16 %v1692
    %v3070 = vunpack.c.l.b16 %v1693
    %v3071 = vunpack.c.h.b16 %v1693
    %v3072 = vunpack.c.l.b16 %v1694
    %v3073 = vunpack.c.h.b16 %v1694
    %v3074 = vunpack.c.l.b16 %v1695
    %v3075 = vunpack.c.h.b16 %v1695
    %v3076 = vunpack.c.l.b16 %v1696
    %v3077 = vunpack.c.h.b16 %v1696
    %v3078 = vunpack.c.l.b16 %v1697
    %v3079 = vunpack.c.h.b16 %v1697
    %v3080 = vunpack.c.l.b16 %v1698
    %v3081 = vunpack.c.h.b16 %v1698
    %v3082 = vunpack.c.l.b16 %v1699
    %v3083 = vunpack.c.h.b16 %v1699
    %v3084 = vunpack.c.l.b16 %v1700
    %v3085 = vunpack.c.h.b16 %v1700
    %v3086 = vunpack.c.l.b16 %v1701
    %v3087 = vunpack.c.h.b16 %v1701
    %v3088 = vunpack.c.l.b16 %v1702
    %v3089 = vunpack.c.h.b16 %v1702
    %v3090 = vunpack.c.l.b16 %v1703
    %v3091 = vunpack.c.h.b16 %v1703
    %v3092 = vunpack.c.l.b16 %v1704
    %v3093 = vunpack.c.h.b16 %v1704
    %v3094 = vunpack.c.l.b16 %v1705
    %v3095 = vunpack.c.h.b16 %v1705
    %v3096 = vunpack.c.l.b16 %v1706
    %v3097 = vunpack.c.h.b16 %v1706
    %v3098 = vunpack.c.l.b16 %v1707
    %v3099 = vunpack.c.h.b16 %v1707
    %v3100 = vunpack.c.l.b16 %v1708
    %v3101 = vunpack.c.h.b16 %v1708
    %v3102 = vunpack.c.l.b16 %v1709
    %v3103 = vunpack.c.h.b16 %v1709
    %v3104 = vunpack.c.l.b16 %v1710
    %v3105 = vunpack.c.h.b16 %v1710
    %v3106 = vunpack.c.l.b16 %v1711
    %v3107 = vunpack.c.h.b16 %v1711
    %v3108 = vunpack.c.l.b16 %v1712
    %v3109 = vunpack.c.h.b16 %v1712
    %v3110 = vunpack.c.l.b16 %v1713
    %v3111 = vunpack.c.h.b16 %v1713
    %v3112 = vunpack.c.l.b16 %v1714
    %v3113 = vunpack.c.h.b16 %v1714
    %v3114 = vunpack.c.l.b16 %v1715
    %v3115 = vunpack.c.h.b16 %v1715
    %v3116 = vunpack.c.l.b16 %v1716
    %v3117 = vunpack.c.h.b16 %v1716
    %v3118 = vunpack.c.l.b16 %v1717
    %v3119 = vunpack.c.h.b16 %v1717
    %v3120 = vunpack.c.l.b16 %v1718
    %v3121 = vunpack.c.h.b16 %v1718
    %v3122 = vunpack.c.l.b16 %v1719
    %v3123 = vunpack.c.h.b16 %v1719
    %v3124 = vunpack.c.l.b16 %v1720
    %v3125 = vunpack.c.h.b16 %v1720
    %v3126 = vunpack.c.l.b16 %v1721
    %v3127 = vunpack.c.h.b16 %v1721
    %v3128 = vunpack.c.l.b16 %v1722
    %v3129 = vunpack.c.h.b16 %v1722
    %v3130 = vunpack.c.l.b16 %v1723
    %v3131 = vunpack.c.h.b16 %v1723
    %v3132 = vunpack.c.l.b16 %v1724
    %v3133 = vunpack.c.h.b16 %v1724
    %v3134 = vunpack.c.l.b16 %v1725
    %v3135 = vunpack.c.h.b16 %v1725
    %v3136 = vunpack.c.l.b16 %v1726
    %v3137 = vunpack.c.h.b16 %v1726
    %v3138 = vunpack.c.l.b16 %v1727
    %v3139 = vunpack.c.h.b16 %v1727
    %v3140 = vunpack.c.l.b16 %v1728
    %v3141 = vunpack.c.h.b16 %v1728
    %v3142 = vunpack.c.l.b16 %v1729
    %v3143 = vunpack.c.h.b16 %v1729
    %v3144 = vunpack.c.l.b16 %v1730
    %v3145 = vunpack.c.h.b16 %v1730
    %v3146 = vunpack.c.l.b16 %v1731
    %v3147 = vunpack.c.h.b16 %v1731
    %v3148 = vunpack.c.l.b16 %v1732
    %v3149 = vunpack.c.h.b16 %v1732
    %v3150 = vunpack.c.l.b16 %v1733
    %v3151 = vunpack.c.h.b16 %v1733
    %v3152 = vunpack.c.l.b16 %v1734
    %v3153 = vunpack.c.h.b16 %v1734
    %v3154 = vunpack.c.l.b16 %v1735
    %v3155 = vunpack.c.h.b16 %v1735
    %v3156 = vunpack.c.l.b16 %v1736
    %v3157 = vunpack.c.h.b16 %v1736
    %v3158 = vunpack.c.l.b16 %v1737
    %v3159 = vunpack.c.h.b16 %v1737
    %v3160 = vunpack.c.l.b16 %v1738
    %v3161 = vunpack.c.h.b16 %v1738
    %v3162 = vunpack.c.l.b16 %v1739
    %v3163 = vunpack.c.h.b16 %v1739
    %v3164 = vunpack.c.l.b16 %v1740
    %v3165 = vunpack.c.h.b16 %v1740
    %v3166 = vunpack.c.l.b16 %v1741
    %v3167 = vunpack.c.h.b16 %v1741
    %v3168 = vunpack.c.l.b16 %v1742
    %v3169 = vunpack.c.h.b16 %v1742
    %v3170 = vunpack.c.l.b16 %v1743
    %v3171 = vunpack.c.h.b16 %v1743
    %v3172 = vunpack.c.l.b16 %v1744
    %v3173 = vunpack.c.h.b16 %v1744
    %v3174 = vunpack.c.l.b16 %v1745
    %v3175 = vunpack.c.h.b16 %v1745
    %v3176 = vunpack.c.l.b16 %v1746
    %v3177 = vunpack.c.h.b16 %v1746
    %v3178 = vunpack.c.l.b16 %v1747
    %v3179 = vunpack.c.h.b16 %v1747
    %v3180 = vunpack.c.l.b16 %v1748
    %v3181 = vunpack.c.h.b16 %v1748
    %v3182 = vunpack.c.l.b16 %v1749
    %v3183 = vunpack.c.h.b16 %v1749
    %v3184 = vunpack.c.l.b16 %v1750
    %v3185 = vunpack.c.h.b16 %v1750
    %v3186 = vunpack.c.l.b16 %v1751
    %v3187 = vunpack.c.h.b16 %v1751
    %v3188 = vunpack.c.l.b16 %v1752
    %v3189 = vunpack.c.h.b16 %v1752
    %v3190 = vunpack.c.l.b16 %v1753
    %v3191 = vunpack.c.h.b16 %v1753
    %v3192 = vunpack.c.l.b16 %v1754
    %v3193 = vunpack.c.h.b16 %v1754
    %v3194 = vunpack.c.l.b16 %v1755
    %v3195 = vunpack.c.h.b16 %v1755
    %v3196 = vunpack.c.l.b16 %v1756
    %v3197 = vunpack.c.h.b16 %v1756
    %v3198 = vunpack.c.l.b16 %v1757
    %v3199 = vunpack.c.h.b16 %v1757
    %v3200 = vunpack.c.l.b16 %v1758
    %v3201 = vunpack.c.h.b16 %v1758
    %v3202 = vunpack.c.l.b16 %v1759
    %v3203 = vunpack.c.h.b16 %v1759
    %v3204 = vunpack.c.l.b16 %v1760
    %v3205 = vunpack.c.h.b16 %v1760
    %v3206 = vunpack.c.l.b16 %v1761
    %v3207 = vunpack.c.h.b16 %v1761
    %v3208 = vunpack.c.l.b16 %v1762
    %v3209 = vunpack.c.h.b16 %v1762
    %v3210 = vunpack.c.l.b16 %v1763
    %v3211 = vunpack.c.h.b16 %v1763
    %v3212 = vunpack.c.l.b16 %v1764
    %v3213 = vunpack.c.h.b16 %v1764
    %v3214 = vunpack.c.l.b16 %v1765
    %v3215 = vunpack.c.h.b16 %v1765
    %v3216 = vunpack.c.l.b16 %v1766
    %v3217 = vunpack.c.h.b16 %v1766
    %v3218 = vunpack.c.l.b16 %v1767
    %v3219 = vunpack.c.h.b16 %v1767
    %v3220 = vunpack.c.l.b16 %v1768
    %v3221 = vunpack.c.h.b16 %v1768
    %v3222 = vunpack.c.l.b16 %v1769
    %v3223 = vunpack.c.h.b16 %v1769
    %v3224 = vunpack.c.l.b16 %v1770
    %v3225 = vunpack.c.h.b16 %v1770
    %v3226 = vunpack.c.l.b16 %v1771
    %v3227 = vunpack.c.h.b16 %v1771
    %v3228 = vunpack.c.l.b16 %v1772
    %v3229 = vunpack.c.h.b16 %v1772
    %v3230 = vunpack.c.l.b16 %v1773
    %v3231 = vunpack.c.h.b16 %v1773
    %v3232 = vunpack.c.l.b16 %v1774
    %v3233 = vunpack.c.h.b16 %v1774
    %v3234 = vunpack.c.l.b16 %v1775
    %v3235 = vunpack.c.h.b16 %v1775
    %v3236 = vunpack.c.l.b16 %v1776
    %v3237 = vunpack.c.h.b16 %v1776
    %v3238 = vunpack.c.l.b16 %v1777
    %v3239 = vunpack.c.h.b16 %v1777
    %v3240 = vunpack.c.l.b16 %v1778
    %v3241 = vunpack.c.h.b16 %v1778
    %v3242 = vunpack.c.l.b16 %v1779
    %v3243 = vunpack.c.h.b16 %v1779
    %v3244 = vunpack.c.l.b16 %v1780
    %v3245 = vunpack.c.h.b16 %v1780
    %v3246 = vunpack.c.l.b16 %v1781
    %v3247 = vunpack.c.h.b16 %v1781
    %v3248 = vunpack.c.l.b16 %v1782
    %v3249 = vunpack.c.h.b16 %v1782
    %v3250 = vunpack.c.l.b16 %v1783
    %v3251 = vunpack.c.h.b16 %v1783
    %v3252 = vunpack.c.l.b16 %v1784
    %v3253 = vunpack.c.h.b16 %v1784
    %v3254 = vunpack.c.l.b16 %v1785
    %v3255 = vunpack.c.h.b16 %v1785
    %v3256 = vunpack.c.l.b16 %v1786
    %v3257 = vunpack.c.h.b16 %v1786
    %v3258 = vunpack.c.l.b16 %v1787
    %v3259 = vunpack.c.h.b16 %v1787
    %v3260 = vunpack.c.l.b16 %v1788
    %v3261 = vunpack.c.h.b16 %v1788
    %v3262 = vunpack.c.l.b16 %v1789
    %v3263 = vunpack.c.h.b16 %v1789
    %v3264 = vunpack.c.l.b16 %v1790
    %v3265 = vunpack.c.h.b16 %v1790
    %v3266 = vunpack.c.l.b16 %v1791
    %v3267 = vunpack.c.h.b16 %v1791
    %v3268 = vunpack.c.l.b16 %v1792
    %v3269 = vunpack.c.h.b16 %v1792
    %v3270 = vunpack.c.l.b16 %v1793
    %v3271 = vunpack.c.h.b16 %v1793
    %v3272 = vunpack.c.l.b16 %v1794
    %v3273 = vunpack.c.h.b16 %v1794
    %v3274 = vunpack.c.l.b16 %v1795
    %v3275 = vunpack.c.h.b16 %v1795
    %v3276 = vunpack.c.l.b16 %v1796
    %v3277 = vunpack.c.h.b16 %v1796
    %v3278 = vunpack.c.l.b16 %v1797
    %v3279 = vunpack.c.h.b16 %v1797
    %v3280 = vunpack.c.l.b16 %v1798
    %v3281 = vunpack.c.h.b16 %v1798
    %v3282 = vunpack.c.l.b16 %v1799
    %v3283 = vunpack.c.h.b16 %v1799
    %v3284 = vunpack.c.l.b16 %v1800
    %v3285 = vunpack.c.h.b16 %v1800
    %v3286 = vunpack.c.l.b16 %v1801
    %v3287 = vunpack.c.h.b16 %v1801
    %v3288 = vunpack.c.l.b16 %v1802
    %v3289 = vunpack.c.h.b16 %v1802
    %v3290 = vunpack.c.l.b16 %v1803
    %v3291 = vunpack.c.h.b16 %v1803
    %v3292 = vunpack.c.l.b16 %v1804
    %v3293 = vunpack.c.h.b16 %v1804
    %v3294 = vunpack.c.l.b16 %v1805
    %v3295 = vunpack.c.h.b16 %v1805
    %v3296 = vunpack.c.l.b16 %v1806
    %v3297 = vunpack.c.h.b16 %v1806
    %v3298 = vunpack.c.l.b16 %v1807
    %v3299 = vunpack.c.h.b16 %v1807
    %v3300 = vunpack.c.l.b16 %v1808
    %v3301 = vunpack.c.h.b16 %v1808
    %v3302 = vunpack.c.l.b16 %v1809
    %v3303 = vunpack.c.h.b16 %v1809
    %v3304 = vunpack.c.l.b16 %v1810
    %v3305 = vunpack.c.h.b16 %v1810
    %v3306 = vunpack.c.l.b16 %v1811
    %v3307 = vunpack.c.h.b16 %v1811
    %v3308 = vunpack.c.l.b16 %v1812
    %v3309 = vunpack.c.h.b16 %v1812
    %v3310 = vunpack.c.l.b16 %v1813
    %v3311 = vunpack.c.h.b16 %v1813
    %v3312 = vunpack.c.l.b16 %v1814
    %v3313 = vunpack.c.h.b16 %v1814
    %v3314 = vunpack.c.l.b16 %v1815
    %v3315 = vunpack.c.h.b16 %v1815
    %v3316 = vunpack.c.l.b16 %v1816
    %v3317 = vunpack.c.h.b16 %v1816
    %v3318 = vunpack.c.l.b16 %v1817
    %v3319 = vunpack.c.h.b16 %v1817
    %v3320 = vunpack.c.l.b16 %v1818
    %v3321 = vunpack.c.h.b16 %v1818
    %v3322 = vunpack.c.l.b16 %v1819
    %v3323 = vunpack.c.h.b16 %v1819
    %v3324 = vunpack.c.l.b16 %v1820
    %v3325 = vunpack.c.h.b16 %v1820
    %v3326 = vunpack.c.l.b16 %v1821
    %v3327 = vunpack.c.h.b16 %v1821
    %v3328 = vunpack.c.l.b16 %v1822
    %v3329 = vunpack.c.h.b16 %v1822
    %v3330 = vunpack.c.l.b16 %v1823
    %v3331 = vunpack.c.h.b16 %v1823
    %v3332 = vunpack.c.l.b16 %v1824
    %v3333 = vunpack.c.h.b16 %v1824
    %v3334 = vunpack.c.l.b16 %v1825
    %v3335 = vunpack.c.h.b16 %v1825
    %v3336 = vunpack.c.l.b16 %v1826
    %v3337 = vunpack.c.h.b16 %v1826
    %v3338 = vunpack.c.l.b16 %v1827
    %v3339 = vunpack.c.h.b16 %v1827
    %v3340 = vunpack.c.l.b16 %v1828
    %v3341 = vunpack.c.h.b16 %v1828
    %v3342 = vunpack.c.l.b16 %v1829
    %v3343 = vunpack.c.h.b16 %v1829
    %v3344 = vunpack.c.l.b16 %v1830
    %v3345 = vunpack.c.h.b16 %v1830
    %v3346 = vunpack.c.l.b16 %v1831
    %v3347 = vunpack.c.h.b16 %v1831
    %v3348 = vunpack.c.l.b16 %v1832
    %v3349 = vunpack.c.h.b16 %v1832
    %v3350 = vunpack.c.l.b16 %v1833
    %v3351 = vunpack.c.h.b16 %v1833
    %v3352 = vunpack.c.l.b16 %v1834
    %v3353 = vunpack.c.h.b16 %v1834
    %v3354 = vunpack.c.l.b16 %v1835
    %v3355 = vunpack.c.h.b16 %v1835
    %v3356 = vunpack.c.l.b16 %v1836
    %v3357 = vunpack.c.h.b16 %v1836
    %v3358 = vunpack.c.l.b16 %v1837
    %v3359 = vunpack.c.h.b16 %v1837
    %v3360 = vunpack.c.l.b16 %v1838
    %v3361 = vunpack.c.h.b16 %v1838
    %v3362 = vunpack.c.l.b16 %v1839
    %v3363 = vunpack.c.h.b16 %v1839
    %v3364 = vunpack.c.l.b16 %v1840
    %v3365 = vunpack.c.h.b16 %v1840
    %v3366 = vunpack.c.l.b16 %v1841
    %v3367 = vunpack.c.h.b16 %v1841
    %v3368 = vunpack.c.l.b16 %v1842
    %v3369 = vunpack.c.h.b16 %v1842
    %v3370 = vunpack.c.l.b16 %v1843
    %v3371 = vunpack.c.h.b16 %v1843
    %v3372 = vunpack.c.l.b16 %v1844
    %v3373 = vunpack.c.h.b16 %v1844
    %v3374 = vunpack.c.l.b16 %v1845
    %v3375 = vunpack.c.h.b16 %v1845
    %v3376 = vunpack.c.l.b16 %v1846
    %v3377 = vunpack.c.h.b16 %v1846
    %v3378 = vunpack.c.l.b16 %v1847
    %v3379 = vunpack.c.h.b16 %v1847
    %v3380 = vunpack.c.l.b16 %v1848
    %v3381 = vunpack.c.h.b16 %v1848
    %v3382 = vunpack.c.l.b16 %v1849
    %v3383 = vunpack.c.h.b16 %v1849
    %v3384 = vunpack.c.l.b16 %v1850
    %v3385 = vunpack.c.h.b16 %v1850
    %v3386 = vunpack.c.l.b16 %v1851
    %v3387 = vunpack.c.h.b16 %v1851
    %v3388 = vunpack.c.l.b16 %v1852
    %v3389 = vunpack.c.h.b16 %v1852
    %v3390 = vunpack.c.l.b16 %v1853
    %v3391 = vunpack.c.h.b16 %v1853
    %v3392 = vunpack.c.l.b16 %v1854
    %v3393 = vunpack.c.h.b16 %v1854
    %v3394 = vunpack.c.l.b16 %v1855
    %v3395 = vunpack.c.h.b16 %v1855
    %v3396 = vunpack.c.l.b16 %v1856
    %v3397 = vunpack.c.h.b16 %v1856
    %v3398 = vunpack.c.l.b16 %v1857
    %v3399 = vunpack.c.h.b16 %v1857
    %v3400 = vunpack.c.l.b16 %v1858
    %v3401 = vunpack.c.h.b16 %v1858
    %v3402 = vunpack.c.l.b16 %v1859
    %v3403 = vunpack.c.h.b16 %v1859
    %v3404 = vunpack.c.l.b16 %v1860
    %v3405 = vunpack.c.h.b16 %v1860
    %v3406 = vunpack.c.l.b16 %v1861
    %v3407 = vunpack.c.h.b16 %v1861
    %v3408 = vunpack.c.l.b16 %v1862
    %v3409 = vunpack.c.h.b16 %v1862
    %v3410 = vunpack.c.l.b16 %v1863
    %v3411 = vunpack.c.h.b16 %v1863
    %v3412 = vunpack.c.l.b16 %v1864
    %v3413 = vunpack.c.h.b16 %v1864
    %v3414 = vunpack.c.l.b16 %v1865
    %v3415 = vunpack.c.h.b16 %v1865
    %v3416 = vunpack.c.l.b16 %v1866
    %v3417 = vunpack.c.h.b16 %v1866
    %v3418 = vunpack.c.l.b16 %v1867
    %v3419 = vunpack.c.h.b16 %v1867
    %v3420 = vunpack.c.l.b16 %v1868
    %v3421 = vunpack.c.h.b16 %v1868
    %v3422 = vunpack.c.l.b16 %v1869
    %v3423 = vunpack.c.h.b16 %v1869
    %v3424 = vunpack.c.l.b16 %v1870
    %v3425 = vunpack.c.h.b16 %v1870
    %v3426 = vunpack.c.l.b16 %v1871
    %v3427 = vunpack.c.h.b16 %v1871
    %v3428 = vunpack.c.l.b16 %v1872
    %v3429 = vunpack.c.h.b16 %v1872
    %v3430 = vunpack.c.l.b16 %v1873
    %v3431 = vunpack.c.h.b16 %v1873
    %v3432 = vunpack.c.l.b16 %v1874
    %v3433 = vunpack.c.h.b16 %v1874
    %v3434 = vunpack.c.l.b16 %v1875
    %v3435 = vunpack.c.h.b16 %v1875
    %v3436 = vunpack.c.l.b16 %v1876
    %v3437 = vunpack.c.h.b16 %v1876
    %v3438 = vunpack.c.l.b16 %v1877
    %v3439 = vunpack.c.h.b16 %v1877
    %v3440 = vunpack.c.l.b16 %v1878
    %v3441 = vunpack.c.h.b16 %v1878
    %v3442 = vunpack.c.l.b16 %v1879
    %v3443 = vunpack.c.h.b16 %v1879
    %v3444 = vunpack.c.l.b16 %v1880
    %v3445 = vunpack.c.h.b16 %v1880
    %v3446 = vunpack.c.l.b16 %v1881
    %v3447 = vunpack.c.h.b16 %v1881
    %v3448 = vunpack.c.l.b16 %v1882
    %v3449 = vunpack.c.h.b16 %v1882
    %v3450 = vunpack.c.l.b16 %v1883
    %v3451 = vunpack.c.h.b16 %v1883
    %v3452 = vunpack.c.l.b16 %v1884
    %v3453 = vunpack.c.h.b16 %v1884
    %v3454 = vunpack.c.l.b16 %v1885
    %v3455 = vunpack.c.h.b16 %v1885
    %v3456 = vunpack.c.l.b16 %v1886
    %v3457 = vunpack.c.h.b16 %v1886
    %v3458 = vunpack.c.l.b16 %v1887
    %v3459 = vunpack.c.h.b16 %v1887
    %v3460 = vunpack.c.l.b16 %v1888
    %v3461 = vunpack.c.h.b16 %v1888
    %v3462 = vunpack.c.l.b16 %v1889
    %v3463 = vunpack.c.h.b16 %v1889
    %v3464 = vunpack.c.l.b16 %v1890
    %v3465 = vunpack.c.h.b16 %v1890
    %v3466 = vunpack.c.l.b16 %v1891
    %v3467 = vunpack.c.h.b16 %v1891
    %v3468 = vunpack.c.l.b16 %v1892
    %v3469 = vunpack.c.h.b16 %v1892
    %v3470 = vunpack.c.l.b16 %v1893
    %v3471 = vunpack.c.h.b16 %v1893
    %v3472 = vpack.c.b16 %v2456, %v2448
    %v3473 = vpack.c.b16 %v2457, %v2449
    %v3474 = vpack.c.b16 %v2458, %v2450
    %v3475 = vpack.c.b16 %v2459, %v2451
    %v3476 = vpack.c.b16 %v2460, %v2452
    %v3477 = vpack.c.b16 %v2461, %v2453
    %v3478 = vpack.c.b16 %v2462, %v2454
    %v3479 = vpack.c.b16 %v2463, %v2455
    %v3480 = vpack.c.b16 %v2472, %v2464
    %v3481 = vpack.c.b16 %v2473, %v2465
    %v3482 = vpack.c.b16 %v2474, %v2466
    %v3483 = vpack.c.b16 %v2475, %v2467
    %v3484 = vpack.c.b16 %v2476, %v2468
    %v3485 = vpack.c.b16 %v2477, %v2469
    %v3486 = vpack.c.b16 %v2478, %v2470
    %v3487 = vpack.c.b16 %v2479, %v2471
    %v3488 = vpack.c.b16 %v2488, %v2480
    %v3489 = vpack.c.b16 %v2489, %v2481
    %v3490 = vpack.c.b16 %v2490, %v2482
    %v3491 = vpack.c.b16 %v2491, %v2483
    %v3492 = vpack.c.b16 %v2492, %v2484
    %v3493 = vpack.c.b16 %v2493, %v2485
    %v3494 = vpack.c.b16 %v2494, %v2486
    %v3495 = vpack.c.b16 %v2495, %v2487
    %v3496 = vpack.c.b16 %v2504, %v2496
    %v3497 = vpack.c.b16 %v2505, %v2497
    %v3498 = vpack.c.b16 %v2506, %v2498
    %v3499 = vpack.c.b16 %v2507, %v2499
    %v3500 = vpack.c.b16 %v2508, %v2500
    %v3501 = vpack.c.b16 %v2509, %v2501
    %v3502 = vpack.c.b16 %v2510, %v2502
    %v3503 = vpack.c.b16 %v2511, %v2503
    %v3504 = vpack.c.b16 %v2520, %v2512
    %v3505 = vpack.c.b16 %v2521, %v2513
    %v3506 = vpack.c.b16 %v2522, %v2514
    %v3507 = vpack.c.b16 %v2523, %v2515
    %v3508 = vpack.c.b16 %v2524, %v2516
    %v3509 = vpack.c.b16 %v2525, %v2517
    %v3510 = vpack.c.b16 %v2526, %v2518
    %v3511 = vpack.c.b16 %v2527, %v2519
    %v3512 = vpack.c.b16 %v2536, %v2528
    %v3513 = vpack.c.b16 %v2537, %v2529
    %v3514 = vpack.c.b16 %v2538, %v2530
    %v3515 = vpack.c.b16 %v2539, %v2531
    %v3516 = vpack.c.b16 %v2540, %v2532
    %v3517 = vpack.c.b16 %v2541, %v2533
    %v3518 = vpack.c.b16 %v2542, %v2534
    %v3519 = vpack.c.b16 %v2543, %v2535
    %v3520 = vpack.c.b16 %v2552, %v2544
    %v3521 = vpack.c.b16 %v2553, %v2545
    %v3522 = vpack.c.b16 %v2554, %v2546
    %v3523 = vpack.c.b16 %v2555, %v2547
    %v3524 = vpack.c.b16 %v2556, %v2548
    %v3525 = vpack.c.b16 %v2557, %v2549
    %v3526 = vpack.c.b16 %v2558, %v2550
    %v3527 = vpack.c.b16 %v2559, %v2551
    %v3528 = vpack.c.b16 %v2568, %v2560
    %v3529 = vpack.c.b16 %v2569, %v2561
    %v3530 = vpack.c.b16 %v2570, %v2562
    %v3531 = vpack.c.b16 %v2571, %v2563
    %v3532 = vpack.c.b16 %v2572, %v2564
    %v3533 = vpack.c.b16 %v2573, %v2565
    %v3534 = vpack.c.b16 %v2574, %v2566
    %v3535 = vpack.c.b16 %v2575, %v2567
    %v3536 = vpack.c.b16 %v2584, %v2576
    %v3537 = vpack.c.b16 %v2585, %v2577
    %v3538 = vpack.c.b16 %v2586, %v2578
    %v3539 = vpack.c.b16 %v2587, %v2579
    %v3540 = vpack.c.b16 %v2588, %v2580
    %v3541 = vpack.c.b16 %v2589, %v2581
    %v3542 = vpack.c.b16 %v2590, %v2582
    %v3543 = vpack.c.b16 %v2591, %v2583
    %v3544 = vpack.c.b16 %v2600, %v2592
    %v3545 = vpack.c.b16 %v2601, %v2593
    %v3546 = vpack.c.b16 %v2602, %v2594
    %v3547 = vpack.c.b16 %v2603, %v2595
    %v3548 = vpack.c.b16 %v2604, %v2596
    %v3549 = vpack.c.b16 %v2605, %v2597
    %v3550 = vpack.c.b16 %v2606, %v2598
    %v3551 = vpack.c.b16 %v2607, %v2599
    %v3552 = vpack.c.b16 %v2616, %v2608
    %v3553 = vpack.c.b16 %v2617, %v2609
    %v3554 = vpack.c.b16 %v2618, %v2610
    %v3555 = vpack.c.b16 %v2619, %v2611
    %v3556 = vpack.c.b16 %v2620, %v2612
    %v3557 = vpack.c.b16 %v2621, %v2613
    %v3558 = vpack.c.b16 %v2622, %v2614
    %v3559 = vpack.c.b16 %v2623, %v2615
    %v3560 = vpack.c.b16 %v2632, %v2624
    %v3561 = vpack.c.b16 %v2633, %v2625
    %v3562 = vpack.c.b16 %v2634, %v2626
    %v3563 = vpack.c.b16 %v2635, %v2627
    %v3564 = vpack.c.b16 %v2636, %v2628
    %v3565 = vpack.c.b16 %v2637, %v2629
    %v3566 = vpack.c.b16 %v2638, %v2630
    %v3567 = vpack.c.b16 %v2639, %v2631
    %v3568 = vpack.c.b16 %v2648, %v2640
    %v3569 = vpack.c.b16 %v2649, %v2641
    %v3570 = vpack.c.b16 %v2650, %v2642
    %v3571 = vpack.c.b16 %v2651, %v2643
    %v3572 = vpack.c.b16 %v2652, %v2644
    %v3573 = vpack.c.b16 %v2653, %v2645
    %v3574 = vpack.c.b16 %v2654, %v2646
    %v3575 = vpack.c.b16 %v2655, %v2647
    %v3576 = vpack.c.b16 %v2664, %v2656
    %v3577 = vpack.c.b16 %v2665, %v2657
    %v3578 = vpack.c.b16 %v2666, %v2658
    %v3579 = vpack.c.b16 %v2667, %v2659
    %v3580 = vpack.c.b16 %v2668, %v2660
    %v3581 = vpack.c.b16 %v2669, %v2661
    %v3582 = vpack.c.b16 %v2670, %v2662
    %v3583 = vpack.c.b16 %v2671, %v2663
    %v3584 = vpack.c.b16 %v2680, %v2672
    %v3585 = vpack.c.b16 %v2681, %v2673
    %v3586 = vpack.c.b16 %v2682, %v2674
    %v3587 = vpack.c.b16 %v2683, %v2675
    %v3588 = vpack.c.b16 %v2684, %v2676
    %v3589 = vpack.c.b16 %v2685, %v2677
    %v3590 = vpack.c.b16 %v2686, %v2678
    %v3591 = vpack.c.b16 %v2687, %v2679
    %v3592 = vpack.c.b16 %v2696, %v2688
    %v3593 = vpack.c.b16 %v2697, %v2689
    %v3594 = vpack.c.b16 %v2698, %v2690
    %v3595 = vpack.c.b16 %v2699, %v2691
    %v3596 = vpack.c.b16 %v2700, %v2692
    %v3597 = vpack.c.b16 %v2701, %v2693
    %v3598 = vpack.c.b16 %v2702, %v2694
    %v3599 = vpack.c.b16 %v2703, %v2695
    %v3600 = vpack.c.b16 %v2712, %v2704
    %v3601 = vpack.c.b16 %v2713, %v2705
    %v3602 = vpack.c.b16 %v2714, %v2706
    %v3603 = vpack.c.b16 %v2715, %v2707
    %v3604 = vpack.c.b16 %v2716, %v2708
    %v3605 = vpack.c.b16 %v2717, %v2709
    %v3606 = vpack.c.b16 %v2718, %v2710
    %v3607 = vpack.c.b16 %v2719, %v2711
    %v3608 = vpack.c.b16 %v2728, %v2720
    %v3609 = vpack.c.b16 %v2729, %v2721
    %v3610 = vpack.c.b16 %v2730, %v2722
    %v3611 = vpack.c.b16 %v2731, %v2723
    %v3612 = vpack.c.b16 %v2732, %v2724
    %v3613 = vpack.c.b16 %v2733, %v2725
    %v3614 = vpack.c.b16 %v2734, %v2726
    %v3615 = vpack.c.b16 %v2735, %v2727
    %v3616 = vpack.c.b16 %v2744, %v2736
    %v3617 = vpack.c.b16 %v2745, %v2737
    %v3618 = vpack.c.b16 %v2746, %v2738
    %v3619 = vpack.c.b16 %v2747, %v2739
    %v3620 = vpack.c.b16 %v2748, %v2740
    %v3621 = vpack.c.b16 %v2749, %v2741
    %v3622 = vpack.c.b16 %v2750, %v2742
    %v3623 = vpack.c.b16 %v2751, %v2743
    %v3624 = vpack.c.b16 %v2760, %v2752
    %v3625 = vpack.c.b16 %v2761, %v2753
    %v3626 = vpack.c.b16 %v2762, %v2754
    %v3627 = vpack.c.b16 %v2763, %v2755
    %v3628 = vpack.c.b16 %v2764, %v2756
    %v3629 = vpack.c.b16 %v2765, %v2757
    %v3630 = vpack.c.b16 %v2766, %v2758
    %v3631 = vpack.c.b16 %v2767, %v2759
    %v3632 = vpack.c.b16 %v2776, %v2768
    %v3633 = vpack.c.b16 %v2777, %v2769
    %v3634 = vpack.c.b16 %v2778, %v2770
    %v3635 = vpack.c.b16 %v2779, %v2771
    %v3636 = vpack.c.b16 %v2780, %v2772
    %v3637 = vpack.c.b16 %v2781, %v2773
    %v3638 = vpack.c.b16 %v2782, %v2774
    %v3639 = vpack.c.b16 %v2783, %v2775
    %v3640 = vpack.c.b16 %v2792, %v2784
    %v3641 = vpack.c.b16 %v2793, %v2785
    %v3642 = vpack.c.b16 %v2794, %v2786
    %v3643 = vpack.c.b16 %v2795, %v2787
    %v3644 = vpack.c.b16 %v2796, %v2788
    %v3645 = vpack.c.b16 %v2797, %v2789
    %v3646 = vpack.c.b16 %v2798, %v2790
    %v3647 = vpack.c.b16 %v2799, %v2791
    %v3648 = vpack.c.b16 %v2808, %v2800
    %v3649 = vpack.c.b16 %v2809, %v2801
    %v3650 = vpack.c.b16 %v2810, %v2802
    %v3651 = vpack.c.b16 %v2811, %v2803
    %v3652 = vpack.c.b16 %v2812, %v2804
    %v3653 = vpack.c.b16 %v2813, %v2805
    %v3654 = vpack.c.b16 %v2814, %v2806
    %v3655 = vpack.c.b16 %v2815, %v2807
    %v3656 = vpack.c.b16 %v2824, %v2816
    %v3657 = vpack.c.b16 %v2825, %v2817
    %v3658 = vpack.c.b16 %v2826, %v2818
    %v3659 = vpack.c.b16 %v2827, %v2819
    %v3660 = vpack.c.b16 %v2828, %v2820
    %v3661 = vpack.c.b16 %v2829, %v2821
    %v3662 = vpack.c.b16 %v2830, %v2822
    %v3663 = vpack.c.b16 %v2831, %v2823
    %v3664 = vpack.c.b16 %v2840, %v2832
    %v3665 = vpack.c.b16 %v2841, %v2833
    %v3666 = vpack.c.b16 %v2842, %v2834
    %v3667 = vpack.c.b16 %v2843, %v2835
    %v3668 = vpack.c.b16 %v2844, %v2836
    %v3669 = vpack.c.b16 %v2845, %v2837
    %v3670 = vpack.c.b16 %v2846, %v2838
    %v3671 = vpack.c.b16 %v2847, %v2839
    %v3672 = vpack.c.b16 %v2856, %v2848
    %v3673 = vpack.c.b16 %v2857, %v2849
    %v3674 = vpack.c.b16 %v2858, %v2850
    %v3675 = vpack.c.b16 %v2859, %v2851
    %v3676 = vpack.c.b16 %v2860, %v2852
    %v3677 = vpack.c.b16 %v2861, %v2853
    %v3678 = vpack.c.b16 %v2862, %v2854
    %v3679 = vpack.c.b16 %v2863, %v2855
    %v3680 = vpack.c.b16 %v2872, %v2864
    %v3681 = vpack.c.b16 %v2873, %v2865
    %v3682 = vpack.c.b16 %v2874, %v2866
    %v3683 = vpack.c.b16 %v2875, %v2867
    %v3684 = vpack.c.b16 %v2876, %v2868
    %v3685 = vpack.c.b16 %v2877, %v2869
    %v3686 = vpack.c.b16 %v2878, %v2870
    %v3687 = vpack.c.b16 %v2879, %v2871
    %v3688 = vpack.c.b16 %v2888, %v2880
    %v3689 = vpack.c.b16 %v2889, %v2881
    %v3690 = vpack.c.b16 %v2890, %v2882
    %v3691 = vpack.c.b16 %v2891, %v2883
    %v3692 = vpack.c.b16 %v2892, %v2884
    %v3693 = vpack.c.b16 %v2893, %v2885
    %v3694 = vpack.c.b16 %v2894, %v2886
    %v3695 = vpack.c.b16 %v2895, %v2887
    %v3696 = vpack.c.b16 %v2904, %v2896
    %v3697 = vpack.c.b16 %v2905, %v2897
    %v3698 = vpack.c.b16 %v2906, %v2898
    %v3699 = vpack.c.b16 %v2907, %v2899
    %v3700 = vpack.c.b16 %v2908, %v2900
    %v3701 = vpack.c.b16 %v2909, %v2901
    %v3702 = vpack.c.b16 %v2910, %v2902
    %v3703 = vpack.c.b16 %v2911, %v2903
    %v3704 = vpack.c.b16 %v2920, %v2912
    %v3705 = vpack.c.b16 %v2921, %v2913
    %v3706 = vpack.c.b16 %v2922, %v2914
    %v3707 = vpack.c.b16 %v2923, %v2915
    %v3708 = vpack.c.b16 %v2924, %v2916
    %v3709 = vpack.c.b16 %v2925, %v2917
    %v3710 = vpack.c.b16 %v2926, %v2918
    %v3711 = vpack.c.b16 %v2927, %v2919
    %v3712 = vpack.c.b16 %v2936, %v2928
    %v3713 = vpack.c.b16 %v2937, %v2929
    %v3714 = vpack.c.b16 %v2938, %v2930
    %v3715 = vpack.c.b16 %v2939, %v2931
    %v3716 = vpack.c.b16 %v2940, %v2932
    %v3717 = vpack.c.b16 %v2941, %v2933
    %v3718 = vpack.c.b16 %v2942, %v2934
    %v3719 = vpack.c.b16 %v2943, %v2935
    %v3720 = vpack.c.b16 %v2952, %v2944
    %v3721 = vpack.c.b16 %v2953, %v2945
    %v3722 = vpack.c.b16 %v2954, %v2946
    %v3723 = vpack.c.b16 %v2955, %v2947
    %v3724 = vpack.c.b16 %v2956, %v2948
    %v3725 = vpack.c.b16 %v2957, %v2949
    %v3726 = vpack.c.b16 %v2958, %v2950
    %v3727 = vpack.c.b16 %v2959, %v2951
    %v3728 = vpack.c.b16 %v2968, %v2960
    %v3729 = vpack.c.b16 %v2969, %v2961
    %v3730 = vpack.c.b16 %v2970, %v2962
    %v3731 = vpack.c.b16 %v2971, %v2963
    %v3732 = vpack.c.b16 %v2972, %v2964
    %v3733 = vpack.c.b16 %v2973, %v2965
    %v3734 = vpack.c.b16 %v2974, %v2966
    %v3735 = vpack.c.b16 %v2975, %v2967
    %v3736 = vpack.c.b16 %v2984, %v2976
    %v3737 = vpack.c.b16 %v2985, %v2977
    %v3738 = vpack.c.b16 %v2986, %v2978
    %v3739 = vpack.c.b16 %v2987, %v2979
    %v3740 = vpack.c.b16 %v2988, %v2980
    %v3741 = vpack.c.b16 %v2989, %v2981
    %v3742 = vpack.c.b16 %v2990, %v2982
    %v3743 = vpack.c.b16 %v2991, %v2983
    %v3744 = vpack.c.b16 %v3000, %v2992
    %v3745 = vpack.c.b16 %v3001, %v2993
    %v3746 = vpack.c.b16 %v3002, %v2994
    %v3747 = vpack.c.b16 %v3003, %v2995
    %v3748 = vpack.c.b16 %v3004, %v2996
    %v3749 = vpack.c.b16 %v3005, %v2997
    %v3750 = vpack.c.b16 %v3006, %v2998
    %v3751 = vpack.c.b16 %v3007, %v2999
    %v3752 = vpack.c.b16 %v3016, %v3008
    %v3753 = vpack.c.b16 %v3017, %v3009
    %v3754 = vpack.c.b16 %v3018, %v3010
    %v3755 = vpack.c.b16 %v3019, %v3011
    %v3756 = vpack.c.b16 %v3020, %v3012
    %v3757 = vpack.c.b16 %v3021, %v3013
    %v3758 = vpack.c.b16 %v3022, %v3014
    %v3759 = vpack.c.b16 %v3023, %v3015
    %v3760 = vpack.c.b16 %v3032, %v3024
    %v3761 = vpack.c.b16 %v3033, %v3025
    %v3762 = vpack.c.b16 %v3034, %v3026
    %v3763 = vpack.c.b16 %v3035, %v3027
    %v3764 = vpack.c.b16 %v3036, %v3028
    %v3765 = vpack.c.b16 %v3037, %v3029
    %v3766 = vpack.c.b16 %v3038, %v3030
    %v3767 = vpack.c.b16 %v3039, %v3031
    %v3768 = vpack.c.b16 %v3048, %v3040
    %v3769 = vpack.c.b16 %v3049, %v3041
    %v3770 = vpack.c.b16 %v3050, %v3042
    %v3771 = vpack.c.b16 %v3051, %v3043
    %v3772 = vpack.c.b16 %v3052, %v3044
    %v3773 = vpack.c.b16 %v3053, %v3045
    %v3774 = vpack.c.b16 %v3054, %v3046
    %v3775 = vpack.c.b16 %v3055, %v3047
    %v3776 = vpack.c.b16 %v3064, %v3056
    %v3777 = vpack.c.b16 %v3065, %v3057
    %v3778 = vpack.c.b16 %v3066, %v3058
    %v3779 = vpack.c.b16 %v3067, %v3059
    %v3780 = vpack.c.b16 %v3068, %v3060
    %v3781 = vpack.c.b16 %v3069, %v3061
    %v3782 = vpack.c.b16 %v3070, %v3062
    %v3783 = vpack.c.b16 %v3071, %v3063
    %v3784 = vpack.c.b16 %v3080, %v3072
    %v3785 = vpack.c.b16 %v3081, %v3073
    %v3786 = vpack.c.b16 %v3082, %v3074
    %v3787 = vpack.c.b16 %v3083, %v3075
    %v3788 = vpack.c.b16 %v3084, %v3076
    %v3789 = vpack.c.b16 %v3085, %v3077
    %v3790 = vpack.c.b16 %v3086, %v3078
    %v3791 = vpack.c.b16 %v3087, %v3079
    %v3792 = vpack.c.b16 %v3096, %v3088
    %v3793 = vpack.c.b16 %v3097, %v3089
    %v3794 = vpack.c.b16 %v3098, %v3090
    %v3795 = vpack.c.b16 %v3099, %v3091
    %v3796 = vpack.c.b16 %v3100, %v3092
    %v3797 = vpack.c.b16 %v3101, %v3093
    %v3798 = vpack.c.b16 %v3102, %v3094
    %v3799 = vpack.c.b16 %v3103, %v3095
    %v3800 = vpack.c.b16 %v3112, %v3104
    %v3801 = vpack.c.b16 %v3113, %v3105
    %v3802 = vpack.c.b16 %v3114, %v3106
    %v3803 = vpack.c.b16 %v3115, %v3107
    %v3804 = vpack.c.b16 %v3116, %v3108
    %v3805 = vpack.c.b16 %v3117, %v3109
    %v3806 = vpack.c.b16 %v3118, %v3110
    %v3807 = vpack.c.b16 %v3119, %v3111
    %v3808 = vpack.c.b16 %v3128, %v3120
    %v3809 = vpack.c.b16 %v3129, %v3121
    %v3810 = vpack.c.b16 %v3130, %v3122
    %v3811 = vpack.c.b16 %v3131, %v3123
    %v3812 = vpack.c.b16 %v3132, %v3124
    %v3813 = vpack.c.b16 %v3133, %v3125
    %v3814 = vpack.c.b16 %v3134, %v3126
    %v3815 = vpack.c.b16 %v3135, %v3127
    %v3816 = vpack.c.b16 %v3144, %v3136
    %v3817 = vpack.c.b16 %v3145, %v3137
    %v3818 = vpack.c.b16 %v3146, %v3138
    %v3819 = vpack.c.b16 %v3147, %v3139
    %v3820 = vpack.c.b16 %v3148, %v3140
    %v3821 = vpack.c.b16 %v3149, %v3141
    %v3822 = vpack.c.b16 %v3150, %v3142
    %v3823 = vpack.c.b16 %v3151, %v3143
    %v3824 = vpack.c.b16 %v3160, %v3152
    %v3825 = vpack.c.b16 %v3161, %v3153
    %v3826 = vpack.c.b16 %v3162, %v3154
    %v3827 = vpack.c.b16 %v3163, %v3155
    %v3828 = vpack.c.b16 %v3164, %v3156
    %v3829 = vpack.c.b16 %v3165, %v3157
    %v3830 = vpack.c.b16 %v3166, %v3158
    %v3831 = vpack.c.b16 %v3167, %v3159
    %v3832 = vpack.c.b16 %v3176, %v3168
    %v3833 = vpack.c.b16 %v3177, %v3169
    %v3834 = vpack.c.b16 %v3178, %v3170
    %v3835 = vpack.c.b16 %v3179, %v3171
    %v3836 = vpack.c.b16 %v3180, %v3172
    %v3837 = vpack.c.b16 %v3181, %v3173
    %v3838 = vpack.c.b16 %v3182, %v3174
    %v3839 = vpack.c.b16 %v3183, %v3175
    %v3840 = vpack.c.b16 %v3192, %v3184
    %v3841 = vpack.c.b16 %v3193, %v3185
    %v3842 = vpack.c.b16 %v3194, %v3186
    %v3843 = vpack.c.b16 %v3195, %v3187
    %v3844 = vpack.c.b16 %v3196, %v3188
    %v3845 = vpack.c.b16 %v3197, %v3189
    %v3846 = vpack.c.b16 %v3198, %v3190
    %v3847 = vpack.c.b16 %v3199, %v3191
    %v3848 = vpack.c.b16 %v3208, %v3200
    %v3849 = vpack.c.b16 %v3209, %v3201
    %v3850 = vpack.c.b16 %v3210, %v3202
    %v3851 = vpack.c.b16 %v3211, %v3203
    %v3852 = vpack.c.b16 %v3212, %v3204
    %v3853 = vpack.c.b16 %v3213, %v3205
    %v3854 = vpack.c.b16 %v3214, %v3206
    %v3855 = vpack.c.b16 %v3215, %v3207
    %v3856 = vpack.c.b16 %v3224, %v3216
    %v3857 = vpack.c.b16 %v3225, %v3217
    %v3858 = vpack.c.b16 %v3226, %v3218
    %v3859 = vpack.c.b16 %v3227, %v3219
    %v3860 = vpack.c.b16 %v3228, %v3220
    %v3861 = vpack.c.b16 %v3229, %v3221
    %v3862 = vpack.c.b16 %v3230, %v3222
    %v3863 = vpack.c.b16 %v3231, %v3223
    %v3864 = vpack.c.b16 %v3240, %v3232
    %v3865 = vpack.c.b16 %v3241, %v3233
    %v3866 = vpack.c.b16 %v3242, %v3234
    %v3867 = vpack.c.b16 %v3243, %v3235
    %v3868 = vpack.c.b16 %v3244, %v3236
    %v3869 = vpack.c.b16 %v3245, %v3237
    %v3870 = vpack.c.b16 %v3246, %v3238
    %v3871 = vpack.c.b16 %v3247, %v3239
    %v3872 = vpack.c.b16 %v3256, %v3248
    %v3873 = vpack.c.b16 %v3257, %v3249
    %v3874 = vpack.c.b16 %v3258, %v3250
    %v3875 = vpack.c.b16 %v3259, %v3251
    %v3876 = vpack.c.b16 %v3260, %v3252
    %v3877 = vpack.c.b16 %v3261, %v3253
    %v3878 = vpack.c.b16 %v3262, %v3254
    %v3879 = vpack.c.b16 %v3263, %v3255
    %v3880 = vpack.c.b16 %v3272, %v3264
    %v3881 = vpack.c.b16 %v3273, %v3265
    %v3882 = vpack.c.b16 %v3274, %v3266
    %v3883 = vpack.c.b16 %v3275, %v3267
    %v3884 = vpack.c.b16 %v3276, %v3268
    %v3885 = vpack.c.b16 %v3277, %v3269
    %v3886 = vpack.c.b16 %v3278, %v3270
    %v3887 = vpack.c.b16 %v3279, %v3271
    %v3888 = vpack.c.b16 %v3288, %v3280
    %v3889 = vpack.c.b16 %v3289, %v3281
    %v3890 = vpack.c.b16 %v3290, %v3282
    %v3891 = vpack.c.b16 %v3291, %v3283
    %v3892 = vpack.c.b16 %v3292, %v3284
    %v3893 = vpack.c.b16 %v3293, %v3285
    %v3894 = vpack.c.b16 %v3294, %v3286
    %v3895 = vpack.c.b16 %v3295, %v3287
    %v3896 = vpack.c.b16 %v3304, %v3296
    %v3897 = vpack.c.b16 %v3305, %v3297
    %v3898 = vpack.c.b16 %v3306, %v3298
    %v3899 = vpack.c.b16 %v3307, %v3299
    %v3900 = vpack.c.b16 %v3308, %v3300
    %v3901 = vpack.c.b16 %v3309, %v3301
    %v3902 = vpack.c.b16 %v3310, %v3302
    %v3903 = vpack.c.b16 %v3311, %v3303
    %v3904 = vpack.c.b16 %v3320, %v3312
    %v3905 = vpack.c.b16 %v3321, %v3313
    %v3906 = vpack.c.b16 %v3322, %v3314
    %v3907 = vpack.c.b16 %v3323, %v3315
    %v3908 = vpack.c.b16 %v3324, %v3316
    %v3909 = vpack.c.b16 %v3325, %v3317
    %v3910 = vpack.c.b16 %v3326, %v3318
    %v3911 = vpack.c.b16 %v3327, %v3319
    %v3912 = vpack.c.b16 %v3336, %v3328
    %v3913 = vpack.c.b16 %v3337, %v3329
    %v3914 = vpack.c.b16 %v3338, %v3330
    %v3915 = vpack.c.b16 %v3339, %v3331
    %v3916 = vpack.c.b16 %v3340, %v3332
    %v3917 = vpack.c.b16 %v3341, %v3333
    %v3918 = vpack.c.b16 %v3342, %v3334
    %v3919 = vpack.c.b16 %v3343, %v3335
    %v3920 = vpack.c.b16 %v3352, %v3344
    %v3921 = vpack.c.b16 %v3353, %v3345
    %v3922 = vpack.c.b16 %v3354, %v3346
    %v3923 = vpack.c.b16 %v3355, %v3347
    %v3924 = vpack.c.b16 %v3356, %v3348
    %v3925 = vpack.c.b16 %v3357, %v3349
    %v3926 = vpack.c.b16 %v3358, %v3350
    %v3927 = vpack.c.b16 %v3359, %v3351
    %v3928 = vpack.c.b16 %v3368, %v3360
    %v3929 = vpack.c.b16 %v3369, %v3361
    %v3930 = vpack.c.b16 %v3370, %v3362
    %v3931 = vpack.c.b16 %v3371, %v3363
    %v3932 = vpack.c.b16 %v3372, %v3364
    %v3933 = vpack.c.b16 %v3373, %v3365
    %v3934 = vpack.c.b16 %v3374, %v3366
    %v3935 = vpack.c.b16 %v3375, %v3367
    %v3936 = vpack.c.b16 %v3384, %v3376
    %v3937 = vpack.c.b16 %v3385, %v3377
    %v3938 = vpack.c.b16 %v3386, %v3378
    %v3939 = vpack.c.b16 %v3387, %v3379
    %v3940 = vpack.c.b16 %v3388, %v3380
    %v3941 = vpack.c.b16 %v3389, %v3381
    %v3942 = vpack.c.b16 %v3390, %v3382
    %v3943 = vpack.c.b16 %v3391, %v3383
    %v3944 = vpack.c.b16 %v3400, %v3392
    %v3945 = vpack.c.b16 %v3401, %v3393
    %v3946 = vpack.c.b16 %v3402, %v3394
    %v3947 = vpack.c.b16 %v3403, %v3395
    %v3948 = vpack.c.b16 %v3404, %v3396
    %v3949 = vpack.c.b16 %v3405, %v3397
    %v3950 = vpack.c.b16 %v3406, %v3398
    %v3951 = vpack.c.b16 %v3407, %v3399
    %v3952 = vpack.c.b16 %v3416, %v3408
    %v3953 = vpack.c.b16 %v3417, %v3409
    %v3954 = vpack.c.b16 %v3418, %v3410
    %v3955 = vpack.c.b16 %v3419, %v3411
    %v3956 = vpack.c.b16 %v3420, %v3412
    %v3957 = vpack.c.b16 %v3421, %v3413
    %v3958 = vpack.c.b16 %v3422, %v3414
    %v3959 = vpack.c.b16 %v3423, %v3415
    %v3960 = vpack.c.b16 %v3432, %v3424
    %v3961 = vpack.c.b16 %v3433, %v3425
    %v3962 = vpack.c.b16 %v3434, %v3426
    %v3963 = vpack.c.b16 %v3435, %v3427
    %v3964 = vpack.c.b16 %v3436, %v3428
    %v3965 = vpack.c.b16 %v3437, %v3429
    %v3966 = vpack.c.b16 %v3438, %v3430
    %v3967 = vpack.c.b16 %v3439, %v3431
    %v3968 = vpack.c.b16 %v3448, %v3440
    %v3969 = vpack.c.b16 %v3449, %v3441
    %v3970 = vpack.c.b16 %v3450, %v3442
    %v3971 = vpack.c.b16 %v3451, %v3443
    %v3972 = vpack.c.b16 %v3452, %v3444
    %v3973 = vpack.c.b16 %v3453, %v3445
    %v3974 = vpack.c.b16 %v3454, %v3446
    %v3975 = vpack.c.b16 %v3455, %v3447
    %v3976 = vpack.c.b16 %v3464, %v3456
    %v3977 = vpack.c.b16 %v3465, %v3457
    %v3978 = vpack.c.b16 %v3466, %v3458
    %v3979 = vpack.c.b16 %v3467, %v3459
    %v3980 = vpack.c.b16 %v3468, %v3460
    %v3981 = vpack.c.b16 %v3469, %v3461
    %v3982 = vpack.c.b16 %v3470, %v3462
    %v3983 = vpack.c.b16 %v3471, %v3463
    %4496 = vmatprep.subr.bf16.mxu0 %v3473
    %4497 = vmatpush1.bf16.msra.mxu0 %v3472
    %4498 = vmatprep.subr.bf16.mxu0 %v3481
    %4499 = vmatpush1.bf16.msra.mxu0 %v3480
    %4500 = vmatprep.subr.bf16.mxu0 %v3489
    %4501 = vmatpush1.bf16.msra.mxu0 %v3488
    %4502 = vmatprep.subr.bf16.mxu0 %v3497
    %4503 = vmatpush1.bf16.msra.mxu0 %v3496
    %4504 = vmatprep.subr.bf16.mxu0 %v3505
    %4505 = vmatpush1.bf16.msra.mxu0 %v3504
    %4506 = vmatprep.subr.bf16.mxu0 %v3513
    %4507 = vmatpush1.bf16.msra.mxu0 %v3512
    %4508 = vmatprep.subr.bf16.mxu0 %v3521
    %4509 = vmatpush1.bf16.msra.mxu0 %v3520
    %4510 = vmatprep.subr.bf16.mxu0 %v3529
    %4511 = vmatpush1.bf16.msra.mxu0 %v3528
    %4512 = vmatprep.subr.bf16.mxu0 %v3537
    %4513 = vmatpush1.bf16.msra.mxu0 %v3536
    %4514 = vmatprep.subr.bf16.mxu0 %v3545
    %4515 = vmatpush1.bf16.msra.mxu0 %v3544
    %4516 = vmatprep.subr.bf16.mxu0 %v3553
    %4517 = vmatpush1.bf16.msra.mxu0 %v3552
    %4518 = vmatprep.subr.bf16.mxu0 %v3561
    %4519 = vmatpush1.bf16.msra.mxu0 %v3560
    %4520 = vmatprep.subr.bf16.mxu0 %v3569
    %4521 = vmatpush1.bf16.msra.mxu0 %v3568
    %4522 = vmatprep.subr.bf16.mxu0 %v3577
    %4523 = vmatpush1.bf16.msra.mxu0 %v3576
    %4524 = vmatprep.subr.bf16.mxu0 %v3585
    %4525 = vmatpush1.bf16.msra.mxu0 %v3584
    %4526 = vmatprep.subr.bf16.mxu0 %v3593
    %4527 = vmatpush1.bf16.msra.mxu0 %v3592
    %4528 = vmatprep.mubr.bf16.mxu0 %v1375
    %4529 = vmatmul.mubr.bf16.gmra.mrb[0].mxu0 %v1374
    %v4530 = vpop.f32.mrb[0].mxu0
    %v4531 = vadd.f32 %v1899, %v4530
    %v4532 = vpop.f32.mrb[0].mxu0
    %v4533 = vadd.f32 %v1903, %v4532
    %v4534 = vpop.f32.mrb[0].mxu0
    %v4535 = vpop.f32.mrb[0].mxu0
    %4536 = vdwg.mxu0
    %4537 = vmatprep.subr.bf16.mxu0 %v3601
    %4538 = vmatpush1.bf16.msra.mxu0 %v3600
    %4539 = vmatprep.subr.bf16.mxu0 %v3609
    %4540 = vmatpush1.bf16.msra.mxu0 %v3608
    %4541 = vmatprep.subr.bf16.mxu0 %v3617
    %4542 = vmatpush1.bf16.msra.mxu0 %v3616
    %4543 = vmatprep.subr.bf16.mxu0 %v3625
    %4544 = vmatpush1.bf16.msra.mxu0 %v3624
    %4545 = vmatprep.subr.bf16.mxu0 %v3633
    %4546 = vmatpush1.bf16.msra.mxu0 %v3632
    %4547 = vmatprep.subr.bf16.mxu0 %v3641
    %4548 = vmatpush1.bf16.msra.mxu0 %v3640
    %4549 = vmatprep.subr.bf16.mxu0 %v3649
    %4550 = vmatpush1.bf16.msra.mxu0 %v3648
    %4551 = vmatprep.subr.bf16.mxu0 %v3657
    %4552 = vmatpush1.bf16.msra.mxu0 %v3656
    %4553 = vmatprep.subr.bf16.mxu0 %v3665
    %4554 = vmatpush1.bf16.msra.mxu0 %v3664
    %4555 = vmatprep.subr.bf16.mxu0 %v3673
    %4556 = vmatpush1.bf16.msra.mxu0 %v3672
    %4557 = vmatprep.subr.bf16.mxu0 %v3681
    %4558 = vmatpush1.bf16.msra.mxu0 %v3680
    %4559 = vmatprep.subr.bf16.mxu0 %v3689
    %4560 = vmatpush1.bf16.msra.mxu0 %v3688
    %4561 = vmatprep.subr.bf16.mxu0 %v3697
    %4562 = vmatpush1.bf16.msra.mxu0 %v3696
    %4563 = vmatprep.subr.bf16.mxu0 %v3705
    %4564 = vmatpush1.bf16.msra.mxu0 %v3704
    %4565 = vmatprep.subr.bf16.mxu0 %v3713
    %4566 = vmatpush1.bf16.msra.mxu0 %v3712
    %4567 = vmatprep.subr.bf16.mxu0 %v3721
    %4568 = vmatpush1.bf16.msra.mxu0 %v3720
    %4569 = vmatprep.mubr.bf16.mxu0 %v1377
    %4570 = vmatmul.mubr.bf16.gmra.mrb[0].mxu0 %v1376
    %v4571 = vpop.f32.mrb[0].mxu0
    %v4572 = vadd.f32 %v4531, %v4571
    %v4573 = vpop.f32.mrb[0].mxu0
    %v4574 = vadd.f32 %v4533, %v4573
    %v4575 = vpop.f32.mrb[0].mxu0
    %v4576 = vpop.f32.mrb[0].mxu0
    %4577 = vdwg.mxu0
    %4578 = vmatprep.subr.bf16.mxu0 %v3729
    %4579 = vmatpush1.bf16.msra.mxu0 %v3728
    %4580 = vmatprep.subr.bf16.mxu0 %v3737
    %4581 = vmatpush1.bf16.msra.mxu0 %v3736
    %4582 = vmatprep.subr.bf16.mxu0 %v3745
    %4583 = vmatpush1.bf16.msra.mxu0 %v3744
    %4584 = vmatprep.subr.bf16.mxu0 %v3753
    %4585 = vmatpush1.bf16.msra.mxu0 %v3752
    %4586 = vmatprep.subr.bf16.mxu0 %v3761
    %4587 = vmatpush1.bf16.msra.mxu0 %v3760
    %4588 = vmatprep.subr.bf16.mxu0 %v3769
    %4589 = vmatpush1.bf16.msra.mxu0 %v3768
    %4590 = vmatprep.subr.bf16.mxu0 %v3777
    %4591 = vmatpush1.bf16.msra.mxu0 %v3776
    %4592 = vmatprep.subr.bf16.mxu0 %v3785
    %4593 = vmatpush1.bf16.msra.mxu0 %v3784
    %4594 = vmatprep.subr.bf16.mxu0 %v3793
    %4595 = vmatpush1.bf16.msra.mxu0 %v3792
    %4596 = vmatprep.subr.bf16.mxu0 %v3801
    %4597 = vmatpush1.bf16.msra.mxu0 %v3800
    %4598 = vmatprep.subr.bf16.mxu0 %v3809
    %4599 = vmatpush1.bf16.msra.mxu0 %v3808
    %4600 = vmatprep.subr.bf16.mxu0 %v3817
    %4601 = vmatpush1.bf16.msra.mxu0 %v3816
    %4602 = vmatprep.subr.bf16.mxu0 %v3825
    %4603 = vmatpush1.bf16.msra.mxu0 %v3824
    %4604 = vmatprep.subr.bf16.mxu0 %v3833
    %4605 = vmatpush1.bf16.msra.mxu0 %v3832
    %4606 = vmatprep.subr.bf16.mxu0 %v3841
    %4607 = vmatpush1.bf16.msra.mxu0 %v3840
    %4608 = vmatprep.subr.bf16.mxu0 %v3849
    %4609 = vmatpush1.bf16.msra.mxu0 %v3848
    %4610 = vmatprep.mubr.bf16.mxu0 %v1379
    %4611 = vmatmul.mubr.bf16.gmra.mrb[0].mxu0 %v1378
    %v4612 = vpop.f32.mrb[0].mxu0
    %v4613 = vadd.f32 %v4572, %v4612
    %v4614 = vpop.f32.mrb[0].mxu0
    %v4615 = vadd.f32 %v4574, %v4614
    %v4616 = vpop.f32.mrb[0].mxu0
    %v4617 = vpop.f32.mrb[0].mxu0
    %4618 = vdwg.mxu0
    %4619 = vmatprep.subr.bf16.mxu0 %v3857
    %4620 = vmatpush1.bf16.msra.mxu0 %v3856
    %4621 = vmatprep.subr.bf16.mxu0 %v3865
    %4622 = vmatpush1.bf16.msra.mxu0 %v3864
    %4623 = vmatprep.subr.bf16.mxu0 %v3873
    %4624 = vmatpush1.bf16.msra.mxu0 %v3872
    %4625 = vmatprep.subr.bf16.mxu0 %v3881
    %4626 = vmatpush1.bf16.msra.mxu0 %v3880
    %4627 = vmatprep.subr.bf16.mxu0 %v3889
    %4628 = vmatpush1.bf16.msra.mxu0 %v3888
    %4629 = vmatprep.subr.bf16.mxu0 %v3897
    %4630 = vmatpush1.bf16.msra.mxu0 %v3896
    %4631 = vmatprep.subr.bf16.mxu0 %v3905
    %4632 = vmatpush1.bf16.msra.mxu0 %v3904
    %4633 = vmatprep.subr.bf16.mxu0 %v3913
    %4634 = vmatpush1.bf16.msra.mxu0 %v3912
    %4635 = vmatprep.subr.bf16.mxu0 %v3921
    %4636 = vmatpush1.bf16.msra.mxu0 %v3920
    %4637 = vmatprep.subr.bf16.mxu0 %v3929
    %4638 = vmatpush1.bf16.msra.mxu0 %v3928
    %4639 = vmatprep.subr.bf16.mxu0 %v3937
    %4640 = vmatpush1.bf16.msra.mxu0 %v3936
    %4641 = vmatprep.subr.bf16.mxu0 %v3945
    %4642 = vmatpush1.bf16.msra.mxu0 %v3944
    %4643 = vmatprep.subr.bf16.mxu0 %v3953
    %4644 = vmatpush1.bf16.msra.mxu0 %v3952
    %4645 = vmatprep.subr.bf16.mxu0 %v3961
    %4646 = vmatpush1.bf16.msra.mxu0 %v3960
    %4647 = vmatprep.subr.bf16.mxu0 %v3969
    %4648 = vmatpush1.bf16.msra.mxu0 %v3968
    %4649 = vmatprep.subr.bf16.mxu0 %v3977
    %4650 = vmatpush1.bf16.msra.mxu0 %v3976
    %4651 = vmatprep.mubr.bf16.mxu0 %v1381
    %4652 = vmatmul.mubr.bf16.gmra.mrb[0].mxu0 %v1380
    %v4653 = vpop.f32.mrb[0].mxu0
    %v4654 = vadd.f32 %v4613, %v4653
    %v4655 = vpop.f32.mrb[0].mxu0
    %v4656 = vadd.f32 %v4615, %v4655
    %v4657 = vpop.f32.mrb[0].mxu0
    %v4658 = vpop.f32.mrb[0].mxu0
    %4659 = vdwg.mxu0
    %4660 = vmatprep.subr.bf16.mxu0 %v3475
    %4661 = vmatpush1.bf16.msra.mxu0 %v3474
    %4662 = vmatprep.subr.bf16.mxu0 %v3483
    %4663 = vmatpush1.bf16.msra.mxu0 %v3482
    %4664 = vmatprep.subr.bf16.mxu0 %v3491
    %4665 = vmatpush1.bf16.msra.mxu0 %v3490
    %4666 = vmatprep.subr.bf16.mxu0 %v3499
    %4667 = vmatpush1.bf16.msra.mxu0 %v3498
    %4668 = vmatprep.subr.bf16.mxu0 %v3507
    %4669 = vmatpush1.bf16.msra.mxu0 %v3506
    %4670 = vmatprep.subr.bf16.mxu0 %v3515
    %4671 = vmatpush1.bf16.msra.mxu0 %v3514
    %4672 = vmatprep.subr.bf16.mxu0 %v3523
    %4673 = vmatpush1.bf16.msra.mxu0 %v3522
    %4674 = vmatprep.subr.bf16.mxu0 %v3531
    %4675 = vmatpush1.bf16.msra.mxu0 %v3530
    %4676 = vmatprep.subr.bf16.mxu0 %v3539
    %4677 = vmatpush1.bf16.msra.mxu0 %v3538
    %4678 = vmatprep.subr.bf16.mxu0 %v3547
    %4679 = vmatpush1.bf16.msra.mxu0 %v3546
    %4680 = vmatprep.subr.bf16.mxu0 %v3555
    %4681 = vmatpush1.bf16.msra.mxu0 %v3554
    %4682 = vmatprep.subr.bf16.mxu0 %v3563
    %4683 = vmatpush1.bf16.msra.mxu0 %v3562
    %4684 = vmatprep.subr.bf16.mxu0 %v3571
    %4685 = vmatpush1.bf16.msra.mxu0 %v3570
    %4686 = vmatprep.subr.bf16.mxu0 %v3579
    %4687 = vmatpush1.bf16.msra.mxu0 %v3578
    %4688 = vmatprep.subr.bf16.mxu0 %v3587
    %4689 = vmatpush1.bf16.msra.mxu0 %v3586
    %4690 = vmatprep.subr.bf16.mxu0 %v3595
    %4691 = vmatpush1.bf16.msra.mxu0 %v3594
    %4692 = vmatprep.mubr.bf16.mxu0 %v1375
    %4693 = vmatmul.mubr.bf16.gmra.mrb[0].mxu0 %v1374
    %v4694 = vpop.f32.mrb[0].mxu0
    %v4695 = vadd.f32 %v1907, %v4694
    %v4696 = vpop.f32.mrb[0].mxu0
    %v4697 = vadd.f32 %v1911, %v4696
    %v4698 = vpop.f32.mrb[0].mxu0
    %v4699 = vpop.f32.mrb[0].mxu0
    %4700 = vdwg.mxu0
    %4701 = vmatprep.subr.bf16.mxu0 %v3603
    %4702 = vmatpush1.bf16.msra.mxu0 %v3602
    %4703 = vmatprep.subr.bf16.mxu0 %v3611
    %4704 = vmatpush1.bf16.msra.mxu0 %v3610
    %4705 = vmatprep.subr.bf16.mxu0 %v3619
    %4706 = vmatpush1.bf16.msra.mxu0 %v3618
    %4707 = vmatprep.subr.bf16.mxu0 %v3627
    %4708 = vmatpush1.bf16.msra.mxu0 %v3626
    %4709 = vmatprep.subr.bf16.mxu0 %v3635
    %4710 = vmatpush1.bf16.msra.mxu0 %v3634
    %4711 = vmatprep.subr.bf16.mxu0 %v3643
    %4712 = vmatpush1.bf16.msra.mxu0 %v3642
    %4713 = vmatprep.subr.bf16.mxu0 %v3651
    %4714 = vmatpush1.bf16.msra.mxu0 %v3650
    %4715 = vmatprep.subr.bf16.mxu0 %v3659
    %4716 = vmatpush1.bf16.msra.mxu0 %v3658
    %4717 = vmatprep.subr.bf16.mxu0 %v3667
    %4718 = vmatpush1.bf16.msra.mxu0 %v3666
    %4719 = vmatprep.subr.bf16.mxu0 %v3675
    %4720 = vmatpush1.bf16.msra.mxu0 %v3674
    %4721 = vmatprep.subr.bf16.mxu0 %v3683
    %4722 = vmatpush1.bf16.msra.mxu0 %v3682
    %4723 = vmatprep.subr.bf16.mxu0 %v3691
    %4724 = vmatpush1.bf16.msra.mxu0 %v3690
    %4725 = vmatprep.subr.bf16.mxu0 %v3699
    %4726 = vmatpush1.bf16.msra.mxu0 %v3698
    %4727 = vmatprep.subr.bf16.mxu0 %v3707
    %4728 = vmatpush1.bf16.msra.mxu0 %v3706
    %4729 = vmatprep.subr.bf16.mxu0 %v3715
    %4730 = vmatpush1.bf16.msra.mxu0 %v3714
    %4731 = vmatprep.subr.bf16.mxu0 %v3723
    %4732 = vmatpush1.bf16.msra.mxu0 %v3722
    %4733 = vmatprep.mubr.bf16.mxu0 %v1377
    %4734 = vmatmul.mubr.bf16.gmra.mrb[0].mxu0 %v1376
    %v4735 = vpop.f32.mrb[0].mxu0
    %v4736 = vadd.f32 %v4695, %v4735
    %v4737 = vpop.f32.mrb[0].mxu0
    %v4738 = vadd.f32 %v4697, %v4737
    %v4739 = vpop.f32.mrb[0].mxu0
    %v4740 = vpop.f32.mrb[0].mxu0
    %4741 = vdwg.mxu0
    %4742 = vmatprep.subr.bf16.mxu0 %v3731
    %4743 = vmatpush1.bf16.msra.mxu0 %v3730
    %4744 = vmatprep.subr.bf16.mxu0 %v3739
    %4745 = vmatpush1.bf16.msra.mxu0 %v3738
    %4746 = vmatprep.subr.bf16.mxu0 %v3747
    %4747 = vmatpush1.bf16.msra.mxu0 %v3746
    %4748 = vmatprep.subr.bf16.mxu0 %v3755
    %4749 = vmatpush1.bf16.msra.mxu0 %v3754
    %4750 = vmatprep.subr.bf16.mxu0 %v3763
    %4751 = vmatpush1.bf16.msra.mxu0 %v3762
    %4752 = vmatprep.subr.bf16.mxu0 %v3771
    %4753 = vmatpush1.bf16.msra.mxu0 %v3770
    %4754 = vmatprep.subr.bf16.mxu0 %v3779
    %4755 = vmatpush1.bf16.msra.mxu0 %v3778
    %4756 = vmatprep.subr.bf16.mxu0 %v3787
    %4757 = vmatpush1.bf16.msra.mxu0 %v3786
    %4758 = vmatprep.subr.bf16.mxu0 %v3795
    %4759 = vmatpush1.bf16.msra.mxu0 %v3794
    %4760 = vmatprep.subr.bf16.mxu0 %v3803
    %4761 = vmatpush1.bf16.msra.mxu0 %v3802
    %4762 = vmatprep.subr.bf16.mxu0 %v3811
    %4763 = vmatpush1.bf16.msra.mxu0 %v3810
    %4764 = vmatprep.subr.bf16.mxu0 %v3819
    %4765 = vmatpush1.bf16.msra.mxu0 %v3818
    %4766 = vmatprep.subr.bf16.mxu0 %v3827
    %4767 = vmatpush1.bf16.msra.mxu0 %v3826
    %4768 = vmatprep.subr.bf16.mxu0 %v3835
    %4769 = vmatpush1.bf16.msra.mxu0 %v3834
    %4770 = vmatprep.subr.bf16.mxu0 %v3843
    %4771 = vmatpush1.bf16.msra.mxu0 %v3842
    %4772 = vmatprep.subr.bf16.mxu0 %v3851
    %4773 = vmatpush1.bf16.msra.mxu0 %v3850
    %4774 = vmatprep.mubr.bf16.mxu0 %v1379
    %4775 = vmatmul.mubr.bf16.gmra.mrb[0].mxu0 %v1378
    %v4776 = vpop.f32.mrb[0].mxu0
    %v4777 = vadd.f32 %v4736, %v4776
    %v4778 = vpop.f32.mrb[0].mxu0
    %v4779 = vadd.f32 %v4738, %v4778
    %v4780 = vpop.f32.mrb[0].mxu0
    %v4781 = vpop.f32.mrb[0].mxu0
    %4782 = vdwg.mxu0
    %4783 = vmatprep.subr.bf16.mxu0 %v3859
    %4784 = vmatpush1.bf16.msra.mxu0 %v3858
    %4785 = vmatprep.subr.bf16.mxu0 %v3867
    %4786 = vmatpush1.bf16.msra.mxu0 %v3866
    %4787 = vmatprep.subr.bf16.mxu0 %v3875
    %4788 = vmatpush1.bf16.msra.mxu0 %v3874
    %4789 = vmatprep.subr.bf16.mxu0 %v3883
    %4790 = vmatpush1.bf16.msra.mxu0 %v3882
    %4791 = vmatprep.subr.bf16.mxu0 %v3891
    %4792 = vmatpush1.bf16.msra.mxu0 %v3890
    %4793 = vmatprep.subr.bf16.mxu0 %v3899
    %4794 = vmatpush1.bf16.msra.mxu0 %v3898
    %4795 = vmatprep.subr.bf16.mxu0 %v3907
    %4796 = vmatpush1.bf16.msra.mxu0 %v3906
    %4797 = vmatprep.subr.bf16.mxu0 %v3915
    %4798 = vmatpush1.bf16.msra.mxu0 %v3914
    %4799 = vmatprep.subr.bf16.mxu0 %v3923
    %4800 = vmatpush1.bf16.msra.mxu0 %v3922
    %4801 = vmatprep.subr.bf16.mxu0 %v3931
    %4802 = vmatpush1.bf16.msra.mxu0 %v3930
    %4803 = vmatprep.subr.bf16.mxu0 %v3939
    %4804 = vmatpush1.bf16.msra.mxu0 %v3938
    %4805 = vmatprep.subr.bf16.mxu0 %v3947
    %4806 = vmatpush1.bf16.msra.mxu0 %v3946
    %4807 = vmatprep.subr.bf16.mxu0 %v3955
    %4808 = vmatpush1.bf16.msra.mxu0 %v3954
    %4809 = vmatprep.subr.bf16.mxu0 %v3963
    %4810 = vmatpush1.bf16.msra.mxu0 %v3962
    %4811 = vmatprep.subr.bf16.mxu0 %v3971
    %4812 = vmatpush1.bf16.msra.mxu0 %v3970
    %4813 = vmatprep.subr.bf16.mxu0 %v3979
    %4814 = vmatpush1.bf16.msra.mxu0 %v3978
    %4815 = vmatprep.mubr.bf16.mxu0 %v1381
    %4816 = vmatmul.mubr.bf16.gmra.mrb[0].mxu0 %v1380
    %v4817 = vpop.f32.mrb[0].mxu0
    %v4818 = vadd.f32 %v4777, %v4817
    %v4819 = vpop.f32.mrb[0].mxu0
    %v4820 = vadd.f32 %v4779, %v4819
    %v4821 = vpop.f32.mrb[0].mxu0
    %v4822 = vpop.f32.mrb[0].mxu0
    %4823 = vdwg.mxu0
    %4824 = vmatprep.subr.bf16.mxu0 %v3477
    %4825 = vmatpush1.bf16.msra.mxu0 %v3476
    %4826 = vmatprep.subr.bf16.mxu0 %v3485
    %4827 = vmatpush1.bf16.msra.mxu0 %v3484
    %4828 = vmatprep.subr.bf16.mxu0 %v3493
    %4829 = vmatpush1.bf16.msra.mxu0 %v3492
    %4830 = vmatprep.subr.bf16.mxu0 %v3501
    %4831 = vmatpush1.bf16.msra.mxu0 %v3500
    %4832 = vmatprep.subr.bf16.mxu0 %v3509
    %4833 = vmatpush1.bf16.msra.mxu0 %v3508
    %4834 = vmatprep.subr.bf16.mxu0 %v3517
    %4835 = vmatpush1.bf16.msra.mxu0 %v3516
    %4836 = vmatprep.subr.bf16.mxu0 %v3525
    %4837 = vmatpush1.bf16.msra.mxu0 %v3524
    %4838 = vmatprep.subr.bf16.mxu0 %v3533
    %4839 = vmatpush1.bf16.msra.mxu0 %v3532
    %4840 = vmatprep.subr.bf16.mxu0 %v3541
    %4841 = vmatpush1.bf16.msra.mxu0 %v3540
    %4842 = vmatprep.subr.bf16.mxu0 %v3549
    %4843 = vmatpush1.bf16.msra.mxu0 %v3548
    %4844 = vmatprep.subr.bf16.mxu0 %v3557
    %4845 = vmatpush1.bf16.msra.mxu0 %v3556
    %4846 = vmatprep.subr.bf16.mxu0 %v3565
    %4847 = vmatpush1.bf16.msra.mxu0 %v3564
    %4848 = vmatprep.subr.bf16.mxu0 %v3573
    %4849 = vmatpush1.bf16.msra.mxu0 %v3572
    %4850 = vmatprep.subr.bf16.mxu0 %v3581
    %4851 = vmatpush1.bf16.msra.mxu0 %v3580
    %4852 = vmatprep.subr.bf16.mxu0 %v3589
    %4853 = vmatpush1.bf16.msra.mxu0 %v3588
    %4854 = vmatprep.subr.bf16.mxu0 %v3597
    %4855 = vmatpush1.bf16.msra.mxu0 %v3596
    %4856 = vmatprep.mubr.bf16.mxu0 %v1375
    %4857 = vmatmul.mubr.bf16.gmra.mrb[0].mxu0 %v1374
    %v4858 = vpop.f32.mrb[0].mxu0
    %v4859 = vadd.f32 %v1915, %v4858
    %v4860 = vpop.f32.mrb[0].mxu0
    %v4861 = vadd.f32 %v1919, %v4860
    %v4862 = vpop.f32.mrb[0].mxu0
    %v4863 = vpop.f32.mrb[0].mxu0
    %4864 = vdwg.mxu0
    %4865 = vmatprep.subr.bf16.mxu0 %v3605
    %4866 = vmatpush1.bf16.msra.mxu0 %v3604
    %4867 = vmatprep.subr.bf16.mxu0 %v3613
    %4868 = vmatpush1.bf16.msra.mxu0 %v3612
    %4869 = vmatprep.subr.bf16.mxu0 %v3621
    %4870 = vmatpush1.bf16.msra.mxu0 %v3620
    %4871 = vmatprep.subr.bf16.mxu0 %v3629
    %4872 = vmatpush1.bf16.msra.mxu0 %v3628
    %4873 = vmatprep.subr.bf16.mxu0 %v3637
    %4874 = vmatpush1.bf16.msra.mxu0 %v3636
    %4875 = vmatprep.subr.bf16.mxu0 %v3645
    %4876 = vmatpush1.bf16.msra.mxu0 %v3644
    %4877 = vmatprep.subr.bf16.mxu0 %v3653
    %4878 = vmatpush1.bf16.msra.mxu0 %v3652
    %4879 = vmatprep.subr.bf16.mxu0 %v3661
    %4880 = vmatpush1.bf16.msra.mxu0 %v3660
    %4881 = vmatprep.subr.bf16.mxu0 %v3669
    %4882 = vmatpush1.bf16.msra.mxu0 %v3668
    %4883 = vmatprep.subr.bf16.mxu0 %v3677
    %4884 = vmatpush1.bf16.msra.mxu0 %v3676
    %4885 = vmatprep.subr.bf16.mxu0 %v3685
    %4886 = vmatpush1.bf16.msra.mxu0 %v3684
    %4887 = vmatprep.subr.bf16.mxu0 %v3693
    %4888 = vmatpush1.bf16.msra.mxu0 %v3692
    %4889 = vmatprep.subr.bf16.mxu0 %v3701
    %4890 = vmatpush1.bf16.msra.mxu0 %v3700
    %4891 = vmatprep.subr.bf16.mxu0 %v3709
    %4892 = vmatpush1.bf16.msra.mxu0 %v3708
    %4893 = vmatprep.subr.bf16.mxu0 %v3717
    %4894 = vmatpush1.bf16.msra.mxu0 %v3716
    %4895 = vmatprep.subr.bf16.mxu0 %v3725
    %4896 = vmatpush1.bf16.msra.mxu0 %v3724
    %4897 = vmatprep.mubr.bf16.mxu0 %v1377
    %4898 = vmatmul.mubr.bf16.gmra.mrb[0].mxu0 %v1376
    %v4899 = vpop.f32.mrb[0].mxu0
    %v4900 = vadd.f32 %v4859, %v4899
    %v4901 = vpop.f32.mrb[0].mxu0
    %v4902 = vadd.f32 %v4861, %v4901
    %v4903 = vpop.f32.mrb[0].mxu0
    %v4904 = vpop.f32.mrb[0].mxu0
    %4905 = vdwg.mxu0
    %4906 = vmatprep.subr.bf16.mxu0 %v3733
    %4907 = vmatpush1.bf16.msra.mxu0 %v3732
    %4908 = vmatprep.subr.bf16.mxu0 %v3741
    %4909 = vmatpush1.bf16.msra.mxu0 %v3740
    %4910 = vmatprep.subr.bf16.mxu0 %v3749
    %4911 = vmatpush1.bf16.msra.mxu0 %v3748
    %4912 = vmatprep.subr.bf16.mxu0 %v3757
    %4913 = vmatpush1.bf16.msra.mxu0 %v3756
    %4914 = vmatprep.subr.bf16.mxu0 %v3765
    %4915 = vmatpush1.bf16.msra.mxu0 %v3764
    %4916 = vmatprep.subr.bf16.mxu0 %v3773
    %4917 = vmatpush1.bf16.msra.mxu0 %v3772
    %4918 = vmatprep.subr.bf16.mxu0 %v3781
    %4919 = vmatpush1.bf16.msra.mxu0 %v3780
    %4920 = vmatprep.subr.bf16.mxu0 %v3789
    %4921 = vmatpush1.bf16.msra.mxu0 %v3788
    %4922 = vmatprep.subr.bf16.mxu0 %v3797
    %4923 = vmatpush1.bf16.msra.mxu0 %v3796
    %4924 = vmatprep.subr.bf16.mxu0 %v3805
    %4925 = vmatpush1.bf16.msra.mxu0 %v3804
    %4926 = vmatprep.subr.bf16.mxu0 %v3813
    %4927 = vmatpush1.bf16.msra.mxu0 %v3812
    %4928 = vmatprep.subr.bf16.mxu0 %v3821
    %4929 = vmatpush1.bf16.msra.mxu0 %v3820
    %4930 = vmatprep.subr.bf16.mxu0 %v3829
    %4931 = vmatpush1.bf16.msra.mxu0 %v3828
    %4932 = vmatprep.subr.bf16.mxu0 %v3837
    %4933 = vmatpush1.bf16.msra.mxu0 %v3836
    %4934 = vmatprep.subr.bf16.mxu0 %v3845
    %4935 = vmatpush1.bf16.msra.mxu0 %v3844
    %4936 = vmatprep.subr.bf16.mxu0 %v3853
    %4937 = vmatpush1.bf16.msra.mxu0 %v3852
    %4938 = vmatprep.mubr.bf16.mxu0 %v1379
    %4939 = vmatmul.mubr.bf16.gmra.mrb[0].mxu0 %v1378
    %v4940 = vpop.f32.mrb[0].mxu0
    %v4941 = vadd.f32 %v4900, %v4940
    %v4942 = vpop.f32.mrb[0].mxu0
    %v4943 = vadd.f32 %v4902, %v4942
    %v4944 = vpop.f32.mrb[0].mxu0
    %v4945 = vpop.f32.mrb[0].mxu0
    %4946 = vdwg.mxu0
    %4947 = vmatprep.subr.bf16.mxu0 %v3861
    %4948 = vmatpush1.bf16.msra.mxu0 %v3860
    %4949 = vmatprep.subr.bf16.mxu0 %v3869
    %4950 = vmatpush1.bf16.msra.mxu0 %v3868
    %4951 = vmatprep.subr.bf16.mxu0 %v3877
    %4952 = vmatpush1.bf16.msra.mxu0 %v3876
    %4953 = vmatprep.subr.bf16.mxu0 %v3885
    %4954 = vmatpush1.bf16.msra.mxu0 %v3884
    %4955 = vmatprep.subr.bf16.mxu0 %v3893
    %4956 = vmatpush1.bf16.msra.mxu0 %v3892
    %4957 = vmatprep.subr.bf16.mxu0 %v3901
    %4958 = vmatpush1.bf16.msra.mxu0 %v3900
    %4959 = vmatprep.subr.bf16.mxu0 %v3909
    %4960 = vmatpush1.bf16.msra.mxu0 %v3908
    %4961 = vmatprep.subr.bf16.mxu0 %v3917
    %4962 = vmatpush1.bf16.msra.mxu0 %v3916
    %4963 = vmatprep.subr.bf16.mxu0 %v3925
    %4964 = vmatpush1.bf16.msra.mxu0 %v3924
    %4965 = vmatprep.subr.bf16.mxu0 %v3933
    %4966 = vmatpush1.bf16.msra.mxu0 %v3932
    %4967 = vmatprep.subr.bf16.mxu0 %v3941
    %4968 = vmatpush1.bf16.msra.mxu0 %v3940
    %4969 = vmatprep.subr.bf16.mxu0 %v3949
    %4970 = vmatpush1.bf16.msra.mxu0 %v3948
    %4971 = vmatprep.subr.bf16.mxu0 %v3957
    %4972 = vmatpush1.bf16.msra.mxu0 %v3956
    %4973 = vmatprep.subr.bf16.mxu0 %v3965
    %4974 = vmatpush1.bf16.msra.mxu0 %v3964
    %4975 = vmatprep.subr.bf16.mxu0 %v3973
    %4976 = vmatpush1.bf16.msra.mxu0 %v3972
    %4977 = vmatprep.subr.bf16.mxu0 %v3981
    %4978 = vmatpush1.bf16.msra.mxu0 %v3980
    %4979 = vmatprep.mubr.bf16.mxu0 %v1381
    %4980 = vmatmul.mubr.bf16.gmra.mrb[0].mxu0 %v1380
    %v4981 = vpop.f32.mrb[0].mxu0
    %v4982 = vadd.f32 %v4941, %v4981
    %v4983 = vpop.f32.mrb[0].mxu0
    %v4984 = vadd.f32 %v4943, %v4983
    %v4985 = vpop.f32.mrb[0].mxu0
    %v4986 = vpop.f32.mrb[0].mxu0
    %4987 = vdwg.mxu0
    %4988 = vmatprep.subr.bf16.mxu0 %v3479
    %4989 = vmatpush1.bf16.msra.mxu0 %v3478
    %4990 = vmatprep.subr.bf16.mxu0 %v3487
    %4991 = vmatpush1.bf16.msra.mxu0 %v3486
    %4992 = vmatprep.subr.bf16.mxu0 %v3495
    %4993 = vmatpush1.bf16.msra.mxu0 %v3494
    %4994 = vmatprep.subr.bf16.mxu0 %v3503
    %4995 = vmatpush1.bf16.msra.mxu0 %v3502
    %4996 = vmatprep.subr.bf16.mxu0 %v3511
    %4997 = vmatpush1.bf16.msra.mxu0 %v3510
    %4998 = vmatprep.subr.bf16.mxu0 %v3519
    %4999 = vmatpush1.bf16.msra.mxu0 %v3518
    %5000 = vmatprep.subr.bf16.mxu0 %v3527
    %5001 = vmatpush1.bf16.msra.mxu0 %v3526
    %5002 = vmatprep.subr.bf16.mxu0 %v3535
    %5003 = vmatpush1.bf16.msra.mxu0 %v3534
    %5004 = vmatprep.subr.bf16.mxu0 %v3543
    %5005 = vmatpush1.bf16.msra.mxu0 %v3542
    %5006 = vmatprep.subr.bf16.mxu0 %v3551
    %5007 = vmatpush1.bf16.msra.mxu0 %v3550
    %5008 = vmatprep.subr.bf16.mxu0 %v3559
    %5009 = vmatpush1.bf16.msra.mxu0 %v3558
    %5010 = vmatprep.subr.bf16.mxu0 %v3567
    %5011 = vmatpush1.bf16.msra.mxu0 %v3566
    %5012 = vmatprep.subr.bf16.mxu0 %v3575
    %5013 = vmatpush1.bf16.msra.mxu0 %v3574
    %5014 = vmatprep.subr.bf16.mxu0 %v3583
    %5015 = vmatpush1.bf16.msra.mxu0 %v3582
    %5016 = vmatprep.subr.bf16.mxu0 %v3591
    %5017 = vmatpush1.bf16.msra.mxu0 %v3590
    %5018 = vmatprep.subr.bf16.mxu0 %v3599
    %5019 = vmatpush1.bf16.msra.mxu0 %v3598
    %5020 = vmatprep.mubr.bf16.mxu0 %v1375
    %5021 = vmatmul.mubr.bf16.gmra.mrb[0].mxu0 %v1374
    %v5022 = vpop.f32.mrb[0].mxu0
    %v5023 = vadd.f32 %v1923, %v5022
    %v5024 = vpop.f32.mrb[0].mxu0
    %v5025 = vadd.f32 %v1927, %v5024
    %v5026 = vpop.f32.mrb[0].mxu0
    %v5027 = vpop.f32.mrb[0].mxu0
    %5028 = vdwg.mxu0
    %5029 = vmatprep.subr.bf16.mxu0 %v3607
    %5030 = vmatpush1.bf16.msra.mxu0 %v3606
    %5031 = vmatprep.subr.bf16.mxu0 %v3615
    %5032 = vmatpush1.bf16.msra.mxu0 %v3614
    %5033 = vmatprep.subr.bf16.mxu0 %v3623
    %5034 = vmatpush1.bf16.msra.mxu0 %v3622
    %5035 = vmatprep.subr.bf16.mxu0 %v3631
    %5036 = vmatpush1.bf16.msra.mxu0 %v3630
    %5037 = vmatprep.subr.bf16.mxu0 %v3639
    %5038 = vmatpush1.bf16.msra.mxu0 %v3638
    %5039 = vmatprep.subr.bf16.mxu0 %v3647
    %5040 = vmatpush1.bf16.msra.mxu0 %v3646
    %5041 = vmatprep.subr.bf16.mxu0 %v3655
    %5042 = vmatpush1.bf16.msra.mxu0 %v3654
    %5043 = vmatprep.subr.bf16.mxu0 %v3663
    %5044 = vmatpush1.bf16.msra.mxu0 %v3662
    %5045 = vmatprep.subr.bf16.mxu0 %v3671
    %5046 = vmatpush1.bf16.msra.mxu0 %v3670
    %5047 = vmatprep.subr.bf16.mxu0 %v3679
    %5048 = vmatpush1.bf16.msra.mxu0 %v3678
    %5049 = vmatprep.subr.bf16.mxu0 %v3687
    %5050 = vmatpush1.bf16.msra.mxu0 %v3686
    %5051 = vmatprep.subr.bf16.mxu0 %v3695
    %5052 = vmatpush1.bf16.msra.mxu0 %v3694
    %5053 = vmatprep.subr.bf16.mxu0 %v3703
    %5054 = vmatpush1.bf16.msra.mxu0 %v3702
    %5055 = vmatprep.subr.bf16.mxu0 %v3711
    %5056 = vmatpush1.bf16.msra.mxu0 %v3710
    %5057 = vmatprep.subr.bf16.mxu0 %v3719
    %5058 = vmatpush1.bf16.msra.mxu0 %v3718
    %5059 = vmatprep.subr.bf16.mxu0 %v3727
    %5060 = vmatpush1.bf16.msra.mxu0 %v3726
    %5061 = vmatprep.mubr.bf16.mxu0 %v1377
    %5062 = vmatmul.mubr.bf16.gmra.mrb[0].mxu0 %v1376
    %v5063 = vpop.f32.mrb[0].mxu0
    %v5064 = vadd.f32 %v5023, %v5063
    %v5065 = vpop.f32.mrb[0].mxu0
    %v5066 = vadd.f32 %v5025, %v5065
    %v5067 = vpop.f32.mrb[0].mxu0
    %v5068 = vpop.f32.mrb[0].mxu0
    %5069 = vdwg.mxu0
    %5070 = vmatprep.subr.bf16.mxu0 %v3735
    %5071 = vmatpush1.bf16.msra.mxu0 %v3734
    %5072 = vmatprep.subr.bf16.mxu0 %v3743
    %5073 = vmatpush1.bf16.msra.mxu0 %v3742
    %5074 = vmatprep.subr.bf16.mxu0 %v3751
    %5075 = vmatpush1.bf16.msra.mxu0 %v3750
    %5076 = vmatprep.subr.bf16.mxu0 %v3759
    %5077 = vmatpush1.bf16.msra.mxu0 %v3758
    %5078 = vmatprep.subr.bf16.mxu0 %v3767
    %5079 = vmatpush1.bf16.msra.mxu0 %v3766
    %5080 = vmatprep.subr.bf16.mxu0 %v3775
    %5081 = vmatpush1.bf16.msra.mxu0 %v3774
    %5082 = vmatprep.subr.bf16.mxu0 %v3783
    %5083 = vmatpush1.bf16.msra.mxu0 %v3782
    %5084 = vmatprep.subr.bf16.mxu0 %v3791
    %5085 = vmatpush1.bf16.msra.mxu0 %v3790
    %5086 = vmatprep.subr.bf16.mxu0 %v3799
    %5087 = vmatpush1.bf16.msra.mxu0 %v3798
    %5088 = vmatprep.subr.bf16.mxu0 %v3807
    %5089 = vmatpush1.bf16.msra.mxu0 %v3806
    %5090 = vmatprep.subr.bf16.mxu0 %v3815
    %5091 = vmatpush1.bf16.msra.mxu0 %v3814
    %5092 = vmatprep.subr.bf16.mxu0 %v3823
    %5093 = vmatpush1.bf16.msra.mxu0 %v3822
    %5094 = vmatprep.subr.bf16.mxu0 %v3831
    %5095 = vmatpush1.bf16.msra.mxu0 %v3830
    %5096 = vmatprep.subr.bf16.mxu0 %v3839
    %5097 = vmatpush1.bf16.msra.mxu0 %v3838
    %5098 = vmatprep.subr.bf16.mxu0 %v3847
    %5099 = vmatpush1.bf16.msra.mxu0 %v3846
    %5100 = vmatprep.subr.bf16.mxu0 %v3855
    %5101 = vmatpush1.bf16.msra.mxu0 %v3854
    %5102 = vmatprep.mubr.bf16.mxu0 %v1379
    %5103 = vmatmul.mubr.bf16.gmra.mrb[0].mxu0 %v1378
    %v5104 = vpop.f32.mrb[0].mxu0
    %v5105 = vadd.f32 %v5064, %v5104
    %v5106 = vpop.f32.mrb[0].mxu0
    %v5107 = vadd.f32 %v5066, %v5106
    %v5108 = vpop.f32.mrb[0].mxu0
    %v5109 = vpop.f32.mrb[0].mxu0
    %5110 = vdwg.mxu0
    %5111 = vmatprep.subr.bf16.mxu0 %v3863
    %5112 = vmatpush1.bf16.msra.mxu0 %v3862
    %5113 = vmatprep.subr.bf16.mxu0 %v3871
    %5114 = vmatpush1.bf16.msra.mxu0 %v3870
    %5115 = vmatprep.subr.bf16.mxu0 %v3879
    %5116 = vmatpush1.bf16.msra.mxu0 %v3878
    %5117 = vmatprep.subr.bf16.mxu0 %v3887
    %5118 = vmatpush1.bf16.msra.mxu0 %v3886
    %5119 = vmatprep.subr.bf16.mxu0 %v3895
    %5120 = vmatpush1.bf16.msra.mxu0 %v3894
    %5121 = vmatprep.subr.bf16.mxu0 %v3903
    %5122 = vmatpush1.bf16.msra.mxu0 %v3902
    %5123 = vmatprep.subr.bf16.mxu0 %v3911
    %5124 = vmatpush1.bf16.msra.mxu0 %v3910
    %5125 = vmatprep.subr.bf16.mxu0 %v3919
    %5126 = vmatpush1.bf16.msra.mxu0 %v3918
    %5127 = vmatprep.subr.bf16.mxu0 %v3927
    %5128 = vmatpush1.bf16.msra.mxu0 %v3926
    %5129 = vmatprep.subr.bf16.mxu0 %v3935
    %5130 = vmatpush1.bf16.msra.mxu0 %v3934
    %5131 = vmatprep.subr.bf16.mxu0 %v3943
    %5132 = vmatpush1.bf16.msra.mxu0 %v3942
    %5133 = vmatprep.subr.bf16.mxu0 %v3951
    %5134 = vmatpush1.bf16.msra.mxu0 %v3950
    %5135 = vmatprep.subr.bf16.mxu0 %v3959
    %5136 = vmatpush1.bf16.msra.mxu0 %v3958
    %5137 = vmatprep.subr.bf16.mxu0 %v3967
    %5138 = vmatpush1.bf16.msra.mxu0 %v3966
    %5139 = vmatprep.subr.bf16.mxu0 %v3975
    %5140 = vmatpush1.bf16.msra.mxu0 %v3974
    %5141 = vmatprep.subr.bf16.mxu0 %v3983
    %5142 = vmatpush1.bf16.msra.mxu0 %v3982
    %5143 = vmatprep.mubr.bf16.mxu0 %v1381
    %5144 = vmatmul.mubr.bf16.gmra.mrb[0].mxu0 %v1380
    %v5145 = vpop.f32.mrb[0].mxu0
    %v5146 = vadd.f32 %v5105, %v5145
    %v5147 = vpop.f32.mrb[0].mxu0
    %v5148 = vadd.f32 %v5107, %v5147
    %v5149 = vpop.f32.mrb[0].mxu0
    %v5150 = vpop.f32.mrb[0].mxu0
    %5151 = vdwg.mxu0
    %v5152 = vmax.f32 %v4654, %v4982
    %v5153 = vmax.f32 %v4656, %v4984
    %v5154 = vmax.f32 %v4818, %v5146
    %v5155 = vmax.f32 %v4820, %v5148
    %v5156 = vmax.f32 %v5152, 0.0
    %v5157 = vmax.f32 %v5153, 0.0
    %v5158 = vmax.f32 %v5154, 0.0
    %v5159 = vmax.f32 %v5155, 0.0
    %v5160 = vpack.c.bf16 %v5156, %v5156
    %v5161 = vpack.c.bf16 %v5157, %v5157
    %v5162 = vpack.c.bf16 %v5158, %v5158
    %v5163 = vpack.c.bf16 %v5159, %v5159
    %v5164 = vld [vmem:[#allocation11] sm:$0xff]
    %v5165 = vld [vmem:[#allocation11 + $0x8] sm:$0xff]
    %v5166 = vld [vmem:[#allocation11 + $0x10] sm:$0xff]
    %v5167 = vld [vmem:[#allocation11 + $0x18] sm:$0xff]
    %v5168 = vld [vmem:[#allocation11 + $0x20] sm:$0xff]
    %v5169 = vld [vmem:[#allocation11 + $0x28] sm:$0xff]
    %v5170 = vld [vmem:[#allocation11 + $0x30] sm:$0xff]
    %v5171 = vld [vmem:[#allocation11 + $0x38] sm:$0xff]
    %v5172 = vld [vmem:[#allocation11 + $0x40] sm:$0xff]
    %v5173 = vld [vmem:[#allocation11 + $0x48] sm:$0xff]
    %v5174 = vld [vmem:[#allocation11 + $0x50] sm:$0xff]
    %v5175 = vld [vmem:[#allocation11 + $0x58] sm:$0xff]
    %v5176 = vld [vmem:[#allocation11 + $0x60] sm:$0xff]
    %v5177 = vld [vmem:[#allocation11 + $0x68] sm:$0xff]
    %v5178 = vld [vmem:[#allocation11 + $0x70] sm:$0xff]
    %v5179 = vld [vmem:[#allocation11 + $0x78] sm:$0xff]
    %v5180 = vld [vmem:[#allocation11 + $0x80] sm:$0xff]
    %v5181 = vld [vmem:[#allocation11 + $0x88] sm:$0xff]
    %v5182 = vld [vmem:[#allocation11 + $0x90] sm:$0xff]
    %v5183 = vld [vmem:[#allocation11 + $0x98] sm:$0xff]
    %v5184 = vld [vmem:[#allocation11 + $0xa0] sm:$0xff]
    %v5185 = vld [vmem:[#allocation11 + $0xa8] sm:$0xff]
    %v5186 = vld [vmem:[#allocation11 + $0xb0] sm:$0xff]
    %v5187 = vld [vmem:[#allocation11 + $0xb8] sm:$0xff]
    %v5188 = vld [vmem:[#allocation11 + $0xc0] sm:$0xff]
    %v5189 = vld [vmem:[#allocation11 + $0xc8] sm:$0xff]
    %v5190 = vld [vmem:[#allocation11 + $0xd0] sm:$0xff]
    %v5191 = vld [vmem:[#allocation11 + $0xd8] sm:$0xff]
    %v5192 = vld [vmem:[#allocation11 + $0xe0] sm:$0xff]
    %v5193 = vld [vmem:[#allocation11 + $0xe8] sm:$0xff]
    %v5194 = vld [vmem:[#allocation11 + $0xf0] sm:$0xff]
    %v5195 = vld [vmem:[#allocation11 + $0xf8] sm:$0xff]
    %v5196 = vld [vmem:[#allocation11 + $0x100] sm:$0xff]
    %v5197 = vld [vmem:[#allocation11 + $0x108] sm:$0xff]
    %v5198 = vld [vmem:[#allocation11 + $0x110] sm:$0xff]
    %v5199 = vld [vmem:[#allocation11 + $0x118] sm:$0xff]
    %v5200 = vld [vmem:[#allocation11 + $0x120] sm:$0xff]
    %v5201 = vld [vmem:[#allocation11 + $0x128] sm:$0xff]
    %v5202 = vld [vmem:[#allocation11 + $0x130] sm:$0xff]
    %v5203 = vld [vmem:[#allocation11 + $0x138] sm:$0xff]
    %v5204 = vld [vmem:[#allocation11 + $0x140] sm:$0xff]
    %v5205 = vld [vmem:[#allocation11 + $0x148] sm:$0xff]
    %v5206 = vld [vmem:[#allocation11 + $0x150] sm:$0xff]
    %v5207 = vld [vmem:[#allocation11 + $0x158] sm:$0xff]
    %v5208 = vld [vmem:[#allocation11 + $0x160] sm:$0xff]
    %v5209 = vld [vmem:[#allocation11 + $0x168] sm:$0xff]
    %v5210 = vld [vmem:[#allocation11 + $0x170] sm:$0xff]
    %v5211 = vld [vmem:[#allocation11 + $0x178] sm:$0xff]
    %v5212 = vld [vmem:[#allocation11 + $0x180] sm:$0xff]
    %v5213 = vld [vmem:[#allocation11 + $0x188] sm:$0xff]
    %v5214 = vld [vmem:[#allocation11 + $0x190] sm:$0xff]
    %v5215 = vld [vmem:[#allocation11 + $0x198] sm:$0xff]
    %v5216 = vld [vmem:[#allocation11 + $0x1a0] sm:$0xff]
    %v5217 = vld [vmem:[#allocation11 + $0x1a8] sm:$0xff]
    %v5218 = vld [vmem:[#allocation11 + $0x1b0] sm:$0xff]
    %v5219 = vld [vmem:[#allocation11 + $0x1b8] sm:$0xff]
    %v5220 = vld [vmem:[#allocation11 + $0x1c0] sm:$0xff]
    %v5221 = vld [vmem:[#allocation11 + $0x1c8] sm:$0xff]
    %v5222 = vld [vmem:[#allocation11 + $0x1d0] sm:$0xff]
    %v5223 = vld [vmem:[#allocation11 + $0x1d8] sm:$0xff]
    %v5224 = vld [vmem:[#allocation11 + $0x1e0] sm:$0xff]
    %v5225 = vld [vmem:[#allocation11 + $0x1e8] sm:$0xff]
    %v5226 = vld [vmem:[#allocation11 + $0x1f0] sm:$0xff]
    %v5227 = vld [vmem:[#allocation11 + $0x1f8] sm:$0xff]
    %v5228 = vld [vmem:[#allocation13] sm:$0x3]
    %v5230 = vlaneseq
    %v5231 = vshrl.u32 %v5230, 7
    %v5232 = vsub.s32 0, %v5231
    %v5233 = vrot.slane %v5228, %v5232
    %v5234 = vlaneseq
    %v5235 = vshrl.u32 %v5234, 7
    %v5236 = vsub.s32 1, %v5235
    %v5237 = vrot.slane %v5228, %v5236
    %v5304 = vunpack.c.l.b16 %v5164
    %v5305 = vunpack.c.h.b16 %v5164
    %v5306 = vunpack.c.l.b16 %v5165
    %v5307 = vunpack.c.h.b16 %v5165
    %v5308 = vunpack.c.l.b16 %v5166
    %v5309 = vunpack.c.h.b16 %v5166
    %v5310 = vunpack.c.l.b16 %v5167
    %v5311 = vunpack.c.h.b16 %v5167
    %v5312 = vunpack.c.l.b16 %v5168
    %v5313 = vunpack.c.h.b16 %v5168
    %v5314 = vunpack.c.l.b16 %v5169
    %v5315 = vunpack.c.h.b16 %v5169
    %v5316 = vunpack.c.l.b16 %v5170
    %v5317 = vunpack.c.h.b16 %v5170
    %v5318 = vunpack.c.l.b16 %v5171
    %v5319 = vunpack.c.h.b16 %v5171
    %v5320 = vunpack.c.l.b16 %v5172
    %v5321 = vunpack.c.h.b16 %v5172
    %v5322 = vunpack.c.l.b16 %v5173
    %v5323 = vunpack.c.h.b16 %v5173
    %v5324 = vunpack.c.l.b16 %v5174
    %v5325 = vunpack.c.h.b16 %v5174
    %v5326 = vunpack.c.l.b16 %v5175
    %v5327 = vunpack.c.h.b16 %v5175
    %v5328 = vunpack.c.l.b16 %v5176
    %v5329 = vunpack.c.h.b16 %v5176
    %v5330 = vunpack.c.l.b16 %v5177
    %v5331 = vunpack.c.h.b16 %v5177
    %v5332 = vunpack.c.l.b16 %v5178
    %v5333 = vunpack.c.h.b16 %v5178
    %v5334 = vunpack.c.l.b16 %v5179
    %v5335 = vunpack.c.h.b16 %v5179
    %v5336 = vunpack.c.l.b16 %v5180
    %v5337 = vunpack.c.h.b16 %v5180
    %v5338 = vunpack.c.l.b16 %v5181
    %v5339 = vunpack.c.h.b16 %v5181
    %v5340 = vunpack.c.l.b16 %v5182
    %v5341 = vunpack.c.h.b16 %v5182
    %v5342 = vunpack.c.l.b16 %v5183
    %v5343 = vunpack.c.h.b16 %v5183
    %v5344 = vunpack.c.l.b16 %v5184
    %v5345 = vunpack.c.h.b16 %v5184
    %v5346 = vunpack.c.l.b16 %v5185
    %v5347 = vunpack.c.h.b16 %v5185
    %v5348 = vunpack.c.l.b16 %v5186
    %v5349 = vunpack.c.h.b16 %v5186
    %v5350 = vunpack.c.l.b16 %v5187
    %v5351 = vunpack.c.h.b16 %v5187
    %v5352 = vunpack.c.l.b16 %v5188
    %v5353 = vunpack.c.h.b16 %v5188
    %v5354 = vunpack.c.l.b16 %v5189
    %v5355 = vunpack.c.h.b16 %v5189
    %v5356 = vunpack.c.l.b16 %v5190
    %v5357 = vunpack.c.h.b16 %v5190
    %v5358 = vunpack.c.l.b16 %v5191
    %v5359 = vunpack.c.h.b16 %v5191
    %v5360 = vunpack.c.l.b16 %v5192
    %v5361 = vunpack.c.h.b16 %v5192
    %v5362 = vunpack.c.l.b16 %v5193
    %v5363 = vunpack.c.h.b16 %v5193
    %v5364 = vunpack.c.l.b16 %v5194
    %v5365 = vunpack.c.h.b16 %v5194
    %v5366 = vunpack.c.l.b16 %v5195
    %v5367 = vunpack.c.h.b16 %v5195
    %v5368 = vunpack.c.l.b16 %v5196
    %v5369 = vunpack.c.h.b16 %v5196
    %v5370 = vunpack.c.l.b16 %v5197
    %v5371 = vunpack.c.h.b16 %v5197
    %v5372 = vunpack.c.l.b16 %v5198
    %v5373 = vunpack.c.h.b16 %v5198
    %v5374 = vunpack.c.l.b16 %v5199
    %v5375 = vunpack.c.h.b16 %v5199
    %v5376 = vunpack.c.l.b16 %v5200
    %v5377 = vunpack.c.h.b16 %v5200
    %v5378 = vunpack.c.l.b16 %v5201
    %v5379 = vunpack.c.h.b16 %v5201
    %v5380 = vunpack.c.l.b16 %v5202
    %v5381 = vunpack.c.h.b16 %v5202
    %v5382 = vunpack.c.l.b16 %v5203
    %v5383 = vunpack.c.h.b16 %v5203
    %v5384 = vunpack.c.l.b16 %v5204
    %v5385 = vunpack.c.h.b16 %v5204
    %v5386 = vunpack.c.l.b16 %v5205
    %v5387 = vunpack.c.h.b16 %v5205
    %v5388 = vunpack.c.l.b16 %v5206
    %v5389 = vunpack.c.h.b16 %v5206
    %v5390 = vunpack.c.l.b16 %v5207
    %v5391 = vunpack.c.h.b16 %v5207
    %v5392 = vunpack.c.l.b16 %v5208
    %v5393 = vunpack.c.h.b16 %v5208
    %v5394 = vunpack.c.l.b16 %v5209
    %v5395 = vunpack.c.h.b16 %v5209
    %v5396 = vunpack.c.l.b16 %v5210
    %v5397 = vunpack.c.h.b16 %v5210
    %v5398 = vunpack.c.l.b16 %v5211
    %v5399 = vunpack.c.h.b16 %v5211
    %v5400 = vunpack.c.l.b16 %v5212
    %v5401 = vunpack.c.h.b16 %v5212
    %v5402 = vunpack.c.l.b16 %v5213
    %v5403 = vunpack.c.h.b16 %v5213
    %v5404 = vunpack.c.l.b16 %v5214
    %v5405 = vunpack.c.h.b16 %v5214
    %v5406 = vunpack.c.l.b16 %v5215
    %v5407 = vunpack.c.h.b16 %v5215
    %v5408 = vunpack.c.l.b16 %v5216
    %v5409 = vunpack.c.h.b16 %v5216
    %v5410 = vunpack.c.l.b16 %v5217
    %v5411 = vunpack.c.h.b16 %v5217
    %v5412 = vunpack.c.l.b16 %v5218
    %v5413 = vunpack.c.h.b16 %v5218
    %v5414 = vunpack.c.l.b16 %v5219
    %v5415 = vunpack.c.h.b16 %v5219
    %v5416 = vunpack.c.l.b16 %v5220
    %v5417 = vunpack.c.h.b16 %v5220
    %v5418 = vunpack.c.l.b16 %v5221
    %v5419 = vunpack.c.h.b16 %v5221
    %v5420 = vunpack.c.l.b16 %v5222
    %v5421 = vunpack.c.h.b16 %v5222
    %v5422 = vunpack.c.l.b16 %v5223
    %v5423 = vunpack.c.h.b16 %v5223
    %v5424 = vunpack.c.l.b16 %v5224
    %v5425 = vunpack.c.h.b16 %v5224
    %v5426 = vunpack.c.l.b16 %v5225
    %v5427 = vunpack.c.h.b16 %v5225
    %v5428 = vunpack.c.l.b16 %v5226
    %v5429 = vunpack.c.h.b16 %v5226
    %v5430 = vunpack.c.l.b16 %v5227
    %v5431 = vunpack.c.h.b16 %v5227
    %v5432 = vpack.c.b16 %v5306, %v5304
    %v5433 = vpack.c.b16 %v5307, %v5305
    %v5434 = vpack.c.b16 %v5310, %v5308
    %v5435 = vpack.c.b16 %v5311, %v5309
    %v5436 = vpack.c.b16 %v5314, %v5312
    %v5437 = vpack.c.b16 %v5315, %v5313
    %v5438 = vpack.c.b16 %v5318, %v5316
    %v5439 = vpack.c.b16 %v5319, %v5317
    %v5440 = vpack.c.b16 %v5322, %v5320
    %v5441 = vpack.c.b16 %v5323, %v5321
    %v5442 = vpack.c.b16 %v5326, %v5324
    %v5443 = vpack.c.b16 %v5327, %v5325
    %v5444 = vpack.c.b16 %v5330, %v5328
    %v5445 = vpack.c.b16 %v5331, %v5329
    %v5446 = vpack.c.b16 %v5334, %v5332
    %v5447 = vpack.c.b16 %v5335, %v5333
    %v5448 = vpack.c.b16 %v5338, %v5336
    %v5449 = vpack.c.b16 %v5339, %v5337
    %v5450 = vpack.c.b16 %v5342, %v5340
    %v5451 = vpack.c.b16 %v5343, %v5341
    %v5452 = vpack.c.b16 %v5346, %v5344
    %v5453 = vpack.c.b16 %v5347, %v5345
    %v5454 = vpack.c.b16 %v5350, %v5348
    %v5455 = vpack.c.b16 %v5351, %v5349
    %v5456 = vpack.c.b16 %v5354, %v5352
    %v5457 = vpack.c.b16 %v5355, %v5353
    %v5458 = vpack.c.b16 %v5358, %v5356
    %v5459 = vpack.c.b16 %v5359, %v5357
    %v5460 = vpack.c.b16 %v5362, %v5360
    %v5461 = vpack.c.b16 %v5363, %v5361
    %v5462 = vpack.c.b16 %v5366, %v5364
    %v5463 = vpack.c.b16 %v5367, %v5365
    %v5464 = vpack.c.b16 %v5370, %v5368
    %v5465 = vpack.c.b16 %v5371, %v5369
    %v5466 = vpack.c.b16 %v5374, %v5372
    %v5467 = vpack.c.b16 %v5375, %v5373
    %v5468 = vpack.c.b16 %v5378, %v5376
    %v5469 = vpack.c.b16 %v5379, %v5377
    %v5470 = vpack.c.b16 %v5382, %v5380
    %v5471 = vpack.c.b16 %v5383, %v5381
    %v5472 = vpack.c.b16 %v5386, %v5384
    %v5473 = vpack.c.b16 %v5387, %v5385
    %v5474 = vpack.c.b16 %v5390, %v5388
    %v5475 = vpack.c.b16 %v5391, %v5389
    %v5476 = vpack.c.b16 %v5394, %v5392
    %v5477 = vpack.c.b16 %v5395, %v5393
    %v5478 = vpack.c.b16 %v5398, %v5396
    %v5479 = vpack.c.b16 %v5399, %v5397
    %v5480 = vpack.c.b16 %v5402, %v5400
    %v5481 = vpack.c.b16 %v5403, %v5401
    %v5482 = vpack.c.b16 %v5406, %v5404
    %v5483 = vpack.c.b16 %v5407, %v5405
    %v5484 = vpack.c.b16 %v5410, %v5408
    %v5485 = vpack.c.b16 %v5411, %v5409
    %v5486 = vpack.c.b16 %v5414, %v5412
    %v5487 = vpack.c.b16 %v5415, %v5413
    %v5488 = vpack.c.b16 %v5418, %v5416
    %v5489 = vpack.c.b16 %v5419, %v5417
    %v5490 = vpack.c.b16 %v5422, %v5420
    %v5491 = vpack.c.b16 %v5423, %v5421
    %v5492 = vpack.c.b16 %v5426, %v5424
    %v5493 = vpack.c.b16 %v5427, %v5425
    %v5494 = vpack.c.b16 %v5430, %v5428
    %v5495 = vpack.c.b16 %v5431, %v5429
    %5560 = vmatprep.subr.bf16.mxu0 %v5433
    %5561 = vmatpush1.bf16.msra.mxu0 %v5432
    %5562 = vmatprep.subr.bf16.mxu0 %v5435
    %5563 = vmatpush1.bf16.msra.mxu0 %v5434
    %5564 = vmatprep.subr.bf16.mxu0 %v5437
    %5565 = vmatpush1.bf16.msra.mxu0 %v5436
    %5566 = vmatprep.subr.bf16.mxu0 %v5439
    %5567 = vmatpush1.bf16.msra.mxu0 %v5438
    %5568 = vmatprep.subr.bf16.mxu0 %v5441
    %5569 = vmatpush1.bf16.msra.mxu0 %v5440
    %5570 = vmatprep.subr.bf16.mxu0 %v5443
    %5571 = vmatpush1.bf16.msra.mxu0 %v5442
    %5572 = vmatprep.subr.bf16.mxu0 %v5445
    %5573 = vmatpush1.bf16.msra.mxu0 %v5444
    %5574 = vmatprep.subr.bf16.mxu0 %v5447
    %5575 = vmatpush1.bf16.msra.mxu0 %v5446
    %5576 = vmatprep.subr.bf16.mxu0 %v5449
    %5577 = vmatpush1.bf16.msra.mxu0 %v5448
    %5578 = vmatprep.subr.bf16.mxu0 %v5451
    %5579 = vmatpush1.bf16.msra.mxu0 %v5450
    %5580 = vmatprep.subr.bf16.mxu0 %v5453
    %5581 = vmatpush1.bf16.msra.mxu0 %v5452
    %5582 = vmatprep.subr.bf16.mxu0 %v5455
    %5583 = vmatpush1.bf16.msra.mxu0 %v5454
    %5584 = vmatprep.subr.bf16.mxu0 %v5457
    %5585 = vmatpush1.bf16.msra.mxu0 %v5456
    %5586 = vmatprep.subr.bf16.mxu0 %v5459
    %5587 = vmatpush1.bf16.msra.mxu0 %v5458
    %5588 = vmatprep.subr.bf16.mxu0 %v5461
    %5589 = vmatpush1.bf16.msra.mxu0 %v5460
    %5590 = vmatprep.subr.bf16.mxu0 %v5463
    %5591 = vmatpush1.bf16.msra.mxu0 %v5462
    %5592 = vmatprep.mubr.bf16.mxu0 %v5161
    %5593 = vmatmul.mubr.bf16.gmra.mrb[0].mxu0 %v5160
    %v5594 = vpop.f32.mrb[0].mxu0
    %v5595 = vadd.f32 %v5233, %v5594
    %v5596 = vpop.f32.mrb[0].mxu0
    %v5597 = vadd.f32 %v5237, %v5596
    %v5598 = vpop.f32.mrb[0].mxu0
    %v5599 = vpop.f32.mrb[0].mxu0
    %5600 = vdwg.mxu0
    %5601 = vmatprep.subr.bf16.mxu0 %v5465
    %5602 = vmatpush1.bf16.msra.mxu0 %v5464
    %5603 = vmatprep.subr.bf16.mxu0 %v5467
    %5604 = vmatpush1.bf16.msra.mxu0 %v5466
    %5605 = vmatprep.subr.bf16.mxu0 %v5469
    %5606 = vmatpush1.bf16.msra.mxu0 %v5468
    %5607 = vmatprep.subr.bf16.mxu0 %v5471
    %5608 = vmatpush1.bf16.msra.mxu0 %v5470
    %5609 = vmatprep.subr.bf16.mxu0 %v5473
    %5610 = vmatpush1.bf16.msra.mxu0 %v5472
    %5611 = vmatprep.subr.bf16.mxu0 %v5475
    %5612 = vmatpush1.bf16.msra.mxu0 %v5474
    %5613 = vmatprep.subr.bf16.mxu0 %v5477
    %5614 = vmatpush1.bf16.msra.mxu0 %v5476
    %5615 = vmatprep.subr.bf16.mxu0 %v5479
    %5616 = vmatpush1.bf16.msra.mxu0 %v5478
    %5617 = vmatprep.subr.bf16.mxu0 %v5481
    %5618 = vmatpush1.bf16.msra.mxu0 %v5480
    %5619 = vmatprep.subr.bf16.mxu0 %v5483
    %5620 = vmatpush1.bf16.msra.mxu0 %v5482
    %5621 = vmatprep.subr.bf16.mxu0 %v5485
    %5622 = vmatpush1.bf16.msra.mxu0 %v5484
    %5623 = vmatprep.subr.bf16.mxu0 %v5487
    %5624 = vmatpush1.bf16.msra.mxu0 %v5486
    %5625 = vmatprep.subr.bf16.mxu0 %v5489
    %5626 = vmatpush1.bf16.msra.mxu0 %v5488
    %5627 = vmatprep.subr.bf16.mxu0 %v5491
    %5628 = vmatpush1.bf16.msra.mxu0 %v5490
    %5629 = vmatprep.subr.bf16.mxu0 %v5493
    %5630 = vmatpush1.bf16.msra.mxu0 %v5492
    %5631 = vmatprep.subr.bf16.mxu0 %v5495
    %5632 = vmatpush1.bf16.msra.mxu0 %v5494
    %5633 = vmatprep.mubr.bf16.mxu0 %v5163
    %5634 = vmatmul.mubr.bf16.gmra.mrb[0].mxu0 %v5162
    %v5635 = vpop.f32.mrb[0].mxu0
    %v5636 = vadd.f32 %v5595, %v5635
    %v5637 = vpop.f32.mrb[0].mxu0
    %v5638 = vadd.f32 %v5597, %v5637
    %v5639 = vpop.f32.mrb[0].mxu0
    %v5640 = vpop.f32.mrb[0].mxu0
    %5641 = vdwg.mxu0
    %v5642 = vmax.f32 %v5636, 0.0
    %v5643 = vmax.f32 %v5638, 0.0
    %v5644 = vpack.c.bf16 %v5642, %v5642
    %v5645 = vpack.c.bf16 %v5643, %v5643
    %v5646 = vld [vmem:[#allocation14] sm:$0xf]
    %v5647 = vld [vmem:[#allocation14 + $0x4] sm:$0xf]
    %v5648 = vld [vmem:[#allocation14 + $0x8] sm:$0xf]
    %v5649 = vld [vmem:[#allocation14 + $0xc] sm:$0xf]
    %v5650 = vld [vmem:[#allocation14 + $0x10] sm:$0xf]
    %v5651 = vld [vmem:[#allocation14 + $0x14] sm:$0xf]
    %v5652 = vld [vmem:[#allocation14 + $0x18] sm:$0xf]
    %v5653 = vld [vmem:[#allocation14 + $0x1c] sm:$0xf]
    %v5654 = vld [vmem:[#allocation14 + $0x20] sm:$0xf]
    %v5655 = vld [vmem:[#allocation14 + $0x24] sm:$0xf]
    %v5656 = vld [vmem:[#allocation14 + $0x28] sm:$0xf]
    %v5657 = vld [vmem:[#allocation14 + $0x2c] sm:$0xf]
    %v5658 = vld [vmem:[#allocation14 + $0x30] sm:$0xf]
    %v5659 = vld [vmem:[#allocation14 + $0x34] sm:$0xf]
    %v5660 = vld [vmem:[#allocation14 + $0x38] sm:$0xf]
    %v5661 = vld [vmem:[#allocation14 + $0x3c] sm:$0xf]
    %v5662 = vld [vmem:[#allocation14 + $0x40] sm:$0xf]
    %v5663 = vld [vmem:[#allocation14 + $0x44] sm:$0xf]
    %v5664 = vld [vmem:[#allocation14 + $0x48] sm:$0xf]
    %v5665 = vld [vmem:[#allocation14 + $0x4c] sm:$0xf]
    %v5666 = vld [vmem:[#allocation14 + $0x50] sm:$0xf]
    %v5667 = vld [vmem:[#allocation14 + $0x54] sm:$0xf]
    %v5668 = vld [vmem:[#allocation14 + $0x58] sm:$0xf]
    %v5669 = vld [vmem:[#allocation14 + $0x5c] sm:$0xf]
    %v5670 = vld [vmem:[#allocation14 + $0x60] sm:$0xf]
    %v5671 = vld [vmem:[#allocation14 + $0x64] sm:$0xf]
    %v5672 = vld [vmem:[#allocation14 + $0x68] sm:$0xf]
    %v5673 = vld [vmem:[#allocation14 + $0x6c] sm:$0xf]
    %v5674 = vld [vmem:[#allocation14 + $0x70] sm:$0xf]
    %v5675 = vld [vmem:[#allocation14 + $0x74] sm:$0xf]
    %v5676 = vld [vmem:[#allocation14 + $0x78] sm:$0xf]
    %v5677 = vld [vmem:[#allocation14 + $0x7c] sm:$0xf]
    %v5678 = vld [vmem:[#allocation16] sm:$0x1]
    %v5680 = vlaneseq
    %v5681 = vshrl.u32 %v5680, 7
    %v5682 = vsub.s32 0, %v5681
    %v5683 = vrot.slane %v5678, %v5682
    %v5717 = vunpack.c.l.b16 %v5646
    %v5718 = vunpack.c.l.b16 %v5647
    %v5719 = vunpack.c.l.b16 %v5648
    %v5720 = vunpack.c.l.b16 %v5649
    %v5721 = vunpack.c.l.b16 %v5650
    %v5722 = vunpack.c.l.b16 %v5651
    %v5723 = vunpack.c.l.b16 %v5652
    %v5724 = vunpack.c.l.b16 %v5653
    %v5725 = vunpack.c.l.b16 %v5654
    %v5726 = vunpack.c.l.b16 %v5655
    %v5727 = vunpack.c.l.b16 %v5656
    %v5728 = vunpack.c.l.b16 %v5657
    %v5729 = vunpack.c.l.b16 %v5658
    %v5730 = vunpack.c.l.b16 %v5659
    %v5731 = vunpack.c.l.b16 %v5660
    %v5732 = vunpack.c.l.b16 %v5661
    %v5733 = vunpack.c.l.b16 %v5662
    %v5734 = vunpack.c.l.b16 %v5663
    %v5735 = vunpack.c.l.b16 %v5664
    %v5736 = vunpack.c.l.b16 %v5665
    %v5737 = vunpack.c.l.b16 %v5666
    %v5738 = vunpack.c.l.b16 %v5667
    %v5739 = vunpack.c.l.b16 %v5668
    %v5740 = vunpack.c.l.b16 %v5669
    %v5741 = vunpack.c.l.b16 %v5670
    %v5742 = vunpack.c.l.b16 %v5671
    %v5743 = vunpack.c.l.b16 %v5672
    %v5744 = vunpack.c.l.b16 %v5673
    %v5745 = vunpack.c.l.b16 %v5674
    %v5746 = vunpack.c.l.b16 %v5675
    %v5747 = vunpack.c.l.b16 %v5676
    %v5748 = vunpack.c.l.b16 %v5677
    %v5749 = vpack.c.b16 %v5718, %v5717
    %v5750 = vpack.c.b16 %v5720, %v5719
    %v5751 = vpack.c.b16 %v5722, %v5721
    %v5752 = vpack.c.b16 %v5724, %v5723
    %v5753 = vpack.c.b16 %v5726, %v5725
    %v5754 = vpack.c.b16 %v5728, %v5727
    %v5755 = vpack.c.b16 %v5730, %v5729
    %v5756 = vpack.c.b16 %v5732, %v5731
    %v5757 = vpack.c.b16 %v5734, %v5733
    %v5758 = vpack.c.b16 %v5736, %v5735
    %v5759 = vpack.c.b16 %v5738, %v5737
    %v5760 = vpack.c.b16 %v5740, %v5739
    %v5761 = vpack.c.b16 %v5742, %v5741
    %v5762 = vpack.c.b16 %v5744, %v5743
    %v5763 = vpack.c.b16 %v5746, %v5745
    %v5764 = vpack.c.b16 %v5748, %v5747
    %5781 = vmatprep.subr.bf16.mxu0 0
    %5782 = vmatpush1.bf16.msra.mxu0 %v5749
    %5783 = vmatprep.subr.bf16.mxu0 0
    %5784 = vmatpush1.bf16.msra.mxu0 %v5750
    %5785 = vmatprep.subr.bf16.mxu0 0
    %5786 = vmatpush1.bf16.msra.mxu0 %v5751
    %5787 = vmatprep.subr.bf16.mxu0 0
    %5788 = vmatpush1.bf16.msra.mxu0 %v5752
    %5789 = vmatprep.subr.bf16.mxu0 0
    %5790 = vmatpush1.bf16.msra.mxu0 %v5753
    %5791 = vmatprep.subr.bf16.mxu0 0
    %5792 = vmatpush1.bf16.msra.mxu0 %v5754
    %5793 = vmatprep.subr.bf16.mxu0 0
    %5794 = vmatpush1.bf16.msra.mxu0 %v5755
    %5795 = vmatprep.subr.bf16.mxu0 0
    %5796 = vmatpush1.bf16.msra.mxu0 %v5756
    %5797 = vmatprep.subr.bf16.mxu0 0
    %5798 = vmatpush1.bf16.msra.mxu0 %v5757
    %5799 = vmatprep.subr.bf16.mxu0 0
    %5800 = vmatpush1.bf16.msra.mxu0 %v5758
    %5801 = vmatprep.subr.bf16.mxu0 0
    %5802 = vmatpush1.bf16.msra.mxu0 %v5759
    %5803 = vmatprep.subr.bf16.mxu0 0
    %5804 = vmatpush1.bf16.msra.mxu0 %v5760
    %5805 = vmatprep.subr.bf16.mxu0 0
    %5806 = vmatpush1.bf16.msra.mxu0 %v5761
    %5807 = vmatprep.subr.bf16.mxu0 0
    %5808 = vmatpush1.bf16.msra.mxu0 %v5762
    %5809 = vmatprep.subr.bf16.mxu0 0
    %5810 = vmatpush1.bf16.msra.mxu0 %v5763
    %5811 = vmatprep.subr.bf16.mxu0 0
    %5812 = vmatpush1.bf16.msra.mxu0 %v5764
    %5813 = vmatprep.mubr.bf16.mxu0 %v5645
    %5814 = vmatmul.mubr.bf16.gmra.mrb[0].mxu0 %v5644
    %v5815 = vpop.f32.mrb[0].mxu0
    %v5816 = vadd.f32 %v5683, %v5815
    %v5817 = vpop.f32.mrb[0].mxu0
    %v5818 = vpop.f32.mrb[0].mxu0
    %v5819 = vpop.f32.mrb[0].mxu0
    %5820 = vdwg.mxu0
    %v5821 = vmax.f32 %v5816, 0.0
    %v5822 = vpack.c.bf16 %v5821, %v5821
    %v5823 = vld [vmem:[#allocation17] sm:$0xf]
    %v5824 = vld [vmem:[#allocation17 + $0x4] sm:$0xf]
    %v5825 = vld [vmem:[#allocation17 + $0x8] sm:$0xf]
    %v5826 = vld [vmem:[#allocation17 + $0xc] sm:$0xf]
    %v5827 = vld [vmem:[#allocation17 + $0x10] sm:$0xf]
    %v5828 = vld [vmem:[#allocation17 + $0x14] sm:$0xf]
    %v5829 = vld [vmem:[#allocation17 + $0x18] sm:$0xf]
    %v5830 = vld [vmem:[#allocation17 + $0x1c] sm:$0xf]
    %v5831 = vld [vmem:[#allocation17 + $0x20] sm:$0xf]
    %v5832 = vld [vmem:[#allocation17 + $0x24] sm:$0xf]
    %v5833 = vld [vmem:[#allocation17 + $0x28] sm:$0xf]
    %v5834 = vld [vmem:[#allocation17 + $0x2c] sm:$0xf]
    %v5835 = vld [vmem:[#allocation17 + $0x30] sm:$0xf]
    %v5836 = vld [vmem:[#allocation17 + $0x34] sm:$0xf]
    %v5837 = vld [vmem:[#allocation17 + $0x38] sm:$0xf]
    %v5838 = vld [vmem:[#allocation17 + $0x3c] sm:$0xf]
    %v5839 = vld [vmem:[#allocation19] sm:$0x1]
    %v5841 = vlaneseq
    %v5842 = vshrl.u32 %v5841, 7
    %v5843 = vsub.s32 0, %v5842
    %v5844 = vrot.slane %v5839, %v5843
    %v5862 = vunpack.c.l.b16 %v5823
    %v5863 = vunpack.c.l.b16 %v5824
    %v5864 = vunpack.c.l.b16 %v5825
    %v5865 = vunpack.c.l.b16 %v5826
    %v5866 = vunpack.c.l.b16 %v5827
    %v5867 = vunpack.c.l.b16 %v5828
    %v5868 = vunpack.c.l.b16 %v5829
    %v5869 = vunpack.c.l.b16 %v5830
    %v5870 = vunpack.c.l.b16 %v5831
    %v5871 = vunpack.c.l.b16 %v5832
    %v5872 = vunpack.c.l.b16 %v5833
    %v5873 = vunpack.c.l.b16 %v5834
    %v5874 = vunpack.c.l.b16 %v5835
    %v5875 = vunpack.c.l.b16 %v5836
    %v5876 = vunpack.c.l.b16 %v5837
    %v5877 = vunpack.c.l.b16 %v5838
    %v5878 = vpack.c.b16 %v5863, %v5862
    %v5879 = vpack.c.b16 %v5865, %v5864
    %v5880 = vpack.c.b16 %v5867, %v5866
    %v5881 = vpack.c.b16 %v5869, %v5868
    %v5882 = vpack.c.b16 %v5871, %v5870
    %v5883 = vpack.c.b16 %v5873, %v5872
    %v5884 = vpack.c.b16 %v5875, %v5874
    %v5885 = vpack.c.b16 %v5877, %v5876
    %5894 = vmatprep.subr.bf16.mxu0 0
    %5895 = vmatpush1.bf16.msra.mxu0 %v5878
    %5896 = vmatprep.subr.bf16.mxu0 0
    %5897 = vmatpush1.bf16.msra.mxu0 %v5879
    %5898 = vmatprep.subr.bf16.mxu0 0
    %5899 = vmatpush1.bf16.msra.mxu0 %v5880
    %5900 = vmatprep.subr.bf16.mxu0 0
    %5901 = vmatpush1.bf16.msra.mxu0 %v5881
    %5902 = vmatprep.subr.bf16.mxu0 0
    %5903 = vmatpush1.bf16.msra.mxu0 %v5882
    %5904 = vmatprep.subr.bf16.mxu0 0
    %5905 = vmatpush1.bf16.msra.mxu0 %v5883
    %5906 = vmatprep.subr.bf16.mxu0 0
    %5907 = vmatpush1.bf16.msra.mxu0 %v5884
    %5908 = vmatprep.subr.bf16.mxu0 0
    %5909 = vmatpush1.bf16.msra.mxu0 %v5885
    %5910 = vmatprep.subr.bf16.mxu0 0
    %5911 = vmatpush1.bf16.msra.mxu0 0
    %5912 = vmatprep.subr.bf16.mxu0 0
    %5913 = vmatpush1.bf16.msra.mxu0 0
    %5914 = vmatprep.subr.bf16.mxu0 0
    %5915 = vmatpush1.bf16.msra.mxu0 0
    %5916 = vmatprep.subr.bf16.mxu0 0
    %5917 = vmatpush1.bf16.msra.mxu0 0
    %5918 = vmatprep.subr.bf16.mxu0 0
    %5919 = vmatpush1.bf16.msra.mxu0 0
    %5920 = vmatprep.subr.bf16.mxu0 0
    %5921 = vmatpush1.bf16.msra.mxu0 0
    %5922 = vmatprep.subr.bf16.mxu0 0
    %5923 = vmatpush1.bf16.msra.mxu0 0
    %5924 = vmatprep.subr.bf16.mxu0 0
    %5925 = vmatpush1.bf16.msra.mxu0 0
    %5926 = vmatprep.mubr.bf16.mxu0 0
    %5927 = vmatmul.mubr.bf16.gmra.mrb[0].mxu0 %v5822
    %v5928 = vpop.f32.mrb[0].mxu0
    %v5929 = vadd.f32 %v5844, %v5928
    %v5930 = vpop.f32.mrb[0].mxu0
    %v5931 = vpop.f32.mrb[0].mxu0
    %v5932 = vpop.f32.mrb[0].mxu0
    %5933 = vdwg.mxu0
    %v5934 = vxor.u32 %v5929, 2147483648
    %v5935 = vmul.f32 %v5934, 1.442695
    %v5936 = vpow.pop %v5935
    %v5937 = vadd.f32 %v5936, 1.0
    %v5938 = vrcp.pop %v5937
    %v5939 = vmul.f32 1.0, %v5938
    %5940 = vst [vmem:[#allocation20] sm:$0xff] %v5939
    // Predicated region
    $region90: #{tpu_custom_call.1} parent=1 // pred_check
      _
    $region91: #{tpu_custom_call.1} parent=1 // pred_check_branch
      %5942 = sbr.rel (0) target = $region93
    $region92: #{tpu_custom_call.1} parent=1 // pred_region
      %s5944 = ssub.s32 128, 128
      %5945 = vsyncadd [#allocation4], %s5944
      %s5947 = sshll.u32 [#allocation20], 4
      %s5948 = int_to_ptr.vmem [resolvable:$true] %s5947
      %5950 = dma.vmem_to_hbm [thread:$0]  %s5948, 128, %s11, [#allocation4]
    $region93: #{tpu_custom_call.1} parent=1 // pred_fallthru
      _
    // Predicated region
    $region94: #{tpu_custom_call.1} parent=1 // pred_check
      _
    $region95: #{tpu_custom_call.1} parent=1 // pred_check_branch
      %5952 = sbr.rel (0) target = $region97
    $region96: #{tpu_custom_call.1} parent=1 // pred_region
      %5953 = dma.done [#allocation4], 128
    $region97: #{tpu_custom_call.1} parent=1 // pred_fallthru
      _
    %5954 = vsyncpa [#allocation3], 1
    %5955 = vsyncpa [#allocation6], 1
    %5956 = vsyncpa [#allocation9], 1
    %5957 = vsyncpa [#allocation12], 1
    %5958 = vsyncpa [#allocation15], 1
    %5959 = vsyncpa [#allocation18], 1
    %5960 = vsyncpa [#allocation4], 1

</llo_original>
